<compile_context>
chip_gen: v6e
topology: v6e:2x2x1
jax: 0.10.0
libtpu: 0.0.40
codegen_flags: <defaults>
</compile_context>

<pallas_src>
import math
from functools import partial

import jax
import jax.numpy as jnp
from jax.experimental import pallas as pl
from jax.experimental.pallas import tpu as pltpu


def _default_vmem_limit():
    try:
        cap = pltpu.get_tpu_info().vmem_capacity_bytes
        return min(int(cap * 3 // 4), 100 * 1024 * 1024)
    except Exception:
        return 48 * 1024 * 1024


_VMEM_LIMIT_BYTES = _default_vmem_limit()


def _silu(y):
    # exp and the approximate reciprocal both ride the EUP slot; the VALU only
    # sees the bias add / mul in the matmul shadow.
    return y * pl.reciprocal(1.0 + jnp.exp(-y), approx=True)


# -----------------------------------------------------------------------------
# Kernel 1: fused cv1 + cv2 pointwise conv.  One read of x, two matmuls, two
# SEPARATE outputs (no post-kernel column slice).
# -----------------------------------------------------------------------------
def _cv12_kernel(x_ref, w1_ref, w2_ref, b1_ref, b2_ref, o1_ref, o2_ref):
    x = x_ref[...]                                   # read x once per block
    y1 = jnp.dot(x, w1_ref[...], preferred_element_type=jnp.float32) + b1_ref[...]
    y2 = jnp.dot(x, w2_ref[...], preferred_element_type=jnp.float32) + b2_ref[...]
    o1_ref[...] = _silu(y1).astype(o1_ref.dtype)
    o2_ref[...] = _silu(y2).astype(o2_ref.dtype)


# -----------------------------------------------------------------------------
# Kernel 2: fused channel-concat + 1x1 "out" conv: SiLU(sum_i x_i @ w_i + b).
# The concatenated tensor never hits HBM.
# -----------------------------------------------------------------------------
def _concat_pointwise_kernel(n_parts, *refs):
    x_refs = refs[:n_parts]
    w_refs = refs[n_parts:2 * n_parts]
    bias_ref = refs[2 * n_parts]
    o_ref = refs[2 * n_parts + 1]
    acc = jnp.dot(x_refs[0][...], w_refs[0][...],
                  preferred_element_type=jnp.float32)
    for i in range(1, n_parts):
        acc = acc + jnp.dot(x_refs[i][...], w_refs[i][...],
                            preferred_element_type=jnp.float32)
    o_ref[...] = _silu(acc + bias_ref[...]).astype(o_ref.dtype)


def _pick_row_tile(m):
    # Prefer a tile that divides m (so no padding copies) and gives >=2 grid
    # steps for megacore sharding / pipelining.
    for tm in (512, 256, 128):
        if m % tm == 0 and m // tm >= 2:
            return tm
    for tm in (512, 256, 128):
        if m % tm == 0:
            return tm
    return 128   # caller pads the ragged tail (fallback only)


def fused_cv1_cv2(x2d, w1, w2, b1, b2, out_dtype=jnp.bfloat16):
    m, cin = x2d.shape
    c1, c2 = w1.shape[1], w2.shape[1]
    tm = _pick_row_tile(m)
    m_pad = pl.cdiv(m, tm) * tm
    if m_pad != m:
        x2d = jnp.pad(x2d, ((0, m_pad - m), (0, 0)))
    b1r = b1.reshape(1, c1).astype(jnp.float32)
    b2r = b2.reshape(1, c2).astype(jnp.float32)
    cost = pl.CostEstimate(
        flops=2 * m_pad * cin * (c1 + c2) + 2 * m_pad * (c1 + c2),
        transcendentals=m_pad * (c1 + c2),
        bytes_accessed=(m_pad * cin * 2 + cin * (c1 + c2) * 2
                        + (c1 + c2) * 4 + m_pad * (c1 + c2) * 2))
    # TODO(synk): mark the resident weight/bias blocks pipeline_mode=pl.Buffered(1)
    # once verified the compiler does not already single-buffer constant-index blocks.
    o1, o2 = pl.pallas_call(
        _cv12_kernel,
        out_shape=(jax.ShapeDtypeStruct((m_pad, c1), out_dtype),
                   jax.ShapeDtypeStruct((m_pad, c2), out_dtype)),
        grid=(m_pad // tm,),
        in_specs=[
            pl.BlockSpec((tm, cin), lambda i: (i, 0)),
            pl.BlockSpec((cin, c1), lambda i: (0, 0)),
            pl.BlockSpec((cin, c2), lambda i: (0, 0)),
            pl.BlockSpec((1, c1), lambda i: (0, 0)),
            pl.BlockSpec((1, c2), lambda i: (0, 0)),
        ],
        out_specs=(pl.BlockSpec((tm, c1), lambda i: (i, 0)),
                   pl.BlockSpec((tm, c2), lambda i: (i, 0))),
        compiler_params=pltpu.CompilerParams(
            dimension_semantics=("parallel",),
            vmem_limit_bytes=_VMEM_LIMIT_BYTES),
        cost_estimate=cost,
    )(x2d, w1, w2, b1r, b2r)
    if m_pad != m:
        o1, o2 = o1[:m], o2[:m]
    return o1, o2


def fused_concat_out(parts, weights, bias, out_dtype=jnp.bfloat16):
    n_parts = len(parts)
    m = parts[0].shape[0]
    cout = weights[0].shape[1]
    tm = _pick_row_tile(m)
    m_pad = pl.cdiv(m, tm) * tm
    if m_pad != m:
        # Fallback only (m = N*H*W is normally 128-aligned).
        # TODO(synk): mask the ragged tail block instead of padding every part.
        parts = [jnp.pad(p, ((0, m_pad - m), (0, 0))) for p in parts]
    bias2 = bias.reshape(1, cout).astype(jnp.float32)

    in_specs = [pl.BlockSpec((tm, p.shape[1]), lambda i: (i, 0)) for p in parts]
    in_specs += [pl.BlockSpec(w.shape, lambda i: (0, 0)) for w in weights]
    in_specs += [pl.BlockSpec((1, cout), lambda i: (0, 0))]

    k_total = sum(w.shape[0] for w in weights)
    out_itemsize = jnp.dtype(out_dtype).itemsize
    cost = pl.CostEstimate(
        flops=2 * m_pad * k_total * cout + 2 * m_pad * cout,
        transcendentals=m_pad * cout,
        bytes_accessed=(sum(int(p.size) * p.dtype.itemsize for p in parts)
                        + sum(int(w.size) * w.dtype.itemsize for w in weights)
                        + cout * 4 + m_pad * cout * out_itemsize))
    y = pl.pallas_call(
        partial(_concat_pointwise_kernel, n_parts),
        out_shape=jax.ShapeDtypeStruct((m_pad, cout), out_dtype),
        grid=(m_pad // tm,),
        in_specs=in_specs,
        out_specs=pl.BlockSpec((tm, cout), lambda i: (i, 0)),
        compiler_params=pltpu.CompilerParams(
            dimension_semantics=("parallel",),
            vmem_limit_bytes=_VMEM_LIMIT_BYTES),
        cost_estimate=cost,
    )(*parts, *weights, bias2)
    return y[:m] if m_pad != m else y


# -----------------------------------------------------------------------------
# Kernel 3: 3x3 conv (stride 1, pad 1) + bias + SiLU, H-tiled with in-kernel
# halo assembly (no XLA-side padding, no full-image f32 upcast).
# -----------------------------------------------------------------------------
def _conv3x3_kernel(nh_last, body_ref, top_ref, bot_ref, w_ref, bias_ref,
                    o_ref, pad_ref):
    # body_ref : (1, th, W, Cin)   bf16  current row tile
    # top_ref  : (1, 1, W, Cin)    bf16  row above the tile (clamped at edges)
    # bot_ref  : (1, 1, W, Cin)    bf16  row below the tile (clamped at edges)
    # w_ref    : (9, Cin, Cout)    bf16  BN-folded taps (ki*3+kj major)
    # bias_ref : (1, Cout)         f32
    # o_ref    : (1, th, W, Cout)
    # pad_ref  : (th+2, W+2, Cin)  bf16 VMEM scratch (zero-bordered window)
    j = pl.program_id(1)
    _, th, w, cout = o_ref.shape
    cin = body_ref.shape[-1]

    # Assemble the zero-bordered window.  Every element of the scratch that is
    # read below is (re)written here, so it is safe under megacore sharding.
    zero_col = jnp.zeros((th + 2, 1, cin), jnp.bfloat16)
    pad_ref[:, 0:1, :] = zero_col
    pad_ref[:, w + 1:w + 2, :] = zero_col
    pad_ref[1:th + 1, 1:w + 1, :] = body_ref[0]

    zero_row = jnp.zeros((1, w, cin), jnp.bfloat16)

    @pl.when(j == 0)
    def _():
        pad_ref[0:1, 1:w + 1, :] = zero_row

    @pl.when(j > 0)
    def _():
        pad_ref[0:1, 1:w + 1, :] = top_ref[0]

    @pl.when(j == nh_last)
    def _():
        pad_ref[th + 1:th + 2, 1:w + 1, :] = zero_row

    @pl.when(j < nh_last)
    def _():
        pad_ref[th + 1:th + 2, 1:w + 1, :] = bot_ref[0]

    # Static unrolled 9-tap accumulation, bf16 operands, f32 accumulator.
    # TODO(synk): group taps into a single K=9*Cin im2col dot once unaligned
    # minor-dim concatenate is a verified-safe lowering at these channel sizes.
    acc = jnp.zeros((th * w, cout), jnp.float32)
    for t in range(9):
        di, dj = divmod(t, 3)
        xs = pad_ref[di:di + th, dj:dj + w, :].reshape(th * w, cin)
        acc = acc + jnp.dot(xs, w_ref[t], preferred_element_type=jnp.float32)
    y = _silu(acc + bias_ref[...])
    o_ref[...] = y.reshape(1, th, w, cout).astype(o_ref.dtype)


def _pick_h_tile(h, w, cin, cout):
    # Largest tile that divides H, gives >=2 blocks per image, and keeps the
    # per-step VMEM footprint modest (v7x: 64 MiB physical).
    for th in (64, 40, 32, 20, 16, 10, 8):
        if h % th == 0 and h // th >= 2:
            vmem_est = ((th + 2) * (w + 2) * cin * 2          # padded scratch
                        + 2 * th * w * (cin + cout) * 2       # dbl-buffered io
                        + th * w * cout * 4)                  # f32 accumulator
            if vmem_est <= 12 * 1024 * 1024:
                return th
    return h  # small feature map: whole image per step


def conv3x3_bn_silu(x_nhwc, w9, bias, out_dtype=jnp.bfloat16):
    n, h, w, cin = x_nhwc.shape
    cout = w9.shape[-1]
    th = _pick_h_tile(h, w, cin, cout)
    nh = h // th
    bias2 = bias.reshape(1, cout).astype(jnp.float32)
    cost = pl.CostEstimate(
        flops=2 * n * h * w * 9 * cin * cout,
        transcendentals=n * h * w * cout,
        bytes_accessed=(int(x_nhwc.size) * 2 * (th + 2) // th
                        + int(w9.size) * 2 + cout * 4
                        + n * h * w * cout * jnp.dtype(out_dtype).itemsize))
    return pl.pallas_call(
        partial(_conv3x3_kernel, nh - 1),
        out_shape=jax.ShapeDtypeStruct((n, h, w, cout), out_dtype),
        grid=(n, nh),
        in_specs=[
            pl.BlockSpec((1, th, w, cin), lambda b, j: (b, j, 0, 0)),
            pl.BlockSpec((1, 1, w, cin),
                         lambda b, j: (b, jnp.maximum(j * th - 1, 0), 0, 0)),
            pl.BlockSpec((1, 1, w, cin),
                         lambda b, j: (b, jnp.minimum((j + 1) * th, h - 1), 0, 0)),
            pl.BlockSpec((9, cin, cout), lambda b, j: (0, 0, 0)),
            pl.BlockSpec((1, cout), lambda b, j: (0, 0)),
        ],
        out_specs=pl.BlockSpec((1, th, w, cout), lambda b, j: (b, j, 0, 0)),
        scratch_shapes=[pltpu.VMEM((th + 2, w + 2, cin), jnp.bfloat16)],
        compiler_params=pltpu.CompilerParams(
            dimension_semantics=("parallel", "parallel"),
            vmem_limit_bytes=_VMEM_LIMIT_BYTES),
        cost_estimate=cost,
    )(x_nhwc, x_nhwc, x_nhwc, w9, bias2)


# -----------------------------------------------------------------------------
# Deterministic parameter construction (BN folded, eval mode)
# -----------------------------------------------------------------------------
def make_conv_params(key, cin, cout, k):
    kw, kg, kb, km, kv = jax.random.split(key, 5)
    w = jax.random.normal(kw, (cout, cin, k, k), jnp.float32) / math.sqrt(cin * k * k)
    gamma = jax.random.uniform(kg, (cout,), jnp.float32, 0.5, 1.5)
    beta = jax.random.normal(kb, (cout,), jnp.float32) * 0.1
    r_mean = jax.random.normal(km, (cout,), jnp.float32) * 0.1
    r_var = jax.random.uniform(kv, (cout,), jnp.float32, 0.5, 1.5)
    eps = 1e-5
    scale = gamma / jnp.sqrt(r_var + eps)
    bias = beta - r_mean * scale
    return w, scale, bias


def make_elan_params(key, in_dim, out_dim, squeeze_ratio=0.5, branch_width=4):
    inter_dim = int(in_dim * squeeze_ratio)
    inter_dim2 = int(inter_dim * squeeze_ratio)
    keys = jax.random.split(key, 3 + branch_width)
    params = {
        "cv1": make_conv_params(keys[0], in_dim, inter_dim, 1),
        "cv2": make_conv_params(keys[1], in_dim, inter_dim, 1),
        "cv3": [],
    }
    for idx in range(branch_width):
        cin = inter_dim if idx == 0 else inter_dim2
        params["cv3"].append(make_conv_params(keys[2 + idx], cin, inter_dim2, 3))
    cat_dim = inter_dim * 2 + inter_dim2 * branch_width
    params["out"] = make_conv_params(keys[2 + branch_width], cat_dim, out_dim, 1)
    return params


# -----------------------------------------------------------------------------
# BN folding + bf16 weight prep for the Pallas path
# -----------------------------------------------------------------------------
def _fold_1x1(w, scale):
    cout, cin = w.shape[0], w.shape[1]
    return (w.reshape(cout, cin) * scale[:, None]).T.astype(jnp.bfloat16)


def _fold_3x3(w, scale):
    cout, cin = w.shape[0], w.shape[1]
    wf = w * scale[:, None, None, None]
    # (Cout, Cin, 3, 3) -> (ki, kj, Cin, Cout) -> (9, Cin, Cout)
    return jnp.transpose(wf, (2, 3, 1, 0)).reshape(9, cin, cout).astype(jnp.bfloat16)


def prepare_kernel_params(params):
    # TODO(synk): if Cout < 128 at production scale, zero-pad folded Cout to 128
    # (lane-dense stores) and drop the pad channels in the out-weight K split.
    w1, s1, b1 = params["cv1"]
    w2, s2, b2 = params["cv2"]
    inter_dim = w1.shape[0]
    inter_dim2 = params["cv3"][0][0].shape[0]
    kp = {
        "w1": _fold_1x1(w1, s1), "b1": b1,
        "w2": _fold_1x1(w2, s2), "b2": b2,
        "cv3": [(_fold_3x3(w, s), b) for (w, s, b) in params["cv3"]],
    }
    wo, so, bo = params["out"]
    wo2 = _fold_1x1(wo, so)
    splits = [inter_dim, inter_dim] + [inter_dim2] * len(params["cv3"])
    w_out_parts, off = [], 0
    for sz in splits:
        w_out_parts.append(wo2[off:off + sz])
        off += sz
    kp["w_out_parts"] = w_out_parts
    kp["b_out"] = bo
    return kp


# -----------------------------------------------------------------------------
# ELANBlockFPN forward (branch_depth=1), NCHW in / NCHW out
# -----------------------------------------------------------------------------
def elan_block_fpn(x_nchw, params):
    kp = prepare_kernel_params(params)

    x = jnp.transpose(x_nchw, (0, 2, 3, 1)).astype(jnp.bfloat16)   # NHWC bf16
    n, h, w, cin = x.shape
    m = n * h * w
    x2d = x.reshape(m, cin)

    # Fused cv1 + cv2: one read of x, two contiguous outputs (no column slice).
    y1, y2 = fused_cv1_cv2(x2d, kp["w1"], kp["w2"], kp["b1"], kp["b2"])

    # Branch chain: cv3[0](cv2 out), cv3[1](prev), ...
    branch_in = y2.reshape(n, h, w, -1)
    branch_parts = []
    for (w9, b) in kp["cv3"]:
        yb = conv3x3_bn_silu(branch_in, w9, b, out_dtype=jnp.bfloat16)
        branch_parts.append(yb.reshape(m, -1))
        branch_in = yb

    # Fused channel-concat + out 1x1 conv (concat never materialised in HBM).
    parts = [y1, y2] + branch_parts
    out2d = fused_concat_out(parts, kp["w_out_parts"], kp["b_out"], jnp.bfloat16)
    out = out2d.reshape(n, h, w, -1)
    # NHWC->NCHW on bf16, cast fused into the copy.
    # TODO(synk): keep the whole detector NHWC end-to-end to drop this transpose.
    return jnp.transpose(out, (0, 3, 1, 2)).astype(jnp.float32)


# -----------------------------------------------------------------------------
# Pure-JAX f32 reference (lax conv) for correctness check
# -----------------------------------------------------------------------------
def _ref_conv(x_nhwc, w, scale, bias, pad):
    y = jax.lax.conv_general_dilated(
        x_nhwc, jnp.transpose(w, (2, 3, 1, 0)),
        window_strides=(1, 1), padding=[(pad, pad), (pad, pad)],
        dimension_numbers=("NHWC", "HWIO", "NHWC"))
    y = y * scale + bias
    return y * jax.nn.sigmoid(y)


def elan_block_fpn_ref(x_nchw, params):
    x = jnp.transpose(x_nchw, (0, 2, 3, 1))
    x1 = _ref_conv(x, *params["cv1"], pad=0)
    x2 = _ref_conv(x, *params["cv2"], pad=0)
    outs = [x1, x2]
    for p in params["cv3"]:
        outs.append(_ref_conv(outs[-1], *p, pad=1))
    cat = jnp.concatenate(outs, axis=-1)
    out = _ref_conv(cat, *params["out"], pad=0)
    return jnp.transpose(out, (0, 3, 1, 2))


if __name__ == "__main__":
    key = jax.random.PRNGKey(0)
    k_x, k_p = jax.random.split(key)

    N, in_dim, H, W = 2, 8, 16, 16       # inter_dim=4, inter_dim2=2
    out_dim = 8
    x = jax.random.normal(k_x, (N, in_dim, H, W), jnp.float32)
    params = make_elan_params(k_p, in_dim, out_dim)

    fwd = jax.jit(elan_block_fpn)
    y = jax.block_until_ready(fwd(x, params))
    assert y.shape == (N, out_dim, H, W), y.shape

    y_ref = jax.block_until_ready(elan_block_fpn_ref(x, params))
    # bf16-vs-f32 comparison: mean relative error (structural bugs blow well
    # past this) plus a max-abs sanity bound.
    rel_err = float(jnp.mean(jnp.abs(y - y_ref)) /
                    (jnp.mean(jnp.abs(y_ref)) + 1e-6))
    max_err = float(jnp.max(jnp.abs(y - y_ref)))
    assert rel_err < 3e-2, f"mismatch vs reference: rel_err={rel_err:.4f}"
    assert max_err < 0.25, f"mismatch vs reference: max_err={max_err:.4f}"

    print("KERNEL_OK")
</pallas_src>

<mosaic_0001>
module attributes {stable_mosaic.version = 11 : i64} {
  func.func @_cv12_kernel(%arg0: i32, %arg1: memref<256x8xbf16, #tpu.memory_space<vmem>>, %arg2: memref<8x4xbf16, #tpu.memory_space<vmem>>, %arg3: memref<8x4xbf16, #tpu.memory_space<vmem>>, %arg4: memref<1x4xf32, #tpu.memory_space<vmem>>, %arg5: memref<1x4xf32, #tpu.memory_space<vmem>>, %arg6: memref<256x4xbf16, #tpu.memory_space<vmem>>, %arg7: memref<256x4xbf16, #tpu.memory_space<vmem>>) attributes {dimension_semantics = [#tpu.dimension_semantics<parallel>], iteration_bounds = array<i64: 2>, scalar_prefetch = 0 : i64, scratch_operands = 0 : i64, tpu.core_type = #tpu.core_type<tc>, window_params = [{transform_indices = @transform_0, window_bounds = array<i64: 256, 8>}, {pipeline_mode = #tpu.pipeline_mode<synchronous>, transform_indices = @transform_1, window_bounds = array<i64: 8, 4>}, {pipeline_mode = #tpu.pipeline_mode<synchronous>, transform_indices = @transform_2, window_bounds = array<i64: 8, 4>}, {pipeline_mode = #tpu.pipeline_mode<synchronous>, transform_indices = @transform_3, window_bounds = array<i64: 1, 4>}, {pipeline_mode = #tpu.pipeline_mode<synchronous>, transform_indices = @transform_4, window_bounds = array<i64: 1, 4>}, {transform_indices = @transform_5, window_bounds = array<i64: 256, 4>}, {transform_indices = @transform_6, window_bounds = array<i64: 256, 4>}]} {
    %c0 = arith.constant 0 : index
    %c0_0 = arith.constant 0 : index
    %0 = vector.load %arg1[%c0, %c0_0] : memref<256x8xbf16, #tpu.memory_space<vmem>>, vector<256x8xbf16>
    %c0_1 = arith.constant 0 : index
    %c0_2 = arith.constant 0 : index
    %1 = vector.load %arg2[%c0_1, %c0_2] : memref<8x4xbf16, #tpu.memory_space<vmem>>, vector<8x4xbf16>
    %cst = arith.constant dense<0.000000e+00> : vector<256x4xf32>
    %2 = tpu.matmul %0, %1, %cst {dimension_numbers = #tpu.dot_dimension_numbers<[1], [0], [0], [1], [0, 0, 1, 1], [], []>} : vector<256x8xbf16>, vector<8x4xbf16>, vector<256x4xf32> -> vector<256x4xf32>
    %c0_3 = arith.constant 0 : index
    %c0_4 = arith.constant 0 : index
    %3 = vector.load %arg4[%c0_3, %c0_4] : memref<1x4xf32, #tpu.memory_space<vmem>>, vector<1x4xf32>
    %4 = vector.broadcast %3 : vector<1x4xf32> to vector<256x4xf32>
    %5 = arith.addf %2, %4 : vector<256x4xf32>
    %c0_5 = arith.constant 0 : index
    %c0_6 = arith.constant 0 : index
    %6 = vector.load %arg3[%c0_5, %c0_6] : memref<8x4xbf16, #tpu.memory_space<vmem>>, vector<8x4xbf16>
    %cst_7 = arith.constant dense<0.000000e+00> : vector<256x4xf32>
    %7 = tpu.matmul %0, %6, %cst_7 {dimension_numbers = #tpu.dot_dimension_numbers<[1], [0], [0], [1], [0, 0, 1, 1], [], []>} : vector<256x8xbf16>, vector<8x4xbf16>, vector<256x4xf32> -> vector<256x4xf32>
    %c0_8 = arith.constant 0 : index
    %c0_9 = arith.constant 0 : index
    %8 = vector.load %arg5[%c0_8, %c0_9] : memref<1x4xf32, #tpu.memory_space<vmem>>, vector<1x4xf32>
    %9 = vector.broadcast %8 : vector<1x4xf32> to vector<256x4xf32>
    %10 = arith.addf %7, %9 : vector<256x4xf32>
    %cst_10 = arith.constant 0.000000e+00 : f32
    %11 = vector.broadcast %cst_10 : f32 to vector<256x4xf32>
    %12 = arith.subf %11, %5 : vector<256x4xf32>
    %13 = math.exp %12 : vector<256x4xf32>
    %cst_11 = arith.constant 1.000000e+00 : f32
    %14 = vector.broadcast %cst_11 : f32 to vector<256x4xf32>
    %15 = arith.addf %14, %13 : vector<256x4xf32>
    %16 = tpu.reciprocal %15 {approx = true} : vector<256x4xf32> -> vector<256x4xf32>
    %17 = arith.mulf %5, %16 : vector<256x4xf32>
    %18 = arith.truncf %17 : vector<256x4xf32> to vector<256x4xbf16>
    %c0_12 = arith.constant 0 : index
    %c0_13 = arith.constant 0 : index
    %19 = vector.load %arg6[%c0_12, %c0_13] : memref<256x4xbf16, #tpu.memory_space<vmem>>, vector<256x4xbf16>
    tpu.vector_store %arg6[%c0_12, %c0_13], %18 {strides = array<i32>} : memref<256x4xbf16, #tpu.memory_space<vmem>>, vector<256x4xbf16>,
    %cst_14 = arith.constant 0.000000e+00 : f32
    %20 = vector.broadcast %cst_14 : f32 to vector<256x4xf32>
    %21 = arith.subf %20, %10 : vector<256x4xf32>
    %22 = math.exp %21 : vector<256x4xf32>
    %cst_15 = arith.constant 1.000000e+00 : f32
    %23 = vector.broadcast %cst_15 : f32 to vector<256x4xf32>
    %24 = arith.addf %23, %22 : vector<256x4xf32>
    %25 = tpu.reciprocal %24 {approx = true} : vector<256x4xf32> -> vector<256x4xf32>
    %26 = arith.mulf %10, %25 : vector<256x4xf32>
    %27 = arith.truncf %26 : vector<256x4xf32> to vector<256x4xbf16>
    %c0_16 = arith.constant 0 : index
    %c0_17 = arith.constant 0 : index
    %28 = vector.load %arg7[%c0_16, %c0_17] : memref<256x4xbf16, #tpu.memory_space<vmem>>, vector<256x4xbf16>
    tpu.vector_store %arg7[%c0_16, %c0_17], %27 {strides = array<i32>} : memref<256x4xbf16, #tpu.memory_space<vmem>>, vector<256x4xbf16>,
    return
  }
  func.func @transform_0(%arg0: i32) -> (i32, i32) {
    %c0_i32 = arith.constant 0 : i32
    %c0_i32_0 = arith.constant 0 : i32
    return %arg0, %c0_i32 : i32, i32
  }
  func.func @transform_1(%arg0: i32) -> (i32, i32) {
    %c0_i32 = arith.constant 0 : i32
    %c0_i32_0 = arith.constant 0 : i32
    %c0_i32_1 = arith.constant 0 : i32
    return %c0_i32, %c0_i32_0 : i32, i32
  }
  func.func @transform_2(%arg0: i32) -> (i32, i32) {
    %c0_i32 = arith.constant 0 : i32
    %c0_i32_0 = arith.constant 0 : i32
    %c0_i32_1 = arith.constant 0 : i32
    return %c0_i32, %c0_i32_0 : i32, i32
  }
  func.func @transform_3(%arg0: i32) -> (i32, i32) {
    %c0_i32 = arith.constant 0 : i32
    %c0_i32_0 = arith.constant 0 : i32
    %c0_i32_1 = arith.constant 0 : i32
    return %c0_i32, %c0_i32_0 : i32, i32
  }
  func.func @transform_4(%arg0: i32) -> (i32, i32) {
    %c0_i32 = arith.constant 0 : i32
    %c0_i32_0 = arith.constant 0 : i32
    %c0_i32_1 = arith.constant 0 : i32
    return %c0_i32, %c0_i32_0 : i32, i32
  }
  func.func @transform_5(%arg0: i32) -> (i32, i32) {
    %c0_i32 = arith.constant 0 : i32
    %c0_i32_0 = arith.constant 0 : i32
    return %arg0, %c0_i32 : i32, i32
  }
  func.func @transform_6(%arg0: i32) -> (i32, i32) {
    %c0_i32 = arith.constant 0 : i32
    %c0_i32_0 = arith.constant 0 : i32
    return %arg0, %c0_i32 : i32, i32
  }
}

module attributes {stable_mosaic.version = 11 : i64} {
  func.func @_conv3x3_kernel(%arg0: i32, %arg1: i32, %arg2: memref<1x8x16x4xbf16, #tpu.memory_space<vmem>>, %arg3: memref<1x1x16x4xbf16, #tpu.memory_space<vmem>>, %arg4: memref<1x1x16x4xbf16, #tpu.memory_space<vmem>>, %arg5: memref<9x4x2xbf16, #tpu.memory_space<vmem>>, %arg6: memref<1x2xf32, #tpu.memory_space<vmem>>, %arg7: memref<1x8x16x2xbf16, #tpu.memory_space<vmem>>, %arg8: memref<10x18x4xbf16, #tpu.memory_space<vmem>>) attributes {dimension_semantics = [#tpu.dimension_semantics<parallel>, #tpu.dimension_semantics<parallel>], iteration_bounds = array<i64: 2, 2>, scalar_prefetch = 0 : i64, scratch_operands = 1 : i64, tpu.core_type = #tpu.core_type<tc>, window_params = [{transform_indices = @transform_0, window_bounds = array<i64: 1, 8, 16, 4>}, {transform_indices = @transform_1, window_bounds = array<i64: 1, 1, 16, 4>}, {transform_indices = @transform_2, window_bounds = array<i64: 1, 1, 16, 4>}, {pipeline_mode = #tpu.pipeline_mode<synchronous>, transform_indices = @transform_3, window_bounds = array<i64: 9, 4, 2>}, {pipeline_mode = #tpu.pipeline_mode<synchronous>, transform_indices = @transform_4, window_bounds = array<i64: 1, 2>}, {transform_indices = @transform_5, window_bounds = array<i64: 1, 8, 16, 2>}]} {
    %cst = arith.constant 0.000000e+00 : bf16
    %0 = vector.broadcast %cst : bf16 to vector<10x1x4xbf16>
    %c0 = arith.constant 0 : index
    %c0_0 = arith.constant 0 : index
    %c0_1 = arith.constant 0 : index
    %1 = vector.load %arg8[%c0, %c0_0, %c0_1] : memref<10x18x4xbf16, #tpu.memory_space<vmem>>, vector<10x1x4xbf16>
    tpu.vector_store %arg8[%c0, %c0_0, %c0_1], %0 {strides = array<i32>} : memref<10x18x4xbf16, #tpu.memory_space<vmem>>, vector<10x1x4xbf16>,
    %c0_2 = arith.constant 0 : index
    %c17 = arith.constant 17 : index
    %c0_3 = arith.constant 0 : index
    %2 = vector.load %arg8[%c0_2, %c17, %c0_3] : memref<10x18x4xbf16, #tpu.memory_space<vmem>>, vector<10x1x4xbf16>
    tpu.vector_store %arg8[%c0_2, %c17, %c0_3], %0 {strides = array<i32>} : memref<10x18x4xbf16, #tpu.memory_space<vmem>>, vector<10x1x4xbf16>,
    %c0_4 = arith.constant 0 : index
    %c0_5 = arith.constant 0 : index
    %c0_6 = arith.constant 0 : index
    %c0_7 = arith.constant 0 : index
    %3 = vector.load %arg2[%c0_4, %c0_5, %c0_6, %c0_7] : memref<1x8x16x4xbf16, #tpu.memory_space<vmem>>, vector<1x8x16x4xbf16>
    %4 = vector.shape_cast %3 : vector<1x8x16x4xbf16> to vector<8x16x4xbf16>
    %c1 = arith.constant 1 : index
    %c1_8 = arith.constant 1 : index
    %c0_9 = arith.constant 0 : index
    %5 = vector.load %arg8[%c1, %c1_8, %c0_9] : memref<10x18x4xbf16, #tpu.memory_space<vmem>>, vector<8x16x4xbf16>
    tpu.vector_store %arg8[%c1, %c1_8, %c0_9], %4 {strides = array<i32>} : memref<10x18x4xbf16, #tpu.memory_space<vmem>>, vector<8x16x4xbf16>,
    %cst_10 = arith.constant 0.000000e+00 : bf16
    %6 = vector.broadcast %cst_10 : bf16 to vector<1x16x4xbf16>
    %c0_i32 = arith.constant 0 : i32
    %7 = arith.cmpi eq, %arg1, %c0_i32 : i32
    %8 = arith.extui %7 : i1 to i32
    %c0_i32_11 = arith.constant 0 : i32
    %9 = arith.cmpi ne, %8, %c0_i32_11 : i32
    scf.if %9 {
      %c0_82 = arith.constant 0 : index
      %c1_83 = arith.constant 1 : index
      %c0_84 = arith.constant 0 : index
      %87 = vector.load %arg8[%c0_82, %c1_83, %c0_84] : memref<10x18x4xbf16, #tpu.memory_space<vmem>>, vector<1x16x4xbf16>
      tpu.vector_store %arg8[%c0_82, %c1_83, %c0_84], %6 {strides = array<i32>} : memref<10x18x4xbf16, #tpu.memory_space<vmem>>, vector<1x16x4xbf16>,
    } else {
    }
    %c0_i32_12 = arith.constant 0 : i32
    %10 = arith.cmpi sgt, %arg1, %c0_i32_12 : i32
    %11 = arith.extui %10 : i1 to i32
    %c0_i32_13 = arith.constant 0 : i32
    %12 = arith.cmpi ne, %11, %c0_i32_13 : i32
    scf.if %12 {
      %c0_82 = arith.constant 0 : index
      %c0_83 = arith.constant 0 : index
      %c0_84 = arith.constant 0 : index
      %c0_85 = arith.constant 0 : index
      %87 = vector.load %arg3[%c0_82, %c0_83, %c0_84, %c0_85] : memref<1x1x16x4xbf16, #tpu.memory_space<vmem>>, vector<1x1x16x4xbf16>
      %88 = vector.shape_cast %87 : vector<1x1x16x4xbf16> to vector<1x16x4xbf16>
      %c0_86 = arith.constant 0 : index
      %c1_87 = arith.constant 1 : index
      %c0_88 = arith.constant 0 : index
      %89 = vector.load %arg8[%c0_86, %c1_87, %c0_88] : memref<10x18x4xbf16, #tpu.memory_space<vmem>>, vector<1x16x4xbf16>
      tpu.vector_store %arg8[%c0_86, %c1_87, %c0_88], %88 {strides = array<i32>} : memref<10x18x4xbf16, #tpu.memory_space<vmem>>, vector<1x16x4xbf16>,
    } else {
    }
    %c1_i32 = arith.constant 1 : i32
    %13 = arith.cmpi eq, %arg1, %c1_i32 : i32
    %14 = arith.extui %13 : i1 to i32
    %c0_i32_14 = arith.constant 0 : i32
    %15 = arith.cmpi ne, %14, %c0_i32_14 : i32
    scf.if %15 {
      %c9 = arith.constant 9 : index
      %c1_82 = arith.constant 1 : index
      %c0_83 = arith.constant 0 : index
      %87 = vector.load %arg8[%c9, %c1_82, %c0_83] : memref<10x18x4xbf16, #tpu.memory_space<vmem>>, vector<1x16x4xbf16>
      tpu.vector_store %arg8[%c9, %c1_82, %c0_83], %6 {strides = array<i32>} : memref<10x18x4xbf16, #tpu.memory_space<vmem>>, vector<1x16x4xbf16>,
    } else {
    }
    %c1_i32_15 = arith.constant 1 : i32
    %16 = arith.cmpi slt, %arg1, %c1_i32_15 : i32
    %17 = arith.extui %16 : i1 to i32
    %c0_i32_16 = arith.constant 0 : i32
    %18 = arith.cmpi ne, %17, %c0_i32_16 : i32
    scf.if %18 {
      %c0_82 = arith.constant 0 : index
      %c0_83 = arith.constant 0 : index
      %c0_84 = arith.constant 0 : index
      %c0_85 = arith.constant 0 : index
      %87 = vector.load %arg4[%c0_82, %c0_83, %c0_84, %c0_85] : memref<1x1x16x4xbf16, #tpu.memory_space<vmem>>, vector<1x1x16x4xbf16>
      %88 = vector.shape_cast %87 : vector<1x1x16x4xbf16> to vector<1x16x4xbf16>
      %c9 = arith.constant 9 : index
      %c1_86 = arith.constant 1 : index
      %c0_87 = arith.constant 0 : index
      %89 = vector.load %arg8[%c9, %c1_86, %c0_87] : memref<10x18x4xbf16, #tpu.memory_space<vmem>>, vector<1x16x4xbf16>
      tpu.vector_store %arg8[%c9, %c1_86, %c0_87], %88 {strides = array<i32>} : memref<10x18x4xbf16, #tpu.memory_space<vmem>>, vector<1x16x4xbf16>,
    } else {
    }
    %cst_17 = arith.constant 0.000000e+00 : f32
    %19 = vector.broadcast %cst_17 : f32 to vector<128x2xf32>
    %c0_18 = arith.constant 0 : index
    %c0_19 = arith.constant 0 : index
    %c0_20 = arith.constant 0 : index
    %20 = vector.load %arg8[%c0_18, %c0_19, %c0_20] : memref<10x18x4xbf16, #tpu.memory_space<vmem>>, vector<8x16x4xbf16>
    %21 = vector.shape_cast %20 : vector<8x16x4xbf16> to vector<128x4xbf16>
    %c0_21 = arith.constant 0 : index
    %c0_22 = arith.constant 0 : index
    %c0_23 = arith.constant 0 : index
    %22 = vector.load %arg5[%c0_21, %c0_22, %c0_23] : memref<9x4x2xbf16, #tpu.memory_space<vmem>>, vector<1x4x2xbf16>
    %23 = vector.shape_cast %22 : vector<1x4x2xbf16> to vector<4x2xbf16>
    %cst_24 = arith.constant dense<0.000000e+00> : vector<128x2xf32>
    %24 = tpu.matmul %21, %23, %cst_24 {dimension_numbers = #tpu.dot_dimension_numbers<[1], [0], [0], [1], [0, 0, 1, 1], [], []>} : vector<128x4xbf16>, vector<4x2xbf16>, vector<128x2xf32> -> vector<128x2xf32>
    %25 = arith.addf %19, %24 : vector<128x2xf32>
    %c0_25 = arith.constant 0 : index
    %c1_26 = arith.constant 1 : index
    %c0_27 = arith.constant 0 : index
    %26 = vector.load %arg8[%c0_25, %c1_26, %c0_27] : memref<10x18x4xbf16, #tpu.memory_space<vmem>>, vector<8x16x4xbf16>
    %27 = vector.shape_cast %26 : vector<8x16x4xbf16> to vector<128x4xbf16>
    %c1_28 = arith.constant 1 : index
    %c0_29 = arith.constant 0 : index
    %c0_30 = arith.constant 0 : index
    %28 = vector.load %arg5[%c1_28, %c0_29, %c0_30] : memref<9x4x2xbf16, #tpu.memory_space<vmem>>, vector<1x4x2xbf16>
    %29 = vector.shape_cast %28 : vector<1x4x2xbf16> to vector<4x2xbf16>
    %cst_31 = arith.constant dense<0.000000e+00> : vector<128x2xf32>
    %30 = tpu.matmul %27, %29, %cst_31 {dimension_numbers = #tpu.dot_dimension_numbers<[1], [0], [0], [1], [0, 0, 1, 1], [], []>} : vector<128x4xbf16>, vector<4x2xbf16>, vector<128x2xf32> -> vector<128x2xf32>
    %31 = arith.addf %25, %30 : vector<128x2xf32>
    %c0_32 = arith.constant 0 : index
    %c2 = arith.constant 2 : index
    %c0_33 = arith.constant 0 : index
    %32 = vector.load %arg8[%c0_32, %c2, %c0_33] : memref<10x18x4xbf16, #tpu.memory_space<vmem>>, vector<8x16x4xbf16>
    %33 = vector.shape_cast %32 : vector<8x16x4xbf16> to vector<128x4xbf16>
    %c2_34 = arith.constant 2 : index
    %c0_35 = arith.constant 0 : index
    %c0_36 = arith.constant 0 : index
    %34 = vector.load %arg5[%c2_34, %c0_35, %c0_36] : memref<9x4x2xbf16, #tpu.memory_space<vmem>>, vector<1x4x2xbf16>
    %35 = vector.shape_cast %34 : vector<1x4x2xbf16> to vector<4x2xbf16>
    %cst_37 = arith.constant dense<0.000000e+00> : vector<128x2xf32>
    %36 = tpu.matmul %33, %35, %cst_37 {dimension_numbers = #tpu.dot_dimension_numbers<[1], [0], [0], [1], [0, 0, 1, 1], [], []>} : vector<128x4xbf16>, vector<4x2xbf16>, vector<128x2xf32> -> vector<128x2xf32>
    %37 = arith.addf %31, %36 : vector<128x2xf32>
    %c1_38 = arith.constant 1 : index
    %c0_39 = arith.constant 0 : index
    %c0_40 = arith.constant 0 : index
    %38 = vector.load %arg8[%c1_38, %c0_39, %c0_40] : memref<10x18x4xbf16, #tpu.memory_space<vmem>>, vector<8x16x4xbf16>
    %39 = vector.shape_cast %38 : vector<8x16x4xbf16> to vector<128x4xbf16>
    %c3 = arith.constant 3 : index
    %c0_41 = arith.constant 0 : index
    %c0_42 = arith.constant 0 : index
    %40 = vector.load %arg5[%c3, %c0_41, %c0_42] : memref<9x4x2xbf16, #tpu.memory_space<vmem>>, vector<1x4x2xbf16>
    %41 = vector.shape_cast %40 : vector<1x4x2xbf16> to vector<4x2xbf16>
    %cst_43 = arith.constant dense<0.000000e+00> : vector<128x2xf32>
    %42 = tpu.matmul %39, %41, %cst_43 {dimension_numbers = #tpu.dot_dimension_numbers<[1], [0], [0], [1], [0, 0, 1, 1], [], []>} : vector<128x4xbf16>, vector<4x2xbf16>, vector<128x2xf32> -> vector<128x2xf32>
    %43 = arith.addf %37, %42 : vector<128x2xf32>
    %c1_44 = arith.constant 1 : index
    %c1_45 = arith.constant 1 : index
    %c0_46 = arith.constant 0 : index
    %44 = vector.load %arg8[%c1_44, %c1_45, %c0_46] : memref<10x18x4xbf16, #tpu.memory_space<vmem>>, vector<8x16x4xbf16>
    %45 = vector.shape_cast %44 : vector<8x16x4xbf16> to vector<128x4xbf16>
    %c4 = arith.constant 4 : index
    %c0_47 = arith.constant 0 : index
    %c0_48 = arith.constant 0 : index
    %46 = vector.load %arg5[%c4, %c0_47, %c0_48] : memref<9x4x2xbf16, #tpu.memory_space<vmem>>, vector<1x4x2xbf16>
    %47 = vector.shape_cast %46 : vector<1x4x2xbf16> to vector<4x2xbf16>
    %cst_49 = arith.constant dense<0.000000e+00> : vector<128x2xf32>
    %48 = tpu.matmul %45, %47, %cst_49 {dimension_numbers = #tpu.dot_dimension_numbers<[1], [0], [0], [1], [0, 0, 1, 1], [], []>} : vector<128x4xbf16>, vector<4x2xbf16>, vector<128x2xf32> -> vector<128x2xf32>
    %49 = arith.addf %43, %48 : vector<128x2xf32>
    %c1_50 = arith.constant 1 : index
    %c2_51 = arith.constant 2 : index
    %c0_52 = arith.constant 0 : index
    %50 = vector.load %arg8[%c1_50, %c2_51, %c0_52] : memref<10x18x4xbf16, #tpu.memory_space<vmem>>, vector<8x16x4xbf16>
    %51 = vector.shape_cast %50 : vector<8x16x4xbf16> to vector<128x4xbf16>
    %c5 = arith.constant 5 : index
    %c0_53 = arith.constant 0 : index
    %c0_54 = arith.constant 0 : index
    %52 = vector.load %arg5[%c5, %c0_53, %c0_54] : memref<9x4x2xbf16, #tpu.memory_space<vmem>>, vector<1x4x2xbf16>
    %53 = vector.shape_cast %52 : vector<1x4x2xbf16> to vector<4x2xbf16>
    %cst_55 = arith.constant dense<0.000000e+00> : vector<128x2xf32>
    %54 = tpu.matmul %51, %53, %cst_55 {dimension_numbers = #tpu.dot_dimension_numbers<[1], [0], [0], [1], [0, 0, 1, 1], [], []>} : vector<128x4xbf16>, vector<4x2xbf16>, vector<128x2xf32> -> vector<128x2xf32>
    %55 = arith.addf %49, %54 : vector<128x2xf32>
    %c2_56 = arith.constant 2 : index
    %c0_57 = arith.constant 0 : index
    %c0_58 = arith.constant 0 : index
    %56 = vector.load %arg8[%c2_56, %c0_57, %c0_58] : memref<10x18x4xbf16, #tpu.memory_space<vmem>>, vector<8x16x4xbf16>
    %57 = vector.shape_cast %56 : vector<8x16x4xbf16> to vector<128x4xbf16>
    %c6 = arith.constant 6 : index
    %c0_59 = arith.constant 0 : index
    %c0_60 = arith.constant 0 : index
    %58 = vector.load %arg5[%c6, %c0_59, %c0_60] : memref<9x4x2xbf16, #tpu.memory_space<vmem>>, vector<1x4x2xbf16>
    %59 = vector.shape_cast %58 : vector<1x4x2xbf16> to vector<4x2xbf16>
    %cst_61 = arith.constant dense<0.000000e+00> : vector<128x2xf32>
    %60 = tpu.matmul %57, %59, %cst_61 {dimension_numbers = #tpu.dot_dimension_numbers<[1], [0], [0], [1], [0, 0, 1, 1], [], []>} : vector<128x4xbf16>, vector<4x2xbf16>, vector<128x2xf32> -> vector<128x2xf32>
    %61 = arith.addf %55, %60 : vector<128x2xf32>
    %c2_62 = arith.constant 2 : index
    %c1_63 = arith.constant 1 : index
    %c0_64 = arith.constant 0 : index
    %62 = vector.load %arg8[%c2_62, %c1_63, %c0_64] : memref<10x18x4xbf16, #tpu.memory_space<vmem>>, vector<8x16x4xbf16>
    %63 = vector.shape_cast %62 : vector<8x16x4xbf16> to vector<128x4xbf16>
    %c7 = arith.constant 7 : index
    %c0_65 = arith.constant 0 : index
    %c0_66 = arith.constant 0 : index
    %64 = vector.load %arg5[%c7, %c0_65, %c0_66] : memref<9x4x2xbf16, #tpu.memory_space<vmem>>, vector<1x4x2xbf16>
    %65 = vector.shape_cast %64 : vector<1x4x2xbf16> to vector<4x2xbf16>
    %cst_67 = arith.constant dense<0.000000e+00> : vector<128x2xf32>
    %66 = tpu.matmul %63, %65, %cst_67 {dimension_numbers = #tpu.dot_dimension_numbers<[1], [0], [0], [1], [0, 0, 1, 1], [], []>} : vector<128x4xbf16>, vector<4x2xbf16>, vector<128x2xf32> -> vector<128x2xf32>
    %67 = arith.addf %61, %66 : vector<128x2xf32>
    %c2_68 = arith.constant 2 : index
    %c2_69 = arith.constant 2 : index
    %c0_70 = arith.constant 0 : index
    %68 = vector.load %arg8[%c2_68, %c2_69, %c0_70] : memref<10x18x4xbf16, #tpu.memory_space<vmem>>, vector<8x16x4xbf16>
    %69 = vector.shape_cast %68 : vector<8x16x4xbf16> to vector<128x4xbf16>
    %c8 = arith.constant 8 : index
    %c0_71 = arith.constant 0 : index
    %c0_72 = arith.constant 0 : index
    %70 = vector.load %arg5[%c8, %c0_71, %c0_72] : memref<9x4x2xbf16, #tpu.memory_space<vmem>>, vector<1x4x2xbf16>
    %71 = vector.shape_cast %70 : vector<1x4x2xbf16> to vector<4x2xbf16>
    %cst_73 = arith.constant dense<0.000000e+00> : vector<128x2xf32>
    %72 = tpu.matmul %69, %71, %cst_73 {dimension_numbers = #tpu.dot_dimension_numbers<[1], [0], [0], [1], [0, 0, 1, 1], [], []>} : vector<128x4xbf16>, vector<4x2xbf16>, vector<128x2xf32> -> vector<128x2xf32>
    %73 = arith.addf %67, %72 : vector<128x2xf32>
    %c0_74 = arith.constant 0 : index
    %c0_75 = arith.constant 0 : index
    %74 = vector.load %arg6[%c0_74, %c0_75] : memref<1x2xf32, #tpu.memory_space<vmem>>, vector<1x2xf32>
    %75 = vector.broadcast %74 : vector<1x2xf32> to vector<128x2xf32>
    %76 = arith.addf %73, %75 : vector<128x2xf32>
    %cst_76 = arith.constant 0.000000e+00 : f32
    %77 = vector.broadcast %cst_76 : f32 to vector<128x2xf32>
    %78 = arith.subf %77, %76 : vector<128x2xf32>
    %79 = math.exp %78 : vector<128x2xf32>
    %cst_77 = arith.constant 1.000000e+00 : f32
    %80 = vector.broadcast %cst_77 : f32 to vector<128x2xf32>
    %81 = arith.addf %80, %79 : vector<128x2xf32>
    %82 = tpu.reciprocal %81 {approx = true} : vector<128x2xf32> -> vector<128x2xf32>
    %83 = arith.mulf %76, %82 : vector<128x2xf32>
    %84 = vector.shape_cast %83 : vector<128x2xf32> to vector<1x8x16x2xf32>
    %85 = arith.truncf %84 : vector<1x8x16x2xf32> to vector<1x8x16x2xbf16>
    %c0_78 = arith.constant 0 : index
    %c0_79 = arith.constant 0 : index
    %c0_80 = arith.constant 0 : index
    %c0_81 = arith.constant 0 : index
    %86 = vector.load %arg7[%c0_78, %c0_79, %c0_80, %c0_81] : memref<1x8x16x2xbf16, #tpu.memory_space<vmem>>, vector<1x8x16x2xbf16>
    tpu.vector_store %arg7[%c0_78, %c0_79, %c0_80, %c0_81], %85 {strides = array<i32>} : memref<1x8x16x2xbf16, #tpu.memory_space<vmem>>, vector<1x8x16x2xbf16>,
    return
  }
  func.func @transform_0(%arg0: i32, %arg1: i32) -> (i32, i32, i32, i32) {
    %c0_i32 = arith.constant 0 : i32
    %c0_i32_0 = arith.constant 0 : i32
    %c0_i32_1 = arith.constant 0 : i32
    return %arg0, %arg1, %c0_i32, %c0_i32_0 : i32, i32, i32, i32
  }
  func.func @transform_1(%arg0: i32, %arg1: i32) -> (i32, i32, i32, i32) {
    %c8_i32 = arith.constant 8 : i32
    %0 = arith.muli %arg1, %c8_i32 : i32
    %c1_i32 = arith.constant 1 : i32
    %1 = arith.subi %0, %c1_i32 : i32
    %c0_i32 = arith.constant 0 : i32
    %2 = arith.maxsi %1, %c0_i32 : i32
    %c0_i32_0 = arith.constant 0 : i32
    %c0_i32_1 = arith.constant 0 : i32
    %c0_i32_2 = arith.constant 0 : i32
    return %arg0, %2, %c0_i32_0, %c0_i32_1 : i32, i32, i32, i32
  }
  func.func @transform_2(%arg0: i32, %arg1: i32) -> (i32, i32, i32, i32) {
    %c1_i32 = arith.constant 1 : i32
    %0 = arith.addi %arg1, %c1_i32 : i32
    %c8_i32 = arith.constant 8 : i32
    %1 = arith.muli %0, %c8_i32 : i32
    %c15_i32 = arith.constant 15 : i32
    %2 = arith.minsi %1, %c15_i32 : i32
    %c0_i32 = arith.constant 0 : i32
    %c0_i32_0 = arith.constant 0 : i32
    %c0_i32_1 = arith.constant 0 : i32
    return %arg0, %2, %c0_i32, %c0_i32_0 : i32, i32, i32, i32
  }
  func.func @transform_3(%arg0: i32, %arg1: i32) -> (i32, i32, i32) {
    %c0_i32 = arith.constant 0 : i32
    %c0_i32_0 = arith.constant 0 : i32
    %c0_i32_1 = arith.constant 0 : i32
    %c0_i32_2 = arith.constant 0 : i32
    return %c0_i32, %c0_i32_0, %c0_i32_1 : i32, i32, i32
  }
  func.func @transform_4(%arg0: i32, %arg1: i32) -> (i32, i32) {
    %c0_i32 = arith.constant 0 : i32
    %c0_i32_0 = arith.constant 0 : i32
    %c0_i32_1 = arith.constant 0 : i32
    return %c0_i32, %c0_i32_0 : i32, i32
  }
  func.func @transform_5(%arg0: i32, %arg1: i32) -> (i32, i32, i32, i32) {
    %c0_i32 = arith.constant 0 : i32
    %c0_i32_0 = arith.constant 0 : i32
    %c0_i32_1 = arith.constant 0 : i32
    return %arg0, %arg1, %c0_i32, %c0_i32_0 : i32, i32, i32, i32
  }
}

module attributes {stable_mosaic.version = 11 : i64} {
  func.func @_conv3x3_kernel(%arg0: i32, %arg1: i32, %arg2: memref<1x8x16x2xbf16, #tpu.memory_space<vmem>>, %arg3: memref<1x1x16x2xbf16, #tpu.memory_space<vmem>>, %arg4: memref<1x1x16x2xbf16, #tpu.memory_space<vmem>>, %arg5: memref<9x2x2xbf16, #tpu.memory_space<vmem>>, %arg6: memref<1x2xf32, #tpu.memory_space<vmem>>, %arg7: memref<1x8x16x2xbf16, #tpu.memory_space<vmem>>, %arg8: memref<10x18x2xbf16, #tpu.memory_space<vmem>>) attributes {dimension_semantics = [#tpu.dimension_semantics<parallel>, #tpu.dimension_semantics<parallel>], iteration_bounds = array<i64: 2, 2>, scalar_prefetch = 0 : i64, scratch_operands = 1 : i64, tpu.core_type = #tpu.core_type<tc>, window_params = [{transform_indices = @transform_0, window_bounds = array<i64: 1, 8, 16, 2>}, {transform_indices = @transform_1, window_bounds = array<i64: 1, 1, 16, 2>}, {transform_indices = @transform_2, window_bounds = array<i64: 1, 1, 16, 2>}, {pipeline_mode = #tpu.pipeline_mode<synchronous>, transform_indices = @transform_3, window_bounds = array<i64: 9, 2, 2>}, {pipeline_mode = #tpu.pipeline_mode<synchronous>, transform_indices = @transform_4, window_bounds = array<i64: 1, 2>}, {transform_indices = @transform_5, window_bounds = array<i64: 1, 8, 16, 2>}]} {
    %cst = arith.constant 0.000000e+00 : bf16
    %0 = vector.broadcast %cst : bf16 to vector<10x1x2xbf16>
    %c0 = arith.constant 0 : index
    %c0_0 = arith.constant 0 : index
    %c0_1 = arith.constant 0 : index
    %1 = vector.load %arg8[%c0, %c0_0, %c0_1] : memref<10x18x2xbf16, #tpu.memory_space<vmem>>, vector<10x1x2xbf16>
    tpu.vector_store %arg8[%c0, %c0_0, %c0_1], %0 {strides = array<i32>} : memref<10x18x2xbf16, #tpu.memory_space<vmem>>, vector<10x1x2xbf16>,
    %c0_2 = arith.constant 0 : index
    %c17 = arith.constant 17 : index
    %c0_3 = arith.constant 0 : index
    %2 = vector.load %arg8[%c0_2, %c17, %c0_3] : memref<10x18x2xbf16, #tpu.memory_space<vmem>>, vector<10x1x2xbf16>
    tpu.vector_store %arg8[%c0_2, %c17, %c0_3], %0 {strides = array<i32>} : memref<10x18x2xbf16, #tpu.memory_space<vmem>>, vector<10x1x2xbf16>,
    %c0_4 = arith.constant 0 : index
    %c0_5 = arith.constant 0 : index
    %c0_6 = arith.constant 0 : index
    %c0_7 = arith.constant 0 : index
    %3 = vector.load %arg2[%c0_4, %c0_5, %c0_6, %c0_7] : memref<1x8x16x2xbf16, #tpu.memory_space<vmem>>, vector<1x8x16x2xbf16>
    %4 = vector.shape_cast %3 : vector<1x8x16x2xbf16> to vector<8x16x2xbf16>
    %c1 = arith.constant 1 : index
    %c1_8 = arith.constant 1 : index
    %c0_9 = arith.constant 0 : index
    %5 = vector.load %arg8[%c1, %c1_8, %c0_9] : memref<10x18x2xbf16, #tpu.memory_space<vmem>>, vector<8x16x2xbf16>
    tpu.vector_store %arg8[%c1, %c1_8, %c0_9], %4 {strides = array<i32>} : memref<10x18x2xbf16, #tpu.memory_space<vmem>>, vector<8x16x2xbf16>,
    %cst_10 = arith.constant 0.000000e+00 : bf16
    %6 = vector.broadcast %cst_10 : bf16 to vector<1x16x2xbf16>
    %c0_i32 = arith.constant 0 : i32
    %7 = arith.cmpi eq, %arg1, %c0_i32 : i32
    %8 = arith.extui %7 : i1 to i32
    %c0_i32_11 = arith.constant 0 : i32
    %9 = arith.cmpi ne, %8, %c0_i32_11 : i32
    scf.if %9 {
      %c0_82 = arith.constant 0 : index
      %c1_83 = arith.constant 1 : index
      %c0_84 = arith.constant 0 : index
      %87 = vector.load %arg8[%c0_82, %c1_83, %c0_84] : memref<10x18x2xbf16, #tpu.memory_space<vmem>>, vector<1x16x2xbf16>
      tpu.vector_store %arg8[%c0_82, %c1_83, %c0_84], %6 {strides = array<i32>} : memref<10x18x2xbf16, #tpu.memory_space<vmem>>, vector<1x16x2xbf16>,
    } else {
    }
    %c0_i32_12 = arith.constant 0 : i32
    %10 = arith.cmpi sgt, %arg1, %c0_i32_12 : i32
    %11 = arith.extui %10 : i1 to i32
    %c0_i32_13 = arith.constant 0 : i32
    %12 = arith.cmpi ne, %11, %c0_i32_13 : i32
    scf.if %12 {
      %c0_82 = arith.constant 0 : index
      %c0_83 = arith.constant 0 : index
      %c0_84 = arith.constant 0 : index
      %c0_85 = arith.constant 0 : index
      %87 = vector.load %arg3[%c0_82, %c0_83, %c0_84, %c0_85] : memref<1x1x16x2xbf16, #tpu.memory_space<vmem>>, vector<1x1x16x2xbf16>
      %88 = vector.shape_cast %87 : vector<1x1x16x2xbf16> to vector<1x16x2xbf16>
      %c0_86 = arith.constant 0 : index
      %c1_87 = arith.constant 1 : index
      %c0_88 = arith.constant 0 : index
      %89 = vector.load %arg8[%c0_86, %c1_87, %c0_88] : memref<10x18x2xbf16, #tpu.memory_space<vmem>>, vector<1x16x2xbf16>
      tpu.vector_store %arg8[%c0_86, %c1_87, %c0_88], %88 {strides = array<i32>} : memref<10x18x2xbf16, #tpu.memory_space<vmem>>, vector<1x16x2xbf16>,
    } else {
    }
    %c1_i32 = arith.constant 1 : i32
    %13 = arith.cmpi eq, %arg1, %c1_i32 : i32
    %14 = arith.extui %13 : i1 to i32
    %c0_i32_14 = arith.constant 0 : i32
    %15 = arith.cmpi ne, %14, %c0_i32_14 : i32
    scf.if %15 {
      %c9 = arith.constant 9 : index
      %c1_82 = arith.constant 1 : index
      %c0_83 = arith.constant 0 : index
      %87 = vector.load %arg8[%c9, %c1_82, %c0_83] : memref<10x18x2xbf16, #tpu.memory_space<vmem>>, vector<1x16x2xbf16>
      tpu.vector_store %arg8[%c9, %c1_82, %c0_83], %6 {strides = array<i32>} : memref<10x18x2xbf16, #tpu.memory_space<vmem>>, vector<1x16x2xbf16>,
    } else {
    }
    %c1_i32_15 = arith.constant 1 : i32
    %16 = arith.cmpi slt, %arg1, %c1_i32_15 : i32
    %17 = arith.extui %16 : i1 to i32
    %c0_i32_16 = arith.constant 0 : i32
    %18 = arith.cmpi ne, %17, %c0_i32_16 : i32
    scf.if %18 {
      %c0_82 = arith.constant 0 : index
      %c0_83 = arith.constant 0 : index
      %c0_84 = arith.constant 0 : index
      %c0_85 = arith.constant 0 : index
      %87 = vector.load %arg4[%c0_82, %c0_83, %c0_84, %c0_85] : memref<1x1x16x2xbf16, #tpu.memory_space<vmem>>, vector<1x1x16x2xbf16>
      %88 = vector.shape_cast %87 : vector<1x1x16x2xbf16> to vector<1x16x2xbf16>
      %c9 = arith.constant 9 : index
      %c1_86 = arith.constant 1 : index
      %c0_87 = arith.constant 0 : index
      %89 = vector.load %arg8[%c9, %c1_86, %c0_87] : memref<10x18x2xbf16, #tpu.memory_space<vmem>>, vector<1x16x2xbf16>
      tpu.vector_store %arg8[%c9, %c1_86, %c0_87], %88 {strides = array<i32>} : memref<10x18x2xbf16, #tpu.memory_space<vmem>>, vector<1x16x2xbf16>,
    } else {
    }
    %cst_17 = arith.constant 0.000000e+00 : f32
    %19 = vector.broadcast %cst_17 : f32 to vector<128x2xf32>
    %c0_18 = arith.constant 0 : index
    %c0_19 = arith.constant 0 : index
    %c0_20 = arith.constant 0 : index
    %20 = vector.load %arg8[%c0_18, %c0_19, %c0_20] : memref<10x18x2xbf16, #tpu.memory_space<vmem>>, vector<8x16x2xbf16>
    %21 = vector.shape_cast %20 : vector<8x16x2xbf16> to vector<128x2xbf16>
    %c0_21 = arith.constant 0 : index
    %c0_22 = arith.constant 0 : index
    %c0_23 = arith.constant 0 : index
    %22 = vector.load %arg5[%c0_21, %c0_22, %c0_23] : memref<9x2x2xbf16, #tpu.memory_space<vmem>>, vector<1x2x2xbf16>
    %23 = vector.shape_cast %22 : vector<1x2x2xbf16> to vector<2x2xbf16>
    %cst_24 = arith.constant dense<0.000000e+00> : vector<128x2xf32>
    %24 = tpu.matmul %21, %23, %cst_24 {dimension_numbers = #tpu.dot_dimension_numbers<[1], [0], [0], [1], [0, 0, 1, 1], [], []>} : vector<128x2xbf16>, vector<2x2xbf16>, vector<128x2xf32> -> vector<128x2xf32>
    %25 = arith.addf %19, %24 : vector<128x2xf32>
    %c0_25 = arith.constant 0 : index
    %c1_26 = arith.constant 1 : index
    %c0_27 = arith.constant 0 : index
    %26 = vector.load %arg8[%c0_25, %c1_26, %c0_27] : memref<10x18x2xbf16, #tpu.memory_space<vmem>>, vector<8x16x2xbf16>
    %27 = vector.shape_cast %26 : vector<8x16x2xbf16> to vector<128x2xbf16>
    %c1_28 = arith.constant 1 : index
    %c0_29 = arith.constant 0 : index
    %c0_30 = arith.constant 0 : index
    %28 = vector.load %arg5[%c1_28, %c0_29, %c0_30] : memref<9x2x2xbf16, #tpu.memory_space<vmem>>, vector<1x2x2xbf16>
    %29 = vector.shape_cast %28 : vector<1x2x2xbf16> to vector<2x2xbf16>
    %cst_31 = arith.constant dense<0.000000e+00> : vector<128x2xf32>
    %30 = tpu.matmul %27, %29, %cst_31 {dimension_numbers = #tpu.dot_dimension_numbers<[1], [0], [0], [1], [0, 0, 1, 1], [], []>} : vector<128x2xbf16>, vector<2x2xbf16>, vector<128x2xf32> -> vector<128x2xf32>
    %31 = arith.addf %25, %30 : vector<128x2xf32>
    %c0_32 = arith.constant 0 : index
    %c2 = arith.constant 2 : index
    %c0_33 = arith.constant 0 : index
    %32 = vector.load %arg8[%c0_32, %c2, %c0_33] : memref<10x18x2xbf16, #tpu.memory_space<vmem>>, vector<8x16x2xbf16>
    %33 = vector.shape_cast %32 : vector<8x16x2xbf16> to vector<128x2xbf16>
    %c2_34 = arith.constant 2 : index
    %c0_35 = arith.constant 0 : index
    %c0_36 = arith.constant 0 : index
    %34 = vector.load %arg5[%c2_34, %c0_35, %c0_36] : memref<9x2x2xbf16, #tpu.memory_space<vmem>>, vector<1x2x2xbf16>
    %35 = vector.shape_cast %34 : vector<1x2x2xbf16> to vector<2x2xbf16>
    %cst_37 = arith.constant dense<0.000000e+00> : vector<128x2xf32>
    %36 = tpu.matmul %33, %35, %cst_37 {dimension_numbers = #tpu.dot_dimension_numbers<[1], [0], [0], [1], [0, 0, 1, 1], [], []>} : vector<128x2xbf16>, vector<2x2xbf16>, vector<128x2xf32> -> vector<128x2xf32>
    %37 = arith.addf %31, %36 : vector<128x2xf32>
    %c1_38 = arith.constant 1 : index
    %c0_39 = arith.constant 0 : index
    %c0_40 = arith.constant 0 : index
    %38 = vector.load %arg8[%c1_38, %c0_39, %c0_40] : memref<10x18x2xbf16, #tpu.memory_space<vmem>>, vector<8x16x2xbf16>
    %39 = vector.shape_cast %38 : vector<8x16x2xbf16> to vector<128x2xbf16>
    %c3 = arith.constant 3 : index
    %c0_41 = arith.constant 0 : index
    %c0_42 = arith.constant 0 : index
    %40 = vector.load %arg5[%c3, %c0_41, %c0_42] : memref<9x2x2xbf16, #tpu.memory_space<vmem>>, vector<1x2x2xbf16>
    %41 = vector.shape_cast %40 : vector<1x2x2xbf16> to vector<2x2xbf16>
    %cst_43 = arith.constant dense<0.000000e+00> : vector<128x2xf32>
    %42 = tpu.matmul %39, %41, %cst_43 {dimension_numbers = #tpu.dot_dimension_numbers<[1], [0], [0], [1], [0, 0, 1, 1], [], []>} : vector<128x2xbf16>, vector<2x2xbf16>, vector<128x2xf32> -> vector<128x2xf32>
    %43 = arith.addf %37, %42 : vector<128x2xf32>
    %c1_44 = arith.constant 1 : index
    %c1_45 = arith.constant 1 : index
    %c0_46 = arith.constant 0 : index
    %44 = vector.load %arg8[%c1_44, %c1_45, %c0_46] : memref<10x18x2xbf16, #tpu.memory_space<vmem>>, vector<8x16x2xbf16>
    %45 = vector.shape_cast %44 : vector<8x16x2xbf16> to vector<128x2xbf16>
    %c4 = arith.constant 4 : index
    %c0_47 = arith.constant 0 : index
    %c0_48 = arith.constant 0 : index
    %46 = vector.load %arg5[%c4, %c0_47, %c0_48] : memref<9x2x2xbf16, #tpu.memory_space<vmem>>, vector<1x2x2xbf16>
    %47 = vector.shape_cast %46 : vector<1x2x2xbf16> to vector<2x2xbf16>
    %cst_49 = arith.constant dense<0.000000e+00> : vector<128x2xf32>
    %48 = tpu.matmul %45, %47, %cst_49 {dimension_numbers = #tpu.dot_dimension_numbers<[1], [0], [0], [1], [0, 0, 1, 1], [], []>} : vector<128x2xbf16>, vector<2x2xbf16>, vector<128x2xf32> -> vector<128x2xf32>
    %49 = arith.addf %43, %48 : vector<128x2xf32>
    %c1_50 = arith.constant 1 : index
    %c2_51 = arith.constant 2 : index
    %c0_52 = arith.constant 0 : index
    %50 = vector.load %arg8[%c1_50, %c2_51, %c0_52] : memref<10x18x2xbf16, #tpu.memory_space<vmem>>, vector<8x16x2xbf16>
    %51 = vector.shape_cast %50 : vector<8x16x2xbf16> to vector<128x2xbf16>
    %c5 = arith.constant 5 : index
    %c0_53 = arith.constant 0 : index
    %c0_54 = arith.constant 0 : index
    %52 = vector.load %arg5[%c5, %c0_53, %c0_54] : memref<9x2x2xbf16, #tpu.memory_space<vmem>>, vector<1x2x2xbf16>
    %53 = vector.shape_cast %52 : vector<1x2x2xbf16> to vector<2x2xbf16>
    %cst_55 = arith.constant dense<0.000000e+00> : vector<128x2xf32>
    %54 = tpu.matmul %51, %53, %cst_55 {dimension_numbers = #tpu.dot_dimension_numbers<[1], [0], [0], [1], [0, 0, 1, 1], [], []>} : vector<128x2xbf16>, vector<2x2xbf16>, vector<128x2xf32> -> vector<128x2xf32>
    %55 = arith.addf %49, %54 : vector<128x2xf32>
    %c2_56 = arith.constant 2 : index
    %c0_57 = arith.constant 0 : index
    %c0_58 = arith.constant 0 : index
    %56 = vector.load %arg8[%c2_56, %c0_57, %c0_58] : memref<10x18x2xbf16, #tpu.memory_space<vmem>>, vector<8x16x2xbf16>
    %57 = vector.shape_cast %56 : vector<8x16x2xbf16> to vector<128x2xbf16>
    %c6 = arith.constant 6 : index
    %c0_59 = arith.constant 0 : index
    %c0_60 = arith.constant 0 : index
    %58 = vector.load %arg5[%c6, %c0_59, %c0_60] : memref<9x2x2xbf16, #tpu.memory_space<vmem>>, vector<1x2x2xbf16>
    %59 = vector.shape_cast %58 : vector<1x2x2xbf16> to vector<2x2xbf16>
    %cst_61 = arith.constant dense<0.000000e+00> : vector<128x2xf32>
    %60 = tpu.matmul %57, %59, %cst_61 {dimension_numbers = #tpu.dot_dimension_numbers<[1], [0], [0], [1], [0, 0, 1, 1], [], []>} : vector<128x2xbf16>, vector<2x2xbf16>, vector<128x2xf32> -> vector<128x2xf32>
    %61 = arith.addf %55, %60 : vector<128x2xf32>
    %c2_62 = arith.constant 2 : index
    %c1_63 = arith.constant 1 : index
    %c0_64 = arith.constant 0 : index
    %62 = vector.load %arg8[%c2_62, %c1_63, %c0_64] : memref<10x18x2xbf16, #tpu.memory_space<vmem>>, vector<8x16x2xbf16>
    %63 = vector.shape_cast %62 : vector<8x16x2xbf16> to vector<128x2xbf16>
    %c7 = arith.constant 7 : index
    %c0_65 = arith.constant 0 : index
    %c0_66 = arith.constant 0 : index
    %64 = vector.load %arg5[%c7, %c0_65, %c0_66] : memref<9x2x2xbf16, #tpu.memory_space<vmem>>, vector<1x2x2xbf16>
    %65 = vector.shape_cast %64 : vector<1x2x2xbf16> to vector<2x2xbf16>
    %cst_67 = arith.constant dense<0.000000e+00> : vector<128x2xf32>
    %66 = tpu.matmul %63, %65, %cst_67 {dimension_numbers = #tpu.dot_dimension_numbers<[1], [0], [0], [1], [0, 0, 1, 1], [], []>} : vector<128x2xbf16>, vector<2x2xbf16>, vector<128x2xf32> -> vector<128x2xf32>
    %67 = arith.addf %61, %66 : vector<128x2xf32>
    %c2_68 = arith.constant 2 : index
    %c2_69 = arith.constant 2 : index
    %c0_70 = arith.constant 0 : index
    %68 = vector.load %arg8[%c2_68, %c2_69, %c0_70] : memref<10x18x2xbf16, #tpu.memory_space<vmem>>, vector<8x16x2xbf16>
    %69 = vector.shape_cast %68 : vector<8x16x2xbf16> to vector<128x2xbf16>
    %c8 = arith.constant 8 : index
    %c0_71 = arith.constant 0 : index
    %c0_72 = arith.constant 0 : index
    %70 = vector.load %arg5[%c8, %c0_71, %c0_72] : memref<9x2x2xbf16, #tpu.memory_space<vmem>>, vector<1x2x2xbf16>
    %71 = vector.shape_cast %70 : vector<1x2x2xbf16> to vector<2x2xbf16>
    %cst_73 = arith.constant dense<0.000000e+00> : vector<128x2xf32>
    %72 = tpu.matmul %69, %71, %cst_73 {dimension_numbers = #tpu.dot_dimension_numbers<[1], [0], [0], [1], [0, 0, 1, 1], [], []>} : vector<128x2xbf16>, vector<2x2xbf16>, vector<128x2xf32> -> vector<128x2xf32>
    %73 = arith.addf %67, %72 : vector<128x2xf32>
    %c0_74 = arith.constant 0 : index
    %c0_75 = arith.constant 0 : index
    %74 = vector.load %arg6[%c0_74, %c0_75] : memref<1x2xf32, #tpu.memory_space<vmem>>, vector<1x2xf32>
    %75 = vector.broadcast %74 : vector<1x2xf32> to vector<128x2xf32>
    %76 = arith.addf %73, %75 : vector<128x2xf32>
    %cst_76 = arith.constant 0.000000e+00 : f32
    %77 = vector.broadcast %cst_76 : f32 to vector<128x2xf32>
    %78 = arith.subf %77, %76 : vector<128x2xf32>
    %79 = math.exp %78 : vector<128x2xf32>
    %cst_77 = arith.constant 1.000000e+00 : f32
    %80 = vector.broadcast %cst_77 : f32 to vector<128x2xf32>
    %81 = arith.addf %80, %79 : vector<128x2xf32>
    %82 = tpu.reciprocal %81 {approx = true} : vector<128x2xf32> -> vector<128x2xf32>
    %83 = arith.mulf %76, %82 : vector<128x2xf32>
    %84 = vector.shape_cast %83 : vector<128x2xf32> to vector<1x8x16x2xf32>
    %85 = arith.truncf %84 : vector<1x8x16x2xf32> to vector<1x8x16x2xbf16>
    %c0_78 = arith.constant 0 : index
    %c0_79 = arith.constant 0 : index
    %c0_80 = arith.constant 0 : index
    %c0_81 = arith.constant 0 : index
    %86 = vector.load %arg7[%c0_78, %c0_79, %c0_80, %c0_81] : memref<1x8x16x2xbf16, #tpu.memory_space<vmem>>, vector<1x8x16x2xbf16>
    tpu.vector_store %arg7[%c0_78, %c0_79, %c0_80, %c0_81], %85 {strides = array<i32>} : memref<1x8x16x2xbf16, #tpu.memory_space<vmem>>, vector<1x8x16x2xbf16>,
    return
  }
  func.func @transform_0(%arg0: i32, %arg1: i32) -> (i32, i32, i32, i32) {
    %c0_i32 = arith.constant 0 : i32
    %c0_i32_0 = arith.constant 0 : i32
    %c0_i32_1 = arith.constant 0 : i32
    return %arg0, %arg1, %c0_i32, %c0_i32_0 : i32, i32, i32, i32
  }
  func.func @transform_1(%arg0: i32, %arg1: i32) -> (i32, i32, i32, i32) {
    %c8_i32 = arith.constant 8 : i32
    %0 = arith.muli %arg1, %c8_i32 : i32
    %c1_i32 = arith.constant 1 : i32
    %1 = arith.subi %0, %c1_i32 : i32
    %c0_i32 = arith.constant 0 : i32
    %2 = arith.maxsi %1, %c0_i32 : i32
    %c0_i32_0 = arith.constant 0 : i32
    %c0_i32_1 = arith.constant 0 : i32
    %c0_i32_2 = arith.constant 0 : i32
    return %arg0, %2, %c0_i32_0, %c0_i32_1 : i32, i32, i32, i32
  }
  func.func @transform_2(%arg0: i32, %arg1: i32) -> (i32, i32, i32, i32) {
    %c1_i32 = arith.constant 1 : i32
    %0 = arith.addi %arg1, %c1_i32 : i32
    %c8_i32 = arith.constant 8 : i32
    %1 = arith.muli %0, %c8_i32 : i32
    %c15_i32 = arith.constant 15 : i32
    %2 = arith.minsi %1, %c15_i32 : i32
    %c0_i32 = arith.constant 0 : i32
    %c0_i32_0 = arith.constant 0 : i32
    %c0_i32_1 = arith.constant 0 : i32
    return %arg0, %2, %c0_i32, %c0_i32_0 : i32, i32, i32, i32
  }
  func.func @transform_3(%arg0: i32, %arg1: i32) -> (i32, i32, i32) {
    %c0_i32 = arith.constant 0 : i32
    %c0_i32_0 = arith.constant 0 : i32
    %c0_i32_1 = arith.constant 0 : i32
    %c0_i32_2 = arith.constant 0 : i32
    return %c0_i32, %c0_i32_0, %c0_i32_1 : i32, i32, i32
  }
  func.func @transform_4(%arg0: i32, %arg1: i32) -> (i32, i32) {
    %c0_i32 = arith.constant 0 : i32
    %c0_i32_0 = arith.constant 0 : i32
    %c0_i32_1 = arith.constant 0 : i32
    return %c0_i32, %c0_i32_0 : i32, i32
  }
  func.func @transform_5(%arg0: i32, %arg1: i32) -> (i32, i32, i32, i32) {
    %c0_i32 = arith.constant 0 : i32
    %c0_i32_0 = arith.constant 0 : i32
    %c0_i32_1 = arith.constant 0 : i32
    return %arg0, %arg1, %c0_i32, %c0_i32_0 : i32, i32, i32, i32
  }
}

module attributes {stable_mosaic.version = 11 : i64} {
  func.func @_concat_pointwise_kernel(%arg0: i32, %arg1: memref<256x4xbf16, #tpu.memory_space<vmem>>, %arg2: memref<256x4xbf16, #tpu.memory_space<vmem>>, %arg3: memref<256x2xbf16, #tpu.memory_space<vmem>>, %arg4: memref<256x2xbf16, #tpu.memory_space<vmem>>, %arg5: memref<256x2xbf16, #tpu.memory_space<vmem>>, %arg6: memref<256x2xbf16, #tpu.memory_space<vmem>>, %arg7: memref<4x8xbf16, #tpu.memory_space<vmem>>, %arg8: memref<4x8xbf16, #tpu.memory_space<vmem>>, %arg9: memref<2x8xbf16, #tpu.memory_space<vmem>>, %arg10: memref<2x8xbf16, #tpu.memory_space<vmem>>, %arg11: memref<2x8xbf16, #tpu.memory_space<vmem>>, %arg12: memref<2x8xbf16, #tpu.memory_space<vmem>>, %arg13: memref<1x8xf32, #tpu.memory_space<vmem>>, %arg14: memref<256x8xbf16, #tpu.memory_space<vmem>>) attributes {dimension_semantics = [#tpu.dimension_semantics<parallel>], iteration_bounds = array<i64: 2>, scalar_prefetch = 0 : i64, scratch_operands = 0 : i64, tpu.core_type = #tpu.core_type<tc>, window_params = [{transform_indices = @transform_0, window_bounds = array<i64: 256, 4>}, {transform_indices = @transform_1, window_bounds = array<i64: 256, 4>}, {transform_indices = @transform_2, window_bounds = array<i64: 256, 2>}, {transform_indices = @transform_3, window_bounds = array<i64: 256, 2>}, {transform_indices = @transform_4, window_bounds = array<i64: 256, 2>}, {transform_indices = @transform_5, window_bounds = array<i64: 256, 2>}, {pipeline_mode = #tpu.pipeline_mode<synchronous>, transform_indices = @transform_6, window_bounds = array<i64: 4, 8>}, {pipeline_mode = #tpu.pipeline_mode<synchronous>, transform_indices = @transform_7, window_bounds = array<i64: 4, 8>}, {pipeline_mode = #tpu.pipeline_mode<synchronous>, transform_indices = @transform_8, window_bounds = array<i64: 2, 8>}, {pipeline_mode = #tpu.pipeline_mode<synchronous>, transform_indices = @transform_9, window_bounds = array<i64: 2, 8>}, {pipeline_mode = #tpu.pipeline_mode<synchronous>, transform_indices = @transform_10, window_bounds = array<i64: 2, 8>}, {pipeline_mode = #tpu.pipeline_mode<synchronous>, transform_indices = @transform_11, window_bounds = array<i64: 2, 8>}, {pipeline_mode = #tpu.pipeline_mode<synchronous>, transform_indices = @transform_12, window_bounds = array<i64: 1, 8>}, {transform_indices = @transform_13, window_bounds = array<i64: 256, 8>}]} {
    %c0 = arith.constant 0 : index
    %c0_0 = arith.constant 0 : index
    %0 = vector.load %arg1[%c0, %c0_0] : memref<256x4xbf16, #tpu.memory_space<vmem>>, vector<256x4xbf16>
    %c0_1 = arith.constant 0 : index
    %c0_2 = arith.constant 0 : index
    %1 = vector.load %arg7[%c0_1, %c0_2] : memref<4x8xbf16, #tpu.memory_space<vmem>>, vector<4x8xbf16>
    %cst = arith.constant dense<0.000000e+00> : vector<256x8xf32>
    %2 = tpu.matmul %0, %1, %cst {dimension_numbers = #tpu.dot_dimension_numbers<[1], [0], [0], [1], [0, 0, 1, 1], [], []>} : vector<256x4xbf16>, vector<4x8xbf16>, vector<256x8xf32> -> vector<256x8xf32>
    %c0_3 = arith.constant 0 : index
    %c0_4 = arith.constant 0 : index
    %3 = vector.load %arg2[%c0_3, %c0_4] : memref<256x4xbf16, #tpu.memory_space<vmem>>, vector<256x4xbf16>
    %c0_5 = arith.constant 0 : index
    %c0_6 = arith.constant 0 : index
    %4 = vector.load %arg8[%c0_5, %c0_6] : memref<4x8xbf16, #tpu.memory_space<vmem>>, vector<4x8xbf16>
    %cst_7 = arith.constant dense<0.000000e+00> : vector<256x8xf32>
    %5 = tpu.matmul %3, %4, %cst_7 {dimension_numbers = #tpu.dot_dimension_numbers<[1], [0], [0], [1], [0, 0, 1, 1], [], []>} : vector<256x4xbf16>, vector<4x8xbf16>, vector<256x8xf32> -> vector<256x8xf32>
    %6 = arith.addf %2, %5 : vector<256x8xf32>
    %c0_8 = arith.constant 0 : index
    %c0_9 = arith.constant 0 : index
    %7 = vector.load %arg3[%c0_8, %c0_9] : memref<256x2xbf16, #tpu.memory_space<vmem>>, vector<256x2xbf16>
    %c0_10 = arith.constant 0 : index
    %c0_11 = arith.constant 0 : index
    %8 = vector.load %arg9[%c0_10, %c0_11] : memref<2x8xbf16, #tpu.memory_space<vmem>>, vector<2x8xbf16>
    %cst_12 = arith.constant dense<0.000000e+00> : vector<256x8xf32>
    %9 = tpu.matmul %7, %8, %cst_12 {dimension_numbers = #tpu.dot_dimension_numbers<[1], [0], [0], [1], [0, 0, 1, 1], [], []>} : vector<256x2xbf16>, vector<2x8xbf16>, vector<256x8xf32> -> vector<256x8xf32>
    %10 = arith.addf %6, %9 : vector<256x8xf32>
    %c0_13 = arith.constant 0 : index
    %c0_14 = arith.constant 0 : index
    %11 = vector.load %arg4[%c0_13, %c0_14] : memref<256x2xbf16, #tpu.memory_space<vmem>>, vector<256x2xbf16>
    %c0_15 = arith.constant 0 : index
    %c0_16 = arith.constant 0 : index
    %12 = vector.load %arg10[%c0_15, %c0_16] : memref<2x8xbf16, #tpu.memory_space<vmem>>, vector<2x8xbf16>
    %cst_17 = arith.constant dense<0.000000e+00> : vector<256x8xf32>
    %13 = tpu.matmul %11, %12, %cst_17 {dimension_numbers = #tpu.dot_dimension_numbers<[1], [0], [0], [1], [0, 0, 1, 1], [], []>} : vector<256x2xbf16>, vector<2x8xbf16>, vector<256x8xf32> -> vector<256x8xf32>
    %14 = arith.addf %10, %13 : vector<256x8xf32>
    %c0_18 = arith.constant 0 : index
    %c0_19 = arith.constant 0 : index
    %15 = vector.load %arg5[%c0_18, %c0_19] : memref<256x2xbf16, #tpu.memory_space<vmem>>, vector<256x2xbf16>
    %c0_20 = arith.constant 0 : index
    %c0_21 = arith.constant 0 : index
    %16 = vector.load %arg11[%c0_20, %c0_21] : memref<2x8xbf16, #tpu.memory_space<vmem>>, vector<2x8xbf16>
    %cst_22 = arith.constant dense<0.000000e+00> : vector<256x8xf32>
    %17 = tpu.matmul %15, %16, %cst_22 {dimension_numbers = #tpu.dot_dimension_numbers<[1], [0], [0], [1], [0, 0, 1, 1], [], []>} : vector<256x2xbf16>, vector<2x8xbf16>, vector<256x8xf32> -> vector<256x8xf32>
    %18 = arith.addf %14, %17 : vector<256x8xf32>
    %c0_23 = arith.constant 0 : index
    %c0_24 = arith.constant 0 : index
    %19 = vector.load %arg6[%c0_23, %c0_24] : memref<256x2xbf16, #tpu.memory_space<vmem>>, vector<256x2xbf16>
    %c0_25 = arith.constant 0 : index
    %c0_26 = arith.constant 0 : index
    %20 = vector.load %arg12[%c0_25, %c0_26] : memref<2x8xbf16, #tpu.memory_space<vmem>>, vector<2x8xbf16>
    %cst_27 = arith.constant dense<0.000000e+00> : vector<256x8xf32>
    %21 = tpu.matmul %19, %20, %cst_27 {dimension_numbers = #tpu.dot_dimension_numbers<[1], [0], [0], [1], [0, 0, 1, 1], [], []>} : vector<256x2xbf16>, vector<2x8xbf16>, vector<256x8xf32> -> vector<256x8xf32>
    %22 = arith.addf %18, %21 : vector<256x8xf32>
    %c0_28 = arith.constant 0 : index
    %c0_29 = arith.constant 0 : index
    %23 = vector.load %arg13[%c0_28, %c0_29] : memref<1x8xf32, #tpu.memory_space<vmem>>, vector<1x8xf32>
    %24 = vector.broadcast %23 : vector<1x8xf32> to vector<256x8xf32>
    %25 = arith.addf %22, %24 : vector<256x8xf32>
    %cst_30 = arith.constant 0.000000e+00 : f32
    %26 = vector.broadcast %cst_30 : f32 to vector<256x8xf32>
    %27 = arith.subf %26, %25 : vector<256x8xf32>
    %28 = math.exp %27 : vector<256x8xf32>
    %cst_31 = arith.constant 1.000000e+00 : f32
    %29 = vector.broadcast %cst_31 : f32 to vector<256x8xf32>
    %30 = arith.addf %29, %28 : vector<256x8xf32>
    %31 = tpu.reciprocal %30 {approx = true} : vector<256x8xf32> -> vector<256x8xf32>
    %32 = arith.mulf %25, %31 : vector<256x8xf32>
    %33 = arith.truncf %32 : vector<256x8xf32> to vector<256x8xbf16>
    %c0_32 = arith.constant 0 : index
    %c0_33 = arith.constant 0 : index
    %34 = vector.load %arg14[%c0_32, %c0_33] : memref<256x8xbf16, #tpu.memory_space<vmem>>, vector<256x8xbf16>
    tpu.vector_store %arg14[%c0_32, %c0_33], %33 {strides = array<i32>} : memref<256x8xbf16, #tpu.memory_space<vmem>>, vector<256x8xbf16>,
    return
  }
  func.func @transform_0(%arg0: i32) -> (i32, i32) {
    %c0_i32 = arith.constant 0 : i32
    %c0_i32_0 = arith.constant 0 : i32
    return %arg0, %c0_i32 : i32, i32
  }
  func.func @transform_1(%arg0: i32) -> (i32, i32) {
    %c0_i32 = arith.constant 0 : i32
    %c0_i32_0 = arith.constant 0 : i32
    return %arg0, %c0_i32 : i32, i32
  }
  func.func @transform_2(%arg0: i32) -> (i32, i32) {
    %c0_i32 = arith.constant 0 : i32
    %c0_i32_0 = arith.constant 0 : i32
    return %arg0, %c0_i32 : i32, i32
  }
  func.func @transform_3(%arg0: i32) -> (i32, i32) {
    %c0_i32 = arith.constant 0 : i32
    %c0_i32_0 = arith.constant 0 : i32
    return %arg0, %c0_i32 : i32, i32
  }
  func.func @transform_4(%arg0: i32) -> (i32, i32) {
    %c0_i32 = arith.constant 0 : i32
    %c0_i32_0 = arith.constant 0 : i32
    return %arg0, %c0_i32 : i32, i32
  }
  func.func @transform_5(%arg0: i32) -> (i32, i32) {
    %c0_i32 = arith.constant 0 : i32
    %c0_i32_0 = arith.constant 0 : i32
    return %arg0, %c0_i32 : i32, i32
  }
  func.func @transform_6(%arg0: i32) -> (i32, i32) {
    %c0_i32 = arith.constant 0 : i32
    %c0_i32_0 = arith.constant 0 : i32
    %c0_i32_1 = arith.constant 0 : i32
    return %c0_i32, %c0_i32_0 : i32, i32
  }
  func.func @transform_7(%arg0: i32) -> (i32, i32) {
    %c0_i32 = arith.constant 0 : i32
    %c0_i32_0 = arith.constant 0 : i32
    %c0_i32_1 = arith.constant 0 : i32
    return %c0_i32, %c0_i32_0 : i32, i32
  }
  func.func @transform_8(%arg0: i32) -> (i32, i32) {
    %c0_i32 = arith.constant 0 : i32
    %c0_i32_0 = arith.constant 0 : i32
    %c0_i32_1 = arith.constant 0 : i32
    return %c0_i32, %c0_i32_0 : i32, i32
  }
  func.func @transform_9(%arg0: i32) -> (i32, i32) {
    %c0_i32 = arith.constant 0 : i32
    %c0_i32_0 = arith.constant 0 : i32
    %c0_i32_1 = arith.constant 0 : i32
    return %c0_i32, %c0_i32_0 : i32, i32
  }
  func.func @transform_10(%arg0: i32) -> (i32, i32) {
    %c0_i32 = arith.constant 0 : i32
    %c0_i32_0 = arith.constant 0 : i32
    %c0_i32_1 = arith.constant 0 : i32
    return %c0_i32, %c0_i32_0 : i32, i32
  }
  func.func @transform_11(%arg0: i32) -> (i32, i32) {
    %c0_i32 = arith.constant 0 : i32
    %c0_i32_0 = arith.constant 0 : i32
    %c0_i32_1 = arith.constant 0 : i32
    return %c0_i32, %c0_i32_0 : i32, i32
  }
  func.func @transform_12(%arg0: i32) -> (i32, i32) {
    %c0_i32 = arith.constant 0 : i32
    %c0_i32_0 = arith.constant 0 : i32
    %c0_i32_1 = arith.constant 0 : i32
    return %c0_i32, %c0_i32_0 : i32, i32
  }
  func.func @transform_13(%arg0: i32) -> (i32, i32) {
    %c0_i32 = arith.constant 0 : i32
    %c0_i32_0 = arith.constant 0 : i32
    return %arg0, %c0_i32 : i32, i32
  }
}

</mosaic_0001>

<llo_original>
// kernel: elan_block_fpn.6
$region0: #{elan_block_fpn.6}
  #allocation0 [shape = 'u32[]', space=smem, size = 0x4, offset = 0x4, fixed_abs, tag = 'smem constant byte address 0x4 - core index']
  #allocation1 [shape = 'u32[144,128]{1,0:T(1,128)}', space=vmem, size = 0x12000, scoped, tag = 'internal scratch']
  %s0 = inlined_call_operand.vmem [shape: bf16[512,8], index: 0, kind: input, shape index: {}]
  %s1 = inlined_call_operand.vmem [shape: bf16[8,4], index: 1, kind: input, shape index: {}]
  %s2 = inlined_call_operand.vmem [shape: bf16[8,4], index: 2, kind: input, shape index: {}]
  %s3 = inlined_call_operand.vmem [shape: f32[1,4], index: 3, kind: input, shape index: {}]
  %s4 = inlined_call_operand.vmem [shape: f32[1,4], index: 4, kind: input, shape index: {}]
  %s5 = inlined_call_operand.vmem [shape: bf16[512,4], index: 5, kind: output, shape index: {0}]
  %s6 = inlined_call_operand.vmem [shape: bf16[512,4], index: 6, kind: output, shape index: {1}]
  %7 = xla_tuple %s5, %s6
  %s8 = sld [smem:[#allocation0]]
  $region61: #{elan_block_fpn.6} parent=0
    _
  %s10 = ssub.s32 1, %s8
  %s11 = scalar_select 0, %s10, %s8
  loop: start=0, step=1, limit=4
  $region2: #{elan_block_fpn.6} parent=0 // loop_pre_header
    _
  $region3: #{elan_block_fpn.6} parent=0 // loop_header
    %s13 = sphi 0, %s17
    %p14 = scmp.ge.s32.totalorder %s13, 4
    %s23 = sphi 0, %s25
    %s26 = sphi 0, %s23
    %s27 = sphi 0, %s26
    %s43 = sphi 0, %s27
    %s47 = sphi 0, %s47
    %s49 = sphi 0, %s47
    %s50 = sphi 0, %s49
    %s64 = sphi 0, %s50
    %s68 = sphi 0, %s68
    %s70 = sphi 0, %s68
    %s71 = sphi 0, %s70
    %s85 = sphi 0, %s71
    %s89 = sphi 0, %s89
    %s91 = sphi 0, %s89
    %s92 = sphi 0, %s91
    %s106 = sphi 0, %s92
    %s110 = sphi 0, %s110
    %s112 = sphi 0, %s110
    %s113 = sphi 0, %s112
    %s127 = sphi 0, %s113
    %s133 = sphi 0, %s135
    %s136 = sphi 0, %s133
    %s137 = sphi 0, %s136
    %s153 = sphi 0, %s137
    %s159 = sphi 0, %s161
    %s162 = sphi 0, %s159
    %s163 = sphi 0, %s162
    %s179 = sphi 0, %s163
  $region4: #{elan_block_fpn.6} parent=0 // loop_header_branch
    %16 = sbr.rel (%p14) target = $region8
  $region5: #{elan_block_fpn.6} parent=0 // loop_body
    %s18 = ssub.s32 %s13, 1
    %s19 = ssub.s32 %s13, 2
    %s20 = sadd.s32 %s13, 1
    %s21 = ssub.s32 %s13, %s20
    %p22 = scmp.eq.s32.totalorder %s21, 0
    %s24 = sadd.s32 %s23, 1
    %s25 = scalar_select %p22, %s23, %s24
    %p28 = pneg %p22
    %p29 = scmp.eq.s32.totalorder %s13, 1
    %p30 = por %p28, %p29
    %p31 = scmp.ne.s32.totalorder %s23, %s26
    %p32 = scmp.eq.s32.totalorder %s13, 0
    %p33 = por %p31, %p32
    %p34 = scmp.ne.s32.totalorder %s23, %s26
    %p35 = scmp.eq.s32.totalorder %s18, 1
    %p36 = por %p34, %p35
    %p37 = scmp.ne.s32.totalorder %s26, %s27
    %p38 = scmp.eq.s32.totalorder %s18, 0
    %p39 = por %p37, %p38
    %p40 = scmp.ne.s32.totalorder %s26, %s27
    %p41 = scmp.eq.s32.totalorder %s19, 1
    %p42 = por %p40, %p41
    %p44 = scmp.ne.s32.totalorder %s27, %s43
    %p45 = scmp.eq.s32.totalorder %s19, 0
    %p46 = por %p44, %p45
    %s48 = sadd.s32 %s47, 1
    %p51 = scmp.eq.s32.totalorder %s13, 1
    %p52 = scmp.ne.s32.totalorder %s47, %s49
    %p53 = scmp.eq.s32.totalorder %s13, 0
    %p54 = por %p52, %p53
    %p55 = scmp.ne.s32.totalorder %s47, %s49
    %p56 = scmp.eq.s32.totalorder %s18, 1
    %p57 = por %p55, %p56
    %p58 = scmp.ne.s32.totalorder %s49, %s50
    %p59 = scmp.eq.s32.totalorder %s18, 0
    %p60 = por %p58, %p59
    %p61 = scmp.ne.s32.totalorder %s49, %s50
    %p62 = scmp.eq.s32.totalorder %s19, 1
    %p63 = por %p61, %p62
    %p65 = scmp.ne.s32.totalorder %s50, %s64
    %p66 = scmp.eq.s32.totalorder %s19, 0
    %p67 = por %p65, %p66
    %s69 = sadd.s32 %s68, 1
    %p72 = scmp.eq.s32.totalorder %s13, 1
    %p73 = scmp.ne.s32.totalorder %s68, %s70
    %p74 = scmp.eq.s32.totalorder %s13, 0
    %p75 = por %p73, %p74
    %p76 = scmp.ne.s32.totalorder %s68, %s70
    %p77 = scmp.eq.s32.totalorder %s18, 1
    %p78 = por %p76, %p77
    %p79 = scmp.ne.s32.totalorder %s70, %s71
    %p80 = scmp.eq.s32.totalorder %s18, 0
    %p81 = por %p79, %p80
    %p82 = scmp.ne.s32.totalorder %s70, %s71
    %p83 = scmp.eq.s32.totalorder %s19, 1
    %p84 = por %p82, %p83
    %p86 = scmp.ne.s32.totalorder %s71, %s85
    %p87 = scmp.eq.s32.totalorder %s19, 0
    %p88 = por %p86, %p87
    %s90 = sadd.s32 %s89, 1
    %p93 = scmp.eq.s32.totalorder %s13, 1
    %p94 = scmp.ne.s32.totalorder %s89, %s91
    %p95 = scmp.eq.s32.totalorder %s13, 0
    %p96 = por %p94, %p95
    %p97 = scmp.ne.s32.totalorder %s89, %s91
    %p98 = scmp.eq.s32.totalorder %s18, 1
    %p99 = por %p97, %p98
    %p100 = scmp.ne.s32.totalorder %s91, %s92
    %p101 = scmp.eq.s32.totalorder %s18, 0
    %p102 = por %p100, %p101
    %p103 = scmp.ne.s32.totalorder %s91, %s92
    %p104 = scmp.eq.s32.totalorder %s19, 1
    %p105 = por %p103, %p104
    %p107 = scmp.ne.s32.totalorder %s92, %s106
    %p108 = scmp.eq.s32.totalorder %s19, 0
    %p109 = por %p107, %p108
    %s111 = sadd.s32 %s110, 1
    %p114 = scmp.eq.s32.totalorder %s13, 1
    %p115 = scmp.ne.s32.totalorder %s110, %s112
    %p116 = scmp.eq.s32.totalorder %s13, 0
    %p117 = por %p115, %p116
    %p118 = scmp.ne.s32.totalorder %s110, %s112
    %p119 = scmp.eq.s32.totalorder %s18, 1
    %p120 = por %p118, %p119
    %p121 = scmp.ne.s32.totalorder %s112, %s113
    %p122 = scmp.eq.s32.totalorder %s18, 0
    %p123 = por %p121, %p122
    %p124 = scmp.ne.s32.totalorder %s112, %s113
    %p125 = scmp.eq.s32.totalorder %s19, 1
    %p126 = por %p124, %p125
    %p128 = scmp.ne.s32.totalorder %s113, %s127
    %p129 = scmp.eq.s32.totalorder %s19, 0
    %p130 = por %p128, %p129
    %s131 = ssub.s32 %s13, %s20
    %p132 = scmp.eq.s32.totalorder %s131, 0
    %s134 = sadd.s32 %s133, 1
    %s135 = scalar_select %p132, %s133, %s134
    %p138 = pneg %p132
    %p139 = scmp.eq.s32.totalorder %s13, 1
    %p140 = por %p138, %p139
    %p141 = scmp.ne.s32.totalorder %s133, %s136
    %p142 = scmp.eq.s32.totalorder %s13, 0
    %p143 = por %p141, %p142
    %p144 = scmp.ne.s32.totalorder %s133, %s136
    %p145 = scmp.eq.s32.totalorder %s18, 1
    %p146 = por %p144, %p145
    %p147 = scmp.ne.s32.totalorder %s136, %s137
    %p148 = scmp.eq.s32.totalorder %s18, 0
    %p149 = por %p147, %p148
    %p150 = scmp.ne.s32.totalorder %s136, %s137
    %p151 = scmp.eq.s32.totalorder %s19, 1
    %p152 = por %p150, %p151
    %p154 = scmp.ne.s32.totalorder %s137, %s153
    %p155 = scmp.eq.s32.totalorder %s19, 0
    %p156 = por %p154, %p155
    %s157 = ssub.s32 %s13, %s20
    %p158 = scmp.eq.s32.totalorder %s157, 0
    %s160 = sadd.s32 %s159, 1
    %s161 = scalar_select %p158, %s159, %s160
    %p164 = pneg %p158
    %p165 = scmp.eq.s32.totalorder %s13, 1
    %p166 = por %p164, %p165
    %p167 = scmp.ne.s32.totalorder %s159, %s162
    %p168 = scmp.eq.s32.totalorder %s13, 0
    %p169 = por %p167, %p168
    %p170 = scmp.ne.s32.totalorder %s159, %s162
    %p171 = scmp.eq.s32.totalorder %s18, 1
    %p172 = por %p170, %p171
    %p173 = scmp.ne.s32.totalorder %s162, %s163
    %p174 = scmp.eq.s32.totalorder %s18, 0
    %p175 = por %p173, %p174
    %p176 = scmp.ne.s32.totalorder %s162, %s163
    %p177 = scmp.eq.s32.totalorder %s19, 1
    %p178 = por %p176, %p177
    %p180 = scmp.ne.s32.totalorder %s163, %s179
    %p181 = scmp.eq.s32.totalorder %s19, 0
    %p182 = por %p180, %p181
    %p183 = scmp.le.s32.totalorder 1, %s13
    %p184 = scmp.lt.s32.totalorder %s13, 3
    %p185 = pnand %p183, %p184
    %p186 = pneg %p185
    // Predicated region
    $region9: #{elan_block_fpn.6} parent=5 // pred_check
      _
    $region10: #{elan_block_fpn.6} parent=5 // pred_check_branch
      %188 = sbr.rel (%p185) target = $region12
    $region11: #{elan_block_fpn.6} parent=5 // pred_region
      %s189 = ssub.s32 %s13, 1
      // Predicated region
      $region13: #{elan_block_fpn.6} parent=11 // pred_check
        %p190 = pneg %p60
      $region14: #{elan_block_fpn.6} parent=11 // pred_check_branch
        %192 = sbr.rel (%p190) target = $region16
      $region15: #{elan_block_fpn.6} parent=11 // pred_region
        _
      $region16: #{elan_block_fpn.6} parent=11 // pred_fallthru
        _
      // Predicated region
      $region17: #{elan_block_fpn.6} parent=11 // pred_check
        %p193 = pneg %p81
      $region18: #{elan_block_fpn.6} parent=11 // pred_check_branch
        %195 = sbr.rel (%p193) target = $region20
      $region19: #{elan_block_fpn.6} parent=11 // pred_region
        _
      $region20: #{elan_block_fpn.6} parent=11 // pred_fallthru
        _
      // Predicated region
      $region21: #{elan_block_fpn.6} parent=11 // pred_check
        %p196 = pneg %p102
      $region22: #{elan_block_fpn.6} parent=11 // pred_check_branch
        %198 = sbr.rel (%p196) target = $region24
      $region23: #{elan_block_fpn.6} parent=11 // pred_region
        _
      $region24: #{elan_block_fpn.6} parent=11 // pred_fallthru
        _
      // Predicated region
      $region25: #{elan_block_fpn.6} parent=11 // pred_check
        %p199 = pneg %p123
      $region26: #{elan_block_fpn.6} parent=11 // pred_check_branch
        %201 = sbr.rel (%p199) target = $region28
      $region27: #{elan_block_fpn.6} parent=11 // pred_region
        _
      $region28: #{elan_block_fpn.6} parent=11 // pred_fallthru
        _
    $region12: #{elan_block_fpn.6} parent=5 // pred_fallthru
      _
    %p202 = scmp.lt.s32.totalorder %s13, 2
    // Predicated region
    $region29: #{elan_block_fpn.6} parent=5 // pred_check
      %p203 = pneg %p202
    $region30: #{elan_block_fpn.6} parent=5 // pred_check_branch
      %205 = sbr.rel (%p203) target = $region32
    $region31: #{elan_block_fpn.6} parent=5 // pred_region
      // Predicated region
      $region33: #{elan_block_fpn.6} parent=31 // pred_check
        %p206 = pneg %p33
      $region34: #{elan_block_fpn.6} parent=31 // pred_check_branch
        %208 = sbr.rel (%p206) target = $region36
      $region35: #{elan_block_fpn.6} parent=31 // pred_region
        %s209 = smul.u32 32, %s13
        %p210 = scmp.lt.s32.totalorder %s209, 63
        %s211 = scalar_select %p210, %s209, 63
        %s212 = smul.addr %s211, 4
        %s213 = scalar_lea.vmem %s0, %s212
        %s214 = smul.u32 32, %s13
      $region36: #{elan_block_fpn.6} parent=31 // pred_fallthru
        _
    $region32: #{elan_block_fpn.6} parent=5 // pred_fallthru
      _
    %p215 = scmp.le.s32.totalorder 1, %s13
    %p216 = scmp.lt.s32.totalorder %s13, 3
    %p217 = pnand %p215, %p216
    %p218 = pneg %p217
    // Predicated region
    $region37: #{elan_block_fpn.6} parent=5 // pred_check
      _
    $region38: #{elan_block_fpn.6} parent=5 // pred_check_branch
      %220 = sbr.rel (%p217) target = $region40
    $region39: #{elan_block_fpn.6} parent=5 // pred_region
      %s221 = ssub.s32 %s13, 1
      %s222 = smul.u32 32, %s18
      %p223 = scmp.lt.s32.totalorder %s222, 63
      %s224 = scalar_select %p223, %s222, 63
      %s225 = smul.addr %s224, 4
      %s226 = scalar_lea.vmem %s0, %s225
      %p227 = pneg %p39
      %p228 = pneg %p36
      %p229 = pneg %p60
      %p230 = pneg %p57
      %p231 = pneg %p81
      %p232 = pneg %p78
      %p233 = pneg %p102
      %p234 = pneg %p99
      %p235 = pneg %p123
      %p236 = pneg %p120
      %p237 = pneg %p149
      %p238 = pneg %p146
      %s239 = smul.u32 32, %s18
      %p240 = scmp.lt.s32.totalorder %s239, 63
      %s241 = scalar_select %p240, %s239, 63
      %s242 = smul.addr %s241, 4
      %s243 = scalar_lea.vmem %s5, %s242
      %p244 = pneg %p175
      %p245 = pneg %p172
      %s246 = smul.u32 32, %s18
      %p247 = scmp.lt.s32.totalorder %s246, 63
      %s248 = scalar_select %p247, %s246, 63
      %s249 = smul.addr %s248, 4
      %s250 = scalar_lea.vmem %s6, %s249
      %s251 = smul.u32 32, %s18
      %p252 = scmp.lt.s32.totalorder %s251, 63
      %s253 = scalar_select %p252, %s251, 63
      %s254 = smul.addr %s253, 4
      %s255 = scalar_lea.vmem %s0, %s254
      %s256 = smul.u32 32, %s18
      %s257 = smul.u32 32, %s18
      %p258 = scmp.lt.s32.totalorder %s257, 63
      %s259 = scalar_select %p258, %s257, 63
      %s260 = smul.addr %s259, 4
      %s261 = scalar_lea.vmem %s5, %s260
      %s262 = smul.u32 32, %s18
      %s263 = smul.u32 32, %s18
      %p264 = scmp.lt.s32.totalorder %s263, 63
      %s265 = scalar_select %p264, %s263, 63
      %s266 = smul.addr %s265, 4
      %s267 = scalar_lea.vmem %s6, %s266
      %s268 = smul.u32 32, %s18
      %v270 = vld [vmem:[%s255] sm:$0xf]
      %v271 = vld [vmem:[%s255 + $0x4] sm:$0xf]
      %v272 = vld [vmem:[%s255 + $0x8] sm:$0xf]
      %v273 = vld [vmem:[%s255 + $0xc] sm:$0xf]
      %v274 = vld [vmem:[%s255 + $0x10] sm:$0xf]
      %v275 = vld [vmem:[%s255 + $0x14] sm:$0xf]
      %v276 = vld [vmem:[%s255 + $0x18] sm:$0xf]
      %v277 = vld [vmem:[%s255 + $0x1c] sm:$0xf]
      %v278 = vld [vmem:[%s255 + $0x20] sm:$0xf]
      %v279 = vld [vmem:[%s255 + $0x24] sm:$0xf]
      %v280 = vld [vmem:[%s255 + $0x28] sm:$0xf]
      %v281 = vld [vmem:[%s255 + $0x2c] sm:$0xf]
      %v282 = vld [vmem:[%s255 + $0x30] sm:$0xf]
      %v283 = vld [vmem:[%s255 + $0x34] sm:$0xf]
      %v284 = vld [vmem:[%s255 + $0x38] sm:$0xf]
      %v285 = vld [vmem:[%s255 + $0x3c] sm:$0xf]
      %v286 = vld [vmem:[%s255 + $0x40] sm:$0xf]
      %v287 = vld [vmem:[%s255 + $0x44] sm:$0xf]
      %v288 = vld [vmem:[%s255 + $0x48] sm:$0xf]
      %v289 = vld [vmem:[%s255 + $0x4c] sm:$0xf]
      %v290 = vld [vmem:[%s255 + $0x50] sm:$0xf]
      %v291 = vld [vmem:[%s255 + $0x54] sm:$0xf]
      %v292 = vld [vmem:[%s255 + $0x58] sm:$0xf]
      %v293 = vld [vmem:[%s255 + $0x5c] sm:$0xf]
      %v294 = vld [vmem:[%s255 + $0x60] sm:$0xf]
      %v295 = vld [vmem:[%s255 + $0x64] sm:$0xf]
      %v296 = vld [vmem:[%s255 + $0x68] sm:$0xf]
      %v297 = vld [vmem:[%s255 + $0x6c] sm:$0xf]
      %v298 = vld [vmem:[%s255 + $0x70] sm:$0xf]
      %v299 = vld [vmem:[%s255 + $0x74] sm:$0xf]
      %v300 = vld [vmem:[%s255 + $0x78] sm:$0xf]
      %v301 = vld [vmem:[%s255 + $0x7c] sm:$0xf]
      %v302 = vld [vmem:[%s1] sm:$0xf]
      %v303 = vld [vmem:[%s3] sm:$0x1]
      %v305 = vlaneseq
      %v306 = vshrl.u32 %v305, 7
      %v307 = vsub.s32 0, %v306
      %v308 = vrot.slane %v303, %v307
      %v342 = vunpack.c.l.b16 %v270
      %v343 = vunpack.c.l.b16 %v271
      %v344 = vunpack.c.l.b16 %v272
      %v345 = vunpack.c.l.b16 %v273
      %v346 = vunpack.c.l.b16 %v274
      %v347 = vunpack.c.l.b16 %v275
      %v348 = vunpack.c.l.b16 %v276
      %v349 = vunpack.c.l.b16 %v277
      %v350 = vunpack.c.l.b16 %v278
      %v351 = vunpack.c.l.b16 %v279
      %v352 = vunpack.c.l.b16 %v280
      %v353 = vunpack.c.l.b16 %v281
      %v354 = vunpack.c.l.b16 %v282
      %v355 = vunpack.c.l.b16 %v283
      %v356 = vunpack.c.l.b16 %v284
      %v357 = vunpack.c.l.b16 %v285
      %v358 = vunpack.c.l.b16 %v286
      %v359 = vunpack.c.l.b16 %v287
      %v360 = vunpack.c.l.b16 %v288
      %v361 = vunpack.c.l.b16 %v289
      %v362 = vunpack.c.l.b16 %v290
      %v363 = vunpack.c.l.b16 %v291
      %v364 = vunpack.c.l.b16 %v292
      %v365 = vunpack.c.l.b16 %v293
      %v366 = vunpack.c.l.b16 %v294
      %v367 = vunpack.c.l.b16 %v295
      %v368 = vunpack.c.l.b16 %v296
      %v369 = vunpack.c.l.b16 %v297
      %v370 = vunpack.c.l.b16 %v298
      %v371 = vunpack.c.l.b16 %v299
      %v372 = vunpack.c.l.b16 %v300
      %v373 = vunpack.c.l.b16 %v301
      %v374 = vpack.c.b16 %v343, %v342
      %v375 = vpack.c.b16 %v345, %v344
      %v376 = vpack.c.b16 %v347, %v346
      %v377 = vpack.c.b16 %v349, %v348
      %v378 = vpack.c.b16 %v351, %v350
      %v379 = vpack.c.b16 %v353, %v352
      %v380 = vpack.c.b16 %v355, %v354
      %v381 = vpack.c.b16 %v357, %v356
      %v382 = vpack.c.b16 %v359, %v358
      %v383 = vpack.c.b16 %v361, %v360
      %v384 = vpack.c.b16 %v363, %v362
      %v385 = vpack.c.b16 %v365, %v364
      %v386 = vpack.c.b16 %v367, %v366
      %v387 = vpack.c.b16 %v369, %v368
      %v388 = vpack.c.b16 %v371, %v370
      %v389 = vpack.c.b16 %v373, %v372
      %vm390 = vcmask 64512
      %v392 = vsel %vm390, %v374, 0
      %v395 = vsel %vm390, %v375, 0
      %v398 = vsel %vm390, %v376, 0
      %v401 = vsel %vm390, %v377, 0
      %v404 = vsel %vm390, %v378, 0
      %v407 = vsel %vm390, %v379, 0
      %v410 = vsel %vm390, %v380, 0
      %v413 = vsel %vm390, %v381, 0
      %v416 = vsel %vm390, %v382, 0
      %v419 = vsel %vm390, %v383, 0
      %v422 = vsel %vm390, %v384, 0
      %v425 = vsel %vm390, %v385, 0
      %v428 = vsel %vm390, %v386, 0
      %v431 = vsel %vm390, %v387, 0
      %v434 = vsel %vm390, %v388, 0
      %v437 = vsel %vm390, %v389, 0
      %vm439 = vcmask 1043456
      %v441 = vsel %vm439, %v302, 0
      %443 = vmatprep.subr.bf16.mxu0 0
      %444 = vmatpush1.bf16.msra.mxu0 0
      %445 = vmatprep.subr.bf16.mxu0 0
      %446 = vmatpush1.bf16.msra.mxu0 0
      %447 = vmatprep.subr.bf16.mxu0 0
      %448 = vmatpush1.bf16.msra.mxu0 0
      %449 = vmatprep.subr.bf16.mxu0 0
      %450 = vmatpush1.bf16.msra.mxu0 0
      %451 = vmatprep.subr.bf16.mxu0 0
      %452 = vmatpush1.bf16.msra.mxu0 0
      %453 = vmatprep.subr.bf16.mxu0 0
      %454 = vmatpush1.bf16.msra.mxu0 0
      %455 = vmatprep.subr.bf16.mxu0 0
      %456 = vmatpush1.bf16.msra.mxu0 0
      %457 = vmatprep.subr.bf16.mxu0 0
      %458 = vmatpush1.bf16.msra.mxu0 %v441
      %459 = vmatprep.subr.bf16.mxu0 0
      %460 = vmatpush2.bf16.msra.mxu0 0
      %461 = vmatprep.subr.bf16.mxu0 0
      %462 = vmatpush2.bf16.msra.mxu0 0
      %463 = vmatprep.subr.bf16.mxu0 0
      %464 = vmatpush2.bf16.msra.mxu0 0
      %465 = vmatprep.subr.bf16.mxu0 0
      %466 = vmatpush2.bf16.msra.mxu0 0
      %467 = vmatprep.subr.bf16.mxu0 0
      %468 = vmatpush2.bf16.msra.mxu0 0
      %469 = vmatprep.subr.bf16.mxu0 0
      %470 = vmatpush2.bf16.msra.mxu0 0
      %471 = vmatprep.subr.bf16.mxu0 0
      %472 = vmatpush2.bf16.msra.mxu0 0
      %473 = vmatprep.subr.bf16.mxu0 0
      %474 = vmatpush2.bf16.msra.mxu0 0
      %475 = vmatprep.mubr.bf16.mxu0 0
      %476 = vmatmul.mubr.bf16.gmra.mxu0 %v392
      %v477 = vpop.f32.mrf.mxu0
      %v478 = vadd.f32 %v308, %v477
      %v479 = vpop.f32.mrf.mxu0
      %v480 = vpop.f32.mrf.mxu0
      %v481 = vadd.f32 %v308, %v480
      %v482 = vpop.f32.mrf.mxu0
      %483 = vmatprep.mubr.bf16.mxu0 0
      %484 = vmatmul.mubr.bf16.gmra.mxu0 %v395
      %v485 = vpop.f32.mrf.mxu0
      %v486 = vadd.f32 %v308, %v485
      %v487 = vpop.f32.mrf.mxu0
      %v488 = vpop.f32.mrf.mxu0
      %v489 = vadd.f32 %v308, %v488
      %v490 = vpop.f32.mrf.mxu0
      %491 = vmatprep.mubr.bf16.mxu0 0
      %492 = vmatmul.mubr.bf16.gmra.mxu0 %v398
      %v493 = vpop.f32.mrf.mxu0
      %v494 = vadd.f32 %v308, %v493
      %v495 = vpop.f32.mrf.mxu0
      %v496 = vpop.f32.mrf.mxu0
      %v497 = vadd.f32 %v308, %v496
      %v498 = vpop.f32.mrf.mxu0
      %499 = vmatprep.mubr.bf16.mxu0 0
      %500 = vmatmul.mubr.bf16.gmra.mxu0 %v401
      %v501 = vpop.f32.mrf.mxu0
      %v502 = vadd.f32 %v308, %v501
      %v503 = vpop.f32.mrf.mxu0
      %v504 = vpop.f32.mrf.mxu0
      %v505 = vadd.f32 %v308, %v504
      %v506 = vpop.f32.mrf.mxu0
      %507 = vmatprep.mubr.bf16.mxu0 0
      %508 = vmatmul.mubr.bf16.gmra.mxu0 %v404
      %v509 = vpop.f32.mrf.mxu0
      %v510 = vadd.f32 %v308, %v509
      %v511 = vpop.f32.mrf.mxu0
      %v512 = vpop.f32.mrf.mxu0
      %v513 = vadd.f32 %v308, %v512
      %v514 = vpop.f32.mrf.mxu0
      %515 = vmatprep.mubr.bf16.mxu0 0
      %516 = vmatmul.mubr.bf16.gmra.mxu0 %v407
      %v517 = vpop.f32.mrf.mxu0
      %v518 = vadd.f32 %v308, %v517
      %v519 = vpop.f32.mrf.mxu0
      %v520 = vpop.f32.mrf.mxu0
      %v521 = vadd.f32 %v308, %v520
      %v522 = vpop.f32.mrf.mxu0
      %523 = vmatprep.mubr.bf16.mxu0 0
      %524 = vmatmul.mubr.bf16.gmra.mxu0 %v410
      %v525 = vpop.f32.mrf.mxu0
      %v526 = vadd.f32 %v308, %v525
      %v527 = vpop.f32.mrf.mxu0
      %v528 = vpop.f32.mrf.mxu0
      %v529 = vadd.f32 %v308, %v528
      %v530 = vpop.f32.mrf.mxu0
      %531 = vmatprep.mubr.bf16.mxu0 0
      %532 = vmatmul.mubr.bf16.gmra.mxu0 %v413
      %v533 = vpop.f32.mrf.mxu0
      %v534 = vadd.f32 %v308, %v533
      %v535 = vpop.f32.mrf.mxu0
      %v536 = vpop.f32.mrf.mxu0
      %v537 = vadd.f32 %v308, %v536
      %v538 = vpop.f32.mrf.mxu0
      %539 = vmatprep.mubr.bf16.mxu0 0
      %540 = vmatmul.mubr.bf16.gmra.mxu0 %v416
      %v541 = vpop.f32.mrf.mxu0
      %v542 = vadd.f32 %v308, %v541
      %v543 = vpop.f32.mrf.mxu0
      %v544 = vpop.f32.mrf.mxu0
      %v545 = vadd.f32 %v308, %v544
      %v546 = vpop.f32.mrf.mxu0
      %547 = vmatprep.mubr.bf16.mxu0 0
      %548 = vmatmul.mubr.bf16.gmra.mxu0 %v419
      %v549 = vpop.f32.mrf.mxu0
      %v550 = vadd.f32 %v308, %v549
      %v551 = vpop.f32.mrf.mxu0
      %v552 = vpop.f32.mrf.mxu0
      %v553 = vadd.f32 %v308, %v552
      %v554 = vpop.f32.mrf.mxu0
      %555 = vmatprep.mubr.bf16.mxu0 0
      %556 = vmatmul.mubr.bf16.gmra.mxu0 %v422
      %v557 = vpop.f32.mrf.mxu0
      %v558 = vadd.f32 %v308, %v557
      %v559 = vpop.f32.mrf.mxu0
      %v560 = vpop.f32.mrf.mxu0
      %v561 = vadd.f32 %v308, %v560
      %v562 = vpop.f32.mrf.mxu0
      %563 = vmatprep.mubr.bf16.mxu0 0
      %564 = vmatmul.mubr.bf16.gmra.mxu0 %v425
      %v565 = vpop.f32.mrf.mxu0
      %v566 = vadd.f32 %v308, %v565
      %v567 = vpop.f32.mrf.mxu0
      %v568 = vpop.f32.mrf.mxu0
      %v569 = vadd.f32 %v308, %v568
      %v570 = vpop.f32.mrf.mxu0
      %571 = vmatprep.mubr.bf16.mxu0 0
      %572 = vmatmul.mubr.bf16.gmra.mxu0 %v428
      %v573 = vpop.f32.mrf.mxu0
      %v574 = vadd.f32 %v308, %v573
      %v575 = vpop.f32.mrf.mxu0
      %v576 = vpop.f32.mrf.mxu0
      %v577 = vadd.f32 %v308, %v576
      %v578 = vpop.f32.mrf.mxu0
      %579 = vmatprep.mubr.bf16.mxu0 0
      %580 = vmatmul.mubr.bf16.gmra.mxu0 %v431
      %v581 = vpop.f32.mrf.mxu0
      %v582 = vadd.f32 %v308, %v581
      %v583 = vpop.f32.mrf.mxu0
      %v584 = vpop.f32.mrf.mxu0
      %v585 = vadd.f32 %v308, %v584
      %v586 = vpop.f32.mrf.mxu0
      %587 = vmatprep.mubr.bf16.mxu0 0
      %588 = vmatmul.mubr.bf16.gmra.mxu0 %v434
      %v589 = vpop.f32.mrf.mxu0
      %v590 = vadd.f32 %v308, %v589
      %v591 = vpop.f32.mrf.mxu0
      %v592 = vpop.f32.mrf.mxu0
      %v593 = vadd.f32 %v308, %v592
      %v594 = vpop.f32.mrf.mxu0
      %595 = vmatprep.mubr.bf16.mxu0 0
      %596 = vmatmul.mubr.bf16.gmra.mxu0 %v437
      %v597 = vpop.f32.mrf.mxu0
      %v598 = vadd.f32 %v308, %v597
      %v599 = vpop.f32.mrf.mxu0
      %v600 = vpop.f32.mrf.mxu0
      %v601 = vadd.f32 %v308, %v600
      %v602 = vpop.f32.mrf.mxu0
      %603 = vdwg.mxu0
      %v604 = vld [vmem:[%s2] sm:$0xf]
      %v605 = vld [vmem:[%s4] sm:$0x1]
      %v607 = vlaneseq
      %v608 = vshrl.u32 %v607, 7
      %v609 = vsub.s32 0, %v608
      %v610 = vrot.slane %v605, %v609
      %v613 = vsel %vm439, %v604, 0
      %615 = vmatprep.subr.bf16.mxu0 0
      %616 = vmatpush1.bf16.msra.mxu0 0
      %617 = vmatprep.subr.bf16.mxu0 0
      %618 = vmatpush1.bf16.msra.mxu0 0
      %619 = vmatprep.subr.bf16.mxu0 0
      %620 = vmatpush1.bf16.msra.mxu0 0
      %621 = vmatprep.subr.bf16.mxu0 0
      %622 = vmatpush1.bf16.msra.mxu0 0
      %623 = vmatprep.subr.bf16.mxu0 0
      %624 = vmatpush1.bf16.msra.mxu0 0
      %625 = vmatprep.subr.bf16.mxu0 0
      %626 = vmatpush1.bf16.msra.mxu0 0
      %627 = vmatprep.subr.bf16.mxu0 0
      %628 = vmatpush1.bf16.msra.mxu0 0
      %629 = vmatprep.subr.bf16.mxu0 0
      %630 = vmatpush1.bf16.msra.mxu0 %v613
      %631 = vmatprep.subr.bf16.mxu0 0
      %632 = vmatpush2.bf16.msra.mxu0 0
      %633 = vmatprep.subr.bf16.mxu0 0
      %634 = vmatpush2.bf16.msra.mxu0 0
      %635 = vmatprep.subr.bf16.mxu0 0
      %636 = vmatpush2.bf16.msra.mxu0 0
      %637 = vmatprep.subr.bf16.mxu0 0
      %638 = vmatpush2.bf16.msra.mxu0 0
      %639 = vmatprep.subr.bf16.mxu0 0
      %640 = vmatpush2.bf16.msra.mxu0 0
      %641 = vmatprep.subr.bf16.mxu0 0
      %642 = vmatpush2.bf16.msra.mxu0 0
      %643 = vmatprep.subr.bf16.mxu0 0
      %644 = vmatpush2.bf16.msra.mxu0 0
      %645 = vmatprep.subr.bf16.mxu0 0
      %646 = vmatpush2.bf16.msra.mxu0 0
      %647 = vmatprep.mubr.bf16.mxu0 0
      %648 = vmatmul.mubr.bf16.gmra.mxu0 %v392
      %v649 = vpop.f32.mrf.mxu0
      %v650 = vadd.f32 %v610, %v649
      %v651 = vpop.f32.mrf.mxu0
      %v652 = vpop.f32.mrf.mxu0
      %v653 = vadd.f32 %v610, %v652
      %v654 = vpop.f32.mrf.mxu0
      %655 = vmatprep.mubr.bf16.mxu0 0
      %656 = vmatmul.mubr.bf16.gmra.mxu0 %v395
      %v657 = vpop.f32.mrf.mxu0
      %v658 = vadd.f32 %v610, %v657
      %v659 = vpop.f32.mrf.mxu0
      %v660 = vpop.f32.mrf.mxu0
      %v661 = vadd.f32 %v610, %v660
      %v662 = vpop.f32.mrf.mxu0
      %663 = vmatprep.mubr.bf16.mxu0 0
      %664 = vmatmul.mubr.bf16.gmra.mxu0 %v398
      %v665 = vpop.f32.mrf.mxu0
      %v666 = vadd.f32 %v610, %v665
      %v667 = vpop.f32.mrf.mxu0
      %v668 = vpop.f32.mrf.mxu0
      %v669 = vadd.f32 %v610, %v668
      %v670 = vpop.f32.mrf.mxu0
      %671 = vmatprep.mubr.bf16.mxu0 0
      %672 = vmatmul.mubr.bf16.gmra.mxu0 %v401
      %v673 = vpop.f32.mrf.mxu0
      %v674 = vadd.f32 %v610, %v673
      %v675 = vpop.f32.mrf.mxu0
      %v676 = vpop.f32.mrf.mxu0
      %v677 = vadd.f32 %v610, %v676
      %v678 = vpop.f32.mrf.mxu0
      %679 = vmatprep.mubr.bf16.mxu0 0
      %680 = vmatmul.mubr.bf16.gmra.mxu0 %v404
      %v681 = vpop.f32.mrf.mxu0
      %v682 = vadd.f32 %v610, %v681
      %v683 = vpop.f32.mrf.mxu0
      %v684 = vpop.f32.mrf.mxu0
      %v685 = vadd.f32 %v610, %v684
      %v686 = vpop.f32.mrf.mxu0
      %687 = vmatprep.mubr.bf16.mxu0 0
      %688 = vmatmul.mubr.bf16.gmra.mxu0 %v407
      %v689 = vpop.f32.mrf.mxu0
      %v690 = vadd.f32 %v610, %v689
      %v691 = vpop.f32.mrf.mxu0
      %v692 = vpop.f32.mrf.mxu0
      %v693 = vadd.f32 %v610, %v692
      %v694 = vpop.f32.mrf.mxu0
      %695 = vmatprep.mubr.bf16.mxu0 0
      %696 = vmatmul.mubr.bf16.gmra.mxu0 %v410
      %v697 = vpop.f32.mrf.mxu0
      %v698 = vadd.f32 %v610, %v697
      %v699 = vpop.f32.mrf.mxu0
      %v700 = vpop.f32.mrf.mxu0
      %v701 = vadd.f32 %v610, %v700
      %v702 = vpop.f32.mrf.mxu0
      %703 = vmatprep.mubr.bf16.mxu0 0
      %704 = vmatmul.mubr.bf16.gmra.mxu0 %v413
      %v705 = vpop.f32.mrf.mxu0
      %v706 = vadd.f32 %v610, %v705
      %v707 = vpop.f32.mrf.mxu0
      %v708 = vpop.f32.mrf.mxu0
      %v709 = vadd.f32 %v610, %v708
      %v710 = vpop.f32.mrf.mxu0
      %711 = vmatprep.mubr.bf16.mxu0 0
      %712 = vmatmul.mubr.bf16.gmra.mxu0 %v416
      %v713 = vpop.f32.mrf.mxu0
      %v714 = vadd.f32 %v610, %v713
      %v715 = vpop.f32.mrf.mxu0
      %v716 = vpop.f32.mrf.mxu0
      %v717 = vadd.f32 %v610, %v716
      %v718 = vpop.f32.mrf.mxu0
      %719 = vmatprep.mubr.bf16.mxu0 0
      %720 = vmatmul.mubr.bf16.gmra.mxu0 %v419
      %v721 = vpop.f32.mrf.mxu0
      %v722 = vadd.f32 %v610, %v721
      %v723 = vpop.f32.mrf.mxu0
      %v724 = vpop.f32.mrf.mxu0
      %v725 = vadd.f32 %v610, %v724
      %v726 = vpop.f32.mrf.mxu0
      %727 = vmatprep.mubr.bf16.mxu0 0
      %728 = vmatmul.mubr.bf16.gmra.mxu0 %v422
      %v729 = vpop.f32.mrf.mxu0
      %v730 = vadd.f32 %v610, %v729
      %v731 = vpop.f32.mrf.mxu0
      %v732 = vpop.f32.mrf.mxu0
      %v733 = vadd.f32 %v610, %v732
      %v734 = vpop.f32.mrf.mxu0
      %735 = vmatprep.mubr.bf16.mxu0 0
      %736 = vmatmul.mubr.bf16.gmra.mxu0 %v425
      %v737 = vpop.f32.mrf.mxu0
      %v738 = vadd.f32 %v610, %v737
      %v739 = vpop.f32.mrf.mxu0
      %v740 = vpop.f32.mrf.mxu0
      %v741 = vadd.f32 %v610, %v740
      %v742 = vpop.f32.mrf.mxu0
      %743 = vmatprep.mubr.bf16.mxu0 0
      %744 = vmatmul.mubr.bf16.gmra.mxu0 %v428
      %v745 = vpop.f32.mrf.mxu0
      %v746 = vadd.f32 %v610, %v745
      %v747 = vpop.f32.mrf.mxu0
      %v748 = vpop.f32.mrf.mxu0
      %v749 = vadd.f32 %v610, %v748
      %v750 = vpop.f32.mrf.mxu0
      %751 = vmatprep.mubr.bf16.mxu0 0
      %752 = vmatmul.mubr.bf16.gmra.mxu0 %v431
      %v753 = vpop.f32.mrf.mxu0
      %v754 = vadd.f32 %v610, %v753
      %v755 = vpop.f32.mrf.mxu0
      %v756 = vpop.f32.mrf.mxu0
      %v757 = vadd.f32 %v610, %v756
      %v758 = vpop.f32.mrf.mxu0
      %759 = vmatprep.mubr.bf16.mxu0 0
      %760 = vmatmul.mubr.bf16.gmra.mxu0 %v434
      %v761 = vpop.f32.mrf.mxu0
      %v762 = vadd.f32 %v610, %v761
      %v763 = vpop.f32.mrf.mxu0
      %v764 = vpop.f32.mrf.mxu0
      %v765 = vadd.f32 %v610, %v764
      %v766 = vpop.f32.mrf.mxu0
      %767 = vmatprep.mubr.bf16.mxu0 0
      %768 = vmatmul.mubr.bf16.gmra.mxu0 %v437
      %v769 = vpop.f32.mrf.mxu0
      %v770 = vadd.f32 %v610, %v769
      %v771 = vpop.f32.mrf.mxu0
      %v772 = vpop.f32.mrf.mxu0
      %v773 = vadd.f32 %v610, %v772
      %v774 = vpop.f32.mrf.mxu0
      %775 = vdwg.mxu0
      %v776 = vsub.f32 0.0, %v478
      %v777 = vsub.f32 0.0, %v481
      %v778 = vsub.f32 0.0, %v486
      %v779 = vsub.f32 0.0, %v489
      %v780 = vsub.f32 0.0, %v494
      %v781 = vsub.f32 0.0, %v497
      %v782 = vsub.f32 0.0, %v502
      %v783 = vsub.f32 0.0, %v505
      %v784 = vsub.f32 0.0, %v510
      %v785 = vsub.f32 0.0, %v513
      %v786 = vsub.f32 0.0, %v518
      %v787 = vsub.f32 0.0, %v521
      %v788 = vsub.f32 0.0, %v526
      %v789 = vsub.f32 0.0, %v529
      %v790 = vsub.f32 0.0, %v534
      %v791 = vsub.f32 0.0, %v537
      %v792 = vsub.f32 0.0, %v542
      %v793 = vsub.f32 0.0, %v545
      %v794 = vsub.f32 0.0, %v550
      %v795 = vsub.f32 0.0, %v553
      %v796 = vsub.f32 0.0, %v558
      %v797 = vsub.f32 0.0, %v561
      %v798 = vsub.f32 0.0, %v566
      %v799 = vsub.f32 0.0, %v569
      %v800 = vsub.f32 0.0, %v574
      %v801 = vsub.f32 0.0, %v577
      %v802 = vsub.f32 0.0, %v582
      %v803 = vsub.f32 0.0, %v585
      %v804 = vsub.f32 0.0, %v590
      %v805 = vsub.f32 0.0, %v593
      %v806 = vsub.f32 0.0, %v598
      %v807 = vsub.f32 0.0, %v601
      %v808 = vmul.f32 %v776, 1.442695
      %v809 = vpow.pop %v808
      %v810 = vmul.f32 %v777, 1.442695
      %v811 = vpow.pop %v810
      %v812 = vmul.f32 %v778, 1.442695
      %v813 = vpow.pop %v812
      %v814 = vmul.f32 %v779, 1.442695
      %v815 = vpow.pop %v814
      %v816 = vmul.f32 %v780, 1.442695
      %v817 = vpow.pop %v816
      %v818 = vmul.f32 %v781, 1.442695
      %v819 = vpow.pop %v818
      %v820 = vmul.f32 %v782, 1.442695
      %v821 = vpow.pop %v820
      %v822 = vmul.f32 %v783, 1.442695
      %v823 = vpow.pop %v822
      %v824 = vmul.f32 %v784, 1.442695
      %v825 = vpow.pop %v824
      %v826 = vmul.f32 %v785, 1.442695
      %v827 = vpow.pop %v826
      %v828 = vmul.f32 %v786, 1.442695
      %v829 = vpow.pop %v828
      %v830 = vmul.f32 %v787, 1.442695
      %v831 = vpow.pop %v830
      %v832 = vmul.f32 %v788, 1.442695
      %v833 = vpow.pop %v832
      %v834 = vmul.f32 %v789, 1.442695
      %v835 = vpow.pop %v834
      %v836 = vmul.f32 %v790, 1.442695
      %v837 = vpow.pop %v836
      %v838 = vmul.f32 %v791, 1.442695
      %v839 = vpow.pop %v838
      %v840 = vmul.f32 %v792, 1.442695
      %v841 = vpow.pop %v840
      %v842 = vmul.f32 %v793, 1.442695
      %v843 = vpow.pop %v842
      %v844 = vmul.f32 %v794, 1.442695
      %v845 = vpow.pop %v844
      %v846 = vmul.f32 %v795, 1.442695
      %v847 = vpow.pop %v846
      %v848 = vmul.f32 %v796, 1.442695
      %v849 = vpow.pop %v848
      %v850 = vmul.f32 %v797, 1.442695
      %v851 = vpow.pop %v850
      %v852 = vmul.f32 %v798, 1.442695
      %v853 = vpow.pop %v852
      %v854 = vmul.f32 %v799, 1.442695
      %v855 = vpow.pop %v854
      %v856 = vmul.f32 %v800, 1.442695
      %v857 = vpow.pop %v856
      %v858 = vmul.f32 %v801, 1.442695
      %v859 = vpow.pop %v858
      %v860 = vmul.f32 %v802, 1.442695
      %v861 = vpow.pop %v860
      %v862 = vmul.f32 %v803, 1.442695
      %v863 = vpow.pop %v862
      %v864 = vmul.f32 %v804, 1.442695
      %v865 = vpow.pop %v864
      %v866 = vmul.f32 %v805, 1.442695
      %v867 = vpow.pop %v866
      %v868 = vmul.f32 %v806, 1.442695
      %v869 = vpow.pop %v868
      %v870 = vmul.f32 %v807, 1.442695
      %v871 = vpow.pop %v870
      %v872 = vadd.f32 %v809, 1.0
      %v873 = vadd.f32 %v811, 1.0
      %v874 = vadd.f32 %v813, 1.0
      %v875 = vadd.f32 %v815, 1.0
      %v876 = vadd.f32 %v817, 1.0
      %v877 = vadd.f32 %v819, 1.0
      %v878 = vadd.f32 %v821, 1.0
      %v879 = vadd.f32 %v823, 1.0
      %v880 = vadd.f32 %v825, 1.0
      %v881 = vadd.f32 %v827, 1.0
      %v882 = vadd.f32 %v829, 1.0
      %v883 = vadd.f32 %v831, 1.0
      %v884 = vadd.f32 %v833, 1.0
      %v885 = vadd.f32 %v835, 1.0
      %v886 = vadd.f32 %v837, 1.0
      %v887 = vadd.f32 %v839, 1.0
      %v888 = vadd.f32 %v841, 1.0
      %v889 = vadd.f32 %v843, 1.0
      %v890 = vadd.f32 %v845, 1.0
      %v891 = vadd.f32 %v847, 1.0
      %v892 = vadd.f32 %v849, 1.0
      %v893 = vadd.f32 %v851, 1.0
      %v894 = vadd.f32 %v853, 1.0
      %v895 = vadd.f32 %v855, 1.0
      %v896 = vadd.f32 %v857, 1.0
      %v897 = vadd.f32 %v859, 1.0
      %v898 = vadd.f32 %v861, 1.0
      %v899 = vadd.f32 %v863, 1.0
      %v900 = vadd.f32 %v865, 1.0
      %v901 = vadd.f32 %v867, 1.0
      %v902 = vadd.f32 %v869, 1.0
      %v903 = vadd.f32 %v871, 1.0
      %v904 = vrcp.pop %v872
      %v905 = vrcp.pop %v873
      %v906 = vrcp.pop %v874
      %v907 = vrcp.pop %v875
      %v908 = vrcp.pop %v876
      %v909 = vrcp.pop %v877
      %v910 = vrcp.pop %v878
      %v911 = vrcp.pop %v879
      %v912 = vrcp.pop %v880
      %v913 = vrcp.pop %v881
      %v914 = vrcp.pop %v882
      %v915 = vrcp.pop %v883
      %v916 = vrcp.pop %v884
      %v917 = vrcp.pop %v885
      %v918 = vrcp.pop %v886
      %v919 = vrcp.pop %v887
      %v920 = vrcp.pop %v888
      %v921 = vrcp.pop %v889
      %v922 = vrcp.pop %v890
      %v923 = vrcp.pop %v891
      %v924 = vrcp.pop %v892
      %v925 = vrcp.pop %v893
      %v926 = vrcp.pop %v894
      %v927 = vrcp.pop %v895
      %v928 = vrcp.pop %v896
      %v929 = vrcp.pop %v897
      %v930 = vrcp.pop %v898
      %v931 = vrcp.pop %v899
      %v932 = vrcp.pop %v900
      %v933 = vrcp.pop %v901
      %v934 = vrcp.pop %v902
      %v935 = vrcp.pop %v903
      %v936 = vmul.f32 %v478, %v904
      %v937 = vmul.f32 %v481, %v905
      %v938 = vmul.f32 %v486, %v906
      %v939 = vmul.f32 %v489, %v907
      %v940 = vmul.f32 %v494, %v908
      %v941 = vmul.f32 %v497, %v909
      %v942 = vmul.f32 %v502, %v910
      %v943 = vmul.f32 %v505, %v911
      %v944 = vmul.f32 %v510, %v912
      %v945 = vmul.f32 %v513, %v913
      %v946 = vmul.f32 %v518, %v914
      %v947 = vmul.f32 %v521, %v915
      %v948 = vmul.f32 %v526, %v916
      %v949 = vmul.f32 %v529, %v917
      %v950 = vmul.f32 %v534, %v918
      %v951 = vmul.f32 %v537, %v919
      %v952 = vmul.f32 %v542, %v920
      %v953 = vmul.f32 %v545, %v921
      %v954 = vmul.f32 %v550, %v922
      %v955 = vmul.f32 %v553, %v923
      %v956 = vmul.f32 %v558, %v924
      %v957 = vmul.f32 %v561, %v925
      %v958 = vmul.f32 %v566, %v926
      %v959 = vmul.f32 %v569, %v927
      %v960 = vmul.f32 %v574, %v928
      %v961 = vmul.f32 %v577, %v929
      %v962 = vmul.f32 %v582, %v930
      %v963 = vmul.f32 %v585, %v931
      %v964 = vmul.f32 %v590, %v932
      %v965 = vmul.f32 %v593, %v933
      %v966 = vmul.f32 %v598, %v934
      %v967 = vmul.f32 %v601, %v935
      %v968 = vpack.c.bf16 %v937, %v936
      %v969 = vpack.c.bf16 %v939, %v938
      %v970 = vpack.c.bf16 %v941, %v940
      %v971 = vpack.c.bf16 %v943, %v942
      %v972 = vpack.c.bf16 %v945, %v944
      %v973 = vpack.c.bf16 %v947, %v946
      %v974 = vpack.c.bf16 %v949, %v948
      %v975 = vpack.c.bf16 %v951, %v950
      %v976 = vpack.c.bf16 %v953, %v952
      %v977 = vpack.c.bf16 %v955, %v954
      %v978 = vpack.c.bf16 %v957, %v956
      %v979 = vpack.c.bf16 %v959, %v958
      %v980 = vpack.c.bf16 %v961, %v960
      %v981 = vpack.c.bf16 %v963, %v962
      %v982 = vpack.c.bf16 %v965, %v964
      %v983 = vpack.c.bf16 %v967, %v966
      %v1000 = vunpack.c.l.b16 %v968
      %v1001 = vunpack.c.h.b16 %v968
      %v1002 = vunpack.c.l.b16 %v969
      %v1003 = vunpack.c.h.b16 %v969
      %v1004 = vunpack.c.l.b16 %v970
      %v1005 = vunpack.c.h.b16 %v970
      %v1006 = vunpack.c.l.b16 %v971
      %v1007 = vunpack.c.h.b16 %v971
      %v1008 = vunpack.c.l.b16 %v972
      %v1009 = vunpack.c.h.b16 %v972
      %v1010 = vunpack.c.l.b16 %v973
      %v1011 = vunpack.c.h.b16 %v973
      %v1012 = vunpack.c.l.b16 %v974
      %v1013 = vunpack.c.h.b16 %v974
      %v1014 = vunpack.c.l.b16 %v975
      %v1015 = vunpack.c.h.b16 %v975
      %v1016 = vunpack.c.l.b16 %v976
      %v1017 = vunpack.c.h.b16 %v976
      %v1018 = vunpack.c.l.b16 %v977
      %v1019 = vunpack.c.h.b16 %v977
      %v1020 = vunpack.c.l.b16 %v978
      %v1021 = vunpack.c.h.b16 %v978
      %v1022 = vunpack.c.l.b16 %v979
      %v1023 = vunpack.c.h.b16 %v979
      %v1024 = vunpack.c.l.b16 %v980
      %v1025 = vunpack.c.h.b16 %v980
      %v1026 = vunpack.c.l.b16 %v981
      %v1027 = vunpack.c.h.b16 %v981
      %v1028 = vunpack.c.l.b16 %v982
      %v1029 = vunpack.c.h.b16 %v982
      %v1030 = vunpack.c.l.b16 %v983
      %v1031 = vunpack.c.h.b16 %v983
      %v1032 = vpack.c.b16 %v1000, %v1000
      %v1033 = vpack.c.b16 %v1001, %v1001
      %v1034 = vpack.c.b16 %v1002, %v1002
      %v1035 = vpack.c.b16 %v1003, %v1003
      %v1036 = vpack.c.b16 %v1004, %v1004
      %v1037 = vpack.c.b16 %v1005, %v1005
      %v1038 = vpack.c.b16 %v1006, %v1006
      %v1039 = vpack.c.b16 %v1007, %v1007
      %v1040 = vpack.c.b16 %v1008, %v1008
      %v1041 = vpack.c.b16 %v1009, %v1009
      %v1042 = vpack.c.b16 %v1010, %v1010
      %v1043 = vpack.c.b16 %v1011, %v1011
      %v1044 = vpack.c.b16 %v1012, %v1012
      %v1045 = vpack.c.b16 %v1013, %v1013
      %v1046 = vpack.c.b16 %v1014, %v1014
      %v1047 = vpack.c.b16 %v1015, %v1015
      %v1048 = vpack.c.b16 %v1016, %v1016
      %v1049 = vpack.c.b16 %v1017, %v1017
      %v1050 = vpack.c.b16 %v1018, %v1018
      %v1051 = vpack.c.b16 %v1019, %v1019
      %v1052 = vpack.c.b16 %v1020, %v1020
      %v1053 = vpack.c.b16 %v1021, %v1021
      %v1054 = vpack.c.b16 %v1022, %v1022
      %v1055 = vpack.c.b16 %v1023, %v1023
      %v1056 = vpack.c.b16 %v1024, %v1024
      %v1057 = vpack.c.b16 %v1025, %v1025
      %v1058 = vpack.c.b16 %v1026, %v1026
      %v1059 = vpack.c.b16 %v1027, %v1027
      %v1060 = vpack.c.b16 %v1028, %v1028
      %v1061 = vpack.c.b16 %v1029, %v1029
      %v1062 = vpack.c.b16 %v1030, %v1030
      %v1063 = vpack.c.b16 %v1031, %v1031
      %vm1096 = vcmask 27648
      %1097 = vst.msk [vmem:[%s261] sm:$0xf] %vm1096, %v1032
      %1098 = vst.msk [vmem:[%s261 + $0x4] sm:$0xf] %vm1096, %v1033
      %1099 = vst.msk [vmem:[%s261 + $0x8] sm:$0xf] %vm1096, %v1034
      %1100 = vst.msk [vmem:[%s261 + $0xc] sm:$0xf] %vm1096, %v1035
      %1101 = vst.msk [vmem:[%s261 + $0x10] sm:$0xf] %vm1096, %v1036
      %1102 = vst.msk [vmem:[%s261 + $0x14] sm:$0xf] %vm1096, %v1037
      %1103 = vst.msk [vmem:[%s261 + $0x18] sm:$0xf] %vm1096, %v1038
      %1104 = vst.msk [vmem:[%s261 + $0x1c] sm:$0xf] %vm1096, %v1039
      %1105 = vst.msk [vmem:[%s261 + $0x20] sm:$0xf] %vm1096, %v1040
      %1106 = vst.msk [vmem:[%s261 + $0x24] sm:$0xf] %vm1096, %v1041
      %1107 = vst.msk [vmem:[%s261 + $0x28] sm:$0xf] %vm1096, %v1042
      %1108 = vst.msk [vmem:[%s261 + $0x2c] sm:$0xf] %vm1096, %v1043
      %1109 = vst.msk [vmem:[%s261 + $0x30] sm:$0xf] %vm1096, %v1044
      %1110 = vst.msk [vmem:[%s261 + $0x34] sm:$0xf] %vm1096, %v1045
      %1111 = vst.msk [vmem:[%s261 + $0x38] sm:$0xf] %vm1096, %v1046
      %1112 = vst.msk [vmem:[%s261 + $0x3c] sm:$0xf] %vm1096, %v1047
      %1113 = vst.msk [vmem:[%s261 + $0x40] sm:$0xf] %vm1096, %v1048
      %1114 = vst.msk [vmem:[%s261 + $0x44] sm:$0xf] %vm1096, %v1049
      %1115 = vst.msk [vmem:[%s261 + $0x48] sm:$0xf] %vm1096, %v1050
      %1116 = vst.msk [vmem:[%s261 + $0x4c] sm:$0xf] %vm1096, %v1051
      %1117 = vst.msk [vmem:[%s261 + $0x50] sm:$0xf] %vm1096, %v1052
      %1118 = vst.msk [vmem:[%s261 + $0x54] sm:$0xf] %vm1096, %v1053
      %1119 = vst.msk [vmem:[%s261 + $0x58] sm:$0xf] %vm1096, %v1054
      %1120 = vst.msk [vmem:[%s261 + $0x5c] sm:$0xf] %vm1096, %v1055
      %1121 = vst.msk [vmem:[%s261 + $0x60] sm:$0xf] %vm1096, %v1056
      %1122 = vst.msk [vmem:[%s261 + $0x64] sm:$0xf] %vm1096, %v1057
      %1123 = vst.msk [vmem:[%s261 + $0x68] sm:$0xf] %vm1096, %v1058
      %1124 = vst.msk [vmem:[%s261 + $0x6c] sm:$0xf] %vm1096, %v1059
      %1125 = vst.msk [vmem:[%s261 + $0x70] sm:$0xf] %vm1096, %v1060
      %1126 = vst.msk [vmem:[%s261 + $0x74] sm:$0xf] %vm1096, %v1061
      %1127 = vst.msk [vmem:[%s261 + $0x78] sm:$0xf] %vm1096, %v1062
      %1128 = vst.msk [vmem:[%s261 + $0x7c] sm:$0xf] %vm1096, %v1063
      %v1129 = vsub.f32 0.0, %v650
      %v1130 = vsub.f32 0.0, %v653
      %v1131 = vsub.f32 0.0, %v658
      %v1132 = vsub.f32 0.0, %v661
      %v1133 = vsub.f32 0.0, %v666
      %v1134 = vsub.f32 0.0, %v669
      %v1135 = vsub.f32 0.0, %v674
      %v1136 = vsub.f32 0.0, %v677
      %v1137 = vsub.f32 0.0, %v682
      %v1138 = vsub.f32 0.0, %v685
      %v1139 = vsub.f32 0.0, %v690
      %v1140 = vsub.f32 0.0, %v693
      %v1141 = vsub.f32 0.0, %v698
      %v1142 = vsub.f32 0.0, %v701
      %v1143 = vsub.f32 0.0, %v706
      %v1144 = vsub.f32 0.0, %v709
      %v1145 = vsub.f32 0.0, %v714
      %v1146 = vsub.f32 0.0, %v717
      %v1147 = vsub.f32 0.0, %v722
      %v1148 = vsub.f32 0.0, %v725
      %v1149 = vsub.f32 0.0, %v730
      %v1150 = vsub.f32 0.0, %v733
      %v1151 = vsub.f32 0.0, %v738
      %v1152 = vsub.f32 0.0, %v741
      %v1153 = vsub.f32 0.0, %v746
      %v1154 = vsub.f32 0.0, %v749
      %v1155 = vsub.f32 0.0, %v754
      %v1156 = vsub.f32 0.0, %v757
      %v1157 = vsub.f32 0.0, %v762
      %v1158 = vsub.f32 0.0, %v765
      %v1159 = vsub.f32 0.0, %v770
      %v1160 = vsub.f32 0.0, %v773
      %v1161 = vmul.f32 %v1129, 1.442695
      %v1162 = vpow.pop %v1161
      %v1163 = vmul.f32 %v1130, 1.442695
      %v1164 = vpow.pop %v1163
      %v1165 = vmul.f32 %v1131, 1.442695
      %v1166 = vpow.pop %v1165
      %v1167 = vmul.f32 %v1132, 1.442695
      %v1168 = vpow.pop %v1167
      %v1169 = vmul.f32 %v1133, 1.442695
      %v1170 = vpow.pop %v1169
      %v1171 = vmul.f32 %v1134, 1.442695
      %v1172 = vpow.pop %v1171
      %v1173 = vmul.f32 %v1135, 1.442695
      %v1174 = vpow.pop %v1173
      %v1175 = vmul.f32 %v1136, 1.442695
      %v1176 = vpow.pop %v1175
      %v1177 = vmul.f32 %v1137, 1.442695
      %v1178 = vpow.pop %v1177
      %v1179 = vmul.f32 %v1138, 1.442695
      %v1180 = vpow.pop %v1179
      %v1181 = vmul.f32 %v1139, 1.442695
      %v1182 = vpow.pop %v1181
      %v1183 = vmul.f32 %v1140, 1.442695
      %v1184 = vpow.pop %v1183
      %v1185 = vmul.f32 %v1141, 1.442695
      %v1186 = vpow.pop %v1185
      %v1187 = vmul.f32 %v1142, 1.442695
      %v1188 = vpow.pop %v1187
      %v1189 = vmul.f32 %v1143, 1.442695
      %v1190 = vpow.pop %v1189
      %v1191 = vmul.f32 %v1144, 1.442695
      %v1192 = vpow.pop %v1191
      %v1193 = vmul.f32 %v1145, 1.442695
      %v1194 = vpow.pop %v1193
      %v1195 = vmul.f32 %v1146, 1.442695
      %v1196 = vpow.pop %v1195
      %v1197 = vmul.f32 %v1147, 1.442695
      %v1198 = vpow.pop %v1197
      %v1199 = vmul.f32 %v1148, 1.442695
      %v1200 = vpow.pop %v1199
      %v1201 = vmul.f32 %v1149, 1.442695
      %v1202 = vpow.pop %v1201
      %v1203 = vmul.f32 %v1150, 1.442695
      %v1204 = vpow.pop %v1203
      %v1205 = vmul.f32 %v1151, 1.442695
      %v1206 = vpow.pop %v1205
      %v1207 = vmul.f32 %v1152, 1.442695
      %v1208 = vpow.pop %v1207
      %v1209 = vmul.f32 %v1153, 1.442695
      %v1210 = vpow.pop %v1209
      %v1211 = vmul.f32 %v1154, 1.442695
      %v1212 = vpow.pop %v1211
      %v1213 = vmul.f32 %v1155, 1.442695
      %v1214 = vpow.pop %v1213
      %v1215 = vmul.f32 %v1156, 1.442695
      %v1216 = vpow.pop %v1215
      %v1217 = vmul.f32 %v1157, 1.442695
      %v1218 = vpow.pop %v1217
      %v1219 = vmul.f32 %v1158, 1.442695
      %v1220 = vpow.pop %v1219
      %v1221 = vmul.f32 %v1159, 1.442695
      %v1222 = vpow.pop %v1221
      %v1223 = vmul.f32 %v1160, 1.442695
      %v1224 = vpow.pop %v1223
      %v1225 = vadd.f32 %v1162, 1.0
      %v1226 = vadd.f32 %v1164, 1.0
      %v1227 = vadd.f32 %v1166, 1.0
      %v1228 = vadd.f32 %v1168, 1.0
      %v1229 = vadd.f32 %v1170, 1.0
      %v1230 = vadd.f32 %v1172, 1.0
      %v1231 = vadd.f32 %v1174, 1.0
      %v1232 = vadd.f32 %v1176, 1.0
      %v1233 = vadd.f32 %v1178, 1.0
      %v1234 = vadd.f32 %v1180, 1.0
      %v1235 = vadd.f32 %v1182, 1.0
      %v1236 = vadd.f32 %v1184, 1.0
      %v1237 = vadd.f32 %v1186, 1.0
      %v1238 = vadd.f32 %v1188, 1.0
      %v1239 = vadd.f32 %v1190, 1.0
      %v1240 = vadd.f32 %v1192, 1.0
      %v1241 = vadd.f32 %v1194, 1.0
      %v1242 = vadd.f32 %v1196, 1.0
      %v1243 = vadd.f32 %v1198, 1.0
      %v1244 = vadd.f32 %v1200, 1.0
      %v1245 = vadd.f32 %v1202, 1.0
      %v1246 = vadd.f32 %v1204, 1.0
      %v1247 = vadd.f32 %v1206, 1.0
      %v1248 = vadd.f32 %v1208, 1.0
      %v1249 = vadd.f32 %v1210, 1.0
      %v1250 = vadd.f32 %v1212, 1.0
      %v1251 = vadd.f32 %v1214, 1.0
      %v1252 = vadd.f32 %v1216, 1.0
      %v1253 = vadd.f32 %v1218, 1.0
      %v1254 = vadd.f32 %v1220, 1.0
      %v1255 = vadd.f32 %v1222, 1.0
      %v1256 = vadd.f32 %v1224, 1.0
      %v1257 = vrcp.pop %v1225
      %v1258 = vrcp.pop %v1226
      %v1259 = vrcp.pop %v1227
      %v1260 = vrcp.pop %v1228
      %v1261 = vrcp.pop %v1229
      %v1262 = vrcp.pop %v1230
      %v1263 = vrcp.pop %v1231
      %v1264 = vrcp.pop %v1232
      %v1265 = vrcp.pop %v1233
      %v1266 = vrcp.pop %v1234
      %v1267 = vrcp.pop %v1235
      %v1268 = vrcp.pop %v1236
      %v1269 = vrcp.pop %v1237
      %v1270 = vrcp.pop %v1238
      %v1271 = vrcp.pop %v1239
      %v1272 = vrcp.pop %v1240
      %v1273 = vrcp.pop %v1241
      %v1274 = vrcp.pop %v1242
      %v1275 = vrcp.pop %v1243
      %v1276 = vrcp.pop %v1244
      %v1277 = vrcp.pop %v1245
      %v1278 = vrcp.pop %v1246
      %v1279 = vrcp.pop %v1247
      %v1280 = vrcp.pop %v1248
      %v1281 = vrcp.pop %v1249
      %v1282 = vrcp.pop %v1250
      %v1283 = vrcp.pop %v1251
      %v1284 = vrcp.pop %v1252
      %v1285 = vrcp.pop %v1253
      %v1286 = vrcp.pop %v1254
      %v1287 = vrcp.pop %v1255
      %v1288 = vrcp.pop %v1256
      %v1289 = vmul.f32 %v650, %v1257
      %v1290 = vmul.f32 %v653, %v1258
      %v1291 = vmul.f32 %v658, %v1259
      %v1292 = vmul.f32 %v661, %v1260
      %v1293 = vmul.f32 %v666, %v1261
      %v1294 = vmul.f32 %v669, %v1262
      %v1295 = vmul.f32 %v674, %v1263
      %v1296 = vmul.f32 %v677, %v1264
      %v1297 = vmul.f32 %v682, %v1265
      %v1298 = vmul.f32 %v685, %v1266
      %v1299 = vmul.f32 %v690, %v1267
      %v1300 = vmul.f32 %v693, %v1268
      %v1301 = vmul.f32 %v698, %v1269
      %v1302 = vmul.f32 %v701, %v1270
      %v1303 = vmul.f32 %v706, %v1271
      %v1304 = vmul.f32 %v709, %v1272
      %v1305 = vmul.f32 %v714, %v1273
      %v1306 = vmul.f32 %v717, %v1274
      %v1307 = vmul.f32 %v722, %v1275
      %v1308 = vmul.f32 %v725, %v1276
      %v1309 = vmul.f32 %v730, %v1277
      %v1310 = vmul.f32 %v733, %v1278
      %v1311 = vmul.f32 %v738, %v1279
      %v1312 = vmul.f32 %v741, %v1280
      %v1313 = vmul.f32 %v746, %v1281
      %v1314 = vmul.f32 %v749, %v1282
      %v1315 = vmul.f32 %v754, %v1283
      %v1316 = vmul.f32 %v757, %v1284
      %v1317 = vmul.f32 %v762, %v1285
      %v1318 = vmul.f32 %v765, %v1286
      %v1319 = vmul.f32 %v770, %v1287
      %v1320 = vmul.f32 %v773, %v1288
      %v1321 = vpack.c.bf16 %v1290, %v1289
      %v1322 = vpack.c.bf16 %v1292, %v1291
      %v1323 = vpack.c.bf16 %v1294, %v1293
      %v1324 = vpack.c.bf16 %v1296, %v1295
      %v1325 = vpack.c.bf16 %v1298, %v1297
      %v1326 = vpack.c.bf16 %v1300, %v1299
      %v1327 = vpack.c.bf16 %v1302, %v1301
      %v1328 = vpack.c.bf16 %v1304, %v1303
      %v1329 = vpack.c.bf16 %v1306, %v1305
      %v1330 = vpack.c.bf16 %v1308, %v1307
      %v1331 = vpack.c.bf16 %v1310, %v1309
      %v1332 = vpack.c.bf16 %v1312, %v1311
      %v1333 = vpack.c.bf16 %v1314, %v1313
      %v1334 = vpack.c.bf16 %v1316, %v1315
      %v1335 = vpack.c.bf16 %v1318, %v1317
      %v1336 = vpack.c.bf16 %v1320, %v1319
      %v1353 = vunpack.c.l.b16 %v1321
      %v1354 = vunpack.c.h.b16 %v1321
      %v1355 = vunpack.c.l.b16 %v1322
      %v1356 = vunpack.c.h.b16 %v1322
      %v1357 = vunpack.c.l.b16 %v1323
      %v1358 = vunpack.c.h.b16 %v1323
      %v1359 = vunpack.c.l.b16 %v1324
      %v1360 = vunpack.c.h.b16 %v1324
      %v1361 = vunpack.c.l.b16 %v1325
      %v1362 = vunpack.c.h.b16 %v1325
      %v1363 = vunpack.c.l.b16 %v1326
      %v1364 = vunpack.c.h.b16 %v1326
      %v1365 = vunpack.c.l.b16 %v1327
      %v1366 = vunpack.c.h.b16 %v1327
      %v1367 = vunpack.c.l.b16 %v1328
      %v1368 = vunpack.c.h.b16 %v1328
      %v1369 = vunpack.c.l.b16 %v1329
      %v1370 = vunpack.c.h.b16 %v1329
      %v1371 = vunpack.c.l.b16 %v1330
      %v1372 = vunpack.c.h.b16 %v1330
      %v1373 = vunpack.c.l.b16 %v1331
      %v1374 = vunpack.c.h.b16 %v1331
      %v1375 = vunpack.c.l.b16 %v1332
      %v1376 = vunpack.c.h.b16 %v1332
      %v1377 = vunpack.c.l.b16 %v1333
      %v1378 = vunpack.c.h.b16 %v1333
      %v1379 = vunpack.c.l.b16 %v1334
      %v1380 = vunpack.c.h.b16 %v1334
      %v1381 = vunpack.c.l.b16 %v1335
      %v1382 = vunpack.c.h.b16 %v1335
      %v1383 = vunpack.c.l.b16 %v1336
      %v1384 = vunpack.c.h.b16 %v1336
      %v1385 = vpack.c.b16 %v1353, %v1353
      %v1386 = vpack.c.b16 %v1354, %v1354
      %v1387 = vpack.c.b16 %v1355, %v1355
      %v1388 = vpack.c.b16 %v1356, %v1356
      %v1389 = vpack.c.b16 %v1357, %v1357
      %v1390 = vpack.c.b16 %v1358, %v1358
      %v1391 = vpack.c.b16 %v1359, %v1359
      %v1392 = vpack.c.b16 %v1360, %v1360
      %v1393 = vpack.c.b16 %v1361, %v1361
      %v1394 = vpack.c.b16 %v1362, %v1362
      %v1395 = vpack.c.b16 %v1363, %v1363
      %v1396 = vpack.c.b16 %v1364, %v1364
      %v1397 = vpack.c.b16 %v1365, %v1365
      %v1398 = vpack.c.b16 %v1366, %v1366
      %v1399 = vpack.c.b16 %v1367, %v1367
      %v1400 = vpack.c.b16 %v1368, %v1368
      %v1401 = vpack.c.b16 %v1369, %v1369
      %v1402 = vpack.c.b16 %v1370, %v1370
      %v1403 = vpack.c.b16 %v1371, %v1371
      %v1404 = vpack.c.b16 %v1372, %v1372
      %v1405 = vpack.c.b16 %v1373, %v1373
      %v1406 = vpack.c.b16 %v1374, %v1374
      %v1407 = vpack.c.b16 %v1375, %v1375
      %v1408 = vpack.c.b16 %v1376, %v1376
      %v1409 = vpack.c.b16 %v1377, %v1377
      %v1410 = vpack.c.b16 %v1378, %v1378
      %v1411 = vpack.c.b16 %v1379, %v1379
      %v1412 = vpack.c.b16 %v1380, %v1380
      %v1413 = vpack.c.b16 %v1381, %v1381
      %v1414 = vpack.c.b16 %v1382, %v1382
      %v1415 = vpack.c.b16 %v1383, %v1383
      %v1416 = vpack.c.b16 %v1384, %v1384
      %1449 = vst.msk [vmem:[%s267] sm:$0xf] %vm1096, %v1385
      %1450 = vst.msk [vmem:[%s267 + $0x4] sm:$0xf] %vm1096, %v1386
      %1451 = vst.msk [vmem:[%s267 + $0x8] sm:$0xf] %vm1096, %v1387
      %1452 = vst.msk [vmem:[%s267 + $0xc] sm:$0xf] %vm1096, %v1388
      %1453 = vst.msk [vmem:[%s267 + $0x10] sm:$0xf] %vm1096, %v1389
      %1454 = vst.msk [vmem:[%s267 + $0x14] sm:$0xf] %vm1096, %v1390
      %1455 = vst.msk [vmem:[%s267 + $0x18] sm:$0xf] %vm1096, %v1391
      %1456 = vst.msk [vmem:[%s267 + $0x1c] sm:$0xf] %vm1096, %v1392
      %1457 = vst.msk [vmem:[%s267 + $0x20] sm:$0xf] %vm1096, %v1393
      %1458 = vst.msk [vmem:[%s267 + $0x24] sm:$0xf] %vm1096, %v1394
      %1459 = vst.msk [vmem:[%s267 + $0x28] sm:$0xf] %vm1096, %v1395
      %1460 = vst.msk [vmem:[%s267 + $0x2c] sm:$0xf] %vm1096, %v1396
      %1461 = vst.msk [vmem:[%s267 + $0x30] sm:$0xf] %vm1096, %v1397
      %1462 = vst.msk [vmem:[%s267 + $0x34] sm:$0xf] %vm1096, %v1398
      %1463 = vst.msk [vmem:[%s267 + $0x38] sm:$0xf] %vm1096, %v1399
      %1464 = vst.msk [vmem:[%s267 + $0x3c] sm:$0xf] %vm1096, %v1400
      %1465 = vst.msk [vmem:[%s267 + $0x40] sm:$0xf] %vm1096, %v1401
      %1466 = vst.msk [vmem:[%s267 + $0x44] sm:$0xf] %vm1096, %v1402
      %1467 = vst.msk [vmem:[%s267 + $0x48] sm:$0xf] %vm1096, %v1403
      %1468 = vst.msk [vmem:[%s267 + $0x4c] sm:$0xf] %vm1096, %v1404
      %1469 = vst.msk [vmem:[%s267 + $0x50] sm:$0xf] %vm1096, %v1405
      %1470 = vst.msk [vmem:[%s267 + $0x54] sm:$0xf] %vm1096, %v1406
      %1471 = vst.msk [vmem:[%s267 + $0x58] sm:$0xf] %vm1096, %v1407
      %1472 = vst.msk [vmem:[%s267 + $0x5c] sm:$0xf] %vm1096, %v1408
      %1473 = vst.msk [vmem:[%s267 + $0x60] sm:$0xf] %vm1096, %v1409
      %1474 = vst.msk [vmem:[%s267 + $0x64] sm:$0xf] %vm1096, %v1410
      %1475 = vst.msk [vmem:[%s267 + $0x68] sm:$0xf] %vm1096, %v1411
      %1476 = vst.msk [vmem:[%s267 + $0x6c] sm:$0xf] %vm1096, %v1412
      %1477 = vst.msk [vmem:[%s267 + $0x70] sm:$0xf] %vm1096, %v1413
      %1478 = vst.msk [vmem:[%s267 + $0x74] sm:$0xf] %vm1096, %v1414
      %1479 = vst.msk [vmem:[%s267 + $0x78] sm:$0xf] %vm1096, %v1415
      %1480 = vst.msk [vmem:[%s267 + $0x7c] sm:$0xf] %vm1096, %v1416
      %s1481 = smul.u32 32, %s18
      %p1482 = scmp.lt.s32.totalorder %s1481, 63
      %s1483 = scalar_select %p1482, %s1481, 63
      %s1484 = smul.addr %s1483, 4
      %s1485 = scalar_lea.vmem %s5, %s1484
      %s1486 = smul.u32 32, %s18
      %p1487 = scmp.lt.s32.totalorder %s1486, 63
      %s1488 = scalar_select %p1487, %s1486, 63
      %s1489 = smul.addr %s1488, 4
      %s1490 = scalar_lea.vmem %s6, %s1489
      // Predicated region
      $region41: #{elan_block_fpn.6} parent=39 // pred_check
        %p1491 = pneg %p146
      $region42: #{elan_block_fpn.6} parent=39 // pred_check_branch
        %1493 = sbr.rel (%p1491) target = $region44
      $region43: #{elan_block_fpn.6} parent=39 // pred_region
        %s1494 = smul.u32 32, %s18
      $region44: #{elan_block_fpn.6} parent=39 // pred_fallthru
        _
      // Predicated region
      $region45: #{elan_block_fpn.6} parent=39 // pred_check
        %p1495 = pneg %p172
      $region46: #{elan_block_fpn.6} parent=39 // pred_check_branch
        %1497 = sbr.rel (%p1495) target = $region48
      $region47: #{elan_block_fpn.6} parent=39 // pred_region
        %s1498 = smul.u32 32, %s18
      $region48: #{elan_block_fpn.6} parent=39 // pred_fallthru
        _
    $region40: #{elan_block_fpn.6} parent=5 // pred_fallthru
      _
    %p1499 = scmp.le.s32.totalorder 2, %s13
    // Predicated region
    $region49: #{elan_block_fpn.6} parent=5 // pred_check
      %p1500 = pneg %p1499
    $region50: #{elan_block_fpn.6} parent=5 // pred_check_branch
      %1502 = sbr.rel (%p1500) target = $region52
    $region51: #{elan_block_fpn.6} parent=5 // pred_region
      %s1503 = ssub.s32 %s13, 2
      // Predicated region
      $region53: #{elan_block_fpn.6} parent=51 // pred_check
        %p1504 = pneg %p152
      $region54: #{elan_block_fpn.6} parent=51 // pred_check_branch
        %1506 = sbr.rel (%p1504) target = $region56
      $region55: #{elan_block_fpn.6} parent=51 // pred_region
        %s1507 = smul.u32 32, %s19
        %p1508 = scmp.lt.s32.totalorder %s1507, 63
        %s1509 = scalar_select %p1508, %s1507, 63
        %s1510 = smul.addr %s1509, 4
        %s1511 = scalar_lea.vmem %s5, %s1510
      $region56: #{elan_block_fpn.6} parent=51 // pred_fallthru
        _
      // Predicated region
      $region57: #{elan_block_fpn.6} parent=51 // pred_check
        %p1512 = pneg %p178
      $region58: #{elan_block_fpn.6} parent=51 // pred_check_branch
        %1514 = sbr.rel (%p1512) target = $region60
      $region59: #{elan_block_fpn.6} parent=51 // pred_region
        %s1515 = smul.u32 32, %s19
        %p1516 = scmp.lt.s32.totalorder %s1515, 63
        %s1517 = scalar_select %p1516, %s1515, 63
        %s1518 = smul.addr %s1517, 4
        %s1519 = scalar_lea.vmem %s6, %s1518
      $region60: #{elan_block_fpn.6} parent=51 // pred_fallthru
        _
    $region52: #{elan_block_fpn.6} parent=5 // pred_fallthru
      _
  $region6: #{elan_block_fpn.6} parent=0 // loop_footer
    %s17 = sadd.s32 1, %s13
  $region7: #{elan_block_fpn.6} parent=0 // loop_footer_branch
    %12 = sbr.rel target = $region3
  $region8: #{elan_block_fpn.6} parent=0 // loop_exit
    _

// kernel: elan_block_fpn.11
$region0: #{elan_block_fpn.11}
  #allocation0 [shape = 'u32[]', space=smem, size = 0x4, offset = 0x4, fixed_abs, tag = 'smem constant byte address 0x4 - core index']
  #allocation1 [shape = 'u32[144,128]{1,0:T(1,128)}', space=vmem, size = 0x12000, scoped, tag = 'internal scratch']
  %s0 = inlined_call_operand.vmem [shape: bf16[512,4], index: 0, kind: input, shape index: {}]
  %s1 = inlined_call_operand.vmem [shape: bf16[512,4], index: 1, kind: input, shape index: {}]
  %s2 = inlined_call_operand.vmem [shape: bf16[512,2], index: 2, kind: input, shape index: {}]
  %s3 = inlined_call_operand.vmem [shape: bf16[512,2], index: 3, kind: input, shape index: {}]
  %s4 = inlined_call_operand.vmem [shape: bf16[512,2], index: 4, kind: input, shape index: {}]
  %s5 = inlined_call_operand.vmem [shape: bf16[512,2], index: 5, kind: input, shape index: {}]
  %s6 = inlined_call_operand.vmem [shape: bf16[4,8], index: 6, kind: input, shape index: {}]
  %s7 = inlined_call_operand.vmem [shape: bf16[4,8], index: 7, kind: input, shape index: {}]
  %s8 = inlined_call_operand.vmem [shape: bf16[2,8], index: 8, kind: input, shape index: {}]
  %s9 = inlined_call_operand.vmem [shape: bf16[2,8], index: 9, kind: input, shape index: {}]
  %s10 = inlined_call_operand.vmem [shape: bf16[2,8], index: 10, kind: input, shape index: {}]
  %s11 = inlined_call_operand.vmem [shape: bf16[2,8], index: 11, kind: input, shape index: {}]
  %s12 = inlined_call_operand.vmem [shape: f32[1,8], index: 12, kind: input, shape index: {}]
  %s13 = inlined_call_operand.vmem [shape: bf16[512,8], index: 13, kind: output, shape index: {}]
  %s14 = sld [smem:[#allocation0]]
  $region85: #{elan_block_fpn.11} parent=0
    _
  %s16 = ssub.s32 1, %s14
  %s17 = scalar_select 0, %s16, %s14
  loop: start=0, step=1, limit=4
  $region2: #{elan_block_fpn.11} parent=0 // loop_pre_header
    _
  $region3: #{elan_block_fpn.11} parent=0 // loop_header
    %s19 = sphi 0, %s23
    %p20 = scmp.ge.s32.totalorder %s19, 4
    %s29 = sphi 0, %s31
    %s32 = sphi 0, %s29
    %s33 = sphi 0, %s32
    %s49 = sphi 0, %s33
    %s55 = sphi 0, %s57
    %s58 = sphi 0, %s55
    %s59 = sphi 0, %s58
    %s75 = sphi 0, %s59
    %s81 = sphi 0, %s83
    %s84 = sphi 0, %s81
    %s85 = sphi 0, %s84
    %s101 = sphi 0, %s85
    %s107 = sphi 0, %s109
    %s110 = sphi 0, %s107
    %s111 = sphi 0, %s110
    %s127 = sphi 0, %s111
    %s133 = sphi 0, %s135
    %s136 = sphi 0, %s133
    %s137 = sphi 0, %s136
    %s153 = sphi 0, %s137
    %s159 = sphi 0, %s161
    %s162 = sphi 0, %s159
    %s163 = sphi 0, %s162
    %s179 = sphi 0, %s163
    %s183 = sphi 0, %s183
    %s185 = sphi 0, %s183
    %s186 = sphi 0, %s185
    %s200 = sphi 0, %s186
    %s204 = sphi 0, %s204
    %s206 = sphi 0, %s204
    %s207 = sphi 0, %s206
    %s221 = sphi 0, %s207
    %s225 = sphi 0, %s225
    %s227 = sphi 0, %s225
    %s228 = sphi 0, %s227
    %s242 = sphi 0, %s228
    %s246 = sphi 0, %s246
    %s248 = sphi 0, %s246
    %s249 = sphi 0, %s248
    %s263 = sphi 0, %s249
    %s267 = sphi 0, %s267
    %s269 = sphi 0, %s267
    %s270 = sphi 0, %s269
    %s284 = sphi 0, %s270
    %s288 = sphi 0, %s288
    %s290 = sphi 0, %s288
    %s291 = sphi 0, %s290
    %s305 = sphi 0, %s291
    %s309 = sphi 0, %s309
    %s311 = sphi 0, %s309
    %s312 = sphi 0, %s311
    %s326 = sphi 0, %s312
    %s332 = sphi 0, %s334
    %s335 = sphi 0, %s332
    %s336 = sphi 0, %s335
    %s352 = sphi 0, %s336
  $region4: #{elan_block_fpn.11} parent=0 // loop_header_branch
    %22 = sbr.rel (%p20) target = $region8
  $region5: #{elan_block_fpn.11} parent=0 // loop_body
    %s24 = ssub.s32 %s19, 1
    %s25 = ssub.s32 %s19, 2
    %s26 = sadd.s32 %s19, 1
    %s27 = ssub.s32 %s19, %s26
    %p28 = scmp.eq.s32.totalorder %s27, 0
    %s30 = sadd.s32 %s29, 1
    %s31 = scalar_select %p28, %s29, %s30
    %p34 = pneg %p28
    %p35 = scmp.eq.s32.totalorder %s19, 1
    %p36 = por %p34, %p35
    %p37 = scmp.ne.s32.totalorder %s29, %s32
    %p38 = scmp.eq.s32.totalorder %s19, 0
    %p39 = por %p37, %p38
    %p40 = scmp.ne.s32.totalorder %s29, %s32
    %p41 = scmp.eq.s32.totalorder %s24, 1
    %p42 = por %p40, %p41
    %p43 = scmp.ne.s32.totalorder %s32, %s33
    %p44 = scmp.eq.s32.totalorder %s24, 0
    %p45 = por %p43, %p44
    %p46 = scmp.ne.s32.totalorder %s32, %s33
    %p47 = scmp.eq.s32.totalorder %s25, 1
    %p48 = por %p46, %p47
    %p50 = scmp.ne.s32.totalorder %s33, %s49
    %p51 = scmp.eq.s32.totalorder %s25, 0
    %p52 = por %p50, %p51
    %s53 = ssub.s32 %s19, %s26
    %p54 = scmp.eq.s32.totalorder %s53, 0
    %s56 = sadd.s32 %s55, 1
    %s57 = scalar_select %p54, %s55, %s56
    %p60 = pneg %p54
    %p61 = scmp.eq.s32.totalorder %s19, 1
    %p62 = por %p60, %p61
    %p63 = scmp.ne.s32.totalorder %s55, %s58
    %p64 = scmp.eq.s32.totalorder %s19, 0
    %p65 = por %p63, %p64
    %p66 = scmp.ne.s32.totalorder %s55, %s58
    %p67 = scmp.eq.s32.totalorder %s24, 1
    %p68 = por %p66, %p67
    %p69 = scmp.ne.s32.totalorder %s58, %s59
    %p70 = scmp.eq.s32.totalorder %s24, 0
    %p71 = por %p69, %p70
    %p72 = scmp.ne.s32.totalorder %s58, %s59
    %p73 = scmp.eq.s32.totalorder %s25, 1
    %p74 = por %p72, %p73
    %p76 = scmp.ne.s32.totalorder %s59, %s75
    %p77 = scmp.eq.s32.totalorder %s25, 0
    %p78 = por %p76, %p77
    %s79 = ssub.s32 %s19, %s26
    %p80 = scmp.eq.s32.totalorder %s79, 0
    %s82 = sadd.s32 %s81, 1
    %s83 = scalar_select %p80, %s81, %s82
    %p86 = pneg %p80
    %p87 = scmp.eq.s32.totalorder %s19, 1
    %p88 = por %p86, %p87
    %p89 = scmp.ne.s32.totalorder %s81, %s84
    %p90 = scmp.eq.s32.totalorder %s19, 0
    %p91 = por %p89, %p90
    %p92 = scmp.ne.s32.totalorder %s81, %s84
    %p93 = scmp.eq.s32.totalorder %s24, 1
    %p94 = por %p92, %p93
    %p95 = scmp.ne.s32.totalorder %s84, %s85
    %p96 = scmp.eq.s32.totalorder %s24, 0
    %p97 = por %p95, %p96
    %p98 = scmp.ne.s32.totalorder %s84, %s85
    %p99 = scmp.eq.s32.totalorder %s25, 1
    %p100 = por %p98, %p99
    %p102 = scmp.ne.s32.totalorder %s85, %s101
    %p103 = scmp.eq.s32.totalorder %s25, 0
    %p104 = por %p102, %p103
    %s105 = ssub.s32 %s19, %s26
    %p106 = scmp.eq.s32.totalorder %s105, 0
    %s108 = sadd.s32 %s107, 1
    %s109 = scalar_select %p106, %s107, %s108
    %p112 = pneg %p106
    %p113 = scmp.eq.s32.totalorder %s19, 1
    %p114 = por %p112, %p113
    %p115 = scmp.ne.s32.totalorder %s107, %s110
    %p116 = scmp.eq.s32.totalorder %s19, 0
    %p117 = por %p115, %p116
    %p118 = scmp.ne.s32.totalorder %s107, %s110
    %p119 = scmp.eq.s32.totalorder %s24, 1
    %p120 = por %p118, %p119
    %p121 = scmp.ne.s32.totalorder %s110, %s111
    %p122 = scmp.eq.s32.totalorder %s24, 0
    %p123 = por %p121, %p122
    %p124 = scmp.ne.s32.totalorder %s110, %s111
    %p125 = scmp.eq.s32.totalorder %s25, 1
    %p126 = por %p124, %p125
    %p128 = scmp.ne.s32.totalorder %s111, %s127
    %p129 = scmp.eq.s32.totalorder %s25, 0
    %p130 = por %p128, %p129
    %s131 = ssub.s32 %s19, %s26
    %p132 = scmp.eq.s32.totalorder %s131, 0
    %s134 = sadd.s32 %s133, 1
    %s135 = scalar_select %p132, %s133, %s134
    %p138 = pneg %p132
    %p139 = scmp.eq.s32.totalorder %s19, 1
    %p140 = por %p138, %p139
    %p141 = scmp.ne.s32.totalorder %s133, %s136
    %p142 = scmp.eq.s32.totalorder %s19, 0
    %p143 = por %p141, %p142
    %p144 = scmp.ne.s32.totalorder %s133, %s136
    %p145 = scmp.eq.s32.totalorder %s24, 1
    %p146 = por %p144, %p145
    %p147 = scmp.ne.s32.totalorder %s136, %s137
    %p148 = scmp.eq.s32.totalorder %s24, 0
    %p149 = por %p147, %p148
    %p150 = scmp.ne.s32.totalorder %s136, %s137
    %p151 = scmp.eq.s32.totalorder %s25, 1
    %p152 = por %p150, %p151
    %p154 = scmp.ne.s32.totalorder %s137, %s153
    %p155 = scmp.eq.s32.totalorder %s25, 0
    %p156 = por %p154, %p155
    %s157 = ssub.s32 %s19, %s26
    %p158 = scmp.eq.s32.totalorder %s157, 0
    %s160 = sadd.s32 %s159, 1
    %s161 = scalar_select %p158, %s159, %s160
    %p164 = pneg %p158
    %p165 = scmp.eq.s32.totalorder %s19, 1
    %p166 = por %p164, %p165
    %p167 = scmp.ne.s32.totalorder %s159, %s162
    %p168 = scmp.eq.s32.totalorder %s19, 0
    %p169 = por %p167, %p168
    %p170 = scmp.ne.s32.totalorder %s159, %s162
    %p171 = scmp.eq.s32.totalorder %s24, 1
    %p172 = por %p170, %p171
    %p173 = scmp.ne.s32.totalorder %s162, %s163
    %p174 = scmp.eq.s32.totalorder %s24, 0
    %p175 = por %p173, %p174
    %p176 = scmp.ne.s32.totalorder %s162, %s163
    %p177 = scmp.eq.s32.totalorder %s25, 1
    %p178 = por %p176, %p177
    %p180 = scmp.ne.s32.totalorder %s163, %s179
    %p181 = scmp.eq.s32.totalorder %s25, 0
    %p182 = por %p180, %p181
    %s184 = sadd.s32 %s183, 1
    %p187 = scmp.eq.s32.totalorder %s19, 1
    %p188 = scmp.ne.s32.totalorder %s183, %s185
    %p189 = scmp.eq.s32.totalorder %s19, 0
    %p190 = por %p188, %p189
    %p191 = scmp.ne.s32.totalorder %s183, %s185
    %p192 = scmp.eq.s32.totalorder %s24, 1
    %p193 = por %p191, %p192
    %p194 = scmp.ne.s32.totalorder %s185, %s186
    %p195 = scmp.eq.s32.totalorder %s24, 0
    %p196 = por %p194, %p195
    %p197 = scmp.ne.s32.totalorder %s185, %s186
    %p198 = scmp.eq.s32.totalorder %s25, 1
    %p199 = por %p197, %p198
    %p201 = scmp.ne.s32.totalorder %s186, %s200
    %p202 = scmp.eq.s32.totalorder %s25, 0
    %p203 = por %p201, %p202
    %s205 = sadd.s32 %s204, 1
    %p208 = scmp.eq.s32.totalorder %s19, 1
    %p209 = scmp.ne.s32.totalorder %s204, %s206
    %p210 = scmp.eq.s32.totalorder %s19, 0
    %p211 = por %p209, %p210
    %p212 = scmp.ne.s32.totalorder %s204, %s206
    %p213 = scmp.eq.s32.totalorder %s24, 1
    %p214 = por %p212, %p213
    %p215 = scmp.ne.s32.totalorder %s206, %s207
    %p216 = scmp.eq.s32.totalorder %s24, 0
    %p217 = por %p215, %p216
    %p218 = scmp.ne.s32.totalorder %s206, %s207
    %p219 = scmp.eq.s32.totalorder %s25, 1
    %p220 = por %p218, %p219
    %p222 = scmp.ne.s32.totalorder %s207, %s221
    %p223 = scmp.eq.s32.totalorder %s25, 0
    %p224 = por %p222, %p223
    %s226 = sadd.s32 %s225, 1
    %p229 = scmp.eq.s32.totalorder %s19, 1
    %p230 = scmp.ne.s32.totalorder %s225, %s227
    %p231 = scmp.eq.s32.totalorder %s19, 0
    %p232 = por %p230, %p231
    %p233 = scmp.ne.s32.totalorder %s225, %s227
    %p234 = scmp.eq.s32.totalorder %s24, 1
    %p235 = por %p233, %p234
    %p236 = scmp.ne.s32.totalorder %s227, %s228
    %p237 = scmp.eq.s32.totalorder %s24, 0
    %p238 = por %p236, %p237
    %p239 = scmp.ne.s32.totalorder %s227, %s228
    %p240 = scmp.eq.s32.totalorder %s25, 1
    %p241 = por %p239, %p240
    %p243 = scmp.ne.s32.totalorder %s228, %s242
    %p244 = scmp.eq.s32.totalorder %s25, 0
    %p245 = por %p243, %p244
    %s247 = sadd.s32 %s246, 1
    %p250 = scmp.eq.s32.totalorder %s19, 1
    %p251 = scmp.ne.s32.totalorder %s246, %s248
    %p252 = scmp.eq.s32.totalorder %s19, 0
    %p253 = por %p251, %p252
    %p254 = scmp.ne.s32.totalorder %s246, %s248
    %p255 = scmp.eq.s32.totalorder %s24, 1
    %p256 = por %p254, %p255
    %p257 = scmp.ne.s32.totalorder %s248, %s249
    %p258 = scmp.eq.s32.totalorder %s24, 0
    %p259 = por %p257, %p258
    %p260 = scmp.ne.s32.totalorder %s248, %s249
    %p261 = scmp.eq.s32.totalorder %s25, 1
    %p262 = por %p260, %p261
    %p264 = scmp.ne.s32.totalorder %s249, %s263
    %p265 = scmp.eq.s32.totalorder %s25, 0
    %p266 = por %p264, %p265
    %s268 = sadd.s32 %s267, 1
    %p271 = scmp.eq.s32.totalorder %s19, 1
    %p272 = scmp.ne.s32.totalorder %s267, %s269
    %p273 = scmp.eq.s32.totalorder %s19, 0
    %p274 = por %p272, %p273
    %p275 = scmp.ne.s32.totalorder %s267, %s269
    %p276 = scmp.eq.s32.totalorder %s24, 1
    %p277 = por %p275, %p276
    %p278 = scmp.ne.s32.totalorder %s269, %s270
    %p279 = scmp.eq.s32.totalorder %s24, 0
    %p280 = por %p278, %p279
    %p281 = scmp.ne.s32.totalorder %s269, %s270
    %p282 = scmp.eq.s32.totalorder %s25, 1
    %p283 = por %p281, %p282
    %p285 = scmp.ne.s32.totalorder %s270, %s284
    %p286 = scmp.eq.s32.totalorder %s25, 0
    %p287 = por %p285, %p286
    %s289 = sadd.s32 %s288, 1
    %p292 = scmp.eq.s32.totalorder %s19, 1
    %p293 = scmp.ne.s32.totalorder %s288, %s290
    %p294 = scmp.eq.s32.totalorder %s19, 0
    %p295 = por %p293, %p294
    %p296 = scmp.ne.s32.totalorder %s288, %s290
    %p297 = scmp.eq.s32.totalorder %s24, 1
    %p298 = por %p296, %p297
    %p299 = scmp.ne.s32.totalorder %s290, %s291
    %p300 = scmp.eq.s32.totalorder %s24, 0
    %p301 = por %p299, %p300
    %p302 = scmp.ne.s32.totalorder %s290, %s291
    %p303 = scmp.eq.s32.totalorder %s25, 1
    %p304 = por %p302, %p303
    %p306 = scmp.ne.s32.totalorder %s291, %s305
    %p307 = scmp.eq.s32.totalorder %s25, 0
    %p308 = por %p306, %p307
    %s310 = sadd.s32 %s309, 1
    %p313 = scmp.eq.s32.totalorder %s19, 1
    %p314 = scmp.ne.s32.totalorder %s309, %s311
    %p315 = scmp.eq.s32.totalorder %s19, 0
    %p316 = por %p314, %p315
    %p317 = scmp.ne.s32.totalorder %s309, %s311
    %p318 = scmp.eq.s32.totalorder %s24, 1
    %p319 = por %p317, %p318
    %p320 = scmp.ne.s32.totalorder %s311, %s312
    %p321 = scmp.eq.s32.totalorder %s24, 0
    %p322 = por %p320, %p321
    %p323 = scmp.ne.s32.totalorder %s311, %s312
    %p324 = scmp.eq.s32.totalorder %s25, 1
    %p325 = por %p323, %p324
    %p327 = scmp.ne.s32.totalorder %s312, %s326
    %p328 = scmp.eq.s32.totalorder %s25, 0
    %p329 = por %p327, %p328
    %s330 = ssub.s32 %s19, %s26
    %p331 = scmp.eq.s32.totalorder %s330, 0
    %s333 = sadd.s32 %s332, 1
    %s334 = scalar_select %p331, %s332, %s333
    %p337 = pneg %p331
    %p338 = scmp.eq.s32.totalorder %s19, 1
    %p339 = por %p337, %p338
    %p340 = scmp.ne.s32.totalorder %s332, %s335
    %p341 = scmp.eq.s32.totalorder %s19, 0
    %p342 = por %p340, %p341
    %p343 = scmp.ne.s32.totalorder %s332, %s335
    %p344 = scmp.eq.s32.totalorder %s24, 1
    %p345 = por %p343, %p344
    %p346 = scmp.ne.s32.totalorder %s335, %s336
    %p347 = scmp.eq.s32.totalorder %s24, 0
    %p348 = por %p346, %p347
    %p349 = scmp.ne.s32.totalorder %s335, %s336
    %p350 = scmp.eq.s32.totalorder %s25, 1
    %p351 = por %p349, %p350
    %p353 = scmp.ne.s32.totalorder %s336, %s352
    %p354 = scmp.eq.s32.totalorder %s25, 0
    %p355 = por %p353, %p354
    %p356 = scmp.le.s32.totalorder 1, %s19
    %p357 = scmp.lt.s32.totalorder %s19, 3
    %p358 = pnand %p356, %p357
    %p359 = pneg %p358
    // Predicated region
    $region9: #{elan_block_fpn.11} parent=5 // pred_check
      _
    $region10: #{elan_block_fpn.11} parent=5 // pred_check_branch
      %361 = sbr.rel (%p358) target = $region12
    $region11: #{elan_block_fpn.11} parent=5 // pred_region
      %s362 = ssub.s32 %s19, 1
      // Predicated region
      $region13: #{elan_block_fpn.11} parent=11 // pred_check
        %p363 = pneg %p196
      $region14: #{elan_block_fpn.11} parent=11 // pred_check_branch
        %365 = sbr.rel (%p363) target = $region16
      $region15: #{elan_block_fpn.11} parent=11 // pred_region
        _
      $region16: #{elan_block_fpn.11} parent=11 // pred_fallthru
        _
      // Predicated region
      $region17: #{elan_block_fpn.11} parent=11 // pred_check
        %p366 = pneg %p217
      $region18: #{elan_block_fpn.11} parent=11 // pred_check_branch
        %368 = sbr.rel (%p366) target = $region20
      $region19: #{elan_block_fpn.11} parent=11 // pred_region
        _
      $region20: #{elan_block_fpn.11} parent=11 // pred_fallthru
        _
      // Predicated region
      $region21: #{elan_block_fpn.11} parent=11 // pred_check
        %p369 = pneg %p238
      $region22: #{elan_block_fpn.11} parent=11 // pred_check_branch
        %371 = sbr.rel (%p369) target = $region24
      $region23: #{elan_block_fpn.11} parent=11 // pred_region
        _
      $region24: #{elan_block_fpn.11} parent=11 // pred_fallthru
        _
      // Predicated region
      $region25: #{elan_block_fpn.11} parent=11 // pred_check
        %p372 = pneg %p259
      $region26: #{elan_block_fpn.11} parent=11 // pred_check_branch
        %374 = sbr.rel (%p372) target = $region28
      $region27: #{elan_block_fpn.11} parent=11 // pred_region
        _
      $region28: #{elan_block_fpn.11} parent=11 // pred_fallthru
        _
      // Predicated region
      $region29: #{elan_block_fpn.11} parent=11 // pred_check
        %p375 = pneg %p280
      $region30: #{elan_block_fpn.11} parent=11 // pred_check_branch
        %377 = sbr.rel (%p375) target = $region32
      $region31: #{elan_block_fpn.11} parent=11 // pred_region
        _
      $region32: #{elan_block_fpn.11} parent=11 // pred_fallthru
        _
      // Predicated region
      $region33: #{elan_block_fpn.11} parent=11 // pred_check
        %p378 = pneg %p301
      $region34: #{elan_block_fpn.11} parent=11 // pred_check_branch
        %380 = sbr.rel (%p378) target = $region36
      $region35: #{elan_block_fpn.11} parent=11 // pred_region
        _
      $region36: #{elan_block_fpn.11} parent=11 // pred_fallthru
        _
      // Predicated region
      $region37: #{elan_block_fpn.11} parent=11 // pred_check
        %p381 = pneg %p322
      $region38: #{elan_block_fpn.11} parent=11 // pred_check_branch
        %383 = sbr.rel (%p381) target = $region40
      $region39: #{elan_block_fpn.11} parent=11 // pred_region
        _
      $region40: #{elan_block_fpn.11} parent=11 // pred_fallthru
        _
    $region12: #{elan_block_fpn.11} parent=5 // pred_fallthru
      _
    %p384 = scmp.lt.s32.totalorder %s19, 2
    // Predicated region
    $region41: #{elan_block_fpn.11} parent=5 // pred_check
      %p385 = pneg %p384
    $region42: #{elan_block_fpn.11} parent=5 // pred_check_branch
      %387 = sbr.rel (%p385) target = $region44
    $region43: #{elan_block_fpn.11} parent=5 // pred_region
      // Predicated region
      $region45: #{elan_block_fpn.11} parent=43 // pred_check
        %p388 = pneg %p39
      $region46: #{elan_block_fpn.11} parent=43 // pred_check_branch
        %390 = sbr.rel (%p388) target = $region48
      $region47: #{elan_block_fpn.11} parent=43 // pred_region
        %s391 = smul.u32 32, %s19
        %p392 = scmp.lt.s32.totalorder %s391, 63
        %s393 = scalar_select %p392, %s391, 63
        %s394 = smul.addr %s393, 4
        %s395 = scalar_lea.vmem %s0, %s394
        %s396 = smul.u32 32, %s19
      $region48: #{elan_block_fpn.11} parent=43 // pred_fallthru
        _
      // Predicated region
      $region49: #{elan_block_fpn.11} parent=43 // pred_check
        %p397 = pneg %p65
      $region50: #{elan_block_fpn.11} parent=43 // pred_check_branch
        %399 = sbr.rel (%p397) target = $region52
      $region51: #{elan_block_fpn.11} parent=43 // pred_region
        %s400 = smul.u32 32, %s19
        %p401 = scmp.lt.s32.totalorder %s400, 63
        %s402 = scalar_select %p401, %s400, 63
        %s403 = smul.addr %s402, 4
        %s404 = scalar_lea.vmem %s1, %s403
        %s405 = smul.u32 32, %s19
      $region52: #{elan_block_fpn.11} parent=43 // pred_fallthru
        _
      // Predicated region
      $region53: #{elan_block_fpn.11} parent=43 // pred_check
        %p406 = pneg %p91
      $region54: #{elan_block_fpn.11} parent=43 // pred_check_branch
        %408 = sbr.rel (%p406) target = $region56
      $region55: #{elan_block_fpn.11} parent=43 // pred_region
        %s409 = smul.u32 32, %s19
        %p410 = scmp.lt.s32.totalorder %s409, 63
        %s411 = scalar_select %p410, %s409, 63
        %s412 = smul.addr %s411, 4
        %s413 = scalar_lea.vmem %s2, %s412
        %s414 = smul.u32 32, %s19
      $region56: #{elan_block_fpn.11} parent=43 // pred_fallthru
        _
      // Predicated region
      $region57: #{elan_block_fpn.11} parent=43 // pred_check
        %p415 = pneg %p117
      $region58: #{elan_block_fpn.11} parent=43 // pred_check_branch
        %417 = sbr.rel (%p415) target = $region60
      $region59: #{elan_block_fpn.11} parent=43 // pred_region
        %s418 = smul.u32 32, %s19
        %p419 = scmp.lt.s32.totalorder %s418, 63
        %s420 = scalar_select %p419, %s418, 63
        %s421 = smul.addr %s420, 4
        %s422 = scalar_lea.vmem %s3, %s421
        %s423 = smul.u32 32, %s19
      $region60: #{elan_block_fpn.11} parent=43 // pred_fallthru
        _
      // Predicated region
      $region61: #{elan_block_fpn.11} parent=43 // pred_check
        %p424 = pneg %p143
      $region62: #{elan_block_fpn.11} parent=43 // pred_check_branch
        %426 = sbr.rel (%p424) target = $region64
      $region63: #{elan_block_fpn.11} parent=43 // pred_region
        %s427 = smul.u32 32, %s19
        %p428 = scmp.lt.s32.totalorder %s427, 63
        %s429 = scalar_select %p428, %s427, 63
        %s430 = smul.addr %s429, 4
        %s431 = scalar_lea.vmem %s4, %s430
        %s432 = smul.u32 32, %s19
      $region64: #{elan_block_fpn.11} parent=43 // pred_fallthru
        _
      // Predicated region
      $region65: #{elan_block_fpn.11} parent=43 // pred_check
        %p433 = pneg %p169
      $region66: #{elan_block_fpn.11} parent=43 // pred_check_branch
        %435 = sbr.rel (%p433) target = $region68
      $region67: #{elan_block_fpn.11} parent=43 // pred_region
        %s436 = smul.u32 32, %s19
        %p437 = scmp.lt.s32.totalorder %s436, 63
        %s438 = scalar_select %p437, %s436, 63
        %s439 = smul.addr %s438, 4
        %s440 = scalar_lea.vmem %s5, %s439
        %s441 = smul.u32 32, %s19
      $region68: #{elan_block_fpn.11} parent=43 // pred_fallthru
        _
    $region44: #{elan_block_fpn.11} parent=5 // pred_fallthru
      _
    %p442 = scmp.le.s32.totalorder 1, %s19
    %p443 = scmp.lt.s32.totalorder %s19, 3
    %p444 = pnand %p442, %p443
    %p445 = pneg %p444
    // Predicated region
    $region69: #{elan_block_fpn.11} parent=5 // pred_check
      _
    $region70: #{elan_block_fpn.11} parent=5 // pred_check_branch
      %447 = sbr.rel (%p444) target = $region72
    $region71: #{elan_block_fpn.11} parent=5 // pred_region
      %s448 = ssub.s32 %s19, 1
      %s449 = smul.u32 32, %s24
      %p450 = scmp.lt.s32.totalorder %s449, 63
      %s451 = scalar_select %p450, %s449, 63
      %s452 = smul.addr %s451, 4
      %s453 = scalar_lea.vmem %s0, %s452
      %p454 = pneg %p45
      %p455 = pneg %p42
      %s456 = smul.u32 32, %s24
      %p457 = scmp.lt.s32.totalorder %s456, 63
      %s458 = scalar_select %p457, %s456, 63
      %s459 = smul.addr %s458, 4
      %s460 = scalar_lea.vmem %s1, %s459
      %p461 = pneg %p71
      %p462 = pneg %p68
      %s463 = smul.u32 32, %s24
      %p464 = scmp.lt.s32.totalorder %s463, 63
      %s465 = scalar_select %p464, %s463, 63
      %s466 = smul.addr %s465, 4
      %s467 = scalar_lea.vmem %s2, %s466
      %p468 = pneg %p97
      %p469 = pneg %p94
      %s470 = smul.u32 32, %s24
      %p471 = scmp.lt.s32.totalorder %s470, 63
      %s472 = scalar_select %p471, %s470, 63
      %s473 = smul.addr %s472, 4
      %s474 = scalar_lea.vmem %s3, %s473
      %p475 = pneg %p123
      %p476 = pneg %p120
      %s477 = smul.u32 32, %s24
      %p478 = scmp.lt.s32.totalorder %s477, 63
      %s479 = scalar_select %p478, %s477, 63
      %s480 = smul.addr %s479, 4
      %s481 = scalar_lea.vmem %s4, %s480
      %p482 = pneg %p149
      %p483 = pneg %p146
      %s484 = smul.u32 32, %s24
      %p485 = scmp.lt.s32.totalorder %s484, 63
      %s486 = scalar_select %p485, %s484, 63
      %s487 = smul.addr %s486, 4
      %s488 = scalar_lea.vmem %s5, %s487
      %p489 = pneg %p175
      %p490 = pneg %p172
      %p491 = pneg %p196
      %p492 = pneg %p193
      %p493 = pneg %p217
      %p494 = pneg %p214
      %p495 = pneg %p238
      %p496 = pneg %p235
      %p497 = pneg %p259
      %p498 = pneg %p256
      %p499 = pneg %p280
      %p500 = pneg %p277
      %p501 = pneg %p301
      %p502 = pneg %p298
      %p503 = pneg %p322
      %p504 = pneg %p319
      %p505 = pneg %p348
      %p506 = pneg %p345
      %s507 = smul.u32 32, %s24
      %p508 = scmp.lt.s32.totalorder %s507, 63
      %s509 = scalar_select %p508, %s507, 63
      %s510 = smul.addr %s509, 4
      %s511 = scalar_lea.vmem %s13, %s510
      %s512 = smul.u32 32, %s24
      %p513 = scmp.lt.s32.totalorder %s512, 63
      %s514 = scalar_select %p513, %s512, 63
      %s515 = smul.addr %s514, 4
      %s516 = scalar_lea.vmem %s0, %s515
      %s517 = smul.u32 32, %s24
      %s518 = smul.u32 32, %s24
      %p519 = scmp.lt.s32.totalorder %s518, 63
      %s520 = scalar_select %p519, %s518, 63
      %s521 = smul.addr %s520, 4
      %s522 = scalar_lea.vmem %s1, %s521
      %s523 = smul.u32 32, %s24
      %s524 = smul.u32 32, %s24
      %p525 = scmp.lt.s32.totalorder %s524, 63
      %s526 = scalar_select %p525, %s524, 63
      %s527 = smul.addr %s526, 4
      %s528 = scalar_lea.vmem %s2, %s527
      %s529 = smul.u32 32, %s24
      %s530 = smul.u32 32, %s24
      %p531 = scmp.lt.s32.totalorder %s530, 63
      %s532 = scalar_select %p531, %s530, 63
      %s533 = smul.addr %s532, 4
      %s534 = scalar_lea.vmem %s3, %s533
      %s535 = smul.u32 32, %s24
      %s536 = smul.u32 32, %s24
      %p537 = scmp.lt.s32.totalorder %s536, 63
      %s538 = scalar_select %p537, %s536, 63
      %s539 = smul.addr %s538, 4
      %s540 = scalar_lea.vmem %s4, %s539
      %s541 = smul.u32 32, %s24
      %s542 = smul.u32 32, %s24
      %p543 = scmp.lt.s32.totalorder %s542, 63
      %s544 = scalar_select %p543, %s542, 63
      %s545 = smul.addr %s544, 4
      %s546 = scalar_lea.vmem %s5, %s545
      %s547 = smul.u32 32, %s24
      %s548 = smul.u32 32, %s24
      %p549 = scmp.lt.s32.totalorder %s548, 63
      %s550 = scalar_select %p549, %s548, 63
      %s551 = smul.addr %s550, 4
      %s552 = scalar_lea.vmem %s13, %s551
      %s553 = smul.u32 32, %s24
      %v555 = vld [vmem:[%s516] sm:$0xf]
      %v556 = vld [vmem:[%s516 + $0x4] sm:$0xf]
      %v557 = vld [vmem:[%s516 + $0x8] sm:$0xf]
      %v558 = vld [vmem:[%s516 + $0xc] sm:$0xf]
      %v559 = vld [vmem:[%s516 + $0x10] sm:$0xf]
      %v560 = vld [vmem:[%s516 + $0x14] sm:$0xf]
      %v561 = vld [vmem:[%s516 + $0x18] sm:$0xf]
      %v562 = vld [vmem:[%s516 + $0x1c] sm:$0xf]
      %v563 = vld [vmem:[%s516 + $0x20] sm:$0xf]
      %v564 = vld [vmem:[%s516 + $0x24] sm:$0xf]
      %v565 = vld [vmem:[%s516 + $0x28] sm:$0xf]
      %v566 = vld [vmem:[%s516 + $0x2c] sm:$0xf]
      %v567 = vld [vmem:[%s516 + $0x30] sm:$0xf]
      %v568 = vld [vmem:[%s516 + $0x34] sm:$0xf]
      %v569 = vld [vmem:[%s516 + $0x38] sm:$0xf]
      %v570 = vld [vmem:[%s516 + $0x3c] sm:$0xf]
      %v571 = vld [vmem:[%s516 + $0x40] sm:$0xf]
      %v572 = vld [vmem:[%s516 + $0x44] sm:$0xf]
      %v573 = vld [vmem:[%s516 + $0x48] sm:$0xf]
      %v574 = vld [vmem:[%s516 + $0x4c] sm:$0xf]
      %v575 = vld [vmem:[%s516 + $0x50] sm:$0xf]
      %v576 = vld [vmem:[%s516 + $0x54] sm:$0xf]
      %v577 = vld [vmem:[%s516 + $0x58] sm:$0xf]
      %v578 = vld [vmem:[%s516 + $0x5c] sm:$0xf]
      %v579 = vld [vmem:[%s516 + $0x60] sm:$0xf]
      %v580 = vld [vmem:[%s516 + $0x64] sm:$0xf]
      %v581 = vld [vmem:[%s516 + $0x68] sm:$0xf]
      %v582 = vld [vmem:[%s516 + $0x6c] sm:$0xf]
      %v583 = vld [vmem:[%s516 + $0x70] sm:$0xf]
      %v584 = vld [vmem:[%s516 + $0x74] sm:$0xf]
      %v585 = vld [vmem:[%s516 + $0x78] sm:$0xf]
      %v586 = vld [vmem:[%s516 + $0x7c] sm:$0xf]
      %v587 = vld [vmem:[%s6] sm:$0x3]
      %v588 = vld [vmem:[%s522] sm:$0xf]
      %v589 = vld [vmem:[%s522 + $0x4] sm:$0xf]
      %v590 = vld [vmem:[%s522 + $0x8] sm:$0xf]
      %v591 = vld [vmem:[%s522 + $0xc] sm:$0xf]
      %v592 = vld [vmem:[%s522 + $0x10] sm:$0xf]
      %v593 = vld [vmem:[%s522 + $0x14] sm:$0xf]
      %v594 = vld [vmem:[%s522 + $0x18] sm:$0xf]
      %v595 = vld [vmem:[%s522 + $0x1c] sm:$0xf]
      %v596 = vld [vmem:[%s522 + $0x20] sm:$0xf]
      %v597 = vld [vmem:[%s522 + $0x24] sm:$0xf]
      %v598 = vld [vmem:[%s522 + $0x28] sm:$0xf]
      %v599 = vld [vmem:[%s522 + $0x2c] sm:$0xf]
      %v600 = vld [vmem:[%s522 + $0x30] sm:$0xf]
      %v601 = vld [vmem:[%s522 + $0x34] sm:$0xf]
      %v602 = vld [vmem:[%s522 + $0x38] sm:$0xf]
      %v603 = vld [vmem:[%s522 + $0x3c] sm:$0xf]
      %v604 = vld [vmem:[%s522 + $0x40] sm:$0xf]
      %v605 = vld [vmem:[%s522 + $0x44] sm:$0xf]
      %v606 = vld [vmem:[%s522 + $0x48] sm:$0xf]
      %v607 = vld [vmem:[%s522 + $0x4c] sm:$0xf]
      %v608 = vld [vmem:[%s522 + $0x50] sm:$0xf]
      %v609 = vld [vmem:[%s522 + $0x54] sm:$0xf]
      %v610 = vld [vmem:[%s522 + $0x58] sm:$0xf]
      %v611 = vld [vmem:[%s522 + $0x5c] sm:$0xf]
      %v612 = vld [vmem:[%s522 + $0x60] sm:$0xf]
      %v613 = vld [vmem:[%s522 + $0x64] sm:$0xf]
      %v614 = vld [vmem:[%s522 + $0x68] sm:$0xf]
      %v615 = vld [vmem:[%s522 + $0x6c] sm:$0xf]
      %v616 = vld [vmem:[%s522 + $0x70] sm:$0xf]
      %v617 = vld [vmem:[%s522 + $0x74] sm:$0xf]
      %v618 = vld [vmem:[%s522 + $0x78] sm:$0xf]
      %v619 = vld [vmem:[%s522 + $0x7c] sm:$0xf]
      %v620 = vld [vmem:[%s7] sm:$0x3]
      %v653 = vunpack.c.l.b16 %v588
      %v654 = vunpack.c.l.b16 %v589
      %v655 = vunpack.c.l.b16 %v590
      %v656 = vunpack.c.l.b16 %v591
      %v657 = vunpack.c.l.b16 %v592
      %v658 = vunpack.c.l.b16 %v593
      %v659 = vunpack.c.l.b16 %v594
      %v660 = vunpack.c.l.b16 %v595
      %v661 = vunpack.c.l.b16 %v596
      %v662 = vunpack.c.l.b16 %v597
      %v663 = vunpack.c.l.b16 %v598
      %v664 = vunpack.c.l.b16 %v599
      %v665 = vunpack.c.l.b16 %v600
      %v666 = vunpack.c.l.b16 %v601
      %v667 = vunpack.c.l.b16 %v602
      %v668 = vunpack.c.l.b16 %v603
      %v669 = vunpack.c.l.b16 %v604
      %v670 = vunpack.c.l.b16 %v605
      %v671 = vunpack.c.l.b16 %v606
      %v672 = vunpack.c.l.b16 %v607
      %v673 = vunpack.c.l.b16 %v608
      %v674 = vunpack.c.l.b16 %v609
      %v675 = vunpack.c.l.b16 %v610
      %v676 = vunpack.c.l.b16 %v611
      %v677 = vunpack.c.l.b16 %v612
      %v678 = vunpack.c.l.b16 %v613
      %v679 = vunpack.c.l.b16 %v614
      %v680 = vunpack.c.l.b16 %v615
      %v681 = vunpack.c.l.b16 %v616
      %v682 = vunpack.c.l.b16 %v617
      %v683 = vunpack.c.l.b16 %v618
      %v684 = vunpack.c.l.b16 %v619
      %v685 = vpack.c.b16 %v654, %v653
      %v686 = vpack.c.b16 %v656, %v655
      %v687 = vpack.c.b16 %v658, %v657
      %v688 = vpack.c.b16 %v660, %v659
      %v689 = vpack.c.b16 %v662, %v661
      %v690 = vpack.c.b16 %v664, %v663
      %v691 = vpack.c.b16 %v666, %v665
      %v692 = vpack.c.b16 %v668, %v667
      %v693 = vpack.c.b16 %v670, %v669
      %v694 = vpack.c.b16 %v672, %v671
      %v695 = vpack.c.b16 %v674, %v673
      %v696 = vpack.c.b16 %v676, %v675
      %v697 = vpack.c.b16 %v678, %v677
      %v698 = vpack.c.b16 %v680, %v679
      %v699 = vpack.c.b16 %v682, %v681
      %v700 = vpack.c.b16 %v684, %v683
      %vm701 = vcmask 31744
      %v703 = vsel %vm701, %v685, 0
      %v706 = vsel %vm701, %v686, 0
      %v709 = vsel %vm701, %v687, 0
      %v712 = vsel %vm701, %v688, 0
      %v715 = vsel %vm701, %v689, 0
      %v718 = vsel %vm701, %v690, 0
      %v721 = vsel %vm701, %v691, 0
      %v724 = vsel %vm701, %v692, 0
      %v727 = vsel %vm701, %v693, 0
      %v730 = vsel %vm701, %v694, 0
      %v733 = vsel %vm701, %v695, 0
      %v736 = vsel %vm701, %v696, 0
      %v739 = vsel %vm701, %v697, 0
      %v742 = vsel %vm701, %v698, 0
      %v745 = vsel %vm701, %v699, 0
      %v748 = vsel %vm701, %v700, 0
      %vm750 = vcmask 1041408
      %v752 = vsel %vm750, %v620, 0
      %754 = vmatprep.subr.bf16.mxu0 0
      %755 = vmatpush1.bf16.msra.mxu0 0
      %756 = vmatprep.subr.bf16.mxu0 0
      %757 = vmatpush1.bf16.msra.mxu0 0
      %758 = vmatprep.subr.bf16.mxu0 0
      %759 = vmatpush1.bf16.msra.mxu0 0
      %760 = vmatprep.subr.bf16.mxu0 0
      %761 = vmatpush1.bf16.msra.mxu0 0
      %762 = vmatprep.subr.bf16.mxu0 0
      %763 = vmatpush1.bf16.msra.mxu0 0
      %764 = vmatprep.subr.bf16.mxu0 0
      %765 = vmatpush1.bf16.msra.mxu0 0
      %766 = vmatprep.subr.bf16.mxu0 0
      %767 = vmatpush1.bf16.msra.mxu0 0
      %768 = vmatprep.subr.bf16.mxu0 0
      %769 = vmatpush1.bf16.msra.mxu0 %v752
      %770 = vmatprep.subr.bf16.mxu0 0
      %771 = vmatpush2.bf16.msra.mxu0 0
      %772 = vmatprep.subr.bf16.mxu0 0
      %773 = vmatpush2.bf16.msra.mxu0 0
      %774 = vmatprep.subr.bf16.mxu0 0
      %775 = vmatpush2.bf16.msra.mxu0 0
      %776 = vmatprep.subr.bf16.mxu0 0
      %777 = vmatpush2.bf16.msra.mxu0 0
      %778 = vmatprep.subr.bf16.mxu0 0
      %779 = vmatpush2.bf16.msra.mxu0 0
      %780 = vmatprep.subr.bf16.mxu0 0
      %781 = vmatpush2.bf16.msra.mxu0 0
      %782 = vmatprep.subr.bf16.mxu0 0
      %783 = vmatpush2.bf16.msra.mxu0 0
      %784 = vmatprep.subr.bf16.mxu0 0
      %785 = vmatpush2.bf16.msra.mxu0 0
      %786 = vmatprep.mubr.bf16.mxu0 0
      %787 = vmatmul.mubr.bf16.gmra.mxu0 %v703
      %v788 = vpop.f32.mrf.mxu0
      %v789 = vadd.f32 0.0, %v788
      %v790 = vpop.f32.mrf.mxu0
      %v791 = vpop.f32.mrf.mxu0
      %v792 = vadd.f32 0.0, %v791
      %v793 = vpop.f32.mrf.mxu0
      %794 = vmatprep.mubr.bf16.mxu0 0
      %795 = vmatmul.mubr.bf16.gmra.mxu0 %v706
      %v796 = vpop.f32.mrf.mxu0
      %v797 = vadd.f32 0.0, %v796
      %v798 = vpop.f32.mrf.mxu0
      %v799 = vpop.f32.mrf.mxu0
      %v800 = vadd.f32 0.0, %v799
      %v801 = vpop.f32.mrf.mxu0
      %802 = vmatprep.mubr.bf16.mxu0 0
      %803 = vmatmul.mubr.bf16.gmra.mxu0 %v709
      %v804 = vpop.f32.mrf.mxu0
      %v805 = vadd.f32 0.0, %v804
      %v806 = vpop.f32.mrf.mxu0
      %v807 = vpop.f32.mrf.mxu0
      %v808 = vadd.f32 0.0, %v807
      %v809 = vpop.f32.mrf.mxu0
      %810 = vmatprep.mubr.bf16.mxu0 0
      %811 = vmatmul.mubr.bf16.gmra.mxu0 %v712
      %v812 = vpop.f32.mrf.mxu0
      %v813 = vadd.f32 0.0, %v812
      %v814 = vpop.f32.mrf.mxu0
      %v815 = vpop.f32.mrf.mxu0
      %v816 = vadd.f32 0.0, %v815
      %v817 = vpop.f32.mrf.mxu0
      %818 = vmatprep.mubr.bf16.mxu0 0
      %819 = vmatmul.mubr.bf16.gmra.mxu0 %v715
      %v820 = vpop.f32.mrf.mxu0
      %v821 = vadd.f32 0.0, %v820
      %v822 = vpop.f32.mrf.mxu0
      %v823 = vpop.f32.mrf.mxu0
      %v824 = vadd.f32 0.0, %v823
      %v825 = vpop.f32.mrf.mxu0
      %826 = vmatprep.mubr.bf16.mxu0 0
      %827 = vmatmul.mubr.bf16.gmra.mxu0 %v718
      %v828 = vpop.f32.mrf.mxu0
      %v829 = vadd.f32 0.0, %v828
      %v830 = vpop.f32.mrf.mxu0
      %v831 = vpop.f32.mrf.mxu0
      %v832 = vadd.f32 0.0, %v831
      %v833 = vpop.f32.mrf.mxu0
      %834 = vmatprep.mubr.bf16.mxu0 0
      %835 = vmatmul.mubr.bf16.gmra.mxu0 %v721
      %v836 = vpop.f32.mrf.mxu0
      %v837 = vadd.f32 0.0, %v836
      %v838 = vpop.f32.mrf.mxu0
      %v839 = vpop.f32.mrf.mxu0
      %v840 = vadd.f32 0.0, %v839
      %v841 = vpop.f32.mrf.mxu0
      %842 = vmatprep.mubr.bf16.mxu0 0
      %843 = vmatmul.mubr.bf16.gmra.mxu0 %v724
      %v844 = vpop.f32.mrf.mxu0
      %v845 = vadd.f32 0.0, %v844
      %v846 = vpop.f32.mrf.mxu0
      %v847 = vpop.f32.mrf.mxu0
      %v848 = vadd.f32 0.0, %v847
      %v849 = vpop.f32.mrf.mxu0
      %850 = vmatprep.mubr.bf16.mxu0 0
      %851 = vmatmul.mubr.bf16.gmra.mxu0 %v727
      %v852 = vpop.f32.mrf.mxu0
      %v853 = vadd.f32 0.0, %v852
      %v854 = vpop.f32.mrf.mxu0
      %v855 = vpop.f32.mrf.mxu0
      %v856 = vadd.f32 0.0, %v855
      %v857 = vpop.f32.mrf.mxu0
      %858 = vmatprep.mubr.bf16.mxu0 0
      %859 = vmatmul.mubr.bf16.gmra.mxu0 %v730
      %v860 = vpop.f32.mrf.mxu0
      %v861 = vadd.f32 0.0, %v860
      %v862 = vpop.f32.mrf.mxu0
      %v863 = vpop.f32.mrf.mxu0
      %v864 = vadd.f32 0.0, %v863
      %v865 = vpop.f32.mrf.mxu0
      %866 = vmatprep.mubr.bf16.mxu0 0
      %867 = vmatmul.mubr.bf16.gmra.mxu0 %v733
      %v868 = vpop.f32.mrf.mxu0
      %v869 = vadd.f32 0.0, %v868
      %v870 = vpop.f32.mrf.mxu0
      %v871 = vpop.f32.mrf.mxu0
      %v872 = vadd.f32 0.0, %v871
      %v873 = vpop.f32.mrf.mxu0
      %874 = vmatprep.mubr.bf16.mxu0 0
      %875 = vmatmul.mubr.bf16.gmra.mxu0 %v736
      %v876 = vpop.f32.mrf.mxu0
      %v877 = vadd.f32 0.0, %v876
      %v878 = vpop.f32.mrf.mxu0
      %v879 = vpop.f32.mrf.mxu0
      %v880 = vadd.f32 0.0, %v879
      %v881 = vpop.f32.mrf.mxu0
      %882 = vmatprep.mubr.bf16.mxu0 0
      %883 = vmatmul.mubr.bf16.gmra.mxu0 %v739
      %v884 = vpop.f32.mrf.mxu0
      %v885 = vadd.f32 0.0, %v884
      %v886 = vpop.f32.mrf.mxu0
      %v887 = vpop.f32.mrf.mxu0
      %v888 = vadd.f32 0.0, %v887
      %v889 = vpop.f32.mrf.mxu0
      %890 = vmatprep.mubr.bf16.mxu0 0
      %891 = vmatmul.mubr.bf16.gmra.mxu0 %v742
      %v892 = vpop.f32.mrf.mxu0
      %v893 = vadd.f32 0.0, %v892
      %v894 = vpop.f32.mrf.mxu0
      %v895 = vpop.f32.mrf.mxu0
      %v896 = vadd.f32 0.0, %v895
      %v897 = vpop.f32.mrf.mxu0
      %898 = vmatprep.mubr.bf16.mxu0 0
      %899 = vmatmul.mubr.bf16.gmra.mxu0 %v745
      %v900 = vpop.f32.mrf.mxu0
      %v901 = vadd.f32 0.0, %v900
      %v902 = vpop.f32.mrf.mxu0
      %v903 = vpop.f32.mrf.mxu0
      %v904 = vadd.f32 0.0, %v903
      %v905 = vpop.f32.mrf.mxu0
      %906 = vmatprep.mubr.bf16.mxu0 0
      %907 = vmatmul.mubr.bf16.gmra.mxu0 %v748
      %v908 = vpop.f32.mrf.mxu0
      %v909 = vadd.f32 0.0, %v908
      %v910 = vpop.f32.mrf.mxu0
      %v911 = vpop.f32.mrf.mxu0
      %v912 = vadd.f32 0.0, %v911
      %v913 = vpop.f32.mrf.mxu0
      %914 = vdwg.mxu0
      %v947 = vunpack.c.l.b16 %v555
      %v948 = vunpack.c.l.b16 %v556
      %v949 = vunpack.c.l.b16 %v557
      %v950 = vunpack.c.l.b16 %v558
      %v951 = vunpack.c.l.b16 %v559
      %v952 = vunpack.c.l.b16 %v560
      %v953 = vunpack.c.l.b16 %v561
      %v954 = vunpack.c.l.b16 %v562
      %v955 = vunpack.c.l.b16 %v563
      %v956 = vunpack.c.l.b16 %v564
      %v957 = vunpack.c.l.b16 %v565
      %v958 = vunpack.c.l.b16 %v566
      %v959 = vunpack.c.l.b16 %v567
      %v960 = vunpack.c.l.b16 %v568
      %v961 = vunpack.c.l.b16 %v569
      %v962 = vunpack.c.l.b16 %v570
      %v963 = vunpack.c.l.b16 %v571
      %v964 = vunpack.c.l.b16 %v572
      %v965 = vunpack.c.l.b16 %v573
      %v966 = vunpack.c.l.b16 %v574
      %v967 = vunpack.c.l.b16 %v575
      %v968 = vunpack.c.l.b16 %v576
      %v969 = vunpack.c.l.b16 %v577
      %v970 = vunpack.c.l.b16 %v578
      %v971 = vunpack.c.l.b16 %v579
      %v972 = vunpack.c.l.b16 %v580
      %v973 = vunpack.c.l.b16 %v581
      %v974 = vunpack.c.l.b16 %v582
      %v975 = vunpack.c.l.b16 %v583
      %v976 = vunpack.c.l.b16 %v584
      %v977 = vunpack.c.l.b16 %v585
      %v978 = vunpack.c.l.b16 %v586
      %v979 = vpack.c.b16 %v948, %v947
      %v980 = vpack.c.b16 %v950, %v949
      %v981 = vpack.c.b16 %v952, %v951
      %v982 = vpack.c.b16 %v954, %v953
      %v983 = vpack.c.b16 %v956, %v955
      %v984 = vpack.c.b16 %v958, %v957
      %v985 = vpack.c.b16 %v960, %v959
      %v986 = vpack.c.b16 %v962, %v961
      %v987 = vpack.c.b16 %v964, %v963
      %v988 = vpack.c.b16 %v966, %v965
      %v989 = vpack.c.b16 %v968, %v967
      %v990 = vpack.c.b16 %v970, %v969
      %v991 = vpack.c.b16 %v972, %v971
      %v992 = vpack.c.b16 %v974, %v973
      %v993 = vpack.c.b16 %v976, %v975
      %v994 = vpack.c.b16 %v978, %v977
      %v996 = vsel %vm701, %v979, 0
      %v999 = vsel %vm701, %v980, 0
      %v1002 = vsel %vm701, %v981, 0
      %v1005 = vsel %vm701, %v982, 0
      %v1008 = vsel %vm701, %v983, 0
      %v1011 = vsel %vm701, %v984, 0
      %v1014 = vsel %vm701, %v985, 0
      %v1017 = vsel %vm701, %v986, 0
      %v1020 = vsel %vm701, %v987, 0
      %v1023 = vsel %vm701, %v988, 0
      %v1026 = vsel %vm701, %v989, 0
      %v1029 = vsel %vm701, %v990, 0
      %v1032 = vsel %vm701, %v991, 0
      %v1035 = vsel %vm701, %v992, 0
      %v1038 = vsel %vm701, %v993, 0
      %v1041 = vsel %vm701, %v994, 0
      %v1044 = vsel %vm750, %v587, 0
      %1046 = vmatprep.subr.bf16.mxu0 0
      %1047 = vmatpush1.bf16.msra.mxu0 0
      %1048 = vmatprep.subr.bf16.mxu0 0
      %1049 = vmatpush1.bf16.msra.mxu0 0
      %1050 = vmatprep.subr.bf16.mxu0 0
      %1051 = vmatpush1.bf16.msra.mxu0 0
      %1052 = vmatprep.subr.bf16.mxu0 0
      %1053 = vmatpush1.bf16.msra.mxu0 0
      %1054 = vmatprep.subr.bf16.mxu0 0
      %1055 = vmatpush1.bf16.msra.mxu0 0
      %1056 = vmatprep.subr.bf16.mxu0 0
      %1057 = vmatpush1.bf16.msra.mxu0 0
      %1058 = vmatprep.subr.bf16.mxu0 0
      %1059 = vmatpush1.bf16.msra.mxu0 0
      %1060 = vmatprep.subr.bf16.mxu0 0
      %1061 = vmatpush1.bf16.msra.mxu0 %v1044
      %1062 = vmatprep.subr.bf16.mxu0 0
      %1063 = vmatpush2.bf16.msra.mxu0 0
      %1064 = vmatprep.subr.bf16.mxu0 0
      %1065 = vmatpush2.bf16.msra.mxu0 0
      %1066 = vmatprep.subr.bf16.mxu0 0
      %1067 = vmatpush2.bf16.msra.mxu0 0
      %1068 = vmatprep.subr.bf16.mxu0 0
      %1069 = vmatpush2.bf16.msra.mxu0 0
      %1070 = vmatprep.subr.bf16.mxu0 0
      %1071 = vmatpush2.bf16.msra.mxu0 0
      %1072 = vmatprep.subr.bf16.mxu0 0
      %1073 = vmatpush2.bf16.msra.mxu0 0
      %1074 = vmatprep.subr.bf16.mxu0 0
      %1075 = vmatpush2.bf16.msra.mxu0 0
      %1076 = vmatprep.subr.bf16.mxu0 0
      %1077 = vmatpush2.bf16.msra.mxu0 0
      %1078 = vmatprep.mubr.bf16.mxu0 0
      %1079 = vmatmul.mubr.bf16.gmra.mxu0 %v996
      %v1080 = vpop.f32.mrf.mxu0
      %v1081 = vadd.f32 %v789, %v1080
      %v1082 = vpop.f32.mrf.mxu0
      %v1083 = vpop.f32.mrf.mxu0
      %v1084 = vadd.f32 %v792, %v1083
      %v1085 = vpop.f32.mrf.mxu0
      %1086 = vmatprep.mubr.bf16.mxu0 0
      %1087 = vmatmul.mubr.bf16.gmra.mxu0 %v999
      %v1088 = vpop.f32.mrf.mxu0
      %v1089 = vadd.f32 %v797, %v1088
      %v1090 = vpop.f32.mrf.mxu0
      %v1091 = vpop.f32.mrf.mxu0
      %v1092 = vadd.f32 %v800, %v1091
      %v1093 = vpop.f32.mrf.mxu0
      %1094 = vmatprep.mubr.bf16.mxu0 0
      %1095 = vmatmul.mubr.bf16.gmra.mxu0 %v1002
      %v1096 = vpop.f32.mrf.mxu0
      %v1097 = vadd.f32 %v805, %v1096
      %v1098 = vpop.f32.mrf.mxu0
      %v1099 = vpop.f32.mrf.mxu0
      %v1100 = vadd.f32 %v808, %v1099
      %v1101 = vpop.f32.mrf.mxu0
      %1102 = vmatprep.mubr.bf16.mxu0 0
      %1103 = vmatmul.mubr.bf16.gmra.mxu0 %v1005
      %v1104 = vpop.f32.mrf.mxu0
      %v1105 = vadd.f32 %v813, %v1104
      %v1106 = vpop.f32.mrf.mxu0
      %v1107 = vpop.f32.mrf.mxu0
      %v1108 = vadd.f32 %v816, %v1107
      %v1109 = vpop.f32.mrf.mxu0
      %1110 = vmatprep.mubr.bf16.mxu0 0
      %1111 = vmatmul.mubr.bf16.gmra.mxu0 %v1008
      %v1112 = vpop.f32.mrf.mxu0
      %v1113 = vadd.f32 %v821, %v1112
      %v1114 = vpop.f32.mrf.mxu0
      %v1115 = vpop.f32.mrf.mxu0
      %v1116 = vadd.f32 %v824, %v1115
      %v1117 = vpop.f32.mrf.mxu0
      %1118 = vmatprep.mubr.bf16.mxu0 0
      %1119 = vmatmul.mubr.bf16.gmra.mxu0 %v1011
      %v1120 = vpop.f32.mrf.mxu0
      %v1121 = vadd.f32 %v829, %v1120
      %v1122 = vpop.f32.mrf.mxu0
      %v1123 = vpop.f32.mrf.mxu0
      %v1124 = vadd.f32 %v832, %v1123
      %v1125 = vpop.f32.mrf.mxu0
      %1126 = vmatprep.mubr.bf16.mxu0 0
      %1127 = vmatmul.mubr.bf16.gmra.mxu0 %v1014
      %v1128 = vpop.f32.mrf.mxu0
      %v1129 = vadd.f32 %v837, %v1128
      %v1130 = vpop.f32.mrf.mxu0
      %v1131 = vpop.f32.mrf.mxu0
      %v1132 = vadd.f32 %v840, %v1131
      %v1133 = vpop.f32.mrf.mxu0
      %1134 = vmatprep.mubr.bf16.mxu0 0
      %1135 = vmatmul.mubr.bf16.gmra.mxu0 %v1017
      %v1136 = vpop.f32.mrf.mxu0
      %v1137 = vadd.f32 %v845, %v1136
      %v1138 = vpop.f32.mrf.mxu0
      %v1139 = vpop.f32.mrf.mxu0
      %v1140 = vadd.f32 %v848, %v1139
      %v1141 = vpop.f32.mrf.mxu0
      %1142 = vmatprep.mubr.bf16.mxu0 0
      %1143 = vmatmul.mubr.bf16.gmra.mxu0 %v1020
      %v1144 = vpop.f32.mrf.mxu0
      %v1145 = vadd.f32 %v853, %v1144
      %v1146 = vpop.f32.mrf.mxu0
      %v1147 = vpop.f32.mrf.mxu0
      %v1148 = vadd.f32 %v856, %v1147
      %v1149 = vpop.f32.mrf.mxu0
      %1150 = vmatprep.mubr.bf16.mxu0 0
      %1151 = vmatmul.mubr.bf16.gmra.mxu0 %v1023
      %v1152 = vpop.f32.mrf.mxu0
      %v1153 = vadd.f32 %v861, %v1152
      %v1154 = vpop.f32.mrf.mxu0
      %v1155 = vpop.f32.mrf.mxu0
      %v1156 = vadd.f32 %v864, %v1155
      %v1157 = vpop.f32.mrf.mxu0
      %1158 = vmatprep.mubr.bf16.mxu0 0
      %1159 = vmatmul.mubr.bf16.gmra.mxu0 %v1026
      %v1160 = vpop.f32.mrf.mxu0
      %v1161 = vadd.f32 %v869, %v1160
      %v1162 = vpop.f32.mrf.mxu0
      %v1163 = vpop.f32.mrf.mxu0
      %v1164 = vadd.f32 %v872, %v1163
      %v1165 = vpop.f32.mrf.mxu0
      %1166 = vmatprep.mubr.bf16.mxu0 0
      %1167 = vmatmul.mubr.bf16.gmra.mxu0 %v1029
      %v1168 = vpop.f32.mrf.mxu0
      %v1169 = vadd.f32 %v877, %v1168
      %v1170 = vpop.f32.mrf.mxu0
      %v1171 = vpop.f32.mrf.mxu0
      %v1172 = vadd.f32 %v880, %v1171
      %v1173 = vpop.f32.mrf.mxu0
      %1174 = vmatprep.mubr.bf16.mxu0 0
      %1175 = vmatmul.mubr.bf16.gmra.mxu0 %v1032
      %v1176 = vpop.f32.mrf.mxu0
      %v1177 = vadd.f32 %v885, %v1176
      %v1178 = vpop.f32.mrf.mxu0
      %v1179 = vpop.f32.mrf.mxu0
      %v1180 = vadd.f32 %v888, %v1179
      %v1181 = vpop.f32.mrf.mxu0
      %1182 = vmatprep.mubr.bf16.mxu0 0
      %1183 = vmatmul.mubr.bf16.gmra.mxu0 %v1035
      %v1184 = vpop.f32.mrf.mxu0
      %v1185 = vadd.f32 %v893, %v1184
      %v1186 = vpop.f32.mrf.mxu0
      %v1187 = vpop.f32.mrf.mxu0
      %v1188 = vadd.f32 %v896, %v1187
      %v1189 = vpop.f32.mrf.mxu0
      %1190 = vmatprep.mubr.bf16.mxu0 0
      %1191 = vmatmul.mubr.bf16.gmra.mxu0 %v1038
      %v1192 = vpop.f32.mrf.mxu0
      %v1193 = vadd.f32 %v901, %v1192
      %v1194 = vpop.f32.mrf.mxu0
      %v1195 = vpop.f32.mrf.mxu0
      %v1196 = vadd.f32 %v904, %v1195
      %v1197 = vpop.f32.mrf.mxu0
      %1198 = vmatprep.mubr.bf16.mxu0 0
      %1199 = vmatmul.mubr.bf16.gmra.mxu0 %v1041
      %v1200 = vpop.f32.mrf.mxu0
      %v1201 = vadd.f32 %v909, %v1200
      %v1202 = vpop.f32.mrf.mxu0
      %v1203 = vpop.f32.mrf.mxu0
      %v1204 = vadd.f32 %v912, %v1203
      %v1205 = vpop.f32.mrf.mxu0
      %1206 = vdwg.mxu0
      %v1207 = vld [vmem:[%s528] sm:$0xf]
      %v1208 = vld [vmem:[%s528 + $0x4] sm:$0xf]
      %v1209 = vld [vmem:[%s528 + $0x8] sm:$0xf]
      %v1210 = vld [vmem:[%s528 + $0xc] sm:$0xf]
      %v1211 = vld [vmem:[%s528 + $0x10] sm:$0xf]
      %v1212 = vld [vmem:[%s528 + $0x14] sm:$0xf]
      %v1213 = vld [vmem:[%s528 + $0x18] sm:$0xf]
      %v1214 = vld [vmem:[%s528 + $0x1c] sm:$0xf]
      %v1215 = vld [vmem:[%s528 + $0x20] sm:$0xf]
      %v1216 = vld [vmem:[%s528 + $0x24] sm:$0xf]
      %v1217 = vld [vmem:[%s528 + $0x28] sm:$0xf]
      %v1218 = vld [vmem:[%s528 + $0x2c] sm:$0xf]
      %v1219 = vld [vmem:[%s528 + $0x30] sm:$0xf]
      %v1220 = vld [vmem:[%s528 + $0x34] sm:$0xf]
      %v1221 = vld [vmem:[%s528 + $0x38] sm:$0xf]
      %v1222 = vld [vmem:[%s528 + $0x3c] sm:$0xf]
      %v1223 = vld [vmem:[%s528 + $0x40] sm:$0xf]
      %v1224 = vld [vmem:[%s528 + $0x44] sm:$0xf]
      %v1225 = vld [vmem:[%s528 + $0x48] sm:$0xf]
      %v1226 = vld [vmem:[%s528 + $0x4c] sm:$0xf]
      %v1227 = vld [vmem:[%s528 + $0x50] sm:$0xf]
      %v1228 = vld [vmem:[%s528 + $0x54] sm:$0xf]
      %v1229 = vld [vmem:[%s528 + $0x58] sm:$0xf]
      %v1230 = vld [vmem:[%s528 + $0x5c] sm:$0xf]
      %v1231 = vld [vmem:[%s528 + $0x60] sm:$0xf]
      %v1232 = vld [vmem:[%s528 + $0x64] sm:$0xf]
      %v1233 = vld [vmem:[%s528 + $0x68] sm:$0xf]
      %v1234 = vld [vmem:[%s528 + $0x6c] sm:$0xf]
      %v1235 = vld [vmem:[%s528 + $0x70] sm:$0xf]
      %v1236 = vld [vmem:[%s528 + $0x74] sm:$0xf]
      %v1237 = vld [vmem:[%s528 + $0x78] sm:$0xf]
      %v1238 = vld [vmem:[%s528 + $0x7c] sm:$0xf]
      %v1239 = vld [vmem:[%s8] sm:$0x1]
      %v1272 = vunpack.c.l.b16 %v1207
      %v1273 = vunpack.c.l.b16 %v1208
      %v1274 = vunpack.c.l.b16 %v1209
      %v1275 = vunpack.c.l.b16 %v1210
      %v1276 = vunpack.c.l.b16 %v1211
      %v1277 = vunpack.c.l.b16 %v1212
      %v1278 = vunpack.c.l.b16 %v1213
      %v1279 = vunpack.c.l.b16 %v1214
      %v1280 = vunpack.c.l.b16 %v1215
      %v1281 = vunpack.c.l.b16 %v1216
      %v1282 = vunpack.c.l.b16 %v1217
      %v1283 = vunpack.c.l.b16 %v1218
      %v1284 = vunpack.c.l.b16 %v1219
      %v1285 = vunpack.c.l.b16 %v1220
      %v1286 = vunpack.c.l.b16 %v1221
      %v1287 = vunpack.c.l.b16 %v1222
      %v1288 = vunpack.c.l.b16 %v1223
      %v1289 = vunpack.c.l.b16 %v1224
      %v1290 = vunpack.c.l.b16 %v1225
      %v1291 = vunpack.c.l.b16 %v1226
      %v1292 = vunpack.c.l.b16 %v1227
      %v1293 = vunpack.c.l.b16 %v1228
      %v1294 = vunpack.c.l.b16 %v1229
      %v1295 = vunpack.c.l.b16 %v1230
      %v1296 = vunpack.c.l.b16 %v1231
      %v1297 = vunpack.c.l.b16 %v1232
      %v1298 = vunpack.c.l.b16 %v1233
      %v1299 = vunpack.c.l.b16 %v1234
      %v1300 = vunpack.c.l.b16 %v1235
      %v1301 = vunpack.c.l.b16 %v1236
      %v1302 = vunpack.c.l.b16 %v1237
      %v1303 = vunpack.c.l.b16 %v1238
      %v1304 = vpack.c.b16 %v1273, %v1272
      %v1305 = vpack.c.b16 %v1275, %v1274
      %v1306 = vpack.c.b16 %v1277, %v1276
      %v1307 = vpack.c.b16 %v1279, %v1278
      %v1308 = vpack.c.b16 %v1281, %v1280
      %v1309 = vpack.c.b16 %v1283, %v1282
      %v1310 = vpack.c.b16 %v1285, %v1284
      %v1311 = vpack.c.b16 %v1287, %v1286
      %v1312 = vpack.c.b16 %v1289, %v1288
      %v1313 = vpack.c.b16 %v1291, %v1290
      %v1314 = vpack.c.b16 %v1293, %v1292
      %v1315 = vpack.c.b16 %v1295, %v1294
      %v1316 = vpack.c.b16 %v1297, %v1296
      %v1317 = vpack.c.b16 %v1299, %v1298
      %v1318 = vpack.c.b16 %v1301, %v1300
      %v1319 = vpack.c.b16 %v1303, %v1302
      %vm1320 = vcmask 15360
      %v1322 = vsel %vm1320, %v1304, 0
      %v1325 = vsel %vm1320, %v1305, 0
      %v1328 = vsel %vm1320, %v1306, 0
      %v1331 = vsel %vm1320, %v1307, 0
      %v1334 = vsel %vm1320, %v1308, 0
      %v1337 = vsel %vm1320, %v1309, 0
      %v1340 = vsel %vm1320, %v1310, 0
      %v1343 = vsel %vm1320, %v1311, 0
      %v1346 = vsel %vm1320, %v1312, 0
      %v1349 = vsel %vm1320, %v1313, 0
      %v1352 = vsel %vm1320, %v1314, 0
      %v1355 = vsel %vm1320, %v1315, 0
      %v1358 = vsel %vm1320, %v1316, 0
      %v1361 = vsel %vm1320, %v1317, 0
      %v1364 = vsel %vm1320, %v1318, 0
      %v1367 = vsel %vm1320, %v1319, 0
      %vm1369 = vcmask 1040384
      %v1371 = vsel %vm1369, %v1239, 0
      %1373 = vmatprep.subr.bf16.mxu0 0
      %1374 = vmatpush1.bf16.msra.mxu0 0
      %1375 = vmatprep.subr.bf16.mxu0 0
      %1376 = vmatpush1.bf16.msra.mxu0 0
      %1377 = vmatprep.subr.bf16.mxu0 0
      %1378 = vmatpush1.bf16.msra.mxu0 0
      %1379 = vmatprep.subr.bf16.mxu0 0
      %1380 = vmatpush1.bf16.msra.mxu0 0
      %1381 = vmatprep.subr.bf16.mxu0 0
      %1382 = vmatpush1.bf16.msra.mxu0 0
      %1383 = vmatprep.subr.bf16.mxu0 0
      %1384 = vmatpush1.bf16.msra.mxu0 0
      %1385 = vmatprep.subr.bf16.mxu0 0
      %1386 = vmatpush1.bf16.msra.mxu0 0
      %1387 = vmatprep.subr.bf16.mxu0 0
      %1388 = vmatpush1.bf16.msra.mxu0 %v1371
      %1389 = vmatprep.subr.bf16.mxu0 0
      %1390 = vmatpush2.bf16.msra.mxu0 0
      %1391 = vmatprep.subr.bf16.mxu0 0
      %1392 = vmatpush2.bf16.msra.mxu0 0
      %1393 = vmatprep.subr.bf16.mxu0 0
      %1394 = vmatpush2.bf16.msra.mxu0 0
      %1395 = vmatprep.subr.bf16.mxu0 0
      %1396 = vmatpush2.bf16.msra.mxu0 0
      %1397 = vmatprep.subr.bf16.mxu0 0
      %1398 = vmatpush2.bf16.msra.mxu0 0
      %1399 = vmatprep.subr.bf16.mxu0 0
      %1400 = vmatpush2.bf16.msra.mxu0 0
      %1401 = vmatprep.subr.bf16.mxu0 0
      %1402 = vmatpush2.bf16.msra.mxu0 0
      %1403 = vmatprep.subr.bf16.mxu0 0
      %1404 = vmatpush2.bf16.msra.mxu0 0
      %1405 = vmatprep.mubr.bf16.mxu0 0
      %1406 = vmatmul.mubr.bf16.gmra.mxu0 %v1322
      %v1407 = vpop.f32.mrf.mxu0
      %v1408 = vadd.f32 0.0, %v1407
      %v1409 = vpop.f32.mrf.mxu0
      %v1410 = vpop.f32.mrf.mxu0
      %v1411 = vadd.f32 0.0, %v1410
      %v1412 = vpop.f32.mrf.mxu0
      %1413 = vmatprep.mubr.bf16.mxu0 0
      %1414 = vmatmul.mubr.bf16.gmra.mxu0 %v1325
      %v1415 = vpop.f32.mrf.mxu0
      %v1416 = vadd.f32 0.0, %v1415
      %v1417 = vpop.f32.mrf.mxu0
      %v1418 = vpop.f32.mrf.mxu0
      %v1419 = vadd.f32 0.0, %v1418
      %v1420 = vpop.f32.mrf.mxu0
      %1421 = vmatprep.mubr.bf16.mxu0 0
      %1422 = vmatmul.mubr.bf16.gmra.mxu0 %v1328
      %v1423 = vpop.f32.mrf.mxu0
      %v1424 = vadd.f32 0.0, %v1423
      %v1425 = vpop.f32.mrf.mxu0
      %v1426 = vpop.f32.mrf.mxu0
      %v1427 = vadd.f32 0.0, %v1426
      %v1428 = vpop.f32.mrf.mxu0
      %1429 = vmatprep.mubr.bf16.mxu0 0
      %1430 = vmatmul.mubr.bf16.gmra.mxu0 %v1331
      %v1431 = vpop.f32.mrf.mxu0
      %v1432 = vadd.f32 0.0, %v1431
      %v1433 = vpop.f32.mrf.mxu0
      %v1434 = vpop.f32.mrf.mxu0
      %v1435 = vadd.f32 0.0, %v1434
      %v1436 = vpop.f32.mrf.mxu0
      %1437 = vmatprep.mubr.bf16.mxu0 0
      %1438 = vmatmul.mubr.bf16.gmra.mxu0 %v1334
      %v1439 = vpop.f32.mrf.mxu0
      %v1440 = vadd.f32 0.0, %v1439
      %v1441 = vpop.f32.mrf.mxu0
      %v1442 = vpop.f32.mrf.mxu0
      %v1443 = vadd.f32 0.0, %v1442
      %v1444 = vpop.f32.mrf.mxu0
      %1445 = vmatprep.mubr.bf16.mxu0 0
      %1446 = vmatmul.mubr.bf16.gmra.mxu0 %v1337
      %v1447 = vpop.f32.mrf.mxu0
      %v1448 = vadd.f32 0.0, %v1447
      %v1449 = vpop.f32.mrf.mxu0
      %v1450 = vpop.f32.mrf.mxu0
      %v1451 = vadd.f32 0.0, %v1450
      %v1452 = vpop.f32.mrf.mxu0
      %1453 = vmatprep.mubr.bf16.mxu0 0
      %1454 = vmatmul.mubr.bf16.gmra.mxu0 %v1340
      %v1455 = vpop.f32.mrf.mxu0
      %v1456 = vadd.f32 0.0, %v1455
      %v1457 = vpop.f32.mrf.mxu0
      %v1458 = vpop.f32.mrf.mxu0
      %v1459 = vadd.f32 0.0, %v1458
      %v1460 = vpop.f32.mrf.mxu0
      %1461 = vmatprep.mubr.bf16.mxu0 0
      %1462 = vmatmul.mubr.bf16.gmra.mxu0 %v1343
      %v1463 = vpop.f32.mrf.mxu0
      %v1464 = vadd.f32 0.0, %v1463
      %v1465 = vpop.f32.mrf.mxu0
      %v1466 = vpop.f32.mrf.mxu0
      %v1467 = vadd.f32 0.0, %v1466
      %v1468 = vpop.f32.mrf.mxu0
      %1469 = vmatprep.mubr.bf16.mxu0 0
      %1470 = vmatmul.mubr.bf16.gmra.mxu0 %v1346
      %v1471 = vpop.f32.mrf.mxu0
      %v1472 = vadd.f32 0.0, %v1471
      %v1473 = vpop.f32.mrf.mxu0
      %v1474 = vpop.f32.mrf.mxu0
      %v1475 = vadd.f32 0.0, %v1474
      %v1476 = vpop.f32.mrf.mxu0
      %1477 = vmatprep.mubr.bf16.mxu0 0
      %1478 = vmatmul.mubr.bf16.gmra.mxu0 %v1349
      %v1479 = vpop.f32.mrf.mxu0
      %v1480 = vadd.f32 0.0, %v1479
      %v1481 = vpop.f32.mrf.mxu0
      %v1482 = vpop.f32.mrf.mxu0
      %v1483 = vadd.f32 0.0, %v1482
      %v1484 = vpop.f32.mrf.mxu0
      %1485 = vmatprep.mubr.bf16.mxu0 0
      %1486 = vmatmul.mubr.bf16.gmra.mxu0 %v1352
      %v1487 = vpop.f32.mrf.mxu0
      %v1488 = vadd.f32 0.0, %v1487
      %v1489 = vpop.f32.mrf.mxu0
      %v1490 = vpop.f32.mrf.mxu0
      %v1491 = vadd.f32 0.0, %v1490
      %v1492 = vpop.f32.mrf.mxu0
      %1493 = vmatprep.mubr.bf16.mxu0 0
      %1494 = vmatmul.mubr.bf16.gmra.mxu0 %v1355
      %v1495 = vpop.f32.mrf.mxu0
      %v1496 = vadd.f32 0.0, %v1495
      %v1497 = vpop.f32.mrf.mxu0
      %v1498 = vpop.f32.mrf.mxu0
      %v1499 = vadd.f32 0.0, %v1498
      %v1500 = vpop.f32.mrf.mxu0
      %1501 = vmatprep.mubr.bf16.mxu0 0
      %1502 = vmatmul.mubr.bf16.gmra.mxu0 %v1358
      %v1503 = vpop.f32.mrf.mxu0
      %v1504 = vadd.f32 0.0, %v1503
      %v1505 = vpop.f32.mrf.mxu0
      %v1506 = vpop.f32.mrf.mxu0
      %v1507 = vadd.f32 0.0, %v1506
      %v1508 = vpop.f32.mrf.mxu0
      %1509 = vmatprep.mubr.bf16.mxu0 0
      %1510 = vmatmul.mubr.bf16.gmra.mxu0 %v1361
      %v1511 = vpop.f32.mrf.mxu0
      %v1512 = vadd.f32 0.0, %v1511
      %v1513 = vpop.f32.mrf.mxu0
      %v1514 = vpop.f32.mrf.mxu0
      %v1515 = vadd.f32 0.0, %v1514
      %v1516 = vpop.f32.mrf.mxu0
      %1517 = vmatprep.mubr.bf16.mxu0 0
      %1518 = vmatmul.mubr.bf16.gmra.mxu0 %v1364
      %v1519 = vpop.f32.mrf.mxu0
      %v1520 = vadd.f32 0.0, %v1519
      %v1521 = vpop.f32.mrf.mxu0
      %v1522 = vpop.f32.mrf.mxu0
      %v1523 = vadd.f32 0.0, %v1522
      %v1524 = vpop.f32.mrf.mxu0
      %1525 = vmatprep.mubr.bf16.mxu0 0
      %1526 = vmatmul.mubr.bf16.gmra.mxu0 %v1367
      %v1527 = vpop.f32.mrf.mxu0
      %v1528 = vadd.f32 0.0, %v1527
      %v1529 = vpop.f32.mrf.mxu0
      %v1530 = vpop.f32.mrf.mxu0
      %v1531 = vadd.f32 0.0, %v1530
      %v1532 = vpop.f32.mrf.mxu0
      %1533 = vdwg.mxu0
      %v1534 = vadd.f32 %v1081, %v1408
      %v1535 = vadd.f32 %v1084, %v1411
      %v1536 = vadd.f32 %v1089, %v1416
      %v1537 = vadd.f32 %v1092, %v1419
      %v1538 = vadd.f32 %v1097, %v1424
      %v1539 = vadd.f32 %v1100, %v1427
      %v1540 = vadd.f32 %v1105, %v1432
      %v1541 = vadd.f32 %v1108, %v1435
      %v1542 = vadd.f32 %v1113, %v1440
      %v1543 = vadd.f32 %v1116, %v1443
      %v1544 = vadd.f32 %v1121, %v1448
      %v1545 = vadd.f32 %v1124, %v1451
      %v1546 = vadd.f32 %v1129, %v1456
      %v1547 = vadd.f32 %v1132, %v1459
      %v1548 = vadd.f32 %v1137, %v1464
      %v1549 = vadd.f32 %v1140, %v1467
      %v1550 = vadd.f32 %v1145, %v1472
      %v1551 = vadd.f32 %v1148, %v1475
      %v1552 = vadd.f32 %v1153, %v1480
      %v1553 = vadd.f32 %v1156, %v1483
      %v1554 = vadd.f32 %v1161, %v1488
      %v1555 = vadd.f32 %v1164, %v1491
      %v1556 = vadd.f32 %v1169, %v1496
      %v1557 = vadd.f32 %v1172, %v1499
      %v1558 = vadd.f32 %v1177, %v1504
      %v1559 = vadd.f32 %v1180, %v1507
      %v1560 = vadd.f32 %v1185, %v1512
      %v1561 = vadd.f32 %v1188, %v1515
      %v1562 = vadd.f32 %v1193, %v1520
      %v1563 = vadd.f32 %v1196, %v1523
      %v1564 = vadd.f32 %v1201, %v1528
      %v1565 = vadd.f32 %v1204, %v1531
      %v1566 = vld [vmem:[%s534] sm:$0xf]
      %v1567 = vld [vmem:[%s534 + $0x4] sm:$0xf]
      %v1568 = vld [vmem:[%s534 + $0x8] sm:$0xf]
      %v1569 = vld [vmem:[%s534 + $0xc] sm:$0xf]
      %v1570 = vld [vmem:[%s534 + $0x10] sm:$0xf]
      %v1571 = vld [vmem:[%s534 + $0x14] sm:$0xf]
      %v1572 = vld [vmem:[%s534 + $0x18] sm:$0xf]
      %v1573 = vld [vmem:[%s534 + $0x1c] sm:$0xf]
      %v1574 = vld [vmem:[%s534 + $0x20] sm:$0xf]
      %v1575 = vld [vmem:[%s534 + $0x24] sm:$0xf]
      %v1576 = vld [vmem:[%s534 + $0x28] sm:$0xf]
      %v1577 = vld [vmem:[%s534 + $0x2c] sm:$0xf]
      %v1578 = vld [vmem:[%s534 + $0x30] sm:$0xf]
      %v1579 = vld [vmem:[%s534 + $0x34] sm:$0xf]
      %v1580 = vld [vmem:[%s534 + $0x38] sm:$0xf]
      %v1581 = vld [vmem:[%s534 + $0x3c] sm:$0xf]
      %v1582 = vld [vmem:[%s534 + $0x40] sm:$0xf]
      %v1583 = vld [vmem:[%s534 + $0x44] sm:$0xf]
      %v1584 = vld [vmem:[%s534 + $0x48] sm:$0xf]
      %v1585 = vld [vmem:[%s534 + $0x4c] sm:$0xf]
      %v1586 = vld [vmem:[%s534 + $0x50] sm:$0xf]
      %v1587 = vld [vmem:[%s534 + $0x54] sm:$0xf]
      %v1588 = vld [vmem:[%s534 + $0x58] sm:$0xf]
      %v1589 = vld [vmem:[%s534 + $0x5c] sm:$0xf]
      %v1590 = vld [vmem:[%s534 + $0x60] sm:$0xf]
      %v1591 = vld [vmem:[%s534 + $0x64] sm:$0xf]
      %v1592 = vld [vmem:[%s534 + $0x68] sm:$0xf]
      %v1593 = vld [vmem:[%s534 + $0x6c] sm:$0xf]
      %v1594 = vld [vmem:[%s534 + $0x70] sm:$0xf]
      %v1595 = vld [vmem:[%s534 + $0x74] sm:$0xf]
      %v1596 = vld [vmem:[%s534 + $0x78] sm:$0xf]
      %v1597 = vld [vmem:[%s534 + $0x7c] sm:$0xf]
      %v1598 = vld [vmem:[%s9] sm:$0x1]
      %v1631 = vunpack.c.l.b16 %v1566
      %v1632 = vunpack.c.l.b16 %v1567
      %v1633 = vunpack.c.l.b16 %v1568
      %v1634 = vunpack.c.l.b16 %v1569
      %v1635 = vunpack.c.l.b16 %v1570
      %v1636 = vunpack.c.l.b16 %v1571
      %v1637 = vunpack.c.l.b16 %v1572
      %v1638 = vunpack.c.l.b16 %v1573
      %v1639 = vunpack.c.l.b16 %v1574
      %v1640 = vunpack.c.l.b16 %v1575
      %v1641 = vunpack.c.l.b16 %v1576
      %v1642 = vunpack.c.l.b16 %v1577
      %v1643 = vunpack.c.l.b16 %v1578
      %v1644 = vunpack.c.l.b16 %v1579
      %v1645 = vunpack.c.l.b16 %v1580
      %v1646 = vunpack.c.l.b16 %v1581
      %v1647 = vunpack.c.l.b16 %v1582
      %v1648 = vunpack.c.l.b16 %v1583
      %v1649 = vunpack.c.l.b16 %v1584
      %v1650 = vunpack.c.l.b16 %v1585
      %v1651 = vunpack.c.l.b16 %v1586
      %v1652 = vunpack.c.l.b16 %v1587
      %v1653 = vunpack.c.l.b16 %v1588
      %v1654 = vunpack.c.l.b16 %v1589
      %v1655 = vunpack.c.l.b16 %v1590
      %v1656 = vunpack.c.l.b16 %v1591
      %v1657 = vunpack.c.l.b16 %v1592
      %v1658 = vunpack.c.l.b16 %v1593
      %v1659 = vunpack.c.l.b16 %v1594
      %v1660 = vunpack.c.l.b16 %v1595
      %v1661 = vunpack.c.l.b16 %v1596
      %v1662 = vunpack.c.l.b16 %v1597
      %v1663 = vpack.c.b16 %v1632, %v1631
      %v1664 = vpack.c.b16 %v1634, %v1633
      %v1665 = vpack.c.b16 %v1636, %v1635
      %v1666 = vpack.c.b16 %v1638, %v1637
      %v1667 = vpack.c.b16 %v1640, %v1639
      %v1668 = vpack.c.b16 %v1642, %v1641
      %v1669 = vpack.c.b16 %v1644, %v1643
      %v1670 = vpack.c.b16 %v1646, %v1645
      %v1671 = vpack.c.b16 %v1648, %v1647
      %v1672 = vpack.c.b16 %v1650, %v1649
      %v1673 = vpack.c.b16 %v1652, %v1651
      %v1674 = vpack.c.b16 %v1654, %v1653
      %v1675 = vpack.c.b16 %v1656, %v1655
      %v1676 = vpack.c.b16 %v1658, %v1657
      %v1677 = vpack.c.b16 %v1660, %v1659
      %v1678 = vpack.c.b16 %v1662, %v1661
      %v1680 = vsel %vm1320, %v1663, 0
      %v1683 = vsel %vm1320, %v1664, 0
      %v1686 = vsel %vm1320, %v1665, 0
      %v1689 = vsel %vm1320, %v1666, 0
      %v1692 = vsel %vm1320, %v1667, 0
      %v1695 = vsel %vm1320, %v1668, 0
      %v1698 = vsel %vm1320, %v1669, 0
      %v1701 = vsel %vm1320, %v1670, 0
      %v1704 = vsel %vm1320, %v1671, 0
      %v1707 = vsel %vm1320, %v1672, 0
      %v1710 = vsel %vm1320, %v1673, 0
      %v1713 = vsel %vm1320, %v1674, 0
      %v1716 = vsel %vm1320, %v1675, 0
      %v1719 = vsel %vm1320, %v1676, 0
      %v1722 = vsel %vm1320, %v1677, 0
      %v1725 = vsel %vm1320, %v1678, 0
      %v1728 = vsel %vm1369, %v1598, 0
      %1730 = vmatprep.subr.bf16.mxu0 0
      %1731 = vmatpush1.bf16.msra.mxu0 0
      %1732 = vmatprep.subr.bf16.mxu0 0
      %1733 = vmatpush1.bf16.msra.mxu0 0
      %1734 = vmatprep.subr.bf16.mxu0 0
      %1735 = vmatpush1.bf16.msra.mxu0 0
      %1736 = vmatprep.subr.bf16.mxu0 0
      %1737 = vmatpush1.bf16.msra.mxu0 0
      %1738 = vmatprep.subr.bf16.mxu0 0
      %1739 = vmatpush1.bf16.msra.mxu0 0
      %1740 = vmatprep.subr.bf16.mxu0 0
      %1741 = vmatpush1.bf16.msra.mxu0 0
      %1742 = vmatprep.subr.bf16.mxu0 0
      %1743 = vmatpush1.bf16.msra.mxu0 0
      %1744 = vmatprep.subr.bf16.mxu0 0
      %1745 = vmatpush1.bf16.msra.mxu0 %v1728
      %1746 = vmatprep.subr.bf16.mxu0 0
      %1747 = vmatpush2.bf16.msra.mxu0 0
      %1748 = vmatprep.subr.bf16.mxu0 0
      %1749 = vmatpush2.bf16.msra.mxu0 0
      %1750 = vmatprep.subr.bf16.mxu0 0
      %1751 = vmatpush2.bf16.msra.mxu0 0
      %1752 = vmatprep.subr.bf16.mxu0 0
      %1753 = vmatpush2.bf16.msra.mxu0 0
      %1754 = vmatprep.subr.bf16.mxu0 0
      %1755 = vmatpush2.bf16.msra.mxu0 0
      %1756 = vmatprep.subr.bf16.mxu0 0
      %1757 = vmatpush2.bf16.msra.mxu0 0
      %1758 = vmatprep.subr.bf16.mxu0 0
      %1759 = vmatpush2.bf16.msra.mxu0 0
      %1760 = vmatprep.subr.bf16.mxu0 0
      %1761 = vmatpush2.bf16.msra.mxu0 0
      %1762 = vmatprep.mubr.bf16.mxu0 0
      %1763 = vmatmul.mubr.bf16.gmra.mxu0 %v1680
      %v1764 = vpop.f32.mrf.mxu0
      %v1765 = vadd.f32 0.0, %v1764
      %v1766 = vpop.f32.mrf.mxu0
      %v1767 = vpop.f32.mrf.mxu0
      %v1768 = vadd.f32 0.0, %v1767
      %v1769 = vpop.f32.mrf.mxu0
      %1770 = vmatprep.mubr.bf16.mxu0 0
      %1771 = vmatmul.mubr.bf16.gmra.mxu0 %v1683
      %v1772 = vpop.f32.mrf.mxu0
      %v1773 = vadd.f32 0.0, %v1772
      %v1774 = vpop.f32.mrf.mxu0
      %v1775 = vpop.f32.mrf.mxu0
      %v1776 = vadd.f32 0.0, %v1775
      %v1777 = vpop.f32.mrf.mxu0
      %1778 = vmatprep.mubr.bf16.mxu0 0
      %1779 = vmatmul.mubr.bf16.gmra.mxu0 %v1686
      %v1780 = vpop.f32.mrf.mxu0
      %v1781 = vadd.f32 0.0, %v1780
      %v1782 = vpop.f32.mrf.mxu0
      %v1783 = vpop.f32.mrf.mxu0
      %v1784 = vadd.f32 0.0, %v1783
      %v1785 = vpop.f32.mrf.mxu0
      %1786 = vmatprep.mubr.bf16.mxu0 0
      %1787 = vmatmul.mubr.bf16.gmra.mxu0 %v1689
      %v1788 = vpop.f32.mrf.mxu0
      %v1789 = vadd.f32 0.0, %v1788
      %v1790 = vpop.f32.mrf.mxu0
      %v1791 = vpop.f32.mrf.mxu0
      %v1792 = vadd.f32 0.0, %v1791
      %v1793 = vpop.f32.mrf.mxu0
      %1794 = vmatprep.mubr.bf16.mxu0 0
      %1795 = vmatmul.mubr.bf16.gmra.mxu0 %v1692
      %v1796 = vpop.f32.mrf.mxu0
      %v1797 = vadd.f32 0.0, %v1796
      %v1798 = vpop.f32.mrf.mxu0
      %v1799 = vpop.f32.mrf.mxu0
      %v1800 = vadd.f32 0.0, %v1799
      %v1801 = vpop.f32.mrf.mxu0
      %1802 = vmatprep.mubr.bf16.mxu0 0
      %1803 = vmatmul.mubr.bf16.gmra.mxu0 %v1695
      %v1804 = vpop.f32.mrf.mxu0
      %v1805 = vadd.f32 0.0, %v1804
      %v1806 = vpop.f32.mrf.mxu0
      %v1807 = vpop.f32.mrf.mxu0
      %v1808 = vadd.f32 0.0, %v1807
      %v1809 = vpop.f32.mrf.mxu0
      %1810 = vmatprep.mubr.bf16.mxu0 0
      %1811 = vmatmul.mubr.bf16.gmra.mxu0 %v1698
      %v1812 = vpop.f32.mrf.mxu0
      %v1813 = vadd.f32 0.0, %v1812
      %v1814 = vpop.f32.mrf.mxu0
      %v1815 = vpop.f32.mrf.mxu0
      %v1816 = vadd.f32 0.0, %v1815
      %v1817 = vpop.f32.mrf.mxu0
      %1818 = vmatprep.mubr.bf16.mxu0 0
      %1819 = vmatmul.mubr.bf16.gmra.mxu0 %v1701
      %v1820 = vpop.f32.mrf.mxu0
      %v1821 = vadd.f32 0.0, %v1820
      %v1822 = vpop.f32.mrf.mxu0
      %v1823 = vpop.f32.mrf.mxu0
      %v1824 = vadd.f32 0.0, %v1823
      %v1825 = vpop.f32.mrf.mxu0
      %1826 = vmatprep.mubr.bf16.mxu0 0
      %1827 = vmatmul.mubr.bf16.gmra.mxu0 %v1704
      %v1828 = vpop.f32.mrf.mxu0
      %v1829 = vadd.f32 0.0, %v1828
      %v1830 = vpop.f32.mrf.mxu0
      %v1831 = vpop.f32.mrf.mxu0
      %v1832 = vadd.f32 0.0, %v1831
      %v1833 = vpop.f32.mrf.mxu0
      %1834 = vmatprep.mubr.bf16.mxu0 0
      %1835 = vmatmul.mubr.bf16.gmra.mxu0 %v1707
      %v1836 = vpop.f32.mrf.mxu0
      %v1837 = vadd.f32 0.0, %v1836
      %v1838 = vpop.f32.mrf.mxu0
      %v1839 = vpop.f32.mrf.mxu0
      %v1840 = vadd.f32 0.0, %v1839
      %v1841 = vpop.f32.mrf.mxu0
      %1842 = vmatprep.mubr.bf16.mxu0 0
      %1843 = vmatmul.mubr.bf16.gmra.mxu0 %v1710
      %v1844 = vpop.f32.mrf.mxu0
      %v1845 = vadd.f32 0.0, %v1844
      %v1846 = vpop.f32.mrf.mxu0
      %v1847 = vpop.f32.mrf.mxu0
      %v1848 = vadd.f32 0.0, %v1847
      %v1849 = vpop.f32.mrf.mxu0
      %1850 = vmatprep.mubr.bf16.mxu0 0
      %1851 = vmatmul.mubr.bf16.gmra.mxu0 %v1713
      %v1852 = vpop.f32.mrf.mxu0
      %v1853 = vadd.f32 0.0, %v1852
      %v1854 = vpop.f32.mrf.mxu0
      %v1855 = vpop.f32.mrf.mxu0
      %v1856 = vadd.f32 0.0, %v1855
      %v1857 = vpop.f32.mrf.mxu0
      %1858 = vmatprep.mubr.bf16.mxu0 0
      %1859 = vmatmul.mubr.bf16.gmra.mxu0 %v1716
      %v1860 = vpop.f32.mrf.mxu0
      %v1861 = vadd.f32 0.0, %v1860
      %v1862 = vpop.f32.mrf.mxu0
      %v1863 = vpop.f32.mrf.mxu0
      %v1864 = vadd.f32 0.0, %v1863
      %v1865 = vpop.f32.mrf.mxu0
      %1866 = vmatprep.mubr.bf16.mxu0 0
      %1867 = vmatmul.mubr.bf16.gmra.mxu0 %v1719
      %v1868 = vpop.f32.mrf.mxu0
      %v1869 = vadd.f32 0.0, %v1868
      %v1870 = vpop.f32.mrf.mxu0
      %v1871 = vpop.f32.mrf.mxu0
      %v1872 = vadd.f32 0.0, %v1871
      %v1873 = vpop.f32.mrf.mxu0
      %1874 = vmatprep.mubr.bf16.mxu0 0
      %1875 = vmatmul.mubr.bf16.gmra.mxu0 %v1722
      %v1876 = vpop.f32.mrf.mxu0
      %v1877 = vadd.f32 0.0, %v1876
      %v1878 = vpop.f32.mrf.mxu0
      %v1879 = vpop.f32.mrf.mxu0
      %v1880 = vadd.f32 0.0, %v1879
      %v1881 = vpop.f32.mrf.mxu0
      %1882 = vmatprep.mubr.bf16.mxu0 0
      %1883 = vmatmul.mubr.bf16.gmra.mxu0 %v1725
      %v1884 = vpop.f32.mrf.mxu0
      %v1885 = vadd.f32 0.0, %v1884
      %v1886 = vpop.f32.mrf.mxu0
      %v1887 = vpop.f32.mrf.mxu0
      %v1888 = vadd.f32 0.0, %v1887
      %v1889 = vpop.f32.mrf.mxu0
      %1890 = vdwg.mxu0
      %v1891 = vadd.f32 %v1534, %v1765
      %v1892 = vadd.f32 %v1535, %v1768
      %v1893 = vadd.f32 %v1536, %v1773
      %v1894 = vadd.f32 %v1537, %v1776
      %v1895 = vadd.f32 %v1538, %v1781
      %v1896 = vadd.f32 %v1539, %v1784
      %v1897 = vadd.f32 %v1540, %v1789
      %v1898 = vadd.f32 %v1541, %v1792
      %v1899 = vadd.f32 %v1542, %v1797
      %v1900 = vadd.f32 %v1543, %v1800
      %v1901 = vadd.f32 %v1544, %v1805
      %v1902 = vadd.f32 %v1545, %v1808
      %v1903 = vadd.f32 %v1546, %v1813
      %v1904 = vadd.f32 %v1547, %v1816
      %v1905 = vadd.f32 %v1548, %v1821
      %v1906 = vadd.f32 %v1549, %v1824
      %v1907 = vadd.f32 %v1550, %v1829
      %v1908 = vadd.f32 %v1551, %v1832
      %v1909 = vadd.f32 %v1552, %v1837
      %v1910 = vadd.f32 %v1553, %v1840
      %v1911 = vadd.f32 %v1554, %v1845
      %v1912 = vadd.f32 %v1555, %v1848
      %v1913 = vadd.f32 %v1556, %v1853
      %v1914 = vadd.f32 %v1557, %v1856
      %v1915 = vadd.f32 %v1558, %v1861
      %v1916 = vadd.f32 %v1559, %v1864
      %v1917 = vadd.f32 %v1560, %v1869
      %v1918 = vadd.f32 %v1561, %v1872
      %v1919 = vadd.f32 %v1562, %v1877
      %v1920 = vadd.f32 %v1563, %v1880
      %v1921 = vadd.f32 %v1564, %v1885
      %v1922 = vadd.f32 %v1565, %v1888
      %v1923 = vld [vmem:[%s540] sm:$0xf]
      %v1924 = vld [vmem:[%s540 + $0x4] sm:$0xf]
      %v1925 = vld [vmem:[%s540 + $0x8] sm:$0xf]
      %v1926 = vld [vmem:[%s540 + $0xc] sm:$0xf]
      %v1927 = vld [vmem:[%s540 + $0x10] sm:$0xf]
      %v1928 = vld [vmem:[%s540 + $0x14] sm:$0xf]
      %v1929 = vld [vmem:[%s540 + $0x18] sm:$0xf]
      %v1930 = vld [vmem:[%s540 + $0x1c] sm:$0xf]
      %v1931 = vld [vmem:[%s540 + $0x20] sm:$0xf]
      %v1932 = vld [vmem:[%s540 + $0x24] sm:$0xf]
      %v1933 = vld [vmem:[%s540 + $0x28] sm:$0xf]
      %v1934 = vld [vmem:[%s540 + $0x2c] sm:$0xf]
      %v1935 = vld [vmem:[%s540 + $0x30] sm:$0xf]
      %v1936 = vld [vmem:[%s540 + $0x34] sm:$0xf]
      %v1937 = vld [vmem:[%s540 + $0x38] sm:$0xf]
      %v1938 = vld [vmem:[%s540 + $0x3c] sm:$0xf]
      %v1939 = vld [vmem:[%s540 + $0x40] sm:$0xf]
      %v1940 = vld [vmem:[%s540 + $0x44] sm:$0xf]
      %v1941 = vld [vmem:[%s540 + $0x48] sm:$0xf]
      %v1942 = vld [vmem:[%s540 + $0x4c] sm:$0xf]
      %v1943 = vld [vmem:[%s540 + $0x50] sm:$0xf]
      %v1944 = vld [vmem:[%s540 + $0x54] sm:$0xf]
      %v1945 = vld [vmem:[%s540 + $0x58] sm:$0xf]
      %v1946 = vld [vmem:[%s540 + $0x5c] sm:$0xf]
      %v1947 = vld [vmem:[%s540 + $0x60] sm:$0xf]
      %v1948 = vld [vmem:[%s540 + $0x64] sm:$0xf]
      %v1949 = vld [vmem:[%s540 + $0x68] sm:$0xf]
      %v1950 = vld [vmem:[%s540 + $0x6c] sm:$0xf]
      %v1951 = vld [vmem:[%s540 + $0x70] sm:$0xf]
      %v1952 = vld [vmem:[%s540 + $0x74] sm:$0xf]
      %v1953 = vld [vmem:[%s540 + $0x78] sm:$0xf]
      %v1954 = vld [vmem:[%s540 + $0x7c] sm:$0xf]
      %v1955 = vld [vmem:[%s10] sm:$0x1]
      %v1988 = vunpack.c.l.b16 %v1923
      %v1989 = vunpack.c.l.b16 %v1924
      %v1990 = vunpack.c.l.b16 %v1925
      %v1991 = vunpack.c.l.b16 %v1926
      %v1992 = vunpack.c.l.b16 %v1927
      %v1993 = vunpack.c.l.b16 %v1928
      %v1994 = vunpack.c.l.b16 %v1929
      %v1995 = vunpack.c.l.b16 %v1930
      %v1996 = vunpack.c.l.b16 %v1931
      %v1997 = vunpack.c.l.b16 %v1932
      %v1998 = vunpack.c.l.b16 %v1933
      %v1999 = vunpack.c.l.b16 %v1934
      %v2000 = vunpack.c.l.b16 %v1935
      %v2001 = vunpack.c.l.b16 %v1936
      %v2002 = vunpack.c.l.b16 %v1937
      %v2003 = vunpack.c.l.b16 %v1938
      %v2004 = vunpack.c.l.b16 %v1939
      %v2005 = vunpack.c.l.b16 %v1940
      %v2006 = vunpack.c.l.b16 %v1941
      %v2007 = vunpack.c.l.b16 %v1942
      %v2008 = vunpack.c.l.b16 %v1943
      %v2009 = vunpack.c.l.b16 %v1944
      %v2010 = vunpack.c.l.b16 %v1945
      %v2011 = vunpack.c.l.b16 %v1946
      %v2012 = vunpack.c.l.b16 %v1947
      %v2013 = vunpack.c.l.b16 %v1948
      %v2014 = vunpack.c.l.b16 %v1949
      %v2015 = vunpack.c.l.b16 %v1950
      %v2016 = vunpack.c.l.b16 %v1951
      %v2017 = vunpack.c.l.b16 %v1952
      %v2018 = vunpack.c.l.b16 %v1953
      %v2019 = vunpack.c.l.b16 %v1954
      %v2020 = vpack.c.b16 %v1989, %v1988
      %v2021 = vpack.c.b16 %v1991, %v1990
      %v2022 = vpack.c.b16 %v1993, %v1992
      %v2023 = vpack.c.b16 %v1995, %v1994
      %v2024 = vpack.c.b16 %v1997, %v1996
      %v2025 = vpack.c.b16 %v1999, %v1998
      %v2026 = vpack.c.b16 %v2001, %v2000
      %v2027 = vpack.c.b16 %v2003, %v2002
      %v2028 = vpack.c.b16 %v2005, %v2004
      %v2029 = vpack.c.b16 %v2007, %v2006
      %v2030 = vpack.c.b16 %v2009, %v2008
      %v2031 = vpack.c.b16 %v2011, %v2010
      %v2032 = vpack.c.b16 %v2013, %v2012
      %v2033 = vpack.c.b16 %v2015, %v2014
      %v2034 = vpack.c.b16 %v2017, %v2016
      %v2035 = vpack.c.b16 %v2019, %v2018
      %v2037 = vsel %vm1320, %v2020, 0
      %v2040 = vsel %vm1320, %v2021, 0
      %v2043 = vsel %vm1320, %v2022, 0
      %v2046 = vsel %vm1320, %v2023, 0
      %v2049 = vsel %vm1320, %v2024, 0
      %v2052 = vsel %vm1320, %v2025, 0
      %v2055 = vsel %vm1320, %v2026, 0
      %v2058 = vsel %vm1320, %v2027, 0
      %v2061 = vsel %vm1320, %v2028, 0
      %v2064 = vsel %vm1320, %v2029, 0
      %v2067 = vsel %vm1320, %v2030, 0
      %v2070 = vsel %vm1320, %v2031, 0
      %v2073 = vsel %vm1320, %v2032, 0
      %v2076 = vsel %vm1320, %v2033, 0
      %v2079 = vsel %vm1320, %v2034, 0
      %v2082 = vsel %vm1320, %v2035, 0
      %v2085 = vsel %vm1369, %v1955, 0
      %2087 = vmatprep.subr.bf16.mxu0 0
      %2088 = vmatpush1.bf16.msra.mxu0 0
      %2089 = vmatprep.subr.bf16.mxu0 0
      %2090 = vmatpush1.bf16.msra.mxu0 0
      %2091 = vmatprep.subr.bf16.mxu0 0
      %2092 = vmatpush1.bf16.msra.mxu0 0
      %2093 = vmatprep.subr.bf16.mxu0 0
      %2094 = vmatpush1.bf16.msra.mxu0 0
      %2095 = vmatprep.subr.bf16.mxu0 0
      %2096 = vmatpush1.bf16.msra.mxu0 0
      %2097 = vmatprep.subr.bf16.mxu0 0
      %2098 = vmatpush1.bf16.msra.mxu0 0
      %2099 = vmatprep.subr.bf16.mxu0 0
      %2100 = vmatpush1.bf16.msra.mxu0 0
      %2101 = vmatprep.subr.bf16.mxu0 0
      %2102 = vmatpush1.bf16.msra.mxu0 %v2085
      %2103 = vmatprep.subr.bf16.mxu0 0
      %2104 = vmatpush2.bf16.msra.mxu0 0
      %2105 = vmatprep.subr.bf16.mxu0 0
      %2106 = vmatpush2.bf16.msra.mxu0 0
      %2107 = vmatprep.subr.bf16.mxu0 0
      %2108 = vmatpush2.bf16.msra.mxu0 0
      %2109 = vmatprep.subr.bf16.mxu0 0
      %2110 = vmatpush2.bf16.msra.mxu0 0
      %2111 = vmatprep.subr.bf16.mxu0 0
      %2112 = vmatpush2.bf16.msra.mxu0 0
      %2113 = vmatprep.subr.bf16.mxu0 0
      %2114 = vmatpush2.bf16.msra.mxu0 0
      %2115 = vmatprep.subr.bf16.mxu0 0
      %2116 = vmatpush2.bf16.msra.mxu0 0
      %2117 = vmatprep.subr.bf16.mxu0 0
      %2118 = vmatpush2.bf16.msra.mxu0 0
      %2119 = vmatprep.mubr.bf16.mxu0 0
      %2120 = vmatmul.mubr.bf16.gmra.mxu0 %v2037
      %v2121 = vpop.f32.mrf.mxu0
      %v2122 = vadd.f32 0.0, %v2121
      %v2123 = vpop.f32.mrf.mxu0
      %v2124 = vpop.f32.mrf.mxu0
      %v2125 = vadd.f32 0.0, %v2124
      %v2126 = vpop.f32.mrf.mxu0
      %2127 = vmatprep.mubr.bf16.mxu0 0
      %2128 = vmatmul.mubr.bf16.gmra.mxu0 %v2040
      %v2129 = vpop.f32.mrf.mxu0
      %v2130 = vadd.f32 0.0, %v2129
      %v2131 = vpop.f32.mrf.mxu0
      %v2132 = vpop.f32.mrf.mxu0
      %v2133 = vadd.f32 0.0, %v2132
      %v2134 = vpop.f32.mrf.mxu0
      %2135 = vmatprep.mubr.bf16.mxu0 0
      %2136 = vmatmul.mubr.bf16.gmra.mxu0 %v2043
      %v2137 = vpop.f32.mrf.mxu0
      %v2138 = vadd.f32 0.0, %v2137
      %v2139 = vpop.f32.mrf.mxu0
      %v2140 = vpop.f32.mrf.mxu0
      %v2141 = vadd.f32 0.0, %v2140
      %v2142 = vpop.f32.mrf.mxu0
      %2143 = vmatprep.mubr.bf16.mxu0 0
      %2144 = vmatmul.mubr.bf16.gmra.mxu0 %v2046
      %v2145 = vpop.f32.mrf.mxu0
      %v2146 = vadd.f32 0.0, %v2145
      %v2147 = vpop.f32.mrf.mxu0
      %v2148 = vpop.f32.mrf.mxu0
      %v2149 = vadd.f32 0.0, %v2148
      %v2150 = vpop.f32.mrf.mxu0
      %2151 = vmatprep.mubr.bf16.mxu0 0
      %2152 = vmatmul.mubr.bf16.gmra.mxu0 %v2049
      %v2153 = vpop.f32.mrf.mxu0
      %v2154 = vadd.f32 0.0, %v2153
      %v2155 = vpop.f32.mrf.mxu0
      %v2156 = vpop.f32.mrf.mxu0
      %v2157 = vadd.f32 0.0, %v2156
      %v2158 = vpop.f32.mrf.mxu0
      %2159 = vmatprep.mubr.bf16.mxu0 0
      %2160 = vmatmul.mubr.bf16.gmra.mxu0 %v2052
      %v2161 = vpop.f32.mrf.mxu0
      %v2162 = vadd.f32 0.0, %v2161
      %v2163 = vpop.f32.mrf.mxu0
      %v2164 = vpop.f32.mrf.mxu0
      %v2165 = vadd.f32 0.0, %v2164
      %v2166 = vpop.f32.mrf.mxu0
      %2167 = vmatprep.mubr.bf16.mxu0 0
      %2168 = vmatmul.mubr.bf16.gmra.mxu0 %v2055
      %v2169 = vpop.f32.mrf.mxu0
      %v2170 = vadd.f32 0.0, %v2169
      %v2171 = vpop.f32.mrf.mxu0
      %v2172 = vpop.f32.mrf.mxu0
      %v2173 = vadd.f32 0.0, %v2172
      %v2174 = vpop.f32.mrf.mxu0
      %2175 = vmatprep.mubr.bf16.mxu0 0
      %2176 = vmatmul.mubr.bf16.gmra.mxu0 %v2058
      %v2177 = vpop.f32.mrf.mxu0
      %v2178 = vadd.f32 0.0, %v2177
      %v2179 = vpop.f32.mrf.mxu0
      %v2180 = vpop.f32.mrf.mxu0
      %v2181 = vadd.f32 0.0, %v2180
      %v2182 = vpop.f32.mrf.mxu0
      %2183 = vmatprep.mubr.bf16.mxu0 0
      %2184 = vmatmul.mubr.bf16.gmra.mxu0 %v2061
      %v2185 = vpop.f32.mrf.mxu0
      %v2186 = vadd.f32 0.0, %v2185
      %v2187 = vpop.f32.mrf.mxu0
      %v2188 = vpop.f32.mrf.mxu0
      %v2189 = vadd.f32 0.0, %v2188
      %v2190 = vpop.f32.mrf.mxu0
      %2191 = vmatprep.mubr.bf16.mxu0 0
      %2192 = vmatmul.mubr.bf16.gmra.mxu0 %v2064
      %v2193 = vpop.f32.mrf.mxu0
      %v2194 = vadd.f32 0.0, %v2193
      %v2195 = vpop.f32.mrf.mxu0
      %v2196 = vpop.f32.mrf.mxu0
      %v2197 = vadd.f32 0.0, %v2196
      %v2198 = vpop.f32.mrf.mxu0
      %2199 = vmatprep.mubr.bf16.mxu0 0
      %2200 = vmatmul.mubr.bf16.gmra.mxu0 %v2067
      %v2201 = vpop.f32.mrf.mxu0
      %v2202 = vadd.f32 0.0, %v2201
      %v2203 = vpop.f32.mrf.mxu0
      %v2204 = vpop.f32.mrf.mxu0
      %v2205 = vadd.f32 0.0, %v2204
      %v2206 = vpop.f32.mrf.mxu0
      %2207 = vmatprep.mubr.bf16.mxu0 0
      %2208 = vmatmul.mubr.bf16.gmra.mxu0 %v2070
      %v2209 = vpop.f32.mrf.mxu0
      %v2210 = vadd.f32 0.0, %v2209
      %v2211 = vpop.f32.mrf.mxu0
      %v2212 = vpop.f32.mrf.mxu0
      %v2213 = vadd.f32 0.0, %v2212
      %v2214 = vpop.f32.mrf.mxu0
      %2215 = vmatprep.mubr.bf16.mxu0 0
      %2216 = vmatmul.mubr.bf16.gmra.mxu0 %v2073
      %v2217 = vpop.f32.mrf.mxu0
      %v2218 = vadd.f32 0.0, %v2217
      %v2219 = vpop.f32.mrf.mxu0
      %v2220 = vpop.f32.mrf.mxu0
      %v2221 = vadd.f32 0.0, %v2220
      %v2222 = vpop.f32.mrf.mxu0
      %2223 = vmatprep.mubr.bf16.mxu0 0
      %2224 = vmatmul.mubr.bf16.gmra.mxu0 %v2076
      %v2225 = vpop.f32.mrf.mxu0
      %v2226 = vadd.f32 0.0, %v2225
      %v2227 = vpop.f32.mrf.mxu0
      %v2228 = vpop.f32.mrf.mxu0
      %v2229 = vadd.f32 0.0, %v2228
      %v2230 = vpop.f32.mrf.mxu0
      %2231 = vmatprep.mubr.bf16.mxu0 0
      %2232 = vmatmul.mubr.bf16.gmra.mxu0 %v2079
      %v2233 = vpop.f32.mrf.mxu0
      %v2234 = vadd.f32 0.0, %v2233
      %v2235 = vpop.f32.mrf.mxu0
      %v2236 = vpop.f32.mrf.mxu0
      %v2237 = vadd.f32 0.0, %v2236
      %v2238 = vpop.f32.mrf.mxu0
      %2239 = vmatprep.mubr.bf16.mxu0 0
      %2240 = vmatmul.mubr.bf16.gmra.mxu0 %v2082
      %v2241 = vpop.f32.mrf.mxu0
      %v2242 = vadd.f32 0.0, %v2241
      %v2243 = vpop.f32.mrf.mxu0
      %v2244 = vpop.f32.mrf.mxu0
      %v2245 = vadd.f32 0.0, %v2244
      %v2246 = vpop.f32.mrf.mxu0
      %2247 = vdwg.mxu0
      %v2248 = vadd.f32 %v1891, %v2122
      %v2249 = vadd.f32 %v1892, %v2125
      %v2250 = vadd.f32 %v1893, %v2130
      %v2251 = vadd.f32 %v1894, %v2133
      %v2252 = vadd.f32 %v1895, %v2138
      %v2253 = vadd.f32 %v1896, %v2141
      %v2254 = vadd.f32 %v1897, %v2146
      %v2255 = vadd.f32 %v1898, %v2149
      %v2256 = vadd.f32 %v1899, %v2154
      %v2257 = vadd.f32 %v1900, %v2157
      %v2258 = vadd.f32 %v1901, %v2162
      %v2259 = vadd.f32 %v1902, %v2165
      %v2260 = vadd.f32 %v1903, %v2170
      %v2261 = vadd.f32 %v1904, %v2173
      %v2262 = vadd.f32 %v1905, %v2178
      %v2263 = vadd.f32 %v1906, %v2181
      %v2264 = vadd.f32 %v1907, %v2186
      %v2265 = vadd.f32 %v1908, %v2189
      %v2266 = vadd.f32 %v1909, %v2194
      %v2267 = vadd.f32 %v1910, %v2197
      %v2268 = vadd.f32 %v1911, %v2202
      %v2269 = vadd.f32 %v1912, %v2205
      %v2270 = vadd.f32 %v1913, %v2210
      %v2271 = vadd.f32 %v1914, %v2213
      %v2272 = vadd.f32 %v1915, %v2218
      %v2273 = vadd.f32 %v1916, %v2221
      %v2274 = vadd.f32 %v1917, %v2226
      %v2275 = vadd.f32 %v1918, %v2229
      %v2276 = vadd.f32 %v1919, %v2234
      %v2277 = vadd.f32 %v1920, %v2237
      %v2278 = vadd.f32 %v1921, %v2242
      %v2279 = vadd.f32 %v1922, %v2245
      %v2280 = vld [vmem:[%s546] sm:$0xf]
      %v2281 = vld [vmem:[%s546 + $0x4] sm:$0xf]
      %v2282 = vld [vmem:[%s546 + $0x8] sm:$0xf]
      %v2283 = vld [vmem:[%s546 + $0xc] sm:$0xf]
      %v2284 = vld [vmem:[%s546 + $0x10] sm:$0xf]
      %v2285 = vld [vmem:[%s546 + $0x14] sm:$0xf]
      %v2286 = vld [vmem:[%s546 + $0x18] sm:$0xf]
      %v2287 = vld [vmem:[%s546 + $0x1c] sm:$0xf]
      %v2288 = vld [vmem:[%s546 + $0x20] sm:$0xf]
      %v2289 = vld [vmem:[%s546 + $0x24] sm:$0xf]
      %v2290 = vld [vmem:[%s546 + $0x28] sm:$0xf]
      %v2291 = vld [vmem:[%s546 + $0x2c] sm:$0xf]
      %v2292 = vld [vmem:[%s546 + $0x30] sm:$0xf]
      %v2293 = vld [vmem:[%s546 + $0x34] sm:$0xf]
      %v2294 = vld [vmem:[%s546 + $0x38] sm:$0xf]
      %v2295 = vld [vmem:[%s546 + $0x3c] sm:$0xf]
      %v2296 = vld [vmem:[%s546 + $0x40] sm:$0xf]
      %v2297 = vld [vmem:[%s546 + $0x44] sm:$0xf]
      %v2298 = vld [vmem:[%s546 + $0x48] sm:$0xf]
      %v2299 = vld [vmem:[%s546 + $0x4c] sm:$0xf]
      %v2300 = vld [vmem:[%s546 + $0x50] sm:$0xf]
      %v2301 = vld [vmem:[%s546 + $0x54] sm:$0xf]
      %v2302 = vld [vmem:[%s546 + $0x58] sm:$0xf]
      %v2303 = vld [vmem:[%s546 + $0x5c] sm:$0xf]
      %v2304 = vld [vmem:[%s546 + $0x60] sm:$0xf]
      %v2305 = vld [vmem:[%s546 + $0x64] sm:$0xf]
      %v2306 = vld [vmem:[%s546 + $0x68] sm:$0xf]
      %v2307 = vld [vmem:[%s546 + $0x6c] sm:$0xf]
      %v2308 = vld [vmem:[%s546 + $0x70] sm:$0xf]
      %v2309 = vld [vmem:[%s546 + $0x74] sm:$0xf]
      %v2310 = vld [vmem:[%s546 + $0x78] sm:$0xf]
      %v2311 = vld [vmem:[%s546 + $0x7c] sm:$0xf]
      %v2312 = vld [vmem:[%s11] sm:$0x1]
      %v2345 = vunpack.c.l.b16 %v2280
      %v2346 = vunpack.c.l.b16 %v2281
      %v2347 = vunpack.c.l.b16 %v2282
      %v2348 = vunpack.c.l.b16 %v2283
      %v2349 = vunpack.c.l.b16 %v2284
      %v2350 = vunpack.c.l.b16 %v2285
      %v2351 = vunpack.c.l.b16 %v2286
      %v2352 = vunpack.c.l.b16 %v2287
      %v2353 = vunpack.c.l.b16 %v2288
      %v2354 = vunpack.c.l.b16 %v2289
      %v2355 = vunpack.c.l.b16 %v2290
      %v2356 = vunpack.c.l.b16 %v2291
      %v2357 = vunpack.c.l.b16 %v2292
      %v2358 = vunpack.c.l.b16 %v2293
      %v2359 = vunpack.c.l.b16 %v2294
      %v2360 = vunpack.c.l.b16 %v2295
      %v2361 = vunpack.c.l.b16 %v2296
      %v2362 = vunpack.c.l.b16 %v2297
      %v2363 = vunpack.c.l.b16 %v2298
      %v2364 = vunpack.c.l.b16 %v2299
      %v2365 = vunpack.c.l.b16 %v2300
      %v2366 = vunpack.c.l.b16 %v2301
      %v2367 = vunpack.c.l.b16 %v2302
      %v2368 = vunpack.c.l.b16 %v2303
      %v2369 = vunpack.c.l.b16 %v2304
      %v2370 = vunpack.c.l.b16 %v2305
      %v2371 = vunpack.c.l.b16 %v2306
      %v2372 = vunpack.c.l.b16 %v2307
      %v2373 = vunpack.c.l.b16 %v2308
      %v2374 = vunpack.c.l.b16 %v2309
      %v2375 = vunpack.c.l.b16 %v2310
      %v2376 = vunpack.c.l.b16 %v2311
      %v2377 = vpack.c.b16 %v2346, %v2345
      %v2378 = vpack.c.b16 %v2348, %v2347
      %v2379 = vpack.c.b16 %v2350, %v2349
      %v2380 = vpack.c.b16 %v2352, %v2351
      %v2381 = vpack.c.b16 %v2354, %v2353
      %v2382 = vpack.c.b16 %v2356, %v2355
      %v2383 = vpack.c.b16 %v2358, %v2357
      %v2384 = vpack.c.b16 %v2360, %v2359
      %v2385 = vpack.c.b16 %v2362, %v2361
      %v2386 = vpack.c.b16 %v2364, %v2363
      %v2387 = vpack.c.b16 %v2366, %v2365
      %v2388 = vpack.c.b16 %v2368, %v2367
      %v2389 = vpack.c.b16 %v2370, %v2369
      %v2390 = vpack.c.b16 %v2372, %v2371
      %v2391 = vpack.c.b16 %v2374, %v2373
      %v2392 = vpack.c.b16 %v2376, %v2375
      %v2394 = vsel %vm1320, %v2377, 0
      %v2397 = vsel %vm1320, %v2378, 0
      %v2400 = vsel %vm1320, %v2379, 0
      %v2403 = vsel %vm1320, %v2380, 0
      %v2406 = vsel %vm1320, %v2381, 0
      %v2409 = vsel %vm1320, %v2382, 0
      %v2412 = vsel %vm1320, %v2383, 0
      %v2415 = vsel %vm1320, %v2384, 0
      %v2418 = vsel %vm1320, %v2385, 0
      %v2421 = vsel %vm1320, %v2386, 0
      %v2424 = vsel %vm1320, %v2387, 0
      %v2427 = vsel %vm1320, %v2388, 0
      %v2430 = vsel %vm1320, %v2389, 0
      %v2433 = vsel %vm1320, %v2390, 0
      %v2436 = vsel %vm1320, %v2391, 0
      %v2439 = vsel %vm1320, %v2392, 0
      %v2442 = vsel %vm1369, %v2312, 0
      %2444 = vmatprep.subr.bf16.mxu0 0
      %2445 = vmatpush1.bf16.msra.mxu0 0
      %2446 = vmatprep.subr.bf16.mxu0 0
      %2447 = vmatpush1.bf16.msra.mxu0 0
      %2448 = vmatprep.subr.bf16.mxu0 0
      %2449 = vmatpush1.bf16.msra.mxu0 0
      %2450 = vmatprep.subr.bf16.mxu0 0
      %2451 = vmatpush1.bf16.msra.mxu0 0
      %2452 = vmatprep.subr.bf16.mxu0 0
      %2453 = vmatpush1.bf16.msra.mxu0 0
      %2454 = vmatprep.subr.bf16.mxu0 0
      %2455 = vmatpush1.bf16.msra.mxu0 0
      %2456 = vmatprep.subr.bf16.mxu0 0
      %2457 = vmatpush1.bf16.msra.mxu0 0
      %2458 = vmatprep.subr.bf16.mxu0 0
      %2459 = vmatpush1.bf16.msra.mxu0 %v2442
      %2460 = vmatprep.subr.bf16.mxu0 0
      %2461 = vmatpush2.bf16.msra.mxu0 0
      %2462 = vmatprep.subr.bf16.mxu0 0
      %2463 = vmatpush2.bf16.msra.mxu0 0
      %2464 = vmatprep.subr.bf16.mxu0 0
      %2465 = vmatpush2.bf16.msra.mxu0 0
      %2466 = vmatprep.subr.bf16.mxu0 0
      %2467 = vmatpush2.bf16.msra.mxu0 0
      %2468 = vmatprep.subr.bf16.mxu0 0
      %2469 = vmatpush2.bf16.msra.mxu0 0
      %2470 = vmatprep.subr.bf16.mxu0 0
      %2471 = vmatpush2.bf16.msra.mxu0 0
      %2472 = vmatprep.subr.bf16.mxu0 0
      %2473 = vmatpush2.bf16.msra.mxu0 0
      %2474 = vmatprep.subr.bf16.mxu0 0
      %2475 = vmatpush2.bf16.msra.mxu0 0
      %2476 = vmatprep.mubr.bf16.mxu0 0
      %2477 = vmatmul.mubr.bf16.gmra.mxu0 %v2394
      %v2478 = vpop.f32.mrf.mxu0
      %v2479 = vadd.f32 0.0, %v2478
      %v2480 = vpop.f32.mrf.mxu0
      %v2481 = vpop.f32.mrf.mxu0
      %v2482 = vadd.f32 0.0, %v2481
      %v2483 = vpop.f32.mrf.mxu0
      %2484 = vmatprep.mubr.bf16.mxu0 0
      %2485 = vmatmul.mubr.bf16.gmra.mxu0 %v2397
      %v2486 = vpop.f32.mrf.mxu0
      %v2487 = vadd.f32 0.0, %v2486
      %v2488 = vpop.f32.mrf.mxu0
      %v2489 = vpop.f32.mrf.mxu0
      %v2490 = vadd.f32 0.0, %v2489
      %v2491 = vpop.f32.mrf.mxu0
      %2492 = vmatprep.mubr.bf16.mxu0 0
      %2493 = vmatmul.mubr.bf16.gmra.mxu0 %v2400
      %v2494 = vpop.f32.mrf.mxu0
      %v2495 = vadd.f32 0.0, %v2494
      %v2496 = vpop.f32.mrf.mxu0
      %v2497 = vpop.f32.mrf.mxu0
      %v2498 = vadd.f32 0.0, %v2497
      %v2499 = vpop.f32.mrf.mxu0
      %2500 = vmatprep.mubr.bf16.mxu0 0
      %2501 = vmatmul.mubr.bf16.gmra.mxu0 %v2403
      %v2502 = vpop.f32.mrf.mxu0
      %v2503 = vadd.f32 0.0, %v2502
      %v2504 = vpop.f32.mrf.mxu0
      %v2505 = vpop.f32.mrf.mxu0
      %v2506 = vadd.f32 0.0, %v2505
      %v2507 = vpop.f32.mrf.mxu0
      %2508 = vmatprep.mubr.bf16.mxu0 0
      %2509 = vmatmul.mubr.bf16.gmra.mxu0 %v2406
      %v2510 = vpop.f32.mrf.mxu0
      %v2511 = vadd.f32 0.0, %v2510
      %v2512 = vpop.f32.mrf.mxu0
      %v2513 = vpop.f32.mrf.mxu0
      %v2514 = vadd.f32 0.0, %v2513
      %v2515 = vpop.f32.mrf.mxu0
      %2516 = vmatprep.mubr.bf16.mxu0 0
      %2517 = vmatmul.mubr.bf16.gmra.mxu0 %v2409
      %v2518 = vpop.f32.mrf.mxu0
      %v2519 = vadd.f32 0.0, %v2518
      %v2520 = vpop.f32.mrf.mxu0
      %v2521 = vpop.f32.mrf.mxu0
      %v2522 = vadd.f32 0.0, %v2521
      %v2523 = vpop.f32.mrf.mxu0
      %2524 = vmatprep.mubr.bf16.mxu0 0
      %2525 = vmatmul.mubr.bf16.gmra.mxu0 %v2412
      %v2526 = vpop.f32.mrf.mxu0
      %v2527 = vadd.f32 0.0, %v2526
      %v2528 = vpop.f32.mrf.mxu0
      %v2529 = vpop.f32.mrf.mxu0
      %v2530 = vadd.f32 0.0, %v2529
      %v2531 = vpop.f32.mrf.mxu0
      %2532 = vmatprep.mubr.bf16.mxu0 0
      %2533 = vmatmul.mubr.bf16.gmra.mxu0 %v2415
      %v2534 = vpop.f32.mrf.mxu0
      %v2535 = vadd.f32 0.0, %v2534
      %v2536 = vpop.f32.mrf.mxu0
      %v2537 = vpop.f32.mrf.mxu0
      %v2538 = vadd.f32 0.0, %v2537
      %v2539 = vpop.f32.mrf.mxu0
      %2540 = vmatprep.mubr.bf16.mxu0 0
      %2541 = vmatmul.mubr.bf16.gmra.mxu0 %v2418
      %v2542 = vpop.f32.mrf.mxu0
      %v2543 = vadd.f32 0.0, %v2542
      %v2544 = vpop.f32.mrf.mxu0
      %v2545 = vpop.f32.mrf.mxu0
      %v2546 = vadd.f32 0.0, %v2545
      %v2547 = vpop.f32.mrf.mxu0
      %2548 = vmatprep.mubr.bf16.mxu0 0
      %2549 = vmatmul.mubr.bf16.gmra.mxu0 %v2421
      %v2550 = vpop.f32.mrf.mxu0
      %v2551 = vadd.f32 0.0, %v2550
      %v2552 = vpop.f32.mrf.mxu0
      %v2553 = vpop.f32.mrf.mxu0
      %v2554 = vadd.f32 0.0, %v2553
      %v2555 = vpop.f32.mrf.mxu0
      %2556 = vmatprep.mubr.bf16.mxu0 0
      %2557 = vmatmul.mubr.bf16.gmra.mxu0 %v2424
      %v2558 = vpop.f32.mrf.mxu0
      %v2559 = vadd.f32 0.0, %v2558
      %v2560 = vpop.f32.mrf.mxu0
      %v2561 = vpop.f32.mrf.mxu0
      %v2562 = vadd.f32 0.0, %v2561
      %v2563 = vpop.f32.mrf.mxu0
      %2564 = vmatprep.mubr.bf16.mxu0 0
      %2565 = vmatmul.mubr.bf16.gmra.mxu0 %v2427
      %v2566 = vpop.f32.mrf.mxu0
      %v2567 = vadd.f32 0.0, %v2566
      %v2568 = vpop.f32.mrf.mxu0
      %v2569 = vpop.f32.mrf.mxu0
      %v2570 = vadd.f32 0.0, %v2569
      %v2571 = vpop.f32.mrf.mxu0
      %2572 = vmatprep.mubr.bf16.mxu0 0
      %2573 = vmatmul.mubr.bf16.gmra.mxu0 %v2430
      %v2574 = vpop.f32.mrf.mxu0
      %v2575 = vadd.f32 0.0, %v2574
      %v2576 = vpop.f32.mrf.mxu0
      %v2577 = vpop.f32.mrf.mxu0
      %v2578 = vadd.f32 0.0, %v2577
      %v2579 = vpop.f32.mrf.mxu0
      %2580 = vmatprep.mubr.bf16.mxu0 0
      %2581 = vmatmul.mubr.bf16.gmra.mxu0 %v2433
      %v2582 = vpop.f32.mrf.mxu0
      %v2583 = vadd.f32 0.0, %v2582
      %v2584 = vpop.f32.mrf.mxu0
      %v2585 = vpop.f32.mrf.mxu0
      %v2586 = vadd.f32 0.0, %v2585
      %v2587 = vpop.f32.mrf.mxu0
      %2588 = vmatprep.mubr.bf16.mxu0 0
      %2589 = vmatmul.mubr.bf16.gmra.mxu0 %v2436
      %v2590 = vpop.f32.mrf.mxu0
      %v2591 = vadd.f32 0.0, %v2590
      %v2592 = vpop.f32.mrf.mxu0
      %v2593 = vpop.f32.mrf.mxu0
      %v2594 = vadd.f32 0.0, %v2593
      %v2595 = vpop.f32.mrf.mxu0
      %2596 = vmatprep.mubr.bf16.mxu0 0
      %2597 = vmatmul.mubr.bf16.gmra.mxu0 %v2439
      %v2598 = vpop.f32.mrf.mxu0
      %v2599 = vadd.f32 0.0, %v2598
      %v2600 = vpop.f32.mrf.mxu0
      %v2601 = vpop.f32.mrf.mxu0
      %v2602 = vadd.f32 0.0, %v2601
      %v2603 = vpop.f32.mrf.mxu0
      %2604 = vdwg.mxu0
      %v2605 = vadd.f32 %v2248, %v2479
      %v2606 = vadd.f32 %v2249, %v2482
      %v2607 = vadd.f32 %v2250, %v2487
      %v2608 = vadd.f32 %v2251, %v2490
      %v2609 = vadd.f32 %v2252, %v2495
      %v2610 = vadd.f32 %v2253, %v2498
      %v2611 = vadd.f32 %v2254, %v2503
      %v2612 = vadd.f32 %v2255, %v2506
      %v2613 = vadd.f32 %v2256, %v2511
      %v2614 = vadd.f32 %v2257, %v2514
      %v2615 = vadd.f32 %v2258, %v2519
      %v2616 = vadd.f32 %v2259, %v2522
      %v2617 = vadd.f32 %v2260, %v2527
      %v2618 = vadd.f32 %v2261, %v2530
      %v2619 = vadd.f32 %v2262, %v2535
      %v2620 = vadd.f32 %v2263, %v2538
      %v2621 = vadd.f32 %v2264, %v2543
      %v2622 = vadd.f32 %v2265, %v2546
      %v2623 = vadd.f32 %v2266, %v2551
      %v2624 = vadd.f32 %v2267, %v2554
      %v2625 = vadd.f32 %v2268, %v2559
      %v2626 = vadd.f32 %v2269, %v2562
      %v2627 = vadd.f32 %v2270, %v2567
      %v2628 = vadd.f32 %v2271, %v2570
      %v2629 = vadd.f32 %v2272, %v2575
      %v2630 = vadd.f32 %v2273, %v2578
      %v2631 = vadd.f32 %v2274, %v2583
      %v2632 = vadd.f32 %v2275, %v2586
      %v2633 = vadd.f32 %v2276, %v2591
      %v2634 = vadd.f32 %v2277, %v2594
      %v2635 = vadd.f32 %v2278, %v2599
      %v2636 = vadd.f32 %v2279, %v2602
      %v2637 = vld [vmem:[%s12] sm:$0x1]
      %v2639 = vlaneseq
      %v2640 = vshrl.u32 %v2639, 7
      %v2641 = vsub.s32 0, %v2640
      %v2642 = vrot.slane %v2637, %v2641
      %v2644 = vadd.f32 %v2605, %v2642
      %v2645 = vadd.f32 %v2606, %v2642
      %v2646 = vadd.f32 %v2607, %v2642
      %v2647 = vadd.f32 %v2608, %v2642
      %v2648 = vadd.f32 %v2609, %v2642
      %v2649 = vadd.f32 %v2610, %v2642
      %v2650 = vadd.f32 %v2611, %v2642
      %v2651 = vadd.f32 %v2612, %v2642
      %v2652 = vadd.f32 %v2613, %v2642
      %v2653 = vadd.f32 %v2614, %v2642
      %v2654 = vadd.f32 %v2615, %v2642
      %v2655 = vadd.f32 %v2616, %v2642
      %v2656 = vadd.f32 %v2617, %v2642
      %v2657 = vadd.f32 %v2618, %v2642
      %v2658 = vadd.f32 %v2619, %v2642
      %v2659 = vadd.f32 %v2620, %v2642
      %v2660 = vadd.f32 %v2621, %v2642
      %v2661 = vadd.f32 %v2622, %v2642
      %v2662 = vadd.f32 %v2623, %v2642
      %v2663 = vadd.f32 %v2624, %v2642
      %v2664 = vadd.f32 %v2625, %v2642
      %v2665 = vadd.f32 %v2626, %v2642
      %v2666 = vadd.f32 %v2627, %v2642
      %v2667 = vadd.f32 %v2628, %v2642
      %v2668 = vadd.f32 %v2629, %v2642
      %v2669 = vadd.f32 %v2630, %v2642
      %v2670 = vadd.f32 %v2631, %v2642
      %v2671 = vadd.f32 %v2632, %v2642
      %v2672 = vadd.f32 %v2633, %v2642
      %v2673 = vadd.f32 %v2634, %v2642
      %v2674 = vadd.f32 %v2635, %v2642
      %v2675 = vadd.f32 %v2636, %v2642
      %v2676 = vsub.f32 0.0, %v2644
      %v2677 = vsub.f32 0.0, %v2645
      %v2678 = vsub.f32 0.0, %v2646
      %v2679 = vsub.f32 0.0, %v2647
      %v2680 = vsub.f32 0.0, %v2648
      %v2681 = vsub.f32 0.0, %v2649
      %v2682 = vsub.f32 0.0, %v2650
      %v2683 = vsub.f32 0.0, %v2651
      %v2684 = vsub.f32 0.0, %v2652
      %v2685 = vsub.f32 0.0, %v2653
      %v2686 = vsub.f32 0.0, %v2654
      %v2687 = vsub.f32 0.0, %v2655
      %v2688 = vsub.f32 0.0, %v2656
      %v2689 = vsub.f32 0.0, %v2657
      %v2690 = vsub.f32 0.0, %v2658
      %v2691 = vsub.f32 0.0, %v2659
      %v2692 = vsub.f32 0.0, %v2660
      %v2693 = vsub.f32 0.0, %v2661
      %v2694 = vsub.f32 0.0, %v2662
      %v2695 = vsub.f32 0.0, %v2663
      %v2696 = vsub.f32 0.0, %v2664
      %v2697 = vsub.f32 0.0, %v2665
      %v2698 = vsub.f32 0.0, %v2666
      %v2699 = vsub.f32 0.0, %v2667
      %v2700 = vsub.f32 0.0, %v2668
      %v2701 = vsub.f32 0.0, %v2669
      %v2702 = vsub.f32 0.0, %v2670
      %v2703 = vsub.f32 0.0, %v2671
      %v2704 = vsub.f32 0.0, %v2672
      %v2705 = vsub.f32 0.0, %v2673
      %v2706 = vsub.f32 0.0, %v2674
      %v2707 = vsub.f32 0.0, %v2675
      %v2708 = vmul.f32 %v2676, 1.442695
      %v2709 = vpow.pop %v2708
      %v2710 = vmul.f32 %v2677, 1.442695
      %v2711 = vpow.pop %v2710
      %v2712 = vmul.f32 %v2678, 1.442695
      %v2713 = vpow.pop %v2712
      %v2714 = vmul.f32 %v2679, 1.442695
      %v2715 = vpow.pop %v2714
      %v2716 = vmul.f32 %v2680, 1.442695
      %v2717 = vpow.pop %v2716
      %v2718 = vmul.f32 %v2681, 1.442695
      %v2719 = vpow.pop %v2718
      %v2720 = vmul.f32 %v2682, 1.442695
      %v2721 = vpow.pop %v2720
      %v2722 = vmul.f32 %v2683, 1.442695
      %v2723 = vpow.pop %v2722
      %v2724 = vmul.f32 %v2684, 1.442695
      %v2725 = vpow.pop %v2724
      %v2726 = vmul.f32 %v2685, 1.442695
      %v2727 = vpow.pop %v2726
      %v2728 = vmul.f32 %v2686, 1.442695
      %v2729 = vpow.pop %v2728
      %v2730 = vmul.f32 %v2687, 1.442695
      %v2731 = vpow.pop %v2730
      %v2732 = vmul.f32 %v2688, 1.442695
      %v2733 = vpow.pop %v2732
      %v2734 = vmul.f32 %v2689, 1.442695
      %v2735 = vpow.pop %v2734
      %v2736 = vmul.f32 %v2690, 1.442695
      %v2737 = vpow.pop %v2736
      %v2738 = vmul.f32 %v2691, 1.442695
      %v2739 = vpow.pop %v2738
      %v2740 = vmul.f32 %v2692, 1.442695
      %v2741 = vpow.pop %v2740
      %v2742 = vmul.f32 %v2693, 1.442695
      %v2743 = vpow.pop %v2742
      %v2744 = vmul.f32 %v2694, 1.442695
      %v2745 = vpow.pop %v2744
      %v2746 = vmul.f32 %v2695, 1.442695
      %v2747 = vpow.pop %v2746
      %v2748 = vmul.f32 %v2696, 1.442695
      %v2749 = vpow.pop %v2748
      %v2750 = vmul.f32 %v2697, 1.442695
      %v2751 = vpow.pop %v2750
      %v2752 = vmul.f32 %v2698, 1.442695
      %v2753 = vpow.pop %v2752
      %v2754 = vmul.f32 %v2699, 1.442695
      %v2755 = vpow.pop %v2754
      %v2756 = vmul.f32 %v2700, 1.442695
      %v2757 = vpow.pop %v2756
      %v2758 = vmul.f32 %v2701, 1.442695
      %v2759 = vpow.pop %v2758
      %v2760 = vmul.f32 %v2702, 1.442695
      %v2761 = vpow.pop %v2760
      %v2762 = vmul.f32 %v2703, 1.442695
      %v2763 = vpow.pop %v2762
      %v2764 = vmul.f32 %v2704, 1.442695
      %v2765 = vpow.pop %v2764
      %v2766 = vmul.f32 %v2705, 1.442695
      %v2767 = vpow.pop %v2766
      %v2768 = vmul.f32 %v2706, 1.442695
      %v2769 = vpow.pop %v2768
      %v2770 = vmul.f32 %v2707, 1.442695
      %v2771 = vpow.pop %v2770
      %v2772 = vadd.f32 %v2709, 1.0
      %v2773 = vadd.f32 %v2711, 1.0
      %v2774 = vadd.f32 %v2713, 1.0
      %v2775 = vadd.f32 %v2715, 1.0
      %v2776 = vadd.f32 %v2717, 1.0
      %v2777 = vadd.f32 %v2719, 1.0
      %v2778 = vadd.f32 %v2721, 1.0
      %v2779 = vadd.f32 %v2723, 1.0
      %v2780 = vadd.f32 %v2725, 1.0
      %v2781 = vadd.f32 %v2727, 1.0
      %v2782 = vadd.f32 %v2729, 1.0
      %v2783 = vadd.f32 %v2731, 1.0
      %v2784 = vadd.f32 %v2733, 1.0
      %v2785 = vadd.f32 %v2735, 1.0
      %v2786 = vadd.f32 %v2737, 1.0
      %v2787 = vadd.f32 %v2739, 1.0
      %v2788 = vadd.f32 %v2741, 1.0
      %v2789 = vadd.f32 %v2743, 1.0
      %v2790 = vadd.f32 %v2745, 1.0
      %v2791 = vadd.f32 %v2747, 1.0
      %v2792 = vadd.f32 %v2749, 1.0
      %v2793 = vadd.f32 %v2751, 1.0
      %v2794 = vadd.f32 %v2753, 1.0
      %v2795 = vadd.f32 %v2755, 1.0
      %v2796 = vadd.f32 %v2757, 1.0
      %v2797 = vadd.f32 %v2759, 1.0
      %v2798 = vadd.f32 %v2761, 1.0
      %v2799 = vadd.f32 %v2763, 1.0
      %v2800 = vadd.f32 %v2765, 1.0
      %v2801 = vadd.f32 %v2767, 1.0
      %v2802 = vadd.f32 %v2769, 1.0
      %v2803 = vadd.f32 %v2771, 1.0
      %v2804 = vrcp.pop %v2772
      %v2805 = vrcp.pop %v2773
      %v2806 = vrcp.pop %v2774
      %v2807 = vrcp.pop %v2775
      %v2808 = vrcp.pop %v2776
      %v2809 = vrcp.pop %v2777
      %v2810 = vrcp.pop %v2778
      %v2811 = vrcp.pop %v2779
      %v2812 = vrcp.pop %v2780
      %v2813 = vrcp.pop %v2781
      %v2814 = vrcp.pop %v2782
      %v2815 = vrcp.pop %v2783
      %v2816 = vrcp.pop %v2784
      %v2817 = vrcp.pop %v2785
      %v2818 = vrcp.pop %v2786
      %v2819 = vrcp.pop %v2787
      %v2820 = vrcp.pop %v2788
      %v2821 = vrcp.pop %v2789
      %v2822 = vrcp.pop %v2790
      %v2823 = vrcp.pop %v2791
      %v2824 = vrcp.pop %v2792
      %v2825 = vrcp.pop %v2793
      %v2826 = vrcp.pop %v2794
      %v2827 = vrcp.pop %v2795
      %v2828 = vrcp.pop %v2796
      %v2829 = vrcp.pop %v2797
      %v2830 = vrcp.pop %v2798
      %v2831 = vrcp.pop %v2799
      %v2832 = vrcp.pop %v2800
      %v2833 = vrcp.pop %v2801
      %v2834 = vrcp.pop %v2802
      %v2835 = vrcp.pop %v2803
      %v2836 = vmul.f32 %v2644, %v2804
      %v2837 = vmul.f32 %v2645, %v2805
      %v2838 = vmul.f32 %v2646, %v2806
      %v2839 = vmul.f32 %v2647, %v2807
      %v2840 = vmul.f32 %v2648, %v2808
      %v2841 = vmul.f32 %v2649, %v2809
      %v2842 = vmul.f32 %v2650, %v2810
      %v2843 = vmul.f32 %v2651, %v2811
      %v2844 = vmul.f32 %v2652, %v2812
      %v2845 = vmul.f32 %v2653, %v2813
      %v2846 = vmul.f32 %v2654, %v2814
      %v2847 = vmul.f32 %v2655, %v2815
      %v2848 = vmul.f32 %v2656, %v2816
      %v2849 = vmul.f32 %v2657, %v2817
      %v2850 = vmul.f32 %v2658, %v2818
      %v2851 = vmul.f32 %v2659, %v2819
      %v2852 = vmul.f32 %v2660, %v2820
      %v2853 = vmul.f32 %v2661, %v2821
      %v2854 = vmul.f32 %v2662, %v2822
      %v2855 = vmul.f32 %v2663, %v2823
      %v2856 = vmul.f32 %v2664, %v2824
      %v2857 = vmul.f32 %v2665, %v2825
      %v2858 = vmul.f32 %v2666, %v2826
      %v2859 = vmul.f32 %v2667, %v2827
      %v2860 = vmul.f32 %v2668, %v2828
      %v2861 = vmul.f32 %v2669, %v2829
      %v2862 = vmul.f32 %v2670, %v2830
      %v2863 = vmul.f32 %v2671, %v2831
      %v2864 = vmul.f32 %v2672, %v2832
      %v2865 = vmul.f32 %v2673, %v2833
      %v2866 = vmul.f32 %v2674, %v2834
      %v2867 = vmul.f32 %v2675, %v2835
      %v2868 = vpack.c.bf16 %v2837, %v2836
      %v2869 = vpack.c.bf16 %v2839, %v2838
      %v2870 = vpack.c.bf16 %v2841, %v2840
      %v2871 = vpack.c.bf16 %v2843, %v2842
      %v2872 = vpack.c.bf16 %v2845, %v2844
      %v2873 = vpack.c.bf16 %v2847, %v2846
      %v2874 = vpack.c.bf16 %v2849, %v2848
      %v2875 = vpack.c.bf16 %v2851, %v2850
      %v2876 = vpack.c.bf16 %v2853, %v2852
      %v2877 = vpack.c.bf16 %v2855, %v2854
      %v2878 = vpack.c.bf16 %v2857, %v2856
      %v2879 = vpack.c.bf16 %v2859, %v2858
      %v2880 = vpack.c.bf16 %v2861, %v2860
      %v2881 = vpack.c.bf16 %v2863, %v2862
      %v2882 = vpack.c.bf16 %v2865, %v2864
      %v2883 = vpack.c.bf16 %v2867, %v2866
      %v2900 = vunpack.c.l.b16 %v2868
      %v2901 = vunpack.c.h.b16 %v2868
      %v2902 = vunpack.c.l.b16 %v2869
      %v2903 = vunpack.c.h.b16 %v2869
      %v2904 = vunpack.c.l.b16 %v2870
      %v2905 = vunpack.c.h.b16 %v2870
      %v2906 = vunpack.c.l.b16 %v2871
      %v2907 = vunpack.c.h.b16 %v2871
      %v2908 = vunpack.c.l.b16 %v2872
      %v2909 = vunpack.c.h.b16 %v2872
      %v2910 = vunpack.c.l.b16 %v2873
      %v2911 = vunpack.c.h.b16 %v2873
      %v2912 = vunpack.c.l.b16 %v2874
      %v2913 = vunpack.c.h.b16 %v2874
      %v2914 = vunpack.c.l.b16 %v2875
      %v2915 = vunpack.c.h.b16 %v2875
      %v2916 = vunpack.c.l.b16 %v2876
      %v2917 = vunpack.c.h.b16 %v2876
      %v2918 = vunpack.c.l.b16 %v2877
      %v2919 = vunpack.c.h.b16 %v2877
      %v2920 = vunpack.c.l.b16 %v2878
      %v2921 = vunpack.c.h.b16 %v2878
      %v2922 = vunpack.c.l.b16 %v2879
      %v2923 = vunpack.c.h.b16 %v2879
      %v2924 = vunpack.c.l.b16 %v2880
      %v2925 = vunpack.c.h.b16 %v2880
      %v2926 = vunpack.c.l.b16 %v2881
      %v2927 = vunpack.c.h.b16 %v2881
      %v2928 = vunpack.c.l.b16 %v2882
      %v2929 = vunpack.c.h.b16 %v2882
      %v2930 = vunpack.c.l.b16 %v2883
      %v2931 = vunpack.c.h.b16 %v2883
      %v2932 = vpack.c.b16 %v2900, %v2900
      %v2933 = vpack.c.b16 %v2901, %v2901
      %v2934 = vpack.c.b16 %v2902, %v2902
      %v2935 = vpack.c.b16 %v2903, %v2903
      %v2936 = vpack.c.b16 %v2904, %v2904
      %v2937 = vpack.c.b16 %v2905, %v2905
      %v2938 = vpack.c.b16 %v2906, %v2906
      %v2939 = vpack.c.b16 %v2907, %v2907
      %v2940 = vpack.c.b16 %v2908, %v2908
      %v2941 = vpack.c.b16 %v2909, %v2909
      %v2942 = vpack.c.b16 %v2910, %v2910
      %v2943 = vpack.c.b16 %v2911, %v2911
      %v2944 = vpack.c.b16 %v2912, %v2912
      %v2945 = vpack.c.b16 %v2913, %v2913
      %v2946 = vpack.c.b16 %v2914, %v2914
      %v2947 = vpack.c.b16 %v2915, %v2915
      %v2948 = vpack.c.b16 %v2916, %v2916
      %v2949 = vpack.c.b16 %v2917, %v2917
      %v2950 = vpack.c.b16 %v2918, %v2918
      %v2951 = vpack.c.b16 %v2919, %v2919
      %v2952 = vpack.c.b16 %v2920, %v2920
      %v2953 = vpack.c.b16 %v2921, %v2921
      %v2954 = vpack.c.b16 %v2922, %v2922
      %v2955 = vpack.c.b16 %v2923, %v2923
      %v2956 = vpack.c.b16 %v2924, %v2924
      %v2957 = vpack.c.b16 %v2925, %v2925
      %v2958 = vpack.c.b16 %v2926, %v2926
      %v2959 = vpack.c.b16 %v2927, %v2927
      %v2960 = vpack.c.b16 %v2928, %v2928
      %v2961 = vpack.c.b16 %v2929, %v2929
      %v2962 = vpack.c.b16 %v2930, %v2930
      %v2963 = vpack.c.b16 %v2931, %v2931
      %vm2996 = vcmask 60416
      %2997 = vst.msk [vmem:[%s552] sm:$0xf] %vm2996, %v2932
      %2998 = vst.msk [vmem:[%s552 + $0x4] sm:$0xf] %vm2996, %v2933
      %2999 = vst.msk [vmem:[%s552 + $0x8] sm:$0xf] %vm2996, %v2934
      %3000 = vst.msk [vmem:[%s552 + $0xc] sm:$0xf] %vm2996, %v2935
      %3001 = vst.msk [vmem:[%s552 + $0x10] sm:$0xf] %vm2996, %v2936
      %3002 = vst.msk [vmem:[%s552 + $0x14] sm:$0xf] %vm2996, %v2937
      %3003 = vst.msk [vmem:[%s552 + $0x18] sm:$0xf] %vm2996, %v2938
      %3004 = vst.msk [vmem:[%s552 + $0x1c] sm:$0xf] %vm2996, %v2939
      %3005 = vst.msk [vmem:[%s552 + $0x20] sm:$0xf] %vm2996, %v2940
      %3006 = vst.msk [vmem:[%s552 + $0x24] sm:$0xf] %vm2996, %v2941
      %3007 = vst.msk [vmem:[%s552 + $0x28] sm:$0xf] %vm2996, %v2942
      %3008 = vst.msk [vmem:[%s552 + $0x2c] sm:$0xf] %vm2996, %v2943
      %3009 = vst.msk [vmem:[%s552 + $0x30] sm:$0xf] %vm2996, %v2944
      %3010 = vst.msk [vmem:[%s552 + $0x34] sm:$0xf] %vm2996, %v2945
      %3011 = vst.msk [vmem:[%s552 + $0x38] sm:$0xf] %vm2996, %v2946
      %3012 = vst.msk [vmem:[%s552 + $0x3c] sm:$0xf] %vm2996, %v2947
      %3013 = vst.msk [vmem:[%s552 + $0x40] sm:$0xf] %vm2996, %v2948
      %3014 = vst.msk [vmem:[%s552 + $0x44] sm:$0xf] %vm2996, %v2949
      %3015 = vst.msk [vmem:[%s552 + $0x48] sm:$0xf] %vm2996, %v2950
      %3016 = vst.msk [vmem:[%s552 + $0x4c] sm:$0xf] %vm2996, %v2951
      %3017 = vst.msk [vmem:[%s552 + $0x50] sm:$0xf] %vm2996, %v2952
      %3018 = vst.msk [vmem:[%s552 + $0x54] sm:$0xf] %vm2996, %v2953
      %3019 = vst.msk [vmem:[%s552 + $0x58] sm:$0xf] %vm2996, %v2954
      %3020 = vst.msk [vmem:[%s552 + $0x5c] sm:$0xf] %vm2996, %v2955
      %3021 = vst.msk [vmem:[%s552 + $0x60] sm:$0xf] %vm2996, %v2956
      %3022 = vst.msk [vmem:[%s552 + $0x64] sm:$0xf] %vm2996, %v2957
      %3023 = vst.msk [vmem:[%s552 + $0x68] sm:$0xf] %vm2996, %v2958
      %3024 = vst.msk [vmem:[%s552 + $0x6c] sm:$0xf] %vm2996, %v2959
      %3025 = vst.msk [vmem:[%s552 + $0x70] sm:$0xf] %vm2996, %v2960
      %3026 = vst.msk [vmem:[%s552 + $0x74] sm:$0xf] %vm2996, %v2961
      %3027 = vst.msk [vmem:[%s552 + $0x78] sm:$0xf] %vm2996, %v2962
      %3028 = vst.msk [vmem:[%s552 + $0x7c] sm:$0xf] %vm2996, %v2963
      %s3029 = smul.u32 32, %s24
      %p3030 = scmp.lt.s32.totalorder %s3029, 63
      %s3031 = scalar_select %p3030, %s3029, 63
      %s3032 = smul.addr %s3031, 4
      %s3033 = scalar_lea.vmem %s13, %s3032
      // Predicated region
      $region73: #{elan_block_fpn.11} parent=71 // pred_check
        %p3034 = pneg %p345
      $region74: #{elan_block_fpn.11} parent=71 // pred_check_branch
        %3036 = sbr.rel (%p3034) target = $region76
      $region75: #{elan_block_fpn.11} parent=71 // pred_region
        %s3037 = smul.u32 32, %s24
      $region76: #{elan_block_fpn.11} parent=71 // pred_fallthru
        _
    $region72: #{elan_block_fpn.11} parent=5 // pred_fallthru
      _
    %p3038 = scmp.le.s32.totalorder 2, %s19
    // Predicated region
    $region77: #{elan_block_fpn.11} parent=5 // pred_check
      %p3039 = pneg %p3038
    $region78: #{elan_block_fpn.11} parent=5 // pred_check_branch
      %3041 = sbr.rel (%p3039) target = $region80
    $region79: #{elan_block_fpn.11} parent=5 // pred_region
      %s3042 = ssub.s32 %s19, 2
      // Predicated region
      $region81: #{elan_block_fpn.11} parent=79 // pred_check
        %p3043 = pneg %p351
      $region82: #{elan_block_fpn.11} parent=79 // pred_check_branch
        %3045 = sbr.rel (%p3043) target = $region84
      $region83: #{elan_block_fpn.11} parent=79 // pred_region
        %s3046 = smul.u32 32, %s25
        %p3047 = scmp.lt.s32.totalorder %s3046, 63
        %s3048 = scalar_select %p3047, %s3046, 63
        %s3049 = smul.addr %s3048, 4
        %s3050 = scalar_lea.vmem %s13, %s3049
      $region84: #{elan_block_fpn.11} parent=79 // pred_fallthru
        _
    $region80: #{elan_block_fpn.11} parent=5 // pred_fallthru
      _
  $region6: #{elan_block_fpn.11} parent=0 // loop_footer
    %s23 = sadd.s32 1, %s19
  $region7: #{elan_block_fpn.11} parent=0 // loop_footer_branch
    %18 = sbr.rel target = $region3
  $region8: #{elan_block_fpn.11} parent=0 // loop_exit
    _

// kernel: elan_block_fpn.7
$region0: #{elan_block_fpn.7}
  #allocation0 [shape = 'u32[]', space=smem, size = 0x4, offset = 0x4, fixed_abs, tag = 'smem constant byte address 0x4 - core index']
  #allocation1 [shape = 'u32[144,128]{1,0:T(1,128)}', space=vmem, size = 0x12000, scoped, tag = 'internal scratch']
  #allocation2 [shape = 'bf16[10,18,4]{2,1,0:T(8,128)(2,1)}', space=vmem, size = 0xf000, scoped, tag = 'scratch operand']
  %s0 = inlined_call_operand.vmem [shape: bf16[2,16,16,4], index: 0, kind: input, shape index: {}, may-alias: {0,1,2}]
  %s1 = inlined_call_operand.vmem [shape: bf16[2,16,16,4], index: 1, kind: input, shape index: {}, may-alias: {0,1,2}]
  %s2 = inlined_call_operand.vmem [shape: bf16[2,16,16,4], index: 2, kind: input, shape index: {}, may-alias: {0,1,2}]
  %s3 = inlined_call_operand.vmem [shape: bf16[9,4,2], index: 3, kind: input, shape index: {}]
  %s4 = inlined_call_operand.vmem [shape: f32[1,2], index: 4, kind: input, shape index: {}]
  %s5 = inlined_call_operand.vmem [shape: bf16[2,16,16,2], index: 5, kind: output, shape index: {}]
  %s6 = sld [smem:[#allocation0]]
  $region69: #{elan_block_fpn.7} parent=0
    _
  %s8 = ssub.s32 1, %s6
  %s9 = scalar_select 0, %s8, %s6
  loop: start=0, step=1, limit=6
  $region2: #{elan_block_fpn.7} parent=0 // loop_pre_header
    _
  $region3: #{elan_block_fpn.7} parent=0 // loop_header
    %s11 = sphi 0, %s15
    %p12 = scmp.ge.s32.totalorder %s11, 6
    %s18 = sphi 0, %s30
    %s19 = sphi 0, %s26
    %s20 = sphi 0, %s18
    %s21 = sphi 0, %s19
    %s22 = sphi 0, %s20
    %s23 = sphi 0, %s21
    %s35 = sphi 0, %s37
    %s38 = sphi 0, %s35
    %s39 = sphi 0, %s38
    %s55 = sphi 0, %s39
    %s71 = sphi 0, %s73
    %s74 = sphi 0, %s71
    %s75 = sphi 0, %s74
    %s91 = sphi 0, %s75
    %s107 = sphi 0, %s109
    %s110 = sphi 0, %s107
    %s111 = sphi 0, %s110
    %s127 = sphi 0, %s111
    %s131 = sphi 0, %s131
    %s133 = sphi 0, %s131
    %s134 = sphi 0, %s133
    %s148 = sphi 0, %s134
    %s152 = sphi 0, %s152
    %s154 = sphi 0, %s152
    %s155 = sphi 0, %s154
    %s169 = sphi 0, %s155
    %s177 = sphi 0, %s179
    %s180 = sphi 0, %s177
    %s181 = sphi 0, %s180
    %s197 = sphi 0, %s181
  $region4: #{elan_block_fpn.7} parent=0 // loop_header_branch
    %14 = sbr.rel (%p12) target = $region8
  $region5: #{elan_block_fpn.7} parent=0 // loop_body
    %s16 = ssub.s32 %s11, 1
    %s17 = ssub.s32 %s11, 2
    %s24 = sadd.s32 1, %s19
    %p25 = scmp.ge.s32.totalorder %s24, 2
    %s26 = scalar_select %p25, 0, %s24
    %s27 = sadd.s32 1, %s18
    %s28 = scalar_select %p25, %s27, %s18
    %p29 = scmp.ge.s32.totalorder %s28, 2
    %s30 = scalar_select %p29, 0, %s28
    %s31 = ssub.s32 %s18, %s30
    %s32 = ssub.s32 %s19, %s26
    %s33 = sor.u32 %s31, %s32
    %p34 = scmp.eq.s32.totalorder %s33, 0
    %s36 = sadd.s32 %s35, 1
    %s37 = scalar_select %p34, %s35, %s36
    %p40 = pneg %p34
    %p41 = scmp.eq.s32.totalorder %s11, 3
    %p42 = por %p40, %p41
    %p43 = scmp.ne.s32.totalorder %s35, %s38
    %p44 = scmp.eq.s32.totalorder %s11, 0
    %p45 = por %p43, %p44
    %p46 = scmp.ne.s32.totalorder %s35, %s38
    %p47 = scmp.eq.s32.totalorder %s16, 3
    %p48 = por %p46, %p47
    %p49 = scmp.ne.s32.totalorder %s38, %s39
    %p50 = scmp.eq.s32.totalorder %s16, 0
    %p51 = por %p49, %p50
    %p52 = scmp.ne.s32.totalorder %s38, %s39
    %p53 = scmp.eq.s32.totalorder %s17, 3
    %p54 = por %p52, %p53
    %p56 = scmp.ne.s32.totalorder %s39, %s55
    %p57 = scmp.eq.s32.totalorder %s17, 0
    %p58 = por %p56, %p57
    %s59 = smul.u32 %s19, 8
    %s60 = ssub.s32 %s59, 1
    %p61 = scmp.gt.s32.totalorder %s60, 0
    %s62 = scalar_select %p61, %s60, 0
    %s63 = smul.u32 %s26, 8
    %s64 = ssub.s32 %s63, 1
    %p65 = scmp.gt.s32.totalorder %s64, 0
    %s66 = scalar_select %p65, %s64, 0
    %s67 = ssub.s32 %s18, %s30
    %s68 = ssub.s32 %s62, %s66
    %s69 = sor.u32 %s67, %s68
    %p70 = scmp.eq.s32.totalorder %s69, 0
    %s72 = sadd.s32 %s71, 1
    %s73 = scalar_select %p70, %s71, %s72
    %p76 = pneg %p70
    %p77 = scmp.eq.s32.totalorder %s11, 3
    %p78 = por %p76, %p77
    %p79 = scmp.ne.s32.totalorder %s71, %s74
    %p80 = scmp.eq.s32.totalorder %s11, 0
    %p81 = por %p79, %p80
    %p82 = scmp.ne.s32.totalorder %s71, %s74
    %p83 = scmp.eq.s32.totalorder %s16, 3
    %p84 = por %p82, %p83
    %p85 = scmp.ne.s32.totalorder %s74, %s75
    %p86 = scmp.eq.s32.totalorder %s16, 0
    %p87 = por %p85, %p86
    %p88 = scmp.ne.s32.totalorder %s74, %s75
    %p89 = scmp.eq.s32.totalorder %s17, 3
    %p90 = por %p88, %p89
    %p92 = scmp.ne.s32.totalorder %s75, %s91
    %p93 = scmp.eq.s32.totalorder %s17, 0
    %p94 = por %p92, %p93
    %s95 = sadd.s32 %s19, 1
    %s96 = smul.u32 %s95, 8
    %p97 = scmp.lt.s32.totalorder %s96, 15
    %s98 = scalar_select %p97, %s96, 15
    %s99 = sadd.s32 %s26, 1
    %s100 = smul.u32 %s99, 8
    %p101 = scmp.lt.s32.totalorder %s100, 15
    %s102 = scalar_select %p101, %s100, 15
    %s103 = ssub.s32 %s18, %s30
    %s104 = ssub.s32 %s98, %s102
    %s105 = sor.u32 %s103, %s104
    %p106 = scmp.eq.s32.totalorder %s105, 0
    %s108 = sadd.s32 %s107, 1
    %s109 = scalar_select %p106, %s107, %s108
    %p112 = pneg %p106
    %p113 = scmp.eq.s32.totalorder %s11, 3
    %p114 = por %p112, %p113
    %p115 = scmp.ne.s32.totalorder %s107, %s110
    %p116 = scmp.eq.s32.totalorder %s11, 0
    %p117 = por %p115, %p116
    %p118 = scmp.ne.s32.totalorder %s107, %s110
    %p119 = scmp.eq.s32.totalorder %s16, 3
    %p120 = por %p118, %p119
    %p121 = scmp.ne.s32.totalorder %s110, %s111
    %p122 = scmp.eq.s32.totalorder %s16, 0
    %p123 = por %p121, %p122
    %p124 = scmp.ne.s32.totalorder %s110, %s111
    %p125 = scmp.eq.s32.totalorder %s17, 3
    %p126 = por %p124, %p125
    %p128 = scmp.ne.s32.totalorder %s111, %s127
    %p129 = scmp.eq.s32.totalorder %s17, 0
    %p130 = por %p128, %p129
    %s132 = sadd.s32 %s131, 1
    %p135 = scmp.eq.s32.totalorder %s11, 3
    %p136 = scmp.ne.s32.totalorder %s131, %s133
    %p137 = scmp.eq.s32.totalorder %s11, 0
    %p138 = por %p136, %p137
    %p139 = scmp.ne.s32.totalorder %s131, %s133
    %p140 = scmp.eq.s32.totalorder %s16, 3
    %p141 = por %p139, %p140
    %p142 = scmp.ne.s32.totalorder %s133, %s134
    %p143 = scmp.eq.s32.totalorder %s16, 0
    %p144 = por %p142, %p143
    %p145 = scmp.ne.s32.totalorder %s133, %s134
    %p146 = scmp.eq.s32.totalorder %s17, 3
    %p147 = por %p145, %p146
    %p149 = scmp.ne.s32.totalorder %s134, %s148
    %p150 = scmp.eq.s32.totalorder %s17, 0
    %p151 = por %p149, %p150
    %s153 = sadd.s32 %s152, 1
    %p156 = scmp.eq.s32.totalorder %s11, 3
    %p157 = scmp.ne.s32.totalorder %s152, %s154
    %p158 = scmp.eq.s32.totalorder %s11, 0
    %p159 = por %p157, %p158
    %p160 = scmp.ne.s32.totalorder %s152, %s154
    %p161 = scmp.eq.s32.totalorder %s16, 3
    %p162 = por %p160, %p161
    %p163 = scmp.ne.s32.totalorder %s154, %s155
    %p164 = scmp.eq.s32.totalorder %s16, 0
    %p165 = por %p163, %p164
    %p166 = scmp.ne.s32.totalorder %s154, %s155
    %p167 = scmp.eq.s32.totalorder %s17, 3
    %p168 = por %p166, %p167
    %p170 = scmp.ne.s32.totalorder %s155, %s169
    %p171 = scmp.eq.s32.totalorder %s17, 0
    %p172 = por %p170, %p171
    %s173 = ssub.s32 %s18, %s30
    %s174 = ssub.s32 %s19, %s26
    %s175 = sor.u32 %s173, %s174
    %p176 = scmp.eq.s32.totalorder %s175, 0
    %s178 = sadd.s32 %s177, 1
    %s179 = scalar_select %p176, %s177, %s178
    %p182 = pneg %p176
    %p183 = scmp.eq.s32.totalorder %s11, 3
    %p184 = por %p182, %p183
    %p185 = scmp.ne.s32.totalorder %s177, %s180
    %p186 = scmp.eq.s32.totalorder %s11, 0
    %p187 = por %p185, %p186
    %p188 = scmp.ne.s32.totalorder %s177, %s180
    %p189 = scmp.eq.s32.totalorder %s16, 3
    %p190 = por %p188, %p189
    %p191 = scmp.ne.s32.totalorder %s180, %s181
    %p192 = scmp.eq.s32.totalorder %s16, 0
    %p193 = por %p191, %p192
    %p194 = scmp.ne.s32.totalorder %s180, %s181
    %p195 = scmp.eq.s32.totalorder %s17, 3
    %p196 = por %p194, %p195
    %p198 = scmp.ne.s32.totalorder %s181, %s197
    %p199 = scmp.eq.s32.totalorder %s17, 0
    %p200 = por %p198, %p199
    %p201 = scmp.le.s32.totalorder 1, %s11
    %p202 = scmp.lt.s32.totalorder %s11, 5
    %p203 = pnand %p201, %p202
    %p204 = pneg %p203
    // Predicated region
    $region9: #{elan_block_fpn.7} parent=5 // pred_check
      _
    $region10: #{elan_block_fpn.7} parent=5 // pred_check_branch
      %206 = sbr.rel (%p203) target = $region12
    $region11: #{elan_block_fpn.7} parent=5 // pred_region
      %s207 = ssub.s32 %s11, 1
      // Predicated region
      $region13: #{elan_block_fpn.7} parent=11 // pred_check
        %p208 = pneg %p144
      $region14: #{elan_block_fpn.7} parent=11 // pred_check_branch
        %210 = sbr.rel (%p208) target = $region16
      $region15: #{elan_block_fpn.7} parent=11 // pred_region
        _
      $region16: #{elan_block_fpn.7} parent=11 // pred_fallthru
        _
      // Predicated region
      $region17: #{elan_block_fpn.7} parent=11 // pred_check
        %p211 = pneg %p165
      $region18: #{elan_block_fpn.7} parent=11 // pred_check_branch
        %213 = sbr.rel (%p211) target = $region20
      $region19: #{elan_block_fpn.7} parent=11 // pred_region
        _
      $region20: #{elan_block_fpn.7} parent=11 // pred_fallthru
        _
    $region12: #{elan_block_fpn.7} parent=5 // pred_fallthru
      _
    %p214 = scmp.lt.s32.totalorder %s11, 4
    // Predicated region
    $region21: #{elan_block_fpn.7} parent=5 // pred_check
      %p215 = pneg %p214
    $region22: #{elan_block_fpn.7} parent=5 // pred_check_branch
      %217 = sbr.rel (%p215) target = $region24
    $region23: #{elan_block_fpn.7} parent=5 // pred_region
      // Predicated region
      $region25: #{elan_block_fpn.7} parent=23 // pred_check
        %p218 = pneg %p45
      $region26: #{elan_block_fpn.7} parent=23 // pred_check_branch
        %220 = sbr.rel (%p218) target = $region28
      $region27: #{elan_block_fpn.7} parent=23 // pred_region
        %s221 = smul.u32 8, %s19
        %p222 = scmp.lt.s32.totalorder %s18, 1
        %s223 = scalar_select %p222, %s18, 1
        %p224 = scmp.lt.s32.totalorder %s221, 15
        %s225 = scalar_select %p224, %s221, 15
        %s226 = smul.addr %s225, 2
        %s227 = smul.addr %s223, 32
        %s228 = sadd.s32 %s226, %s227
        %s229 = smul.addr %s228, 4
        %s230 = scalar_lea.vmem %s0, %s229
        %s231 = smul.u32 8, %s19
      $region28: #{elan_block_fpn.7} parent=23 // pred_fallthru
        _
      // Predicated region
      $region29: #{elan_block_fpn.7} parent=23 // pred_check
        %p232 = pneg %p81
      $region30: #{elan_block_fpn.7} parent=23 // pred_check_branch
        %234 = sbr.rel (%p232) target = $region32
      $region31: #{elan_block_fpn.7} parent=23 // pred_region
        %s235 = smul.u32 %s19, 8
        %s236 = ssub.s32 %s235, 1
        %p237 = scmp.gt.s32.totalorder %s236, 0
        %s238 = scalar_select %p237, %s236, 0
        %p239 = scmp.lt.s32.totalorder %s18, 1
        %s240 = scalar_select %p239, %s18, 1
        %p241 = scmp.lt.s32.totalorder %s238, 15
        %s242 = scalar_select %p241, %s238, 15
        %s243 = smul.addr %s242, 2
        %s244 = smul.addr %s240, 32
        %s245 = sadd.s32 %s243, %s244
        %s246 = smul.addr %s245, 4
        %s247 = scalar_lea.vmem %s1, %s246
        %s248 = smul.u32 %s19, 8
        %s249 = ssub.s32 %s248, 1
        %p250 = scmp.gt.s32.totalorder %s249, 0
        %s251 = scalar_select %p250, %s249, 0
      $region32: #{elan_block_fpn.7} parent=23 // pred_fallthru
        _
      // Predicated region
      $region33: #{elan_block_fpn.7} parent=23 // pred_check
        %p252 = pneg %p117
      $region34: #{elan_block_fpn.7} parent=23 // pred_check_branch
        %254 = sbr.rel (%p252) target = $region36
      $region35: #{elan_block_fpn.7} parent=23 // pred_region
        %s255 = sadd.s32 %s19, 1
        %s256 = smul.u32 %s255, 8
        %p257 = scmp.lt.s32.totalorder %s256, 15
        %s258 = scalar_select %p257, %s256, 15
        %p259 = scmp.lt.s32.totalorder %s18, 1
        %s260 = scalar_select %p259, %s18, 1
        %p261 = scmp.lt.s32.totalorder %s258, 15
        %s262 = scalar_select %p261, %s258, 15
        %s263 = smul.addr %s262, 2
        %s264 = smul.addr %s260, 32
        %s265 = sadd.s32 %s263, %s264
        %s266 = smul.addr %s265, 4
        %s267 = scalar_lea.vmem %s2, %s266
        %s268 = sadd.s32 %s19, 1
        %s269 = smul.u32 %s268, 8
        %p270 = scmp.lt.s32.totalorder %s269, 15
        %s271 = scalar_select %p270, %s269, 15
      $region36: #{elan_block_fpn.7} parent=23 // pred_fallthru
        _
    $region24: #{elan_block_fpn.7} parent=5 // pred_fallthru
      _
    %p272 = scmp.le.s32.totalorder 1, %s11
    %p273 = scmp.lt.s32.totalorder %s11, 5
    %p274 = pnand %p272, %p273
    %p275 = pneg %p274
    // Predicated region
    $region37: #{elan_block_fpn.7} parent=5 // pred_check
      _
    $region38: #{elan_block_fpn.7} parent=5 // pred_check_branch
      %277 = sbr.rel (%p274) target = $region40
    $region39: #{elan_block_fpn.7} parent=5 // pred_region
      %s278 = ssub.s32 %s11, 1
      %s279 = smul.u32 8, %s21
      %p280 = scmp.lt.s32.totalorder %s20, 1
      %s281 = scalar_select %p280, %s20, 1
      %p282 = scmp.lt.s32.totalorder %s279, 15
      %s283 = scalar_select %p282, %s279, 15
      %s284 = smul.addr %s283, 2
      %s285 = smul.addr %s281, 32
      %s286 = sadd.s32 %s284, %s285
      %s287 = smul.addr %s286, 4
      %s288 = scalar_lea.vmem %s0, %s287
      %p289 = pneg %p51
      %p290 = pneg %p48
      %s291 = smul.u32 %s21, 8
      %s292 = ssub.s32 %s291, 1
      %p293 = scmp.gt.s32.totalorder %s292, 0
      %s294 = scalar_select %p293, %s292, 0
      %p295 = scmp.lt.s32.totalorder %s20, 1
      %s296 = scalar_select %p295, %s20, 1
      %p297 = scmp.lt.s32.totalorder %s294, 15
      %s298 = scalar_select %p297, %s294, 15
      %s299 = smul.addr %s298, 2
      %s300 = smul.addr %s296, 32
      %s301 = sadd.s32 %s299, %s300
      %s302 = smul.addr %s301, 4
      %s303 = scalar_lea.vmem %s1, %s302
      %p304 = pneg %p87
      %p305 = pneg %p84
      %s306 = sadd.s32 %s21, 1
      %s307 = smul.u32 %s306, 8
      %p308 = scmp.lt.s32.totalorder %s307, 15
      %s309 = scalar_select %p308, %s307, 15
      %p310 = scmp.lt.s32.totalorder %s20, 1
      %s311 = scalar_select %p310, %s20, 1
      %p312 = scmp.lt.s32.totalorder %s309, 15
      %s313 = scalar_select %p312, %s309, 15
      %s314 = smul.addr %s313, 2
      %s315 = smul.addr %s311, 32
      %s316 = sadd.s32 %s314, %s315
      %s317 = smul.addr %s316, 4
      %s318 = scalar_lea.vmem %s2, %s317
      %p319 = pneg %p123
      %p320 = pneg %p120
      %p321 = pneg %p144
      %p322 = pneg %p141
      %p323 = pneg %p165
      %p324 = pneg %p162
      %p325 = pneg %p193
      %p326 = pneg %p190
      %s327 = smul.u32 8, %s21
      %p328 = scmp.lt.s32.totalorder %s20, 1
      %s329 = scalar_select %p328, %s20, 1
      %p330 = scmp.lt.s32.totalorder %s327, 15
      %s331 = scalar_select %p330, %s327, 15
      %s332 = smul.addr %s331, 2
      %s333 = smul.addr %s329, 32
      %s334 = sadd.s32 %s332, %s333
      %s335 = smul.addr %s334, 4
      %s336 = scalar_lea.vmem %s5, %s335
      %s337 = smul.u32 8, %s21
      %p338 = scmp.lt.s32.totalorder %s20, 1
      %s339 = scalar_select %p338, %s20, 1
      %p340 = scmp.lt.s32.totalorder %s337, 15
      %s341 = scalar_select %p340, %s337, 15
      %s342 = smul.addr %s341, 2
      %s343 = smul.addr %s339, 32
      %s344 = sadd.s32 %s342, %s343
      %s345 = smul.addr %s344, 4
      %s346 = scalar_lea.vmem %s0, %s345
      %s347 = smul.u32 8, %s21
      %s348 = smul.u32 %s21, 8
      %s349 = ssub.s32 %s348, 1
      %p350 = scmp.gt.s32.totalorder %s349, 0
      %s351 = scalar_select %p350, %s349, 0
      %p352 = scmp.lt.s32.totalorder %s20, 1
      %s353 = scalar_select %p352, %s20, 1
      %p354 = scmp.lt.s32.totalorder %s351, 15
      %s355 = scalar_select %p354, %s351, 15
      %s356 = smul.addr %s355, 2
      %s357 = smul.addr %s353, 32
      %s358 = sadd.s32 %s356, %s357
      %s359 = smul.addr %s358, 4
      %s360 = scalar_lea.vmem %s1, %s359
      %s361 = smul.u32 %s21, 8
      %s362 = ssub.s32 %s361, 1
      %p363 = scmp.gt.s32.totalorder %s362, 0
      %s364 = scalar_select %p363, %s362, 0
      %s365 = sadd.s32 %s21, 1
      %s366 = smul.u32 %s365, 8
      %p367 = scmp.lt.s32.totalorder %s366, 15
      %s368 = scalar_select %p367, %s366, 15
      %p369 = scmp.lt.s32.totalorder %s20, 1
      %s370 = scalar_select %p369, %s20, 1
      %p371 = scmp.lt.s32.totalorder %s368, 15
      %s372 = scalar_select %p371, %s368, 15
      %s373 = smul.addr %s372, 2
      %s374 = smul.addr %s370, 32
      %s375 = sadd.s32 %s373, %s374
      %s376 = smul.addr %s375, 4
      %s377 = scalar_lea.vmem %s2, %s376
      %s378 = sadd.s32 %s21, 1
      %s379 = smul.u32 %s378, 8
      %p380 = scmp.lt.s32.totalorder %s379, 15
      %s381 = scalar_select %p380, %s379, 15
      %s382 = smul.u32 8, %s21
      %p383 = scmp.lt.s32.totalorder %s20, 1
      %s384 = scalar_select %p383, %s20, 1
      %p385 = scmp.lt.s32.totalorder %s382, 15
      %s386 = scalar_select %p385, %s382, 15
      %s387 = smul.addr %s386, 2
      %s388 = smul.addr %s384, 32
      %s389 = sadd.s32 %s387, %s388
      %s390 = smul.addr %s389, 4
      %s391 = scalar_lea.vmem %s5, %s390
      %s392 = smul.u32 8, %s21
      %vm394 = vcmask 24576
      %vm395 = vsmask.f32 256
      %vm396 = vmand %vm394, %vm395
      %v397 = vld [vmem:[#allocation2] sm:$0x1]
      %v398 = vsel %vm396, 0, %v397
      %399 = vst [vmem:[#allocation2] sm:$0x1] %v398
      %v400 = vld [vmem:[#allocation2 + $0xc] sm:$0x1]
      %v401 = vsel %vm396, 0, %v400
      %402 = vst [vmem:[#allocation2 + $0xc] sm:$0x1] %v401
      %v403 = vld [vmem:[#allocation2 + $0x18] sm:$0x1]
      %v404 = vsel %vm396, 0, %v403
      %405 = vst [vmem:[#allocation2 + $0x18] sm:$0x1] %v404
      %v406 = vld [vmem:[#allocation2 + $0x24] sm:$0x1]
      %v407 = vsel %vm396, 0, %v406
      %408 = vst [vmem:[#allocation2 + $0x24] sm:$0x1] %v407
      %v409 = vld [vmem:[#allocation2 + $0x30] sm:$0x1]
      %v410 = vsel %vm396, 0, %v409
      %411 = vst [vmem:[#allocation2 + $0x30] sm:$0x1] %v410
      %v412 = vld [vmem:[#allocation2 + $0x3c] sm:$0x1]
      %v413 = vsel %vm396, 0, %v412
      %414 = vst [vmem:[#allocation2 + $0x3c] sm:$0x1] %v413
      %v415 = vld [vmem:[#allocation2 + $0x48] sm:$0x1]
      %v416 = vsel %vm396, 0, %v415
      %417 = vst [vmem:[#allocation2 + $0x48] sm:$0x1] %v416
      %v418 = vld [vmem:[#allocation2 + $0x54] sm:$0x1]
      %v419 = vsel %vm396, 0, %v418
      %420 = vst [vmem:[#allocation2 + $0x54] sm:$0x1] %v419
      %v421 = vld [vmem:[#allocation2 + $0x60] sm:$0x1]
      %v422 = vsel %vm396, 0, %v421
      %423 = vst [vmem:[#allocation2 + $0x60] sm:$0x1] %v422
      %v424 = vld [vmem:[#allocation2 + $0x6c] sm:$0x1]
      %v425 = vsel %vm396, 0, %v424
      %426 = vst [vmem:[#allocation2 + $0x6c] sm:$0x1] %v425
      %vm427 = vsmask.f32 7938
      %vm428 = vmand %vm394, %vm427
      %v429 = vld [vmem:[#allocation2 + $0x8] sm:$0x1]
      %v430 = vsel %vm428, 0, %v429
      %431 = vst [vmem:[#allocation2 + $0x8] sm:$0x1] %v430
      %v432 = vld [vmem:[#allocation2 + $0x14] sm:$0x1]
      %v433 = vsel %vm428, 0, %v432
      %434 = vst [vmem:[#allocation2 + $0x14] sm:$0x1] %v433
      %v435 = vld [vmem:[#allocation2 + $0x20] sm:$0x1]
      %v436 = vsel %vm428, 0, %v435
      %437 = vst [vmem:[#allocation2 + $0x20] sm:$0x1] %v436
      %v438 = vld [vmem:[#allocation2 + $0x2c] sm:$0x1]
      %v439 = vsel %vm428, 0, %v438
      %440 = vst [vmem:[#allocation2 + $0x2c] sm:$0x1] %v439
      %v441 = vld [vmem:[#allocation2 + $0x38] sm:$0x1]
      %v442 = vsel %vm428, 0, %v441
      %443 = vst [vmem:[#allocation2 + $0x38] sm:$0x1] %v442
      %v444 = vld [vmem:[#allocation2 + $0x44] sm:$0x1]
      %v445 = vsel %vm428, 0, %v444
      %446 = vst [vmem:[#allocation2 + $0x44] sm:$0x1] %v445
      %v447 = vld [vmem:[#allocation2 + $0x50] sm:$0x1]
      %v448 = vsel %vm428, 0, %v447
      %449 = vst [vmem:[#allocation2 + $0x50] sm:$0x1] %v448
      %v450 = vld [vmem:[#allocation2 + $0x5c] sm:$0x1]
      %v451 = vsel %vm428, 0, %v450
      %452 = vst [vmem:[#allocation2 + $0x5c] sm:$0x1] %v451
      %v453 = vld [vmem:[#allocation2 + $0x68] sm:$0x1]
      %v454 = vsel %vm428, 0, %v453
      %455 = vst [vmem:[#allocation2 + $0x68] sm:$0x1] %v454
      %v456 = vld [vmem:[#allocation2 + $0x74] sm:$0x1]
      %v457 = vsel %vm428, 0, %v456
      %458 = vst [vmem:[#allocation2 + $0x74] sm:$0x1] %v457
      %v459 = vld [vmem:[%s346] sm:$0xf]
      %v460 = vld [vmem:[%s346 + $0x4] sm:$0xf]
      %v461 = vld [vmem:[%s346 + $0x8] sm:$0xf]
      %v462 = vld [vmem:[%s346 + $0xc] sm:$0xf]
      %v463 = vld [vmem:[%s346 + $0x10] sm:$0xf]
      %v464 = vld [vmem:[%s346 + $0x14] sm:$0xf]
      %v465 = vld [vmem:[%s346 + $0x18] sm:$0xf]
      %v466 = vld [vmem:[%s346 + $0x1c] sm:$0xf]
      %v467 = vld [vmem:[%s346 + $0x20] sm:$0xf]
      %v468 = vld [vmem:[%s346 + $0x24] sm:$0xf]
      %v469 = vld [vmem:[%s346 + $0x28] sm:$0xf]
      %v470 = vld [vmem:[%s346 + $0x2c] sm:$0xf]
      %v471 = vld [vmem:[%s346 + $0x30] sm:$0xf]
      %v472 = vld [vmem:[%s346 + $0x34] sm:$0xf]
      %v473 = vld [vmem:[%s346 + $0x38] sm:$0xf]
      %v474 = vld [vmem:[%s346 + $0x3c] sm:$0xf]
      %vm475 = vsmask.f32 4368
      %vm476 = vmor %vm395, %vm475
      %v478 = vshrl.u32 %v459, 16
      %v480 = vrot.slane %v478, 7
      %v481 = vshll.u32 %v459, 16
      %v483 = vor.u32 %v480, %v481
      %v484 = vrot.slane %v480, 4
      %v486 = vshrl.u32 %v460, 16
      %v488 = vrot.slane %v486, 7
      %v489 = vshll.u32 %v460, 16
      %v491 = vor.u32 %v488, %v489
      %v492 = vsel %vm476, %v484, %v491
      %v493 = vrot.slane %v488, 4
      %v495 = vshrl.u32 %v461, 16
      %v497 = vrot.slane %v495, 7
      %v498 = vshll.u32 %v461, 16
      %v500 = vor.u32 %v497, %v498
      %v501 = vrot.slane %v497, 4
      %v503 = vshrl.u32 %v462, 16
      %v505 = vrot.slane %v503, 7
      %v506 = vshll.u32 %v462, 16
      %v508 = vor.u32 %v505, %v506
      %v509 = vsel %vm476, %v501, %v508
      %v510 = vrot.slane %v505, 4
      %v512 = vshrl.u32 %v463, 16
      %v514 = vrot.slane %v512, 7
      %v515 = vshll.u32 %v463, 16
      %v517 = vor.u32 %v514, %v515
      %v518 = vrot.slane %v514, 4
      %v520 = vshrl.u32 %v464, 16
      %v522 = vrot.slane %v520, 7
      %v523 = vshll.u32 %v464, 16
      %v525 = vor.u32 %v522, %v523
      %v526 = vsel %vm476, %v518, %v525
      %v527 = vrot.slane %v522, 4
      %v529 = vshrl.u32 %v465, 16
      %v531 = vrot.slane %v529, 7
      %v532 = vshll.u32 %v465, 16
      %v534 = vor.u32 %v531, %v532
      %v535 = vrot.slane %v531, 4
      %v537 = vshrl.u32 %v466, 16
      %v539 = vrot.slane %v537, 7
      %v540 = vshll.u32 %v466, 16
      %v542 = vor.u32 %v539, %v540
      %v543 = vsel %vm476, %v535, %v542
      %v544 = vrot.slane %v539, 4
      %v546 = vshrl.u32 %v467, 16
      %v548 = vrot.slane %v546, 7
      %v549 = vshll.u32 %v467, 16
      %v551 = vor.u32 %v548, %v549
      %v552 = vrot.slane %v548, 4
      %v554 = vshrl.u32 %v468, 16
      %v556 = vrot.slane %v554, 7
      %v557 = vshll.u32 %v468, 16
      %v559 = vor.u32 %v556, %v557
      %v560 = vsel %vm476, %v552, %v559
      %v561 = vrot.slane %v556, 4
      %v563 = vshrl.u32 %v469, 16
      %v565 = vrot.slane %v563, 7
      %v566 = vshll.u32 %v469, 16
      %v568 = vor.u32 %v565, %v566
      %v569 = vrot.slane %v565, 4
      %v571 = vshrl.u32 %v470, 16
      %v573 = vrot.slane %v571, 7
      %v574 = vshll.u32 %v470, 16
      %v576 = vor.u32 %v573, %v574
      %v577 = vsel %vm476, %v569, %v576
      %v578 = vrot.slane %v573, 4
      %v580 = vshrl.u32 %v471, 16
      %v582 = vrot.slane %v580, 7
      %v583 = vshll.u32 %v471, 16
      %v585 = vor.u32 %v582, %v583
      %v586 = vrot.slane %v582, 4
      %v588 = vshrl.u32 %v472, 16
      %v590 = vrot.slane %v588, 7
      %v591 = vshll.u32 %v472, 16
      %v593 = vor.u32 %v590, %v591
      %v594 = vsel %vm476, %v586, %v593
      %v595 = vrot.slane %v590, 4
      %v597 = vshrl.u32 %v473, 16
      %v599 = vrot.slane %v597, 7
      %v600 = vshll.u32 %v473, 16
      %v602 = vor.u32 %v599, %v600
      %v603 = vrot.slane %v599, 4
      %v605 = vshrl.u32 %v474, 16
      %v607 = vrot.slane %v605, 7
      %v608 = vshll.u32 %v474, 16
      %v610 = vor.u32 %v607, %v608
      %v611 = vsel %vm476, %v603, %v610
      %v612 = vrot.slane %v607, 4
      %s637 = scalar_lea.vmem [#allocation2], 12
      %vm638 = vcmask 27648
      %vm639 = vmand %vm638, %vm427
      %v640 = vld [vmem:[%s637] sm:$0xf]
      %v641 = vsel %vm639, %v483, %v640
      %642 = vst [vmem:[%s637] sm:$0xf] %v641
      %vm643 = vcmask 27648
      %644 = vst.msk [vmem:[%s637 + $0x4] sm:$0xf] %vm643, %v492
      %v645 = vld [vmem:[%s637 + $0x8] sm:$0x1]
      %v646 = vsel %vm396, %v493, %v645
      %647 = vst [vmem:[%s637 + $0x8] sm:$0x1] %v646
      %v648 = vld [vmem:[%s637 + $0xc] sm:$0xf]
      %v649 = vsel %vm639, %v500, %v648
      %650 = vst [vmem:[%s637 + $0xc] sm:$0xf] %v649
      %651 = vst.msk [vmem:[%s637 + $0x10] sm:$0xf] %vm643, %v509
      %v652 = vld [vmem:[%s637 + $0x14] sm:$0x1]
      %v653 = vsel %vm396, %v510, %v652
      %654 = vst [vmem:[%s637 + $0x14] sm:$0x1] %v653
      %v655 = vld [vmem:[%s637 + $0x18] sm:$0xf]
      %v656 = vsel %vm639, %v517, %v655
      %657 = vst [vmem:[%s637 + $0x18] sm:$0xf] %v656
      %658 = vst.msk [vmem:[%s637 + $0x1c] sm:$0xf] %vm643, %v526
      %v659 = vld [vmem:[%s637 + $0x20] sm:$0x1]
      %v660 = vsel %vm396, %v527, %v659
      %661 = vst [vmem:[%s637 + $0x20] sm:$0x1] %v660
      %v662 = vld [vmem:[%s637 + $0x24] sm:$0xf]
      %v663 = vsel %vm639, %v534, %v662
      %664 = vst [vmem:[%s637 + $0x24] sm:$0xf] %v663
      %665 = vst.msk [vmem:[%s637 + $0x28] sm:$0xf] %vm643, %v543
      %v666 = vld [vmem:[%s637 + $0x2c] sm:$0x1]
      %v667 = vsel %vm396, %v544, %v666
      %668 = vst [vmem:[%s637 + $0x2c] sm:$0x1] %v667
      %v669 = vld [vmem:[%s637 + $0x30] sm:$0xf]
      %v670 = vsel %vm639, %v551, %v669
      %671 = vst [vmem:[%s637 + $0x30] sm:$0xf] %v670
      %672 = vst.msk [vmem:[%s637 + $0x34] sm:$0xf] %vm643, %v560
      %v673 = vld [vmem:[%s637 + $0x38] sm:$0x1]
      %v674 = vsel %vm396, %v561, %v673
      %675 = vst [vmem:[%s637 + $0x38] sm:$0x1] %v674
      %v676 = vld [vmem:[%s637 + $0x3c] sm:$0xf]
      %v677 = vsel %vm639, %v568, %v676
      %678 = vst [vmem:[%s637 + $0x3c] sm:$0xf] %v677
      %679 = vst.msk [vmem:[%s637 + $0x40] sm:$0xf] %vm643, %v577
      %v680 = vld [vmem:[%s637 + $0x44] sm:$0x1]
      %v681 = vsel %vm396, %v578, %v680
      %682 = vst [vmem:[%s637 + $0x44] sm:$0x1] %v681
      %v683 = vld [vmem:[%s637 + $0x48] sm:$0xf]
      %v684 = vsel %vm639, %v585, %v683
      %685 = vst [vmem:[%s637 + $0x48] sm:$0xf] %v684
      %686 = vst.msk [vmem:[%s637 + $0x4c] sm:$0xf] %vm643, %v594
      %v687 = vld [vmem:[%s637 + $0x50] sm:$0x1]
      %v688 = vsel %vm396, %v595, %v687
      %689 = vst [vmem:[%s637 + $0x50] sm:$0x1] %v688
      %v690 = vld [vmem:[%s637 + $0x54] sm:$0xf]
      %v691 = vsel %vm639, %v602, %v690
      %692 = vst [vmem:[%s637 + $0x54] sm:$0xf] %v691
      %693 = vst.msk [vmem:[%s637 + $0x58] sm:$0xf] %vm643, %v611
      %v694 = vld [vmem:[%s637 + $0x5c] sm:$0x1]
      %v695 = vsel %vm396, %v612, %v694
      %696 = vst [vmem:[%s637 + $0x5c] sm:$0x1] %v695
      %p697 = scmp.eq.s32.totalorder %s21, 0
      // Predicated region
      $region41: #{elan_block_fpn.7} parent=39 // pred_check
        %p698 = pneg %p697
      $region42: #{elan_block_fpn.7} parent=39 // pred_check_branch
        %700 = sbr.rel (%p698) target = $region44
      $region43: #{elan_block_fpn.7} parent=39 // pred_region
        %v701 = vld [vmem:[#allocation2] sm:$0xf]
        %v702 = vsel %vm639, 0, %v701
        %703 = vst [vmem:[#allocation2] sm:$0xf] %v702
        %704 = vst.msk [vmem:[#allocation2 + $0x4] sm:$0xf] %vm643, 0
        %v705 = vld [vmem:[#allocation2 + $0x8] sm:$0x1]
        %v706 = vsel %vm396, 0, %v705
        %707 = vst [vmem:[#allocation2 + $0x8] sm:$0x1] %v706
      $region44: #{elan_block_fpn.7} parent=39 // pred_fallthru
        _
      %p708 = scmp.gt.s32.totalorder %s21, 0
      // Predicated region
      $region45: #{elan_block_fpn.7} parent=39 // pred_check
        %p709 = pneg %p708
      $region46: #{elan_block_fpn.7} parent=39 // pred_check_branch
        %711 = sbr.rel (%p709) target = $region48
      $region47: #{elan_block_fpn.7} parent=39 // pred_region
        %v712 = vld [vmem:[%s360] sm:$0xf]
        %v713 = vld [vmem:[%s360 + $0x4] sm:$0xf]
        %v715 = vshrl.u32 %v712, 16
        %v717 = vrot.slane %v715, 7
        %v718 = vshll.u32 %v712, 16
        %v720 = vor.u32 %v717, %v718
        %v721 = vrot.slane %v717, 4
        %v723 = vshrl.u32 %v713, 16
        %v725 = vrot.slane %v723, 7
        %v726 = vshll.u32 %v713, 16
        %v728 = vor.u32 %v725, %v726
        %v729 = vsel %vm476, %v721, %v728
        %v730 = vrot.slane %v725, 4
        %v734 = vld [vmem:[#allocation2] sm:$0xf]
        %v735 = vsel %vm639, %v720, %v734
        %736 = vst [vmem:[#allocation2] sm:$0xf] %v735
        %737 = vst.msk [vmem:[#allocation2 + $0x4] sm:$0xf] %vm643, %v729
        %v738 = vld [vmem:[#allocation2 + $0x8] sm:$0x1]
        %v739 = vsel %vm396, %v730, %v738
        %740 = vst [vmem:[#allocation2 + $0x8] sm:$0x1] %v739
      $region48: #{elan_block_fpn.7} parent=39 // pred_fallthru
        _
      %p741 = scmp.eq.s32.totalorder %s21, 1
      // Predicated region
      $region49: #{elan_block_fpn.7} parent=39 // pred_check
        %p742 = pneg %p741
      $region50: #{elan_block_fpn.7} parent=39 // pred_check_branch
        %744 = sbr.rel (%p742) target = $region52
      $region51: #{elan_block_fpn.7} parent=39 // pred_region
        %s745 = scalar_lea.vmem [#allocation2], 108
        %v746 = vld [vmem:[%s745] sm:$0xf]
        %v747 = vsel %vm639, 0, %v746
        %748 = vst [vmem:[%s745] sm:$0xf] %v747
        %749 = vst.msk [vmem:[%s745 + $0x4] sm:$0xf] %vm643, 0
        %v750 = vld [vmem:[%s745 + $0x8] sm:$0x1]
        %v751 = vsel %vm396, 0, %v750
        %752 = vst [vmem:[%s745 + $0x8] sm:$0x1] %v751
      $region52: #{elan_block_fpn.7} parent=39 // pred_fallthru
        _
      %p753 = scmp.lt.s32.totalorder %s21, 1
      // Predicated region
      $region53: #{elan_block_fpn.7} parent=39 // pred_check
        %p754 = pneg %p753
      $region54: #{elan_block_fpn.7} parent=39 // pred_check_branch
        %756 = sbr.rel (%p754) target = $region56
      $region55: #{elan_block_fpn.7} parent=39 // pred_region
        %v757 = vld [vmem:[%s377] sm:$0xf]
        %v758 = vld [vmem:[%s377 + $0x4] sm:$0xf]
        %v760 = vshrl.u32 %v757, 16
        %v762 = vrot.slane %v760, 7
        %v763 = vshll.u32 %v757, 16
        %v765 = vor.u32 %v762, %v763
        %v766 = vrot.slane %v762, 4
        %v768 = vshrl.u32 %v758, 16
        %v770 = vrot.slane %v768, 7
        %v771 = vshll.u32 %v758, 16
        %v773 = vor.u32 %v770, %v771
        %v774 = vsel %vm476, %v766, %v773
        %v775 = vrot.slane %v770, 4
        %s779 = scalar_lea.vmem [#allocation2], 108
        %v780 = vld [vmem:[%s779] sm:$0xf]
        %v781 = vsel %vm639, %v765, %v780
        %782 = vst [vmem:[%s779] sm:$0xf] %v781
        %783 = vst.msk [vmem:[%s779 + $0x4] sm:$0xf] %vm643, %v774
        %v784 = vld [vmem:[%s779 + $0x8] sm:$0x1]
        %v785 = vsel %vm396, %v775, %v784
        %786 = vst [vmem:[%s779 + $0x8] sm:$0x1] %v785
      $region56: #{elan_block_fpn.7} parent=39 // pred_fallthru
        _
      %v787 = vld [vmem:[#allocation2] sm:$0xf]
      %v788 = vld [vmem:[#allocation2 + $0x4] sm:$0xf]
      %v789 = vld [vmem:[#allocation2 + $0xc] sm:$0xf]
      %v790 = vld [vmem:[#allocation2 + $0x10] sm:$0xf]
      %v791 = vld [vmem:[#allocation2 + $0x18] sm:$0xf]
      %v792 = vld [vmem:[#allocation2 + $0x1c] sm:$0xf]
      %v793 = vld [vmem:[#allocation2 + $0x24] sm:$0xf]
      %v794 = vld [vmem:[#allocation2 + $0x28] sm:$0xf]
      %v795 = vld [vmem:[#allocation2 + $0x30] sm:$0xf]
      %v796 = vld [vmem:[#allocation2 + $0x34] sm:$0xf]
      %v797 = vld [vmem:[#allocation2 + $0x3c] sm:$0xf]
      %v798 = vld [vmem:[#allocation2 + $0x40] sm:$0xf]
      %v799 = vld [vmem:[#allocation2 + $0x48] sm:$0xf]
      %v800 = vld [vmem:[#allocation2 + $0x4c] sm:$0xf]
      %v801 = vld [vmem:[#allocation2 + $0x54] sm:$0xf]
      %v802 = vld [vmem:[#allocation2 + $0x58] sm:$0xf]
      %v803 = vld [vmem:[%s3] sm:$0x3]
      %v804 = vld [vmem:[#allocation2 + $0x8] sm:$0x1]
      %v805 = vld [vmem:[#allocation2 + $0x14] sm:$0x1]
      %v806 = vld [vmem:[#allocation2 + $0x20] sm:$0x1]
      %v807 = vld [vmem:[#allocation2 + $0x2c] sm:$0x1]
      %v808 = vld [vmem:[#allocation2 + $0x38] sm:$0x1]
      %v809 = vld [vmem:[#allocation2 + $0x44] sm:$0x1]
      %v810 = vld [vmem:[#allocation2 + $0x50] sm:$0x1]
      %v811 = vld [vmem:[#allocation2 + $0x5c] sm:$0x1]
      %vm812 = vsmask.f32 3328
      %vm813 = vsmask.f32 7440
      %vm814 = vmor %vm812, %vm813
      %v816 = vshrl.u32 %v787, 16
      %v818 = vrot.slane %v816, 4
      %v819 = vshll.u32 %v787, 16
      %v821 = vrot.slane %v819, 5
      %v822 = vor.u32 %v818, %v821
      %v823 = vrot.slane %v822, 4
      %v825 = vshll.u32 %v788, 16
      %v827 = vrot.slane %v825, 5
      %v828 = vsel %vm814, %v823, %v827
      %v829 = vshrl.u32 %v788, 16
      %v831 = vrot.slane %v829, 4
      %v832 = vor.u32 %v831, %v827
      %v833 = vrot.slane %v832, 4
      %v835 = vshll.u32 %v804, 16
      %v837 = vrot.slane %v835, 5
      %v838 = vsel %vm814, %v833, %v837
      %v840 = vshrl.u32 %v789, 16
      %v842 = vrot.slane %v840, 4
      %v843 = vshll.u32 %v789, 16
      %v845 = vrot.slane %v843, 5
      %v846 = vor.u32 %v842, %v845
      %v847 = vrot.slane %v846, 4
      %v849 = vshll.u32 %v790, 16
      %v851 = vrot.slane %v849, 5
      %v852 = vsel %vm814, %v847, %v851
      %v853 = vshrl.u32 %v790, 16
      %v855 = vrot.slane %v853, 4
      %v856 = vor.u32 %v855, %v851
      %v857 = vrot.slane %v856, 4
      %v859 = vshll.u32 %v805, 16
      %v861 = vrot.slane %v859, 5
      %v862 = vsel %vm814, %v857, %v861
      %v864 = vshrl.u32 %v791, 16
      %v866 = vrot.slane %v864, 4
      %v867 = vshll.u32 %v791, 16
      %v869 = vrot.slane %v867, 5
      %v870 = vor.u32 %v866, %v869
      %v871 = vrot.slane %v870, 4
      %v873 = vshll.u32 %v792, 16
      %v875 = vrot.slane %v873, 5
      %v876 = vsel %vm814, %v871, %v875
      %v877 = vshrl.u32 %v792, 16
      %v879 = vrot.slane %v877, 4
      %v880 = vor.u32 %v879, %v875
      %v881 = vrot.slane %v880, 4
      %v883 = vshll.u32 %v806, 16
      %v885 = vrot.slane %v883, 5
      %v886 = vsel %vm814, %v881, %v885
      %v888 = vshrl.u32 %v793, 16
      %v890 = vrot.slane %v888, 4
      %v891 = vshll.u32 %v793, 16
      %v893 = vrot.slane %v891, 5
      %v894 = vor.u32 %v890, %v893
      %v895 = vrot.slane %v894, 4
      %v897 = vshll.u32 %v794, 16
      %v899 = vrot.slane %v897, 5
      %v900 = vsel %vm814, %v895, %v899
      %v901 = vshrl.u32 %v794, 16
      %v903 = vrot.slane %v901, 4
      %v904 = vor.u32 %v903, %v899
      %v905 = vrot.slane %v904, 4
      %v907 = vshll.u32 %v807, 16
      %v909 = vrot.slane %v907, 5
      %v910 = vsel %vm814, %v905, %v909
      %v912 = vshrl.u32 %v795, 16
      %v914 = vrot.slane %v912, 4
      %v915 = vshll.u32 %v795, 16
      %v917 = vrot.slane %v915, 5
      %v918 = vor.u32 %v914, %v917
      %v919 = vrot.slane %v918, 4
      %v921 = vshll.u32 %v796, 16
      %v923 = vrot.slane %v921, 5
      %v924 = vsel %vm814, %v919, %v923
      %v925 = vshrl.u32 %v796, 16
      %v927 = vrot.slane %v925, 4
      %v928 = vor.u32 %v927, %v923
      %v929 = vrot.slane %v928, 4
      %v931 = vshll.u32 %v808, 16
      %v933 = vrot.slane %v931, 5
      %v934 = vsel %vm814, %v929, %v933
      %v936 = vshrl.u32 %v797, 16
      %v938 = vrot.slane %v936, 4
      %v939 = vshll.u32 %v797, 16
      %v941 = vrot.slane %v939, 5
      %v942 = vor.u32 %v938, %v941
      %v943 = vrot.slane %v942, 4
      %v945 = vshll.u32 %v798, 16
      %v947 = vrot.slane %v945, 5
      %v948 = vsel %vm814, %v943, %v947
      %v949 = vshrl.u32 %v798, 16
      %v951 = vrot.slane %v949, 4
      %v952 = vor.u32 %v951, %v947
      %v953 = vrot.slane %v952, 4
      %v955 = vshll.u32 %v809, 16
      %v957 = vrot.slane %v955, 5
      %v958 = vsel %vm814, %v953, %v957
      %v960 = vshrl.u32 %v799, 16
      %v962 = vrot.slane %v960, 4
      %v963 = vshll.u32 %v799, 16
      %v965 = vrot.slane %v963, 5
      %v966 = vor.u32 %v962, %v965
      %v967 = vrot.slane %v966, 4
      %v969 = vshll.u32 %v800, 16
      %v971 = vrot.slane %v969, 5
      %v972 = vsel %vm814, %v967, %v971
      %v973 = vshrl.u32 %v800, 16
      %v975 = vrot.slane %v973, 4
      %v976 = vor.u32 %v975, %v971
      %v977 = vrot.slane %v976, 4
      %v979 = vshll.u32 %v810, 16
      %v981 = vrot.slane %v979, 5
      %v982 = vsel %vm814, %v977, %v981
      %v984 = vshrl.u32 %v801, 16
      %v986 = vrot.slane %v984, 4
      %v987 = vshll.u32 %v801, 16
      %v989 = vrot.slane %v987, 5
      %v990 = vor.u32 %v986, %v989
      %v991 = vrot.slane %v990, 4
      %v993 = vshll.u32 %v802, 16
      %v995 = vrot.slane %v993, 5
      %v996 = vsel %vm814, %v991, %v995
      %v997 = vshrl.u32 %v802, 16
      %v999 = vrot.slane %v997, 4
      %v1000 = vor.u32 %v999, %v995
      %v1001 = vrot.slane %v1000, 4
      %v1003 = vshll.u32 %v811, 16
      %v1005 = vrot.slane %v1003, 5
      %v1006 = vsel %vm814, %v1001, %v1005
      %s1007 = scalar_lea.vmem %s3, 2
      %v1008 = vld [vmem:[%s1007] sm:$0x3]
      %v1009 = vunpack.c.l.b16 %v828
      %v1010 = vunpack.c.l.b16 %v838
      %v1011 = vunpack.c.l.b16 %v852
      %v1012 = vunpack.c.l.b16 %v862
      %v1013 = vunpack.c.l.b16 %v876
      %v1014 = vunpack.c.l.b16 %v886
      %v1015 = vunpack.c.l.b16 %v900
      %v1016 = vunpack.c.l.b16 %v910
      %v1017 = vunpack.c.l.b16 %v924
      %v1018 = vunpack.c.l.b16 %v934
      %v1019 = vunpack.c.l.b16 %v948
      %v1020 = vunpack.c.l.b16 %v958
      %v1021 = vunpack.c.l.b16 %v972
      %v1022 = vunpack.c.l.b16 %v982
      %v1023 = vunpack.c.l.b16 %v996
      %v1024 = vunpack.c.l.b16 %v1006
      %v1025 = vpack.c.b16 %v1010, %v1009
      %v1026 = vpack.c.b16 %v1012, %v1011
      %v1027 = vpack.c.b16 %v1014, %v1013
      %v1028 = vpack.c.b16 %v1016, %v1015
      %v1029 = vpack.c.b16 %v1018, %v1017
      %v1030 = vpack.c.b16 %v1020, %v1019
      %v1031 = vpack.c.b16 %v1022, %v1021
      %v1032 = vpack.c.b16 %v1024, %v1023
      %vm1033 = vcmask 31744
      %v1035 = vsel %vm1033, %v1025, 0
      %v1038 = vsel %vm1033, %v1026, 0
      %v1041 = vsel %vm1033, %v1027, 0
      %v1044 = vsel %vm1033, %v1028, 0
      %v1047 = vsel %vm1033, %v1029, 0
      %v1050 = vsel %vm1033, %v1030, 0
      %v1053 = vsel %vm1033, %v1031, 0
      %v1056 = vsel %vm1033, %v1032, 0
      %vm1058 = vcmask 1041408
      %v1060 = vsel %vm1058, %v1008, 0
      %1062 = vmatprep.subr.bf16.mxu0 0
      %1063 = vmatpush1.bf16.msra.mxu0 0
      %1064 = vmatprep.subr.bf16.mxu0 0
      %1065 = vmatpush1.bf16.msra.mxu0 0
      %1066 = vmatprep.subr.bf16.mxu0 0
      %1067 = vmatpush1.bf16.msra.mxu0 0
      %1068 = vmatprep.subr.bf16.mxu0 0
      %1069 = vmatpush1.bf16.msra.mxu0 0
      %1070 = vmatprep.subr.bf16.mxu0 0
      %1071 = vmatpush1.bf16.msra.mxu0 0
      %1072 = vmatprep.subr.bf16.mxu0 0
      %1073 = vmatpush1.bf16.msra.mxu0 0
      %1074 = vmatprep.subr.bf16.mxu0 0
      %1075 = vmatpush1.bf16.msra.mxu0 0
      %1076 = vmatprep.subr.bf16.mxu0 0
      %1077 = vmatpush1.bf16.msra.mxu0 %v1060
      %1078 = vmatprep.subr.bf16.mxu0 0
      %1079 = vmatpush2.bf16.msra.mxu0 0
      %1080 = vmatprep.subr.bf16.mxu0 0
      %1081 = vmatpush2.bf16.msra.mxu0 0
      %1082 = vmatprep.subr.bf16.mxu0 0
      %1083 = vmatpush2.bf16.msra.mxu0 0
      %1084 = vmatprep.subr.bf16.mxu0 0
      %1085 = vmatpush2.bf16.msra.mxu0 0
      %1086 = vmatprep.subr.bf16.mxu0 0
      %1087 = vmatpush2.bf16.msra.mxu0 0
      %1088 = vmatprep.subr.bf16.mxu0 0
      %1089 = vmatpush2.bf16.msra.mxu0 0
      %1090 = vmatprep.subr.bf16.mxu0 0
      %1091 = vmatpush2.bf16.msra.mxu0 0
      %1092 = vmatprep.subr.bf16.mxu0 0
      %1093 = vmatpush2.bf16.msra.mxu0 0
      %1094 = vmatprep.mubr.bf16.mxu0 0
      %1095 = vmatmul.mubr.bf16.gmra.mxu0 %v1035
      %v1096 = vpop.f32.mrf.mxu0
      %v1097 = vadd.f32 0.0, %v1096
      %v1098 = vpop.f32.mrf.mxu0
      %v1099 = vpop.f32.mrf.mxu0
      %v1100 = vadd.f32 0.0, %v1099
      %v1101 = vpop.f32.mrf.mxu0
      %1102 = vmatprep.mubr.bf16.mxu0 0
      %1103 = vmatmul.mubr.bf16.gmra.mxu0 %v1038
      %v1104 = vpop.f32.mrf.mxu0
      %v1105 = vadd.f32 0.0, %v1104
      %v1106 = vpop.f32.mrf.mxu0
      %v1107 = vpop.f32.mrf.mxu0
      %v1108 = vadd.f32 0.0, %v1107
      %v1109 = vpop.f32.mrf.mxu0
      %1110 = vmatprep.mubr.bf16.mxu0 0
      %1111 = vmatmul.mubr.bf16.gmra.mxu0 %v1041
      %v1112 = vpop.f32.mrf.mxu0
      %v1113 = vadd.f32 0.0, %v1112
      %v1114 = vpop.f32.mrf.mxu0
      %v1115 = vpop.f32.mrf.mxu0
      %v1116 = vadd.f32 0.0, %v1115
      %v1117 = vpop.f32.mrf.mxu0
      %1118 = vmatprep.mubr.bf16.mxu0 0
      %1119 = vmatmul.mubr.bf16.gmra.mxu0 %v1044
      %v1120 = vpop.f32.mrf.mxu0
      %v1121 = vadd.f32 0.0, %v1120
      %v1122 = vpop.f32.mrf.mxu0
      %v1123 = vpop.f32.mrf.mxu0
      %v1124 = vadd.f32 0.0, %v1123
      %v1125 = vpop.f32.mrf.mxu0
      %1126 = vmatprep.mubr.bf16.mxu0 0
      %1127 = vmatmul.mubr.bf16.gmra.mxu0 %v1047
      %v1128 = vpop.f32.mrf.mxu0
      %v1129 = vadd.f32 0.0, %v1128
      %v1130 = vpop.f32.mrf.mxu0
      %v1131 = vpop.f32.mrf.mxu0
      %v1132 = vadd.f32 0.0, %v1131
      %v1133 = vpop.f32.mrf.mxu0
      %1134 = vmatprep.mubr.bf16.mxu0 0
      %1135 = vmatmul.mubr.bf16.gmra.mxu0 %v1050
      %v1136 = vpop.f32.mrf.mxu0
      %v1137 = vadd.f32 0.0, %v1136
      %v1138 = vpop.f32.mrf.mxu0
      %v1139 = vpop.f32.mrf.mxu0
      %v1140 = vadd.f32 0.0, %v1139
      %v1141 = vpop.f32.mrf.mxu0
      %1142 = vmatprep.mubr.bf16.mxu0 0
      %1143 = vmatmul.mubr.bf16.gmra.mxu0 %v1053
      %v1144 = vpop.f32.mrf.mxu0
      %v1145 = vadd.f32 0.0, %v1144
      %v1146 = vpop.f32.mrf.mxu0
      %v1147 = vpop.f32.mrf.mxu0
      %v1148 = vadd.f32 0.0, %v1147
      %v1149 = vpop.f32.mrf.mxu0
      %1150 = vmatprep.mubr.bf16.mxu0 0
      %1151 = vmatmul.mubr.bf16.gmra.mxu0 %v1056
      %v1152 = vpop.f32.mrf.mxu0
      %v1153 = vadd.f32 0.0, %v1152
      %v1154 = vpop.f32.mrf.mxu0
      %v1155 = vpop.f32.mrf.mxu0
      %v1156 = vadd.f32 0.0, %v1155
      %v1157 = vpop.f32.mrf.mxu0
      %1158 = vdwg.mxu0
      %v1175 = vunpack.c.l.b16 %v787
      %v1176 = vunpack.c.l.b16 %v788
      %v1177 = vunpack.c.l.b16 %v789
      %v1178 = vunpack.c.l.b16 %v790
      %v1179 = vunpack.c.l.b16 %v791
      %v1180 = vunpack.c.l.b16 %v792
      %v1181 = vunpack.c.l.b16 %v793
      %v1182 = vunpack.c.l.b16 %v794
      %v1183 = vunpack.c.l.b16 %v795
      %v1184 = vunpack.c.l.b16 %v796
      %v1185 = vunpack.c.l.b16 %v797
      %v1186 = vunpack.c.l.b16 %v798
      %v1187 = vunpack.c.l.b16 %v799
      %v1188 = vunpack.c.l.b16 %v800
      %v1189 = vunpack.c.l.b16 %v801
      %v1190 = vunpack.c.l.b16 %v802
      %v1191 = vpack.c.b16 %v1176, %v1175
      %v1192 = vpack.c.b16 %v1178, %v1177
      %v1193 = vpack.c.b16 %v1180, %v1179
      %v1194 = vpack.c.b16 %v1182, %v1181
      %v1195 = vpack.c.b16 %v1184, %v1183
      %v1196 = vpack.c.b16 %v1186, %v1185
      %v1197 = vpack.c.b16 %v1188, %v1187
      %v1198 = vpack.c.b16 %v1190, %v1189
      %v1200 = vsel %vm1033, %v1191, 0
      %v1203 = vsel %vm1033, %v1192, 0
      %v1206 = vsel %vm1033, %v1193, 0
      %v1209 = vsel %vm1033, %v1194, 0
      %v1212 = vsel %vm1033, %v1195, 0
      %v1215 = vsel %vm1033, %v1196, 0
      %v1218 = vsel %vm1033, %v1197, 0
      %v1221 = vsel %vm1033, %v1198, 0
      %v1224 = vsel %vm1058, %v803, 0
      %1226 = vmatprep.subr.bf16.mxu0 0
      %1227 = vmatpush1.bf16.msra.mxu0 0
      %1228 = vmatprep.subr.bf16.mxu0 0
      %1229 = vmatpush1.bf16.msra.mxu0 0
      %1230 = vmatprep.subr.bf16.mxu0 0
      %1231 = vmatpush1.bf16.msra.mxu0 0
      %1232 = vmatprep.subr.bf16.mxu0 0
      %1233 = vmatpush1.bf16.msra.mxu0 0
      %1234 = vmatprep.subr.bf16.mxu0 0
      %1235 = vmatpush1.bf16.msra.mxu0 0
      %1236 = vmatprep.subr.bf16.mxu0 0
      %1237 = vmatpush1.bf16.msra.mxu0 0
      %1238 = vmatprep.subr.bf16.mxu0 0
      %1239 = vmatpush1.bf16.msra.mxu0 0
      %1240 = vmatprep.subr.bf16.mxu0 0
      %1241 = vmatpush1.bf16.msra.mxu0 %v1224
      %1242 = vmatprep.subr.bf16.mxu0 0
      %1243 = vmatpush2.bf16.msra.mxu0 0
      %1244 = vmatprep.subr.bf16.mxu0 0
      %1245 = vmatpush2.bf16.msra.mxu0 0
      %1246 = vmatprep.subr.bf16.mxu0 0
      %1247 = vmatpush2.bf16.msra.mxu0 0
      %1248 = vmatprep.subr.bf16.mxu0 0
      %1249 = vmatpush2.bf16.msra.mxu0 0
      %1250 = vmatprep.subr.bf16.mxu0 0
      %1251 = vmatpush2.bf16.msra.mxu0 0
      %1252 = vmatprep.subr.bf16.mxu0 0
      %1253 = vmatpush2.bf16.msra.mxu0 0
      %1254 = vmatprep.subr.bf16.mxu0 0
      %1255 = vmatpush2.bf16.msra.mxu0 0
      %1256 = vmatprep.subr.bf16.mxu0 0
      %1257 = vmatpush2.bf16.msra.mxu0 0
      %1258 = vmatprep.mubr.bf16.mxu0 0
      %1259 = vmatmul.mubr.bf16.gmra.mxu0 %v1200
      %v1260 = vpop.f32.mrf.mxu0
      %v1261 = vadd.f32 %v1097, %v1260
      %v1262 = vpop.f32.mrf.mxu0
      %v1263 = vpop.f32.mrf.mxu0
      %v1264 = vadd.f32 %v1100, %v1263
      %v1265 = vpop.f32.mrf.mxu0
      %1266 = vmatprep.mubr.bf16.mxu0 0
      %1267 = vmatmul.mubr.bf16.gmra.mxu0 %v1203
      %v1268 = vpop.f32.mrf.mxu0
      %v1269 = vadd.f32 %v1105, %v1268
      %v1270 = vpop.f32.mrf.mxu0
      %v1271 = vpop.f32.mrf.mxu0
      %v1272 = vadd.f32 %v1108, %v1271
      %v1273 = vpop.f32.mrf.mxu0
      %1274 = vmatprep.mubr.bf16.mxu0 0
      %1275 = vmatmul.mubr.bf16.gmra.mxu0 %v1206
      %v1276 = vpop.f32.mrf.mxu0
      %v1277 = vadd.f32 %v1113, %v1276
      %v1278 = vpop.f32.mrf.mxu0
      %v1279 = vpop.f32.mrf.mxu0
      %v1280 = vadd.f32 %v1116, %v1279
      %v1281 = vpop.f32.mrf.mxu0
      %1282 = vmatprep.mubr.bf16.mxu0 0
      %1283 = vmatmul.mubr.bf16.gmra.mxu0 %v1209
      %v1284 = vpop.f32.mrf.mxu0
      %v1285 = vadd.f32 %v1121, %v1284
      %v1286 = vpop.f32.mrf.mxu0
      %v1287 = vpop.f32.mrf.mxu0
      %v1288 = vadd.f32 %v1124, %v1287
      %v1289 = vpop.f32.mrf.mxu0
      %1290 = vmatprep.mubr.bf16.mxu0 0
      %1291 = vmatmul.mubr.bf16.gmra.mxu0 %v1212
      %v1292 = vpop.f32.mrf.mxu0
      %v1293 = vadd.f32 %v1129, %v1292
      %v1294 = vpop.f32.mrf.mxu0
      %v1295 = vpop.f32.mrf.mxu0
      %v1296 = vadd.f32 %v1132, %v1295
      %v1297 = vpop.f32.mrf.mxu0
      %1298 = vmatprep.mubr.bf16.mxu0 0
      %1299 = vmatmul.mubr.bf16.gmra.mxu0 %v1215
      %v1300 = vpop.f32.mrf.mxu0
      %v1301 = vadd.f32 %v1137, %v1300
      %v1302 = vpop.f32.mrf.mxu0
      %v1303 = vpop.f32.mrf.mxu0
      %v1304 = vadd.f32 %v1140, %v1303
      %v1305 = vpop.f32.mrf.mxu0
      %1306 = vmatprep.mubr.bf16.mxu0 0
      %1307 = vmatmul.mubr.bf16.gmra.mxu0 %v1218
      %v1308 = vpop.f32.mrf.mxu0
      %v1309 = vadd.f32 %v1145, %v1308
      %v1310 = vpop.f32.mrf.mxu0
      %v1311 = vpop.f32.mrf.mxu0
      %v1312 = vadd.f32 %v1148, %v1311
      %v1313 = vpop.f32.mrf.mxu0
      %1314 = vmatprep.mubr.bf16.mxu0 0
      %1315 = vmatmul.mubr.bf16.gmra.mxu0 %v1221
      %v1316 = vpop.f32.mrf.mxu0
      %v1317 = vadd.f32 %v1153, %v1316
      %v1318 = vpop.f32.mrf.mxu0
      %v1319 = vpop.f32.mrf.mxu0
      %v1320 = vadd.f32 %v1156, %v1319
      %v1321 = vpop.f32.mrf.mxu0
      %1322 = vdwg.mxu0
      %v1323 = vld [vmem:[#allocation2] sm:$0xe]
      %v1324 = vld [vmem:[#allocation2 + $0xc] sm:$0xe]
      %v1325 = vld [vmem:[#allocation2 + $0x18] sm:$0xe]
      %v1326 = vld [vmem:[#allocation2 + $0x24] sm:$0xe]
      %v1327 = vld [vmem:[#allocation2 + $0x30] sm:$0xe]
      %v1328 = vld [vmem:[#allocation2 + $0x3c] sm:$0xe]
      %v1329 = vld [vmem:[#allocation2 + $0x48] sm:$0xe]
      %v1330 = vld [vmem:[#allocation2 + $0x54] sm:$0xe]
      %vm1347 = vcmask 1042432
      %vm1348 = vcmask 1046532
      %vm1349 = vmor %vm1347, %vm1348
      %v1350 = vrot.slane %v1323, 5
      %v1351 = vrot.slane %v1350, 4
      %v1352 = vrot.slane %v788, 5
      %v1353 = vsel %vm1349, %v1351, %v1352
      %v1354 = vrot.slane %v1352, 4
      %v1355 = vrot.slane %v804, 5
      %v1356 = vsel %vm1349, %v1354, %v1355
      %v1357 = vrot.slane %v1324, 5
      %v1358 = vrot.slane %v1357, 4
      %v1359 = vrot.slane %v790, 5
      %v1360 = vsel %vm1349, %v1358, %v1359
      %v1361 = vrot.slane %v1359, 4
      %v1362 = vrot.slane %v805, 5
      %v1363 = vsel %vm1349, %v1361, %v1362
      %v1364 = vrot.slane %v1325, 5
      %v1365 = vrot.slane %v1364, 4
      %v1366 = vrot.slane %v792, 5
      %v1367 = vsel %vm1349, %v1365, %v1366
      %v1368 = vrot.slane %v1366, 4
      %v1369 = vrot.slane %v806, 5
      %v1370 = vsel %vm1349, %v1368, %v1369
      %v1371 = vrot.slane %v1326, 5
      %v1372 = vrot.slane %v1371, 4
      %v1373 = vrot.slane %v794, 5
      %v1374 = vsel %vm1349, %v1372, %v1373
      %v1375 = vrot.slane %v1373, 4
      %v1376 = vrot.slane %v807, 5
      %v1377 = vsel %vm1349, %v1375, %v1376
      %v1378 = vrot.slane %v1327, 5
      %v1379 = vrot.slane %v1378, 4
      %v1380 = vrot.slane %v796, 5
      %v1381 = vsel %vm1349, %v1379, %v1380
      %v1382 = vrot.slane %v1380, 4
      %v1383 = vrot.slane %v808, 5
      %v1384 = vsel %vm1349, %v1382, %v1383
      %v1385 = vrot.slane %v1328, 5
      %v1386 = vrot.slane %v1385, 4
      %v1387 = vrot.slane %v798, 5
      %v1388 = vsel %vm1349, %v1386, %v1387
      %v1389 = vrot.slane %v1387, 4
      %v1390 = vrot.slane %v809, 5
      %v1391 = vsel %vm1349, %v1389, %v1390
      %v1392 = vrot.slane %v1329, 5
      %v1393 = vrot.slane %v1392, 4
      %v1394 = vrot.slane %v800, 5
      %v1395 = vsel %vm1349, %v1393, %v1394
      %v1396 = vrot.slane %v1394, 4
      %v1397 = vrot.slane %v810, 5
      %v1398 = vsel %vm1349, %v1396, %v1397
      %v1399 = vrot.slane %v1330, 5
      %v1400 = vrot.slane %v1399, 4
      %v1401 = vrot.slane %v802, 5
      %v1402 = vsel %vm1349, %v1400, %v1401
      %v1403 = vrot.slane %v1401, 4
      %v1404 = vrot.slane %v811, 5
      %v1405 = vsel %vm1349, %v1403, %v1404
      %s1406 = scalar_lea.vmem %s3, 4
      %v1407 = vld [vmem:[%s1406] sm:$0x3]
      %v1408 = vunpack.c.l.b16 %v1353
      %v1409 = vunpack.c.l.b16 %v1356
      %v1410 = vunpack.c.l.b16 %v1360
      %v1411 = vunpack.c.l.b16 %v1363
      %v1412 = vunpack.c.l.b16 %v1367
      %v1413 = vunpack.c.l.b16 %v1370
      %v1414 = vunpack.c.l.b16 %v1374
      %v1415 = vunpack.c.l.b16 %v1377
      %v1416 = vunpack.c.l.b16 %v1381
      %v1417 = vunpack.c.l.b16 %v1384
      %v1418 = vunpack.c.l.b16 %v1388
      %v1419 = vunpack.c.l.b16 %v1391
      %v1420 = vunpack.c.l.b16 %v1395
      %v1421 = vunpack.c.l.b16 %v1398
      %v1422 = vunpack.c.l.b16 %v1402
      %v1423 = vunpack.c.l.b16 %v1405
      %v1424 = vpack.c.b16 %v1409, %v1408
      %v1425 = vpack.c.b16 %v1411, %v1410
      %v1426 = vpack.c.b16 %v1413, %v1412
      %v1427 = vpack.c.b16 %v1415, %v1414
      %v1428 = vpack.c.b16 %v1417, %v1416
      %v1429 = vpack.c.b16 %v1419, %v1418
      %v1430 = vpack.c.b16 %v1421, %v1420
      %v1431 = vpack.c.b16 %v1423, %v1422
      %v1433 = vsel %vm1033, %v1424, 0
      %v1436 = vsel %vm1033, %v1425, 0
      %v1439 = vsel %vm1033, %v1426, 0
      %v1442 = vsel %vm1033, %v1427, 0
      %v1445 = vsel %vm1033, %v1428, 0
      %v1448 = vsel %vm1033, %v1429, 0
      %v1451 = vsel %vm1033, %v1430, 0
      %v1454 = vsel %vm1033, %v1431, 0
      %v1457 = vsel %vm1058, %v1407, 0
      %1459 = vmatprep.subr.bf16.mxu0 0
      %1460 = vmatpush1.bf16.msra.mxu0 0
      %1461 = vmatprep.subr.bf16.mxu0 0
      %1462 = vmatpush1.bf16.msra.mxu0 0
      %1463 = vmatprep.subr.bf16.mxu0 0
      %1464 = vmatpush1.bf16.msra.mxu0 0
      %1465 = vmatprep.subr.bf16.mxu0 0
      %1466 = vmatpush1.bf16.msra.mxu0 0
      %1467 = vmatprep.subr.bf16.mxu0 0
      %1468 = vmatpush1.bf16.msra.mxu0 0
      %1469 = vmatprep.subr.bf16.mxu0 0
      %1470 = vmatpush1.bf16.msra.mxu0 0
      %1471 = vmatprep.subr.bf16.mxu0 0
      %1472 = vmatpush1.bf16.msra.mxu0 0
      %1473 = vmatprep.subr.bf16.mxu0 0
      %1474 = vmatpush1.bf16.msra.mxu0 %v1457
      %1475 = vmatprep.subr.bf16.mxu0 0
      %1476 = vmatpush2.bf16.msra.mxu0 0
      %1477 = vmatprep.subr.bf16.mxu0 0
      %1478 = vmatpush2.bf16.msra.mxu0 0
      %1479 = vmatprep.subr.bf16.mxu0 0
      %1480 = vmatpush2.bf16.msra.mxu0 0
      %1481 = vmatprep.subr.bf16.mxu0 0
      %1482 = vmatpush2.bf16.msra.mxu0 0
      %1483 = vmatprep.subr.bf16.mxu0 0
      %1484 = vmatpush2.bf16.msra.mxu0 0
      %1485 = vmatprep.subr.bf16.mxu0 0
      %1486 = vmatpush2.bf16.msra.mxu0 0
      %1487 = vmatprep.subr.bf16.mxu0 0
      %1488 = vmatpush2.bf16.msra.mxu0 0
      %1489 = vmatprep.subr.bf16.mxu0 0
      %1490 = vmatpush2.bf16.msra.mxu0 0
      %1491 = vmatprep.mubr.bf16.mxu0 0
      %1492 = vmatmul.mubr.bf16.gmra.mxu0 %v1433
      %v1493 = vpop.f32.mrf.mxu0
      %v1494 = vadd.f32 0.0, %v1493
      %v1495 = vpop.f32.mrf.mxu0
      %v1496 = vpop.f32.mrf.mxu0
      %v1497 = vadd.f32 0.0, %v1496
      %v1498 = vpop.f32.mrf.mxu0
      %1499 = vmatprep.mubr.bf16.mxu0 0
      %1500 = vmatmul.mubr.bf16.gmra.mxu0 %v1436
      %v1501 = vpop.f32.mrf.mxu0
      %v1502 = vadd.f32 0.0, %v1501
      %v1503 = vpop.f32.mrf.mxu0
      %v1504 = vpop.f32.mrf.mxu0
      %v1505 = vadd.f32 0.0, %v1504
      %v1506 = vpop.f32.mrf.mxu0
      %1507 = vmatprep.mubr.bf16.mxu0 0
      %1508 = vmatmul.mubr.bf16.gmra.mxu0 %v1439
      %v1509 = vpop.f32.mrf.mxu0
      %v1510 = vadd.f32 0.0, %v1509
      %v1511 = vpop.f32.mrf.mxu0
      %v1512 = vpop.f32.mrf.mxu0
      %v1513 = vadd.f32 0.0, %v1512
      %v1514 = vpop.f32.mrf.mxu0
      %1515 = vmatprep.mubr.bf16.mxu0 0
      %1516 = vmatmul.mubr.bf16.gmra.mxu0 %v1442
      %v1517 = vpop.f32.mrf.mxu0
      %v1518 = vadd.f32 0.0, %v1517
      %v1519 = vpop.f32.mrf.mxu0
      %v1520 = vpop.f32.mrf.mxu0
      %v1521 = vadd.f32 0.0, %v1520
      %v1522 = vpop.f32.mrf.mxu0
      %1523 = vmatprep.mubr.bf16.mxu0 0
      %1524 = vmatmul.mubr.bf16.gmra.mxu0 %v1445
      %v1525 = vpop.f32.mrf.mxu0
      %v1526 = vadd.f32 0.0, %v1525
      %v1527 = vpop.f32.mrf.mxu0
      %v1528 = vpop.f32.mrf.mxu0
      %v1529 = vadd.f32 0.0, %v1528
      %v1530 = vpop.f32.mrf.mxu0
      %1531 = vmatprep.mubr.bf16.mxu0 0
      %1532 = vmatmul.mubr.bf16.gmra.mxu0 %v1448
      %v1533 = vpop.f32.mrf.mxu0
      %v1534 = vadd.f32 0.0, %v1533
      %v1535 = vpop.f32.mrf.mxu0
      %v1536 = vpop.f32.mrf.mxu0
      %v1537 = vadd.f32 0.0, %v1536
      %v1538 = vpop.f32.mrf.mxu0
      %1539 = vmatprep.mubr.bf16.mxu0 0
      %1540 = vmatmul.mubr.bf16.gmra.mxu0 %v1451
      %v1541 = vpop.f32.mrf.mxu0
      %v1542 = vadd.f32 0.0, %v1541
      %v1543 = vpop.f32.mrf.mxu0
      %v1544 = vpop.f32.mrf.mxu0
      %v1545 = vadd.f32 0.0, %v1544
      %v1546 = vpop.f32.mrf.mxu0
      %1547 = vmatprep.mubr.bf16.mxu0 0
      %1548 = vmatmul.mubr.bf16.gmra.mxu0 %v1454
      %v1549 = vpop.f32.mrf.mxu0
      %v1550 = vadd.f32 0.0, %v1549
      %v1551 = vpop.f32.mrf.mxu0
      %v1552 = vpop.f32.mrf.mxu0
      %v1553 = vadd.f32 0.0, %v1552
      %v1554 = vpop.f32.mrf.mxu0
      %1555 = vdwg.mxu0
      %v1556 = vadd.f32 %v1261, %v1494
      %v1557 = vadd.f32 %v1264, %v1497
      %v1558 = vadd.f32 %v1269, %v1502
      %v1559 = vadd.f32 %v1272, %v1505
      %v1560 = vadd.f32 %v1277, %v1510
      %v1561 = vadd.f32 %v1280, %v1513
      %v1562 = vadd.f32 %v1285, %v1518
      %v1563 = vadd.f32 %v1288, %v1521
      %v1564 = vadd.f32 %v1293, %v1526
      %v1565 = vadd.f32 %v1296, %v1529
      %v1566 = vadd.f32 %v1301, %v1534
      %v1567 = vadd.f32 %v1304, %v1537
      %v1568 = vadd.f32 %v1309, %v1542
      %v1569 = vadd.f32 %v1312, %v1545
      %v1570 = vadd.f32 %v1317, %v1550
      %v1571 = vadd.f32 %v1320, %v1553
      %v1572 = vld [vmem:[%s637] sm:$0xf]
      %v1573 = vld [vmem:[%s637 + $0x4] sm:$0xf]
      %v1574 = vld [vmem:[%s637 + $0xc] sm:$0xf]
      %v1575 = vld [vmem:[%s637 + $0x10] sm:$0xf]
      %v1576 = vld [vmem:[%s637 + $0x18] sm:$0xf]
      %v1577 = vld [vmem:[%s637 + $0x1c] sm:$0xf]
      %v1578 = vld [vmem:[%s637 + $0x24] sm:$0xf]
      %v1579 = vld [vmem:[%s637 + $0x28] sm:$0xf]
      %v1580 = vld [vmem:[%s637 + $0x30] sm:$0xf]
      %v1581 = vld [vmem:[%s637 + $0x34] sm:$0xf]
      %v1582 = vld [vmem:[%s637 + $0x3c] sm:$0xf]
      %v1583 = vld [vmem:[%s637 + $0x40] sm:$0xf]
      %v1584 = vld [vmem:[%s637 + $0x48] sm:$0xf]
      %v1585 = vld [vmem:[%s637 + $0x4c] sm:$0xf]
      %v1586 = vld [vmem:[%s637 + $0x54] sm:$0xf]
      %v1587 = vld [vmem:[%s637 + $0x58] sm:$0xf]
      %s1588 = scalar_lea.vmem %s3, 6
      %v1589 = vld [vmem:[%s1588] sm:$0x3]
      %v1606 = vunpack.c.l.b16 %v1572
      %v1607 = vunpack.c.l.b16 %v1573
      %v1608 = vunpack.c.l.b16 %v1574
      %v1609 = vunpack.c.l.b16 %v1575
      %v1610 = vunpack.c.l.b16 %v1576
      %v1611 = vunpack.c.l.b16 %v1577
      %v1612 = vunpack.c.l.b16 %v1578
      %v1613 = vunpack.c.l.b16 %v1579
      %v1614 = vunpack.c.l.b16 %v1580
      %v1615 = vunpack.c.l.b16 %v1581
      %v1616 = vunpack.c.l.b16 %v1582
      %v1617 = vunpack.c.l.b16 %v1583
      %v1618 = vunpack.c.l.b16 %v1584
      %v1619 = vunpack.c.l.b16 %v1585
      %v1620 = vunpack.c.l.b16 %v1586
      %v1621 = vunpack.c.l.b16 %v1587
      %v1622 = vpack.c.b16 %v1607, %v1606
      %v1623 = vpack.c.b16 %v1609, %v1608
      %v1624 = vpack.c.b16 %v1611, %v1610
      %v1625 = vpack.c.b16 %v1613, %v1612
      %v1626 = vpack.c.b16 %v1615, %v1614
      %v1627 = vpack.c.b16 %v1617, %v1616
      %v1628 = vpack.c.b16 %v1619, %v1618
      %v1629 = vpack.c.b16 %v1621, %v1620
      %v1631 = vsel %vm1033, %v1622, 0
      %v1634 = vsel %vm1033, %v1623, 0
      %v1637 = vsel %vm1033, %v1624, 0
      %v1640 = vsel %vm1033, %v1625, 0
      %v1643 = vsel %vm1033, %v1626, 0
      %v1646 = vsel %vm1033, %v1627, 0
      %v1649 = vsel %vm1033, %v1628, 0
      %v1652 = vsel %vm1033, %v1629, 0
      %v1655 = vsel %vm1058, %v1589, 0
      %1657 = vmatprep.subr.bf16.mxu0 0
      %1658 = vmatpush1.bf16.msra.mxu0 0
      %1659 = vmatprep.subr.bf16.mxu0 0
      %1660 = vmatpush1.bf16.msra.mxu0 0
      %1661 = vmatprep.subr.bf16.mxu0 0
      %1662 = vmatpush1.bf16.msra.mxu0 0
      %1663 = vmatprep.subr.bf16.mxu0 0
      %1664 = vmatpush1.bf16.msra.mxu0 0
      %1665 = vmatprep.subr.bf16.mxu0 0
      %1666 = vmatpush1.bf16.msra.mxu0 0
      %1667 = vmatprep.subr.bf16.mxu0 0
      %1668 = vmatpush1.bf16.msra.mxu0 0
      %1669 = vmatprep.subr.bf16.mxu0 0
      %1670 = vmatpush1.bf16.msra.mxu0 0
      %1671 = vmatprep.subr.bf16.mxu0 0
      %1672 = vmatpush1.bf16.msra.mxu0 %v1655
      %1673 = vmatprep.subr.bf16.mxu0 0
      %1674 = vmatpush2.bf16.msra.mxu0 0
      %1675 = vmatprep.subr.bf16.mxu0 0
      %1676 = vmatpush2.bf16.msra.mxu0 0
      %1677 = vmatprep.subr.bf16.mxu0 0
      %1678 = vmatpush2.bf16.msra.mxu0 0
      %1679 = vmatprep.subr.bf16.mxu0 0
      %1680 = vmatpush2.bf16.msra.mxu0 0
      %1681 = vmatprep.subr.bf16.mxu0 0
      %1682 = vmatpush2.bf16.msra.mxu0 0
      %1683 = vmatprep.subr.bf16.mxu0 0
      %1684 = vmatpush2.bf16.msra.mxu0 0
      %1685 = vmatprep.subr.bf16.mxu0 0
      %1686 = vmatpush2.bf16.msra.mxu0 0
      %1687 = vmatprep.subr.bf16.mxu0 0
      %1688 = vmatpush2.bf16.msra.mxu0 0
      %1689 = vmatprep.mubr.bf16.mxu0 0
      %1690 = vmatmul.mubr.bf16.gmra.mxu0 %v1631
      %v1691 = vpop.f32.mrf.mxu0
      %v1692 = vadd.f32 0.0, %v1691
      %v1693 = vpop.f32.mrf.mxu0
      %v1694 = vpop.f32.mrf.mxu0
      %v1695 = vadd.f32 0.0, %v1694
      %v1696 = vpop.f32.mrf.mxu0
      %1697 = vmatprep.mubr.bf16.mxu0 0
      %1698 = vmatmul.mubr.bf16.gmra.mxu0 %v1634
      %v1699 = vpop.f32.mrf.mxu0
      %v1700 = vadd.f32 0.0, %v1699
      %v1701 = vpop.f32.mrf.mxu0
      %v1702 = vpop.f32.mrf.mxu0
      %v1703 = vadd.f32 0.0, %v1702
      %v1704 = vpop.f32.mrf.mxu0
      %1705 = vmatprep.mubr.bf16.mxu0 0
      %1706 = vmatmul.mubr.bf16.gmra.mxu0 %v1637
      %v1707 = vpop.f32.mrf.mxu0
      %v1708 = vadd.f32 0.0, %v1707
      %v1709 = vpop.f32.mrf.mxu0
      %v1710 = vpop.f32.mrf.mxu0
      %v1711 = vadd.f32 0.0, %v1710
      %v1712 = vpop.f32.mrf.mxu0
      %1713 = vmatprep.mubr.bf16.mxu0 0
      %1714 = vmatmul.mubr.bf16.gmra.mxu0 %v1640
      %v1715 = vpop.f32.mrf.mxu0
      %v1716 = vadd.f32 0.0, %v1715
      %v1717 = vpop.f32.mrf.mxu0
      %v1718 = vpop.f32.mrf.mxu0
      %v1719 = vadd.f32 0.0, %v1718
      %v1720 = vpop.f32.mrf.mxu0
      %1721 = vmatprep.mubr.bf16.mxu0 0
      %1722 = vmatmul.mubr.bf16.gmra.mxu0 %v1643
      %v1723 = vpop.f32.mrf.mxu0
      %v1724 = vadd.f32 0.0, %v1723
      %v1725 = vpop.f32.mrf.mxu0
      %v1726 = vpop.f32.mrf.mxu0
      %v1727 = vadd.f32 0.0, %v1726
      %v1728 = vpop.f32.mrf.mxu0
      %1729 = vmatprep.mubr.bf16.mxu0 0
      %1730 = vmatmul.mubr.bf16.gmra.mxu0 %v1646
      %v1731 = vpop.f32.mrf.mxu0
      %v1732 = vadd.f32 0.0, %v1731
      %v1733 = vpop.f32.mrf.mxu0
      %v1734 = vpop.f32.mrf.mxu0
      %v1735 = vadd.f32 0.0, %v1734
      %v1736 = vpop.f32.mrf.mxu0
      %1737 = vmatprep.mubr.bf16.mxu0 0
      %1738 = vmatmul.mubr.bf16.gmra.mxu0 %v1649
      %v1739 = vpop.f32.mrf.mxu0
      %v1740 = vadd.f32 0.0, %v1739
      %v1741 = vpop.f32.mrf.mxu0
      %v1742 = vpop.f32.mrf.mxu0
      %v1743 = vadd.f32 0.0, %v1742
      %v1744 = vpop.f32.mrf.mxu0
      %1745 = vmatprep.mubr.bf16.mxu0 0
      %1746 = vmatmul.mubr.bf16.gmra.mxu0 %v1652
      %v1747 = vpop.f32.mrf.mxu0
      %v1748 = vadd.f32 0.0, %v1747
      %v1749 = vpop.f32.mrf.mxu0
      %v1750 = vpop.f32.mrf.mxu0
      %v1751 = vadd.f32 0.0, %v1750
      %v1752 = vpop.f32.mrf.mxu0
      %1753 = vdwg.mxu0
      %v1754 = vadd.f32 %v1556, %v1692
      %v1755 = vadd.f32 %v1557, %v1695
      %v1756 = vadd.f32 %v1558, %v1700
      %v1757 = vadd.f32 %v1559, %v1703
      %v1758 = vadd.f32 %v1560, %v1708
      %v1759 = vadd.f32 %v1561, %v1711
      %v1760 = vadd.f32 %v1562, %v1716
      %v1761 = vadd.f32 %v1563, %v1719
      %v1762 = vadd.f32 %v1564, %v1724
      %v1763 = vadd.f32 %v1565, %v1727
      %v1764 = vadd.f32 %v1566, %v1732
      %v1765 = vadd.f32 %v1567, %v1735
      %v1766 = vadd.f32 %v1568, %v1740
      %v1767 = vadd.f32 %v1569, %v1743
      %v1768 = vadd.f32 %v1570, %v1748
      %v1769 = vadd.f32 %v1571, %v1751
      %v1770 = vld [vmem:[%s637] sm:$0xf]
      %v1771 = vld [vmem:[%s637 + $0x4] sm:$0xf]
      %v1772 = vld [vmem:[%s637 + $0x8] sm:$0x1]
      %v1773 = vld [vmem:[%s637 + $0xc] sm:$0xf]
      %v1774 = vld [vmem:[%s637 + $0x10] sm:$0xf]
      %v1775 = vld [vmem:[%s637 + $0x14] sm:$0x1]
      %v1776 = vld [vmem:[%s637 + $0x18] sm:$0xf]
      %v1777 = vld [vmem:[%s637 + $0x1c] sm:$0xf]
      %v1778 = vld [vmem:[%s637 + $0x20] sm:$0x1]
      %v1779 = vld [vmem:[%s637 + $0x24] sm:$0xf]
      %v1780 = vld [vmem:[%s637 + $0x28] sm:$0xf]
      %v1781 = vld [vmem:[%s637 + $0x2c] sm:$0x1]
      %v1782 = vld [vmem:[%s637 + $0x30] sm:$0xf]
      %v1783 = vld [vmem:[%s637 + $0x34] sm:$0xf]
      %v1784 = vld [vmem:[%s637 + $0x38] sm:$0x1]
      %v1785 = vld [vmem:[%s637 + $0x3c] sm:$0xf]
      %v1786 = vld [vmem:[%s637 + $0x40] sm:$0xf]
      %v1787 = vld [vmem:[%s637 + $0x44] sm:$0x1]
      %v1788 = vld [vmem:[%s637 + $0x48] sm:$0xf]
      %v1789 = vld [vmem:[%s637 + $0x4c] sm:$0xf]
      %v1790 = vld [vmem:[%s637 + $0x50] sm:$0x1]
      %v1791 = vld [vmem:[%s637 + $0x54] sm:$0xf]
      %v1792 = vld [vmem:[%s637 + $0x58] sm:$0xf]
      %v1793 = vld [vmem:[%s637 + $0x5c] sm:$0x1]
      %v1795 = vshrl.u32 %v1770, 16
      %v1797 = vrot.slane %v1795, 4
      %v1798 = vshll.u32 %v1770, 16
      %v1800 = vrot.slane %v1798, 5
      %v1801 = vor.u32 %v1797, %v1800
      %v1802 = vrot.slane %v1801, 4
      %v1804 = vshll.u32 %v1771, 16
      %v1806 = vrot.slane %v1804, 5
      %v1807 = vsel %vm814, %v1802, %v1806
      %v1808 = vshrl.u32 %v1771, 16
      %v1810 = vrot.slane %v1808, 4
      %v1811 = vor.u32 %v1810, %v1806
      %v1812 = vrot.slane %v1811, 4
      %v1814 = vshll.u32 %v1772, 16
      %v1816 = vrot.slane %v1814, 5
      %v1817 = vsel %vm814, %v1812, %v1816
      %v1819 = vshrl.u32 %v1773, 16
      %v1821 = vrot.slane %v1819, 4
      %v1822 = vshll.u32 %v1773, 16
      %v1824 = vrot.slane %v1822, 5
      %v1825 = vor.u32 %v1821, %v1824
      %v1826 = vrot.slane %v1825, 4
      %v1828 = vshll.u32 %v1774, 16
      %v1830 = vrot.slane %v1828, 5
      %v1831 = vsel %vm814, %v1826, %v1830
      %v1832 = vshrl.u32 %v1774, 16
      %v1834 = vrot.slane %v1832, 4
      %v1835 = vor.u32 %v1834, %v1830
      %v1836 = vrot.slane %v1835, 4
      %v1838 = vshll.u32 %v1775, 16
      %v1840 = vrot.slane %v1838, 5
      %v1841 = vsel %vm814, %v1836, %v1840
      %v1843 = vshrl.u32 %v1776, 16
      %v1845 = vrot.slane %v1843, 4
      %v1846 = vshll.u32 %v1776, 16
      %v1848 = vrot.slane %v1846, 5
      %v1849 = vor.u32 %v1845, %v1848
      %v1850 = vrot.slane %v1849, 4
      %v1852 = vshll.u32 %v1777, 16
      %v1854 = vrot.slane %v1852, 5
      %v1855 = vsel %vm814, %v1850, %v1854
      %v1856 = vshrl.u32 %v1777, 16
      %v1858 = vrot.slane %v1856, 4
      %v1859 = vor.u32 %v1858, %v1854
      %v1860 = vrot.slane %v1859, 4
      %v1862 = vshll.u32 %v1778, 16
      %v1864 = vrot.slane %v1862, 5
      %v1865 = vsel %vm814, %v1860, %v1864
      %v1867 = vshrl.u32 %v1779, 16
      %v1869 = vrot.slane %v1867, 4
      %v1870 = vshll.u32 %v1779, 16
      %v1872 = vrot.slane %v1870, 5
      %v1873 = vor.u32 %v1869, %v1872
      %v1874 = vrot.slane %v1873, 4
      %v1876 = vshll.u32 %v1780, 16
      %v1878 = vrot.slane %v1876, 5
      %v1879 = vsel %vm814, %v1874, %v1878
      %v1880 = vshrl.u32 %v1780, 16
      %v1882 = vrot.slane %v1880, 4
      %v1883 = vor.u32 %v1882, %v1878
      %v1884 = vrot.slane %v1883, 4
      %v1886 = vshll.u32 %v1781, 16
      %v1888 = vrot.slane %v1886, 5
      %v1889 = vsel %vm814, %v1884, %v1888
      %v1891 = vshrl.u32 %v1782, 16
      %v1893 = vrot.slane %v1891, 4
      %v1894 = vshll.u32 %v1782, 16
      %v1896 = vrot.slane %v1894, 5
      %v1897 = vor.u32 %v1893, %v1896
      %v1898 = vrot.slane %v1897, 4
      %v1900 = vshll.u32 %v1783, 16
      %v1902 = vrot.slane %v1900, 5
      %v1903 = vsel %vm814, %v1898, %v1902
      %v1904 = vshrl.u32 %v1783, 16
      %v1906 = vrot.slane %v1904, 4
      %v1907 = vor.u32 %v1906, %v1902
      %v1908 = vrot.slane %v1907, 4
      %v1910 = vshll.u32 %v1784, 16
      %v1912 = vrot.slane %v1910, 5
      %v1913 = vsel %vm814, %v1908, %v1912
      %v1915 = vshrl.u32 %v1785, 16
      %v1917 = vrot.slane %v1915, 4
      %v1918 = vshll.u32 %v1785, 16
      %v1920 = vrot.slane %v1918, 5
      %v1921 = vor.u32 %v1917, %v1920
      %v1922 = vrot.slane %v1921, 4
      %v1924 = vshll.u32 %v1786, 16
      %v1926 = vrot.slane %v1924, 5
      %v1927 = vsel %vm814, %v1922, %v1926
      %v1928 = vshrl.u32 %v1786, 16
      %v1930 = vrot.slane %v1928, 4
      %v1931 = vor.u32 %v1930, %v1926
      %v1932 = vrot.slane %v1931, 4
      %v1934 = vshll.u32 %v1787, 16
      %v1936 = vrot.slane %v1934, 5
      %v1937 = vsel %vm814, %v1932, %v1936
      %v1939 = vshrl.u32 %v1788, 16
      %v1941 = vrot.slane %v1939, 4
      %v1942 = vshll.u32 %v1788, 16
      %v1944 = vrot.slane %v1942, 5
      %v1945 = vor.u32 %v1941, %v1944
      %v1946 = vrot.slane %v1945, 4
      %v1948 = vshll.u32 %v1789, 16
      %v1950 = vrot.slane %v1948, 5
      %v1951 = vsel %vm814, %v1946, %v1950
      %v1952 = vshrl.u32 %v1789, 16
      %v1954 = vrot.slane %v1952, 4
      %v1955 = vor.u32 %v1954, %v1950
      %v1956 = vrot.slane %v1955, 4
      %v1958 = vshll.u32 %v1790, 16
      %v1960 = vrot.slane %v1958, 5
      %v1961 = vsel %vm814, %v1956, %v1960
      %v1963 = vshrl.u32 %v1791, 16
      %v1965 = vrot.slane %v1963, 4
      %v1966 = vshll.u32 %v1791, 16
      %v1968 = vrot.slane %v1966, 5
      %v1969 = vor.u32 %v1965, %v1968
      %v1970 = vrot.slane %v1969, 4
      %v1972 = vshll.u32 %v1792, 16
      %v1974 = vrot.slane %v1972, 5
      %v1975 = vsel %vm814, %v1970, %v1974
      %v1976 = vshrl.u32 %v1792, 16
      %v1978 = vrot.slane %v1976, 4
      %v1979 = vor.u32 %v1978, %v1974
      %v1980 = vrot.slane %v1979, 4
      %v1982 = vshll.u32 %v1793, 16
      %v1984 = vrot.slane %v1982, 5
      %v1985 = vsel %vm814, %v1980, %v1984
      %s1986 = scalar_lea.vmem %s3, 8
      %v1987 = vld [vmem:[%s1986] sm:$0x3]
      %v1988 = vunpack.c.l.b16 %v1807
      %v1989 = vunpack.c.l.b16 %v1817
      %v1990 = vunpack.c.l.b16 %v1831
      %v1991 = vunpack.c.l.b16 %v1841
      %v1992 = vunpack.c.l.b16 %v1855
      %v1993 = vunpack.c.l.b16 %v1865
      %v1994 = vunpack.c.l.b16 %v1879
      %v1995 = vunpack.c.l.b16 %v1889
      %v1996 = vunpack.c.l.b16 %v1903
      %v1997 = vunpack.c.l.b16 %v1913
      %v1998 = vunpack.c.l.b16 %v1927
      %v1999 = vunpack.c.l.b16 %v1937
      %v2000 = vunpack.c.l.b16 %v1951
      %v2001 = vunpack.c.l.b16 %v1961
      %v2002 = vunpack.c.l.b16 %v1975
      %v2003 = vunpack.c.l.b16 %v1985
      %v2004 = vpack.c.b16 %v1989, %v1988
      %v2005 = vpack.c.b16 %v1991, %v1990
      %v2006 = vpack.c.b16 %v1993, %v1992
      %v2007 = vpack.c.b16 %v1995, %v1994
      %v2008 = vpack.c.b16 %v1997, %v1996
      %v2009 = vpack.c.b16 %v1999, %v1998
      %v2010 = vpack.c.b16 %v2001, %v2000
      %v2011 = vpack.c.b16 %v2003, %v2002
      %v2013 = vsel %vm1033, %v2004, 0
      %v2016 = vsel %vm1033, %v2005, 0
      %v2019 = vsel %vm1033, %v2006, 0
      %v2022 = vsel %vm1033, %v2007, 0
      %v2025 = vsel %vm1033, %v2008, 0
      %v2028 = vsel %vm1033, %v2009, 0
      %v2031 = vsel %vm1033, %v2010, 0
      %v2034 = vsel %vm1033, %v2011, 0
      %v2037 = vsel %vm1058, %v1987, 0
      %2039 = vmatprep.subr.bf16.mxu0 0
      %2040 = vmatpush1.bf16.msra.mxu0 0
      %2041 = vmatprep.subr.bf16.mxu0 0
      %2042 = vmatpush1.bf16.msra.mxu0 0
      %2043 = vmatprep.subr.bf16.mxu0 0
      %2044 = vmatpush1.bf16.msra.mxu0 0
      %2045 = vmatprep.subr.bf16.mxu0 0
      %2046 = vmatpush1.bf16.msra.mxu0 0
      %2047 = vmatprep.subr.bf16.mxu0 0
      %2048 = vmatpush1.bf16.msra.mxu0 0
      %2049 = vmatprep.subr.bf16.mxu0 0
      %2050 = vmatpush1.bf16.msra.mxu0 0
      %2051 = vmatprep.subr.bf16.mxu0 0
      %2052 = vmatpush1.bf16.msra.mxu0 0
      %2053 = vmatprep.subr.bf16.mxu0 0
      %2054 = vmatpush1.bf16.msra.mxu0 %v2037
      %2055 = vmatprep.subr.bf16.mxu0 0
      %2056 = vmatpush2.bf16.msra.mxu0 0
      %2057 = vmatprep.subr.bf16.mxu0 0
      %2058 = vmatpush2.bf16.msra.mxu0 0
      %2059 = vmatprep.subr.bf16.mxu0 0
      %2060 = vmatpush2.bf16.msra.mxu0 0
      %2061 = vmatprep.subr.bf16.mxu0 0
      %2062 = vmatpush2.bf16.msra.mxu0 0
      %2063 = vmatprep.subr.bf16.mxu0 0
      %2064 = vmatpush2.bf16.msra.mxu0 0
      %2065 = vmatprep.subr.bf16.mxu0 0
      %2066 = vmatpush2.bf16.msra.mxu0 0
      %2067 = vmatprep.subr.bf16.mxu0 0
      %2068 = vmatpush2.bf16.msra.mxu0 0
      %2069 = vmatprep.subr.bf16.mxu0 0
      %2070 = vmatpush2.bf16.msra.mxu0 0
      %2071 = vmatprep.mubr.bf16.mxu0 0
      %2072 = vmatmul.mubr.bf16.gmra.mxu0 %v2013
      %v2073 = vpop.f32.mrf.mxu0
      %v2074 = vadd.f32 0.0, %v2073
      %v2075 = vpop.f32.mrf.mxu0
      %v2076 = vpop.f32.mrf.mxu0
      %v2077 = vadd.f32 0.0, %v2076
      %v2078 = vpop.f32.mrf.mxu0
      %2079 = vmatprep.mubr.bf16.mxu0 0
      %2080 = vmatmul.mubr.bf16.gmra.mxu0 %v2016
      %v2081 = vpop.f32.mrf.mxu0
      %v2082 = vadd.f32 0.0, %v2081
      %v2083 = vpop.f32.mrf.mxu0
      %v2084 = vpop.f32.mrf.mxu0
      %v2085 = vadd.f32 0.0, %v2084
      %v2086 = vpop.f32.mrf.mxu0
      %2087 = vmatprep.mubr.bf16.mxu0 0
      %2088 = vmatmul.mubr.bf16.gmra.mxu0 %v2019
      %v2089 = vpop.f32.mrf.mxu0
      %v2090 = vadd.f32 0.0, %v2089
      %v2091 = vpop.f32.mrf.mxu0
      %v2092 = vpop.f32.mrf.mxu0
      %v2093 = vadd.f32 0.0, %v2092
      %v2094 = vpop.f32.mrf.mxu0
      %2095 = vmatprep.mubr.bf16.mxu0 0
      %2096 = vmatmul.mubr.bf16.gmra.mxu0 %v2022
      %v2097 = vpop.f32.mrf.mxu0
      %v2098 = vadd.f32 0.0, %v2097
      %v2099 = vpop.f32.mrf.mxu0
      %v2100 = vpop.f32.mrf.mxu0
      %v2101 = vadd.f32 0.0, %v2100
      %v2102 = vpop.f32.mrf.mxu0
      %2103 = vmatprep.mubr.bf16.mxu0 0
      %2104 = vmatmul.mubr.bf16.gmra.mxu0 %v2025
      %v2105 = vpop.f32.mrf.mxu0
      %v2106 = vadd.f32 0.0, %v2105
      %v2107 = vpop.f32.mrf.mxu0
      %v2108 = vpop.f32.mrf.mxu0
      %v2109 = vadd.f32 0.0, %v2108
      %v2110 = vpop.f32.mrf.mxu0
      %2111 = vmatprep.mubr.bf16.mxu0 0
      %2112 = vmatmul.mubr.bf16.gmra.mxu0 %v2028
      %v2113 = vpop.f32.mrf.mxu0
      %v2114 = vadd.f32 0.0, %v2113
      %v2115 = vpop.f32.mrf.mxu0
      %v2116 = vpop.f32.mrf.mxu0
      %v2117 = vadd.f32 0.0, %v2116
      %v2118 = vpop.f32.mrf.mxu0
      %2119 = vmatprep.mubr.bf16.mxu0 0
      %2120 = vmatmul.mubr.bf16.gmra.mxu0 %v2031
      %v2121 = vpop.f32.mrf.mxu0
      %v2122 = vadd.f32 0.0, %v2121
      %v2123 = vpop.f32.mrf.mxu0
      %v2124 = vpop.f32.mrf.mxu0
      %v2125 = vadd.f32 0.0, %v2124
      %v2126 = vpop.f32.mrf.mxu0
      %2127 = vmatprep.mubr.bf16.mxu0 0
      %2128 = vmatmul.mubr.bf16.gmra.mxu0 %v2034
      %v2129 = vpop.f32.mrf.mxu0
      %v2130 = vadd.f32 0.0, %v2129
      %v2131 = vpop.f32.mrf.mxu0
      %v2132 = vpop.f32.mrf.mxu0
      %v2133 = vadd.f32 0.0, %v2132
      %v2134 = vpop.f32.mrf.mxu0
      %2135 = vdwg.mxu0
      %v2136 = vadd.f32 %v1754, %v2074
      %v2137 = vadd.f32 %v1755, %v2077
      %v2138 = vadd.f32 %v1756, %v2082
      %v2139 = vadd.f32 %v1757, %v2085
      %v2140 = vadd.f32 %v1758, %v2090
      %v2141 = vadd.f32 %v1759, %v2093
      %v2142 = vadd.f32 %v1760, %v2098
      %v2143 = vadd.f32 %v1761, %v2101
      %v2144 = vadd.f32 %v1762, %v2106
      %v2145 = vadd.f32 %v1763, %v2109
      %v2146 = vadd.f32 %v1764, %v2114
      %v2147 = vadd.f32 %v1765, %v2117
      %v2148 = vadd.f32 %v1766, %v2122
      %v2149 = vadd.f32 %v1767, %v2125
      %v2150 = vadd.f32 %v1768, %v2130
      %v2151 = vadd.f32 %v1769, %v2133
      %v2152 = vld [vmem:[%s637] sm:$0xe]
      %v2153 = vld [vmem:[%s637 + $0xc] sm:$0xe]
      %v2154 = vld [vmem:[%s637 + $0x18] sm:$0xe]
      %v2155 = vld [vmem:[%s637 + $0x24] sm:$0xe]
      %v2156 = vld [vmem:[%s637 + $0x30] sm:$0xe]
      %v2157 = vld [vmem:[%s637 + $0x3c] sm:$0xe]
      %v2158 = vld [vmem:[%s637 + $0x48] sm:$0xe]
      %v2159 = vld [vmem:[%s637 + $0x54] sm:$0xe]
      %v2184 = vrot.slane %v2152, 5
      %v2185 = vrot.slane %v2184, 4
      %v2186 = vrot.slane %v1771, 5
      %v2187 = vsel %vm1349, %v2185, %v2186
      %v2188 = vrot.slane %v2186, 4
      %v2189 = vrot.slane %v1772, 5
      %v2190 = vsel %vm1349, %v2188, %v2189
      %v2191 = vrot.slane %v2153, 5
      %v2192 = vrot.slane %v2191, 4
      %v2193 = vrot.slane %v1774, 5
      %v2194 = vsel %vm1349, %v2192, %v2193
      %v2195 = vrot.slane %v2193, 4
      %v2196 = vrot.slane %v1775, 5
      %v2197 = vsel %vm1349, %v2195, %v2196
      %v2198 = vrot.slane %v2154, 5
      %v2199 = vrot.slane %v2198, 4
      %v2200 = vrot.slane %v1777, 5
      %v2201 = vsel %vm1349, %v2199, %v2200
      %v2202 = vrot.slane %v2200, 4
      %v2203 = vrot.slane %v1778, 5
      %v2204 = vsel %vm1349, %v2202, %v2203
      %v2205 = vrot.slane %v2155, 5
      %v2206 = vrot.slane %v2205, 4
      %v2207 = vrot.slane %v1780, 5
      %v2208 = vsel %vm1349, %v2206, %v2207
      %v2209 = vrot.slane %v2207, 4
      %v2210 = vrot.slane %v1781, 5
      %v2211 = vsel %vm1349, %v2209, %v2210
      %v2212 = vrot.slane %v2156, 5
      %v2213 = vrot.slane %v2212, 4
      %v2214 = vrot.slane %v1783, 5
      %v2215 = vsel %vm1349, %v2213, %v2214
      %v2216 = vrot.slane %v2214, 4
      %v2217 = vrot.slane %v1784, 5
      %v2218 = vsel %vm1349, %v2216, %v2217
      %v2219 = vrot.slane %v2157, 5
      %v2220 = vrot.slane %v2219, 4
      %v2221 = vrot.slane %v1786, 5
      %v2222 = vsel %vm1349, %v2220, %v2221
      %v2223 = vrot.slane %v2221, 4
      %v2224 = vrot.slane %v1787, 5
      %v2225 = vsel %vm1349, %v2223, %v2224
      %v2226 = vrot.slane %v2158, 5
      %v2227 = vrot.slane %v2226, 4
      %v2228 = vrot.slane %v1789, 5
      %v2229 = vsel %vm1349, %v2227, %v2228
      %v2230 = vrot.slane %v2228, 4
      %v2231 = vrot.slane %v1790, 5
      %v2232 = vsel %vm1349, %v2230, %v2231
      %v2233 = vrot.slane %v2159, 5
      %v2234 = vrot.slane %v2233, 4
      %v2235 = vrot.slane %v1792, 5
      %v2236 = vsel %vm1349, %v2234, %v2235
      %v2237 = vrot.slane %v2235, 4
      %v2238 = vrot.slane %v1793, 5
      %v2239 = vsel %vm1349, %v2237, %v2238
      %s2240 = scalar_lea.vmem %s3, 10
      %v2241 = vld [vmem:[%s2240] sm:$0x3]
      %v2242 = vunpack.c.l.b16 %v2187
      %v2243 = vunpack.c.l.b16 %v2190
      %v2244 = vunpack.c.l.b16 %v2194
      %v2245 = vunpack.c.l.b16 %v2197
      %v2246 = vunpack.c.l.b16 %v2201
      %v2247 = vunpack.c.l.b16 %v2204
      %v2248 = vunpack.c.l.b16 %v2208
      %v2249 = vunpack.c.l.b16 %v2211
      %v2250 = vunpack.c.l.b16 %v2215
      %v2251 = vunpack.c.l.b16 %v2218
      %v2252 = vunpack.c.l.b16 %v2222
      %v2253 = vunpack.c.l.b16 %v2225
      %v2254 = vunpack.c.l.b16 %v2229
      %v2255 = vunpack.c.l.b16 %v2232
      %v2256 = vunpack.c.l.b16 %v2236
      %v2257 = vunpack.c.l.b16 %v2239
      %v2258 = vpack.c.b16 %v2243, %v2242
      %v2259 = vpack.c.b16 %v2245, %v2244
      %v2260 = vpack.c.b16 %v2247, %v2246
      %v2261 = vpack.c.b16 %v2249, %v2248
      %v2262 = vpack.c.b16 %v2251, %v2250
      %v2263 = vpack.c.b16 %v2253, %v2252
      %v2264 = vpack.c.b16 %v2255, %v2254
      %v2265 = vpack.c.b16 %v2257, %v2256
      %v2267 = vsel %vm1033, %v2258, 0
      %v2270 = vsel %vm1033, %v2259, 0
      %v2273 = vsel %vm1033, %v2260, 0
      %v2276 = vsel %vm1033, %v2261, 0
      %v2279 = vsel %vm1033, %v2262, 0
      %v2282 = vsel %vm1033, %v2263, 0
      %v2285 = vsel %vm1033, %v2264, 0
      %v2288 = vsel %vm1033, %v2265, 0
      %v2291 = vsel %vm1058, %v2241, 0
      %2293 = vmatprep.subr.bf16.mxu0 0
      %2294 = vmatpush1.bf16.msra.mxu0 0
      %2295 = vmatprep.subr.bf16.mxu0 0
      %2296 = vmatpush1.bf16.msra.mxu0 0
      %2297 = vmatprep.subr.bf16.mxu0 0
      %2298 = vmatpush1.bf16.msra.mxu0 0
      %2299 = vmatprep.subr.bf16.mxu0 0
      %2300 = vmatpush1.bf16.msra.mxu0 0
      %2301 = vmatprep.subr.bf16.mxu0 0
      %2302 = vmatpush1.bf16.msra.mxu0 0
      %2303 = vmatprep.subr.bf16.mxu0 0
      %2304 = vmatpush1.bf16.msra.mxu0 0
      %2305 = vmatprep.subr.bf16.mxu0 0
      %2306 = vmatpush1.bf16.msra.mxu0 0
      %2307 = vmatprep.subr.bf16.mxu0 0
      %2308 = vmatpush1.bf16.msra.mxu0 %v2291
      %2309 = vmatprep.subr.bf16.mxu0 0
      %2310 = vmatpush2.bf16.msra.mxu0 0
      %2311 = vmatprep.subr.bf16.mxu0 0
      %2312 = vmatpush2.bf16.msra.mxu0 0
      %2313 = vmatprep.subr.bf16.mxu0 0
      %2314 = vmatpush2.bf16.msra.mxu0 0
      %2315 = vmatprep.subr.bf16.mxu0 0
      %2316 = vmatpush2.bf16.msra.mxu0 0
      %2317 = vmatprep.subr.bf16.mxu0 0
      %2318 = vmatpush2.bf16.msra.mxu0 0
      %2319 = vmatprep.subr.bf16.mxu0 0
      %2320 = vmatpush2.bf16.msra.mxu0 0
      %2321 = vmatprep.subr.bf16.mxu0 0
      %2322 = vmatpush2.bf16.msra.mxu0 0
      %2323 = vmatprep.subr.bf16.mxu0 0
      %2324 = vmatpush2.bf16.msra.mxu0 0
      %2325 = vmatprep.mubr.bf16.mxu0 0
      %2326 = vmatmul.mubr.bf16.gmra.mxu0 %v2267
      %v2327 = vpop.f32.mrf.mxu0
      %v2328 = vadd.f32 0.0, %v2327
      %v2329 = vpop.f32.mrf.mxu0
      %v2330 = vpop.f32.mrf.mxu0
      %v2331 = vadd.f32 0.0, %v2330
      %v2332 = vpop.f32.mrf.mxu0
      %2333 = vmatprep.mubr.bf16.mxu0 0
      %2334 = vmatmul.mubr.bf16.gmra.mxu0 %v2270
      %v2335 = vpop.f32.mrf.mxu0
      %v2336 = vadd.f32 0.0, %v2335
      %v2337 = vpop.f32.mrf.mxu0
      %v2338 = vpop.f32.mrf.mxu0
      %v2339 = vadd.f32 0.0, %v2338
      %v2340 = vpop.f32.mrf.mxu0
      %2341 = vmatprep.mubr.bf16.mxu0 0
      %2342 = vmatmul.mubr.bf16.gmra.mxu0 %v2273
      %v2343 = vpop.f32.mrf.mxu0
      %v2344 = vadd.f32 0.0, %v2343
      %v2345 = vpop.f32.mrf.mxu0
      %v2346 = vpop.f32.mrf.mxu0
      %v2347 = vadd.f32 0.0, %v2346
      %v2348 = vpop.f32.mrf.mxu0
      %2349 = vmatprep.mubr.bf16.mxu0 0
      %2350 = vmatmul.mubr.bf16.gmra.mxu0 %v2276
      %v2351 = vpop.f32.mrf.mxu0
      %v2352 = vadd.f32 0.0, %v2351
      %v2353 = vpop.f32.mrf.mxu0
      %v2354 = vpop.f32.mrf.mxu0
      %v2355 = vadd.f32 0.0, %v2354
      %v2356 = vpop.f32.mrf.mxu0
      %2357 = vmatprep.mubr.bf16.mxu0 0
      %2358 = vmatmul.mubr.bf16.gmra.mxu0 %v2279
      %v2359 = vpop.f32.mrf.mxu0
      %v2360 = vadd.f32 0.0, %v2359
      %v2361 = vpop.f32.mrf.mxu0
      %v2362 = vpop.f32.mrf.mxu0
      %v2363 = vadd.f32 0.0, %v2362
      %v2364 = vpop.f32.mrf.mxu0
      %2365 = vmatprep.mubr.bf16.mxu0 0
      %2366 = vmatmul.mubr.bf16.gmra.mxu0 %v2282
      %v2367 = vpop.f32.mrf.mxu0
      %v2368 = vadd.f32 0.0, %v2367
      %v2369 = vpop.f32.mrf.mxu0
      %v2370 = vpop.f32.mrf.mxu0
      %v2371 = vadd.f32 0.0, %v2370
      %v2372 = vpop.f32.mrf.mxu0
      %2373 = vmatprep.mubr.bf16.mxu0 0
      %2374 = vmatmul.mubr.bf16.gmra.mxu0 %v2285
      %v2375 = vpop.f32.mrf.mxu0
      %v2376 = vadd.f32 0.0, %v2375
      %v2377 = vpop.f32.mrf.mxu0
      %v2378 = vpop.f32.mrf.mxu0
      %v2379 = vadd.f32 0.0, %v2378
      %v2380 = vpop.f32.mrf.mxu0
      %2381 = vmatprep.mubr.bf16.mxu0 0
      %2382 = vmatmul.mubr.bf16.gmra.mxu0 %v2288
      %v2383 = vpop.f32.mrf.mxu0
      %v2384 = vadd.f32 0.0, %v2383
      %v2385 = vpop.f32.mrf.mxu0
      %v2386 = vpop.f32.mrf.mxu0
      %v2387 = vadd.f32 0.0, %v2386
      %v2388 = vpop.f32.mrf.mxu0
      %2389 = vdwg.mxu0
      %v2390 = vadd.f32 %v2136, %v2328
      %v2391 = vadd.f32 %v2137, %v2331
      %v2392 = vadd.f32 %v2138, %v2336
      %v2393 = vadd.f32 %v2139, %v2339
      %v2394 = vadd.f32 %v2140, %v2344
      %v2395 = vadd.f32 %v2141, %v2347
      %v2396 = vadd.f32 %v2142, %v2352
      %v2397 = vadd.f32 %v2143, %v2355
      %v2398 = vadd.f32 %v2144, %v2360
      %v2399 = vadd.f32 %v2145, %v2363
      %v2400 = vadd.f32 %v2146, %v2368
      %v2401 = vadd.f32 %v2147, %v2371
      %v2402 = vadd.f32 %v2148, %v2376
      %v2403 = vadd.f32 %v2149, %v2379
      %v2404 = vadd.f32 %v2150, %v2384
      %v2405 = vadd.f32 %v2151, %v2387
      %s2406 = scalar_lea.vmem [#allocation2], 24
      %v2407 = vld [vmem:[%s2406] sm:$0xf]
      %v2408 = vld [vmem:[%s2406 + $0x4] sm:$0xf]
      %v2409 = vld [vmem:[%s2406 + $0xc] sm:$0xf]
      %v2410 = vld [vmem:[%s2406 + $0x10] sm:$0xf]
      %v2411 = vld [vmem:[%s2406 + $0x18] sm:$0xf]
      %v2412 = vld [vmem:[%s2406 + $0x1c] sm:$0xf]
      %v2413 = vld [vmem:[%s2406 + $0x24] sm:$0xf]
      %v2414 = vld [vmem:[%s2406 + $0x28] sm:$0xf]
      %v2415 = vld [vmem:[%s2406 + $0x30] sm:$0xf]
      %v2416 = vld [vmem:[%s2406 + $0x34] sm:$0xf]
      %v2417 = vld [vmem:[%s2406 + $0x3c] sm:$0xf]
      %v2418 = vld [vmem:[%s2406 + $0x40] sm:$0xf]
      %v2419 = vld [vmem:[%s2406 + $0x48] sm:$0xf]
      %v2420 = vld [vmem:[%s2406 + $0x4c] sm:$0xf]
      %v2421 = vld [vmem:[%s2406 + $0x54] sm:$0xf]
      %v2422 = vld [vmem:[%s2406 + $0x58] sm:$0xf]
      %s2423 = scalar_lea.vmem %s3, 12
      %v2424 = vld [vmem:[%s2423] sm:$0x3]
      %v2441 = vunpack.c.l.b16 %v2407
      %v2442 = vunpack.c.l.b16 %v2408
      %v2443 = vunpack.c.l.b16 %v2409
      %v2444 = vunpack.c.l.b16 %v2410
      %v2445 = vunpack.c.l.b16 %v2411
      %v2446 = vunpack.c.l.b16 %v2412
      %v2447 = vunpack.c.l.b16 %v2413
      %v2448 = vunpack.c.l.b16 %v2414
      %v2449 = vunpack.c.l.b16 %v2415
      %v2450 = vunpack.c.l.b16 %v2416
      %v2451 = vunpack.c.l.b16 %v2417
      %v2452 = vunpack.c.l.b16 %v2418
      %v2453 = vunpack.c.l.b16 %v2419
      %v2454 = vunpack.c.l.b16 %v2420
      %v2455 = vunpack.c.l.b16 %v2421
      %v2456 = vunpack.c.l.b16 %v2422
      %v2457 = vpack.c.b16 %v2442, %v2441
      %v2458 = vpack.c.b16 %v2444, %v2443
      %v2459 = vpack.c.b16 %v2446, %v2445
      %v2460 = vpack.c.b16 %v2448, %v2447
      %v2461 = vpack.c.b16 %v2450, %v2449
      %v2462 = vpack.c.b16 %v2452, %v2451
      %v2463 = vpack.c.b16 %v2454, %v2453
      %v2464 = vpack.c.b16 %v2456, %v2455
      %v2466 = vsel %vm1033, %v2457, 0
      %v2469 = vsel %vm1033, %v2458, 0
      %v2472 = vsel %vm1033, %v2459, 0
      %v2475 = vsel %vm1033, %v2460, 0
      %v2478 = vsel %vm1033, %v2461, 0
      %v2481 = vsel %vm1033, %v2462, 0
      %v2484 = vsel %vm1033, %v2463, 0
      %v2487 = vsel %vm1033, %v2464, 0
      %v2490 = vsel %vm1058, %v2424, 0
      %2492 = vmatprep.subr.bf16.mxu0 0
      %2493 = vmatpush1.bf16.msra.mxu0 0
      %2494 = vmatprep.subr.bf16.mxu0 0
      %2495 = vmatpush1.bf16.msra.mxu0 0
      %2496 = vmatprep.subr.bf16.mxu0 0
      %2497 = vmatpush1.bf16.msra.mxu0 0
      %2498 = vmatprep.subr.bf16.mxu0 0
      %2499 = vmatpush1.bf16.msra.mxu0 0
      %2500 = vmatprep.subr.bf16.mxu0 0
      %2501 = vmatpush1.bf16.msra.mxu0 0
      %2502 = vmatprep.subr.bf16.mxu0 0
      %2503 = vmatpush1.bf16.msra.mxu0 0
      %2504 = vmatprep.subr.bf16.mxu0 0
      %2505 = vmatpush1.bf16.msra.mxu0 0
      %2506 = vmatprep.subr.bf16.mxu0 0
      %2507 = vmatpush1.bf16.msra.mxu0 %v2490
      %2508 = vmatprep.subr.bf16.mxu0 0
      %2509 = vmatpush2.bf16.msra.mxu0 0
      %2510 = vmatprep.subr.bf16.mxu0 0
      %2511 = vmatpush2.bf16.msra.mxu0 0
      %2512 = vmatprep.subr.bf16.mxu0 0
      %2513 = vmatpush2.bf16.msra.mxu0 0
      %2514 = vmatprep.subr.bf16.mxu0 0
      %2515 = vmatpush2.bf16.msra.mxu0 0
      %2516 = vmatprep.subr.bf16.mxu0 0
      %2517 = vmatpush2.bf16.msra.mxu0 0
      %2518 = vmatprep.subr.bf16.mxu0 0
      %2519 = vmatpush2.bf16.msra.mxu0 0
      %2520 = vmatprep.subr.bf16.mxu0 0
      %2521 = vmatpush2.bf16.msra.mxu0 0
      %2522 = vmatprep.subr.bf16.mxu0 0
      %2523 = vmatpush2.bf16.msra.mxu0 0
      %2524 = vmatprep.mubr.bf16.mxu0 0
      %2525 = vmatmul.mubr.bf16.gmra.mxu0 %v2466
      %v2526 = vpop.f32.mrf.mxu0
      %v2527 = vadd.f32 0.0, %v2526
      %v2528 = vpop.f32.mrf.mxu0
      %v2529 = vpop.f32.mrf.mxu0
      %v2530 = vadd.f32 0.0, %v2529
      %v2531 = vpop.f32.mrf.mxu0
      %2532 = vmatprep.mubr.bf16.mxu0 0
      %2533 = vmatmul.mubr.bf16.gmra.mxu0 %v2469
      %v2534 = vpop.f32.mrf.mxu0
      %v2535 = vadd.f32 0.0, %v2534
      %v2536 = vpop.f32.mrf.mxu0
      %v2537 = vpop.f32.mrf.mxu0
      %v2538 = vadd.f32 0.0, %v2537
      %v2539 = vpop.f32.mrf.mxu0
      %2540 = vmatprep.mubr.bf16.mxu0 0
      %2541 = vmatmul.mubr.bf16.gmra.mxu0 %v2472
      %v2542 = vpop.f32.mrf.mxu0
      %v2543 = vadd.f32 0.0, %v2542
      %v2544 = vpop.f32.mrf.mxu0
      %v2545 = vpop.f32.mrf.mxu0
      %v2546 = vadd.f32 0.0, %v2545
      %v2547 = vpop.f32.mrf.mxu0
      %2548 = vmatprep.mubr.bf16.mxu0 0
      %2549 = vmatmul.mubr.bf16.gmra.mxu0 %v2475
      %v2550 = vpop.f32.mrf.mxu0
      %v2551 = vadd.f32 0.0, %v2550
      %v2552 = vpop.f32.mrf.mxu0
      %v2553 = vpop.f32.mrf.mxu0
      %v2554 = vadd.f32 0.0, %v2553
      %v2555 = vpop.f32.mrf.mxu0
      %2556 = vmatprep.mubr.bf16.mxu0 0
      %2557 = vmatmul.mubr.bf16.gmra.mxu0 %v2478
      %v2558 = vpop.f32.mrf.mxu0
      %v2559 = vadd.f32 0.0, %v2558
      %v2560 = vpop.f32.mrf.mxu0
      %v2561 = vpop.f32.mrf.mxu0
      %v2562 = vadd.f32 0.0, %v2561
      %v2563 = vpop.f32.mrf.mxu0
      %2564 = vmatprep.mubr.bf16.mxu0 0
      %2565 = vmatmul.mubr.bf16.gmra.mxu0 %v2481
      %v2566 = vpop.f32.mrf.mxu0
      %v2567 = vadd.f32 0.0, %v2566
      %v2568 = vpop.f32.mrf.mxu0
      %v2569 = vpop.f32.mrf.mxu0
      %v2570 = vadd.f32 0.0, %v2569
      %v2571 = vpop.f32.mrf.mxu0
      %2572 = vmatprep.mubr.bf16.mxu0 0
      %2573 = vmatmul.mubr.bf16.gmra.mxu0 %v2484
      %v2574 = vpop.f32.mrf.mxu0
      %v2575 = vadd.f32 0.0, %v2574
      %v2576 = vpop.f32.mrf.mxu0
      %v2577 = vpop.f32.mrf.mxu0
      %v2578 = vadd.f32 0.0, %v2577
      %v2579 = vpop.f32.mrf.mxu0
      %2580 = vmatprep.mubr.bf16.mxu0 0
      %2581 = vmatmul.mubr.bf16.gmra.mxu0 %v2487
      %v2582 = vpop.f32.mrf.mxu0
      %v2583 = vadd.f32 0.0, %v2582
      %v2584 = vpop.f32.mrf.mxu0
      %v2585 = vpop.f32.mrf.mxu0
      %v2586 = vadd.f32 0.0, %v2585
      %v2587 = vpop.f32.mrf.mxu0
      %2588 = vdwg.mxu0
      %v2589 = vadd.f32 %v2390, %v2527
      %v2590 = vadd.f32 %v2391, %v2530
      %v2591 = vadd.f32 %v2392, %v2535
      %v2592 = vadd.f32 %v2393, %v2538
      %v2593 = vadd.f32 %v2394, %v2543
      %v2594 = vadd.f32 %v2395, %v2546
      %v2595 = vadd.f32 %v2396, %v2551
      %v2596 = vadd.f32 %v2397, %v2554
      %v2597 = vadd.f32 %v2398, %v2559
      %v2598 = vadd.f32 %v2399, %v2562
      %v2599 = vadd.f32 %v2400, %v2567
      %v2600 = vadd.f32 %v2401, %v2570
      %v2601 = vadd.f32 %v2402, %v2575
      %v2602 = vadd.f32 %v2403, %v2578
      %v2603 = vadd.f32 %v2404, %v2583
      %v2604 = vadd.f32 %v2405, %v2586
      %v2605 = vld [vmem:[%s2406] sm:$0xf]
      %v2606 = vld [vmem:[%s2406 + $0x4] sm:$0xf]
      %v2607 = vld [vmem:[%s2406 + $0x8] sm:$0x1]
      %v2608 = vld [vmem:[%s2406 + $0xc] sm:$0xf]
      %v2609 = vld [vmem:[%s2406 + $0x10] sm:$0xf]
      %v2610 = vld [vmem:[%s2406 + $0x14] sm:$0x1]
      %v2611 = vld [vmem:[%s2406 + $0x18] sm:$0xf]
      %v2612 = vld [vmem:[%s2406 + $0x1c] sm:$0xf]
      %v2613 = vld [vmem:[%s2406 + $0x20] sm:$0x1]
      %v2614 = vld [vmem:[%s2406 + $0x24] sm:$0xf]
      %v2615 = vld [vmem:[%s2406 + $0x28] sm:$0xf]
      %v2616 = vld [vmem:[%s2406 + $0x2c] sm:$0x1]
      %v2617 = vld [vmem:[%s2406 + $0x30] sm:$0xf]
      %v2618 = vld [vmem:[%s2406 + $0x34] sm:$0xf]
      %v2619 = vld [vmem:[%s2406 + $0x38] sm:$0x1]
      %v2620 = vld [vmem:[%s2406 + $0x3c] sm:$0xf]
      %v2621 = vld [vmem:[%s2406 + $0x40] sm:$0xf]
      %v2622 = vld [vmem:[%s2406 + $0x44] sm:$0x1]
      %v2623 = vld [vmem:[%s2406 + $0x48] sm:$0xf]
      %v2624 = vld [vmem:[%s2406 + $0x4c] sm:$0xf]
      %v2625 = vld [vmem:[%s2406 + $0x50] sm:$0x1]
      %v2626 = vld [vmem:[%s2406 + $0x54] sm:$0xf]
      %v2627 = vld [vmem:[%s2406 + $0x58] sm:$0xf]
      %v2628 = vld [vmem:[%s2406 + $0x5c] sm:$0x1]
      %v2630 = vshrl.u32 %v2605, 16
      %v2632 = vrot.slane %v2630, 4
      %v2633 = vshll.u32 %v2605, 16
      %v2635 = vrot.slane %v2633, 5
      %v2636 = vor.u32 %v2632, %v2635
      %v2637 = vrot.slane %v2636, 4
      %v2639 = vshll.u32 %v2606, 16
      %v2641 = vrot.slane %v2639, 5
      %v2642 = vsel %vm814, %v2637, %v2641
      %v2643 = vshrl.u32 %v2606, 16
      %v2645 = vrot.slane %v2643, 4
      %v2646 = vor.u32 %v2645, %v2641
      %v2647 = vrot.slane %v2646, 4
      %v2649 = vshll.u32 %v2607, 16
      %v2651 = vrot.slane %v2649, 5
      %v2652 = vsel %vm814, %v2647, %v2651
      %v2654 = vshrl.u32 %v2608, 16
      %v2656 = vrot.slane %v2654, 4
      %v2657 = vshll.u32 %v2608, 16
      %v2659 = vrot.slane %v2657, 5
      %v2660 = vor.u32 %v2656, %v2659
      %v2661 = vrot.slane %v2660, 4
      %v2663 = vshll.u32 %v2609, 16
      %v2665 = vrot.slane %v2663, 5
      %v2666 = vsel %vm814, %v2661, %v2665
      %v2667 = vshrl.u32 %v2609, 16
      %v2669 = vrot.slane %v2667, 4
      %v2670 = vor.u32 %v2669, %v2665
      %v2671 = vrot.slane %v2670, 4
      %v2673 = vshll.u32 %v2610, 16
      %v2675 = vrot.slane %v2673, 5
      %v2676 = vsel %vm814, %v2671, %v2675
      %v2678 = vshrl.u32 %v2611, 16
      %v2680 = vrot.slane %v2678, 4
      %v2681 = vshll.u32 %v2611, 16
      %v2683 = vrot.slane %v2681, 5
      %v2684 = vor.u32 %v2680, %v2683
      %v2685 = vrot.slane %v2684, 4
      %v2687 = vshll.u32 %v2612, 16
      %v2689 = vrot.slane %v2687, 5
      %v2690 = vsel %vm814, %v2685, %v2689
      %v2691 = vshrl.u32 %v2612, 16
      %v2693 = vrot.slane %v2691, 4
      %v2694 = vor.u32 %v2693, %v2689
      %v2695 = vrot.slane %v2694, 4
      %v2697 = vshll.u32 %v2613, 16
      %v2699 = vrot.slane %v2697, 5
      %v2700 = vsel %vm814, %v2695, %v2699
      %v2702 = vshrl.u32 %v2614, 16
      %v2704 = vrot.slane %v2702, 4
      %v2705 = vshll.u32 %v2614, 16
      %v2707 = vrot.slane %v2705, 5
      %v2708 = vor.u32 %v2704, %v2707
      %v2709 = vrot.slane %v2708, 4
      %v2711 = vshll.u32 %v2615, 16
      %v2713 = vrot.slane %v2711, 5
      %v2714 = vsel %vm814, %v2709, %v2713
      %v2715 = vshrl.u32 %v2615, 16
      %v2717 = vrot.slane %v2715, 4
      %v2718 = vor.u32 %v2717, %v2713
      %v2719 = vrot.slane %v2718, 4
      %v2721 = vshll.u32 %v2616, 16
      %v2723 = vrot.slane %v2721, 5
      %v2724 = vsel %vm814, %v2719, %v2723
      %v2726 = vshrl.u32 %v2617, 16
      %v2728 = vrot.slane %v2726, 4
      %v2729 = vshll.u32 %v2617, 16
      %v2731 = vrot.slane %v2729, 5
      %v2732 = vor.u32 %v2728, %v2731
      %v2733 = vrot.slane %v2732, 4
      %v2735 = vshll.u32 %v2618, 16
      %v2737 = vrot.slane %v2735, 5
      %v2738 = vsel %vm814, %v2733, %v2737
      %v2739 = vshrl.u32 %v2618, 16
      %v2741 = vrot.slane %v2739, 4
      %v2742 = vor.u32 %v2741, %v2737
      %v2743 = vrot.slane %v2742, 4
      %v2745 = vshll.u32 %v2619, 16
      %v2747 = vrot.slane %v2745, 5
      %v2748 = vsel %vm814, %v2743, %v2747
      %v2750 = vshrl.u32 %v2620, 16
      %v2752 = vrot.slane %v2750, 4
      %v2753 = vshll.u32 %v2620, 16
      %v2755 = vrot.slane %v2753, 5
      %v2756 = vor.u32 %v2752, %v2755
      %v2757 = vrot.slane %v2756, 4
      %v2759 = vshll.u32 %v2621, 16
      %v2761 = vrot.slane %v2759, 5
      %v2762 = vsel %vm814, %v2757, %v2761
      %v2763 = vshrl.u32 %v2621, 16
      %v2765 = vrot.slane %v2763, 4
      %v2766 = vor.u32 %v2765, %v2761
      %v2767 = vrot.slane %v2766, 4
      %v2769 = vshll.u32 %v2622, 16
      %v2771 = vrot.slane %v2769, 5
      %v2772 = vsel %vm814, %v2767, %v2771
      %v2774 = vshrl.u32 %v2623, 16
      %v2776 = vrot.slane %v2774, 4
      %v2777 = vshll.u32 %v2623, 16
      %v2779 = vrot.slane %v2777, 5
      %v2780 = vor.u32 %v2776, %v2779
      %v2781 = vrot.slane %v2780, 4
      %v2783 = vshll.u32 %v2624, 16
      %v2785 = vrot.slane %v2783, 5
      %v2786 = vsel %vm814, %v2781, %v2785
      %v2787 = vshrl.u32 %v2624, 16
      %v2789 = vrot.slane %v2787, 4
      %v2790 = vor.u32 %v2789, %v2785
      %v2791 = vrot.slane %v2790, 4
      %v2793 = vshll.u32 %v2625, 16
      %v2795 = vrot.slane %v2793, 5
      %v2796 = vsel %vm814, %v2791, %v2795
      %v2798 = vshrl.u32 %v2626, 16
      %v2800 = vrot.slane %v2798, 4
      %v2801 = vshll.u32 %v2626, 16
      %v2803 = vrot.slane %v2801, 5
      %v2804 = vor.u32 %v2800, %v2803
      %v2805 = vrot.slane %v2804, 4
      %v2807 = vshll.u32 %v2627, 16
      %v2809 = vrot.slane %v2807, 5
      %v2810 = vsel %vm814, %v2805, %v2809
      %v2811 = vshrl.u32 %v2627, 16
      %v2813 = vrot.slane %v2811, 4
      %v2814 = vor.u32 %v2813, %v2809
      %v2815 = vrot.slane %v2814, 4
      %v2817 = vshll.u32 %v2628, 16
      %v2819 = vrot.slane %v2817, 5
      %v2820 = vsel %vm814, %v2815, %v2819
      %s2821 = scalar_lea.vmem %s3, 14
      %v2822 = vld [vmem:[%s2821] sm:$0x3]
      %v2823 = vunpack.c.l.b16 %v2642
      %v2824 = vunpack.c.l.b16 %v2652
      %v2825 = vunpack.c.l.b16 %v2666
      %v2826 = vunpack.c.l.b16 %v2676
      %v2827 = vunpack.c.l.b16 %v2690
      %v2828 = vunpack.c.l.b16 %v2700
      %v2829 = vunpack.c.l.b16 %v2714
      %v2830 = vunpack.c.l.b16 %v2724
      %v2831 = vunpack.c.l.b16 %v2738
      %v2832 = vunpack.c.l.b16 %v2748
      %v2833 = vunpack.c.l.b16 %v2762
      %v2834 = vunpack.c.l.b16 %v2772
      %v2835 = vunpack.c.l.b16 %v2786
      %v2836 = vunpack.c.l.b16 %v2796
      %v2837 = vunpack.c.l.b16 %v2810
      %v2838 = vunpack.c.l.b16 %v2820
      %v2839 = vpack.c.b16 %v2824, %v2823
      %v2840 = vpack.c.b16 %v2826, %v2825
      %v2841 = vpack.c.b16 %v2828, %v2827
      %v2842 = vpack.c.b16 %v2830, %v2829
      %v2843 = vpack.c.b16 %v2832, %v2831
      %v2844 = vpack.c.b16 %v2834, %v2833
      %v2845 = vpack.c.b16 %v2836, %v2835
      %v2846 = vpack.c.b16 %v2838, %v2837
      %v2848 = vsel %vm1033, %v2839, 0
      %v2851 = vsel %vm1033, %v2840, 0
      %v2854 = vsel %vm1033, %v2841, 0
      %v2857 = vsel %vm1033, %v2842, 0
      %v2860 = vsel %vm1033, %v2843, 0
      %v2863 = vsel %vm1033, %v2844, 0
      %v2866 = vsel %vm1033, %v2845, 0
      %v2869 = vsel %vm1033, %v2846, 0
      %v2872 = vsel %vm1058, %v2822, 0
      %2874 = vmatprep.subr.bf16.mxu0 0
      %2875 = vmatpush1.bf16.msra.mxu0 0
      %2876 = vmatprep.subr.bf16.mxu0 0
      %2877 = vmatpush1.bf16.msra.mxu0 0
      %2878 = vmatprep.subr.bf16.mxu0 0
      %2879 = vmatpush1.bf16.msra.mxu0 0
      %2880 = vmatprep.subr.bf16.mxu0 0
      %2881 = vmatpush1.bf16.msra.mxu0 0
      %2882 = vmatprep.subr.bf16.mxu0 0
      %2883 = vmatpush1.bf16.msra.mxu0 0
      %2884 = vmatprep.subr.bf16.mxu0 0
      %2885 = vmatpush1.bf16.msra.mxu0 0
      %2886 = vmatprep.subr.bf16.mxu0 0
      %2887 = vmatpush1.bf16.msra.mxu0 0
      %2888 = vmatprep.subr.bf16.mxu0 0
      %2889 = vmatpush1.bf16.msra.mxu0 %v2872
      %2890 = vmatprep.subr.bf16.mxu0 0
      %2891 = vmatpush2.bf16.msra.mxu0 0
      %2892 = vmatprep.subr.bf16.mxu0 0
      %2893 = vmatpush2.bf16.msra.mxu0 0
      %2894 = vmatprep.subr.bf16.mxu0 0
      %2895 = vmatpush2.bf16.msra.mxu0 0
      %2896 = vmatprep.subr.bf16.mxu0 0
      %2897 = vmatpush2.bf16.msra.mxu0 0
      %2898 = vmatprep.subr.bf16.mxu0 0
      %2899 = vmatpush2.bf16.msra.mxu0 0
      %2900 = vmatprep.subr.bf16.mxu0 0
      %2901 = vmatpush2.bf16.msra.mxu0 0
      %2902 = vmatprep.subr.bf16.mxu0 0
      %2903 = vmatpush2.bf16.msra.mxu0 0
      %2904 = vmatprep.subr.bf16.mxu0 0
      %2905 = vmatpush2.bf16.msra.mxu0 0
      %2906 = vmatprep.mubr.bf16.mxu0 0
      %2907 = vmatmul.mubr.bf16.gmra.mxu0 %v2848
      %v2908 = vpop.f32.mrf.mxu0
      %v2909 = vadd.f32 0.0, %v2908
      %v2910 = vpop.f32.mrf.mxu0
      %v2911 = vpop.f32.mrf.mxu0
      %v2912 = vadd.f32 0.0, %v2911
      %v2913 = vpop.f32.mrf.mxu0
      %2914 = vmatprep.mubr.bf16.mxu0 0
      %2915 = vmatmul.mubr.bf16.gmra.mxu0 %v2851
      %v2916 = vpop.f32.mrf.mxu0
      %v2917 = vadd.f32 0.0, %v2916
      %v2918 = vpop.f32.mrf.mxu0
      %v2919 = vpop.f32.mrf.mxu0
      %v2920 = vadd.f32 0.0, %v2919
      %v2921 = vpop.f32.mrf.mxu0
      %2922 = vmatprep.mubr.bf16.mxu0 0
      %2923 = vmatmul.mubr.bf16.gmra.mxu0 %v2854
      %v2924 = vpop.f32.mrf.mxu0
      %v2925 = vadd.f32 0.0, %v2924
      %v2926 = vpop.f32.mrf.mxu0
      %v2927 = vpop.f32.mrf.mxu0
      %v2928 = vadd.f32 0.0, %v2927
      %v2929 = vpop.f32.mrf.mxu0
      %2930 = vmatprep.mubr.bf16.mxu0 0
      %2931 = vmatmul.mubr.bf16.gmra.mxu0 %v2857
      %v2932 = vpop.f32.mrf.mxu0
      %v2933 = vadd.f32 0.0, %v2932
      %v2934 = vpop.f32.mrf.mxu0
      %v2935 = vpop.f32.mrf.mxu0
      %v2936 = vadd.f32 0.0, %v2935
      %v2937 = vpop.f32.mrf.mxu0
      %2938 = vmatprep.mubr.bf16.mxu0 0
      %2939 = vmatmul.mubr.bf16.gmra.mxu0 %v2860
      %v2940 = vpop.f32.mrf.mxu0
      %v2941 = vadd.f32 0.0, %v2940
      %v2942 = vpop.f32.mrf.mxu0
      %v2943 = vpop.f32.mrf.mxu0
      %v2944 = vadd.f32 0.0, %v2943
      %v2945 = vpop.f32.mrf.mxu0
      %2946 = vmatprep.mubr.bf16.mxu0 0
      %2947 = vmatmul.mubr.bf16.gmra.mxu0 %v2863
      %v2948 = vpop.f32.mrf.mxu0
      %v2949 = vadd.f32 0.0, %v2948
      %v2950 = vpop.f32.mrf.mxu0
      %v2951 = vpop.f32.mrf.mxu0
      %v2952 = vadd.f32 0.0, %v2951
      %v2953 = vpop.f32.mrf.mxu0
      %2954 = vmatprep.mubr.bf16.mxu0 0
      %2955 = vmatmul.mubr.bf16.gmra.mxu0 %v2866
      %v2956 = vpop.f32.mrf.mxu0
      %v2957 = vadd.f32 0.0, %v2956
      %v2958 = vpop.f32.mrf.mxu0
      %v2959 = vpop.f32.mrf.mxu0
      %v2960 = vadd.f32 0.0, %v2959
      %v2961 = vpop.f32.mrf.mxu0
      %2962 = vmatprep.mubr.bf16.mxu0 0
      %2963 = vmatmul.mubr.bf16.gmra.mxu0 %v2869
      %v2964 = vpop.f32.mrf.mxu0
      %v2965 = vadd.f32 0.0, %v2964
      %v2966 = vpop.f32.mrf.mxu0
      %v2967 = vpop.f32.mrf.mxu0
      %v2968 = vadd.f32 0.0, %v2967
      %v2969 = vpop.f32.mrf.mxu0
      %2970 = vdwg.mxu0
      %v2971 = vadd.f32 %v2589, %v2909
      %v2972 = vadd.f32 %v2590, %v2912
      %v2973 = vadd.f32 %v2591, %v2917
      %v2974 = vadd.f32 %v2592, %v2920
      %v2975 = vadd.f32 %v2593, %v2925
      %v2976 = vadd.f32 %v2594, %v2928
      %v2977 = vadd.f32 %v2595, %v2933
      %v2978 = vadd.f32 %v2596, %v2936
      %v2979 = vadd.f32 %v2597, %v2941
      %v2980 = vadd.f32 %v2598, %v2944
      %v2981 = vadd.f32 %v2599, %v2949
      %v2982 = vadd.f32 %v2600, %v2952
      %v2983 = vadd.f32 %v2601, %v2957
      %v2984 = vadd.f32 %v2602, %v2960
      %v2985 = vadd.f32 %v2603, %v2965
      %v2986 = vadd.f32 %v2604, %v2968
      %v2987 = vld [vmem:[%s2406] sm:$0xe]
      %v2988 = vld [vmem:[%s2406 + $0xc] sm:$0xe]
      %v2989 = vld [vmem:[%s2406 + $0x18] sm:$0xe]
      %v2990 = vld [vmem:[%s2406 + $0x24] sm:$0xe]
      %v2991 = vld [vmem:[%s2406 + $0x30] sm:$0xe]
      %v2992 = vld [vmem:[%s2406 + $0x3c] sm:$0xe]
      %v2993 = vld [vmem:[%s2406 + $0x48] sm:$0xe]
      %v2994 = vld [vmem:[%s2406 + $0x54] sm:$0xe]
      %v3019 = vrot.slane %v2987, 5
      %v3020 = vrot.slane %v3019, 4
      %v3021 = vrot.slane %v2606, 5
      %v3022 = vsel %vm1349, %v3020, %v3021
      %v3023 = vrot.slane %v3021, 4
      %v3024 = vrot.slane %v2607, 5
      %v3025 = vsel %vm1349, %v3023, %v3024
      %v3026 = vrot.slane %v2988, 5
      %v3027 = vrot.slane %v3026, 4
      %v3028 = vrot.slane %v2609, 5
      %v3029 = vsel %vm1349, %v3027, %v3028
      %v3030 = vrot.slane %v3028, 4
      %v3031 = vrot.slane %v2610, 5
      %v3032 = vsel %vm1349, %v3030, %v3031
      %v3033 = vrot.slane %v2989, 5
      %v3034 = vrot.slane %v3033, 4
      %v3035 = vrot.slane %v2612, 5
      %v3036 = vsel %vm1349, %v3034, %v3035
      %v3037 = vrot.slane %v3035, 4
      %v3038 = vrot.slane %v2613, 5
      %v3039 = vsel %vm1349, %v3037, %v3038
      %v3040 = vrot.slane %v2990, 5
      %v3041 = vrot.slane %v3040, 4
      %v3042 = vrot.slane %v2615, 5
      %v3043 = vsel %vm1349, %v3041, %v3042
      %v3044 = vrot.slane %v3042, 4
      %v3045 = vrot.slane %v2616, 5
      %v3046 = vsel %vm1349, %v3044, %v3045
      %v3047 = vrot.slane %v2991, 5
      %v3048 = vrot.slane %v3047, 4
      %v3049 = vrot.slane %v2618, 5
      %v3050 = vsel %vm1349, %v3048, %v3049
      %v3051 = vrot.slane %v3049, 4
      %v3052 = vrot.slane %v2619, 5
      %v3053 = vsel %vm1349, %v3051, %v3052
      %v3054 = vrot.slane %v2992, 5
      %v3055 = vrot.slane %v3054, 4
      %v3056 = vrot.slane %v2621, 5
      %v3057 = vsel %vm1349, %v3055, %v3056
      %v3058 = vrot.slane %v3056, 4
      %v3059 = vrot.slane %v2622, 5
      %v3060 = vsel %vm1349, %v3058, %v3059
      %v3061 = vrot.slane %v2993, 5
      %v3062 = vrot.slane %v3061, 4
      %v3063 = vrot.slane %v2624, 5
      %v3064 = vsel %vm1349, %v3062, %v3063
      %v3065 = vrot.slane %v3063, 4
      %v3066 = vrot.slane %v2625, 5
      %v3067 = vsel %vm1349, %v3065, %v3066
      %v3068 = vrot.slane %v2994, 5
      %v3069 = vrot.slane %v3068, 4
      %v3070 = vrot.slane %v2627, 5
      %v3071 = vsel %vm1349, %v3069, %v3070
      %v3072 = vrot.slane %v3070, 4
      %v3073 = vrot.slane %v2628, 5
      %v3074 = vsel %vm1349, %v3072, %v3073
      %s3075 = scalar_lea.vmem %s3, 16
      %v3076 = vld [vmem:[%s3075] sm:$0x3]
      %v3077 = vunpack.c.l.b16 %v3022
      %v3078 = vunpack.c.l.b16 %v3025
      %v3079 = vunpack.c.l.b16 %v3029
      %v3080 = vunpack.c.l.b16 %v3032
      %v3081 = vunpack.c.l.b16 %v3036
      %v3082 = vunpack.c.l.b16 %v3039
      %v3083 = vunpack.c.l.b16 %v3043
      %v3084 = vunpack.c.l.b16 %v3046
      %v3085 = vunpack.c.l.b16 %v3050
      %v3086 = vunpack.c.l.b16 %v3053
      %v3087 = vunpack.c.l.b16 %v3057
      %v3088 = vunpack.c.l.b16 %v3060
      %v3089 = vunpack.c.l.b16 %v3064
      %v3090 = vunpack.c.l.b16 %v3067
      %v3091 = vunpack.c.l.b16 %v3071
      %v3092 = vunpack.c.l.b16 %v3074
      %v3093 = vpack.c.b16 %v3078, %v3077
      %v3094 = vpack.c.b16 %v3080, %v3079
      %v3095 = vpack.c.b16 %v3082, %v3081
      %v3096 = vpack.c.b16 %v3084, %v3083
      %v3097 = vpack.c.b16 %v3086, %v3085
      %v3098 = vpack.c.b16 %v3088, %v3087
      %v3099 = vpack.c.b16 %v3090, %v3089
      %v3100 = vpack.c.b16 %v3092, %v3091
      %v3102 = vsel %vm1033, %v3093, 0
      %v3105 = vsel %vm1033, %v3094, 0
      %v3108 = vsel %vm1033, %v3095, 0
      %v3111 = vsel %vm1033, %v3096, 0
      %v3114 = vsel %vm1033, %v3097, 0
      %v3117 = vsel %vm1033, %v3098, 0
      %v3120 = vsel %vm1033, %v3099, 0
      %v3123 = vsel %vm1033, %v3100, 0
      %v3126 = vsel %vm1058, %v3076, 0
      %3128 = vmatprep.subr.bf16.mxu0 0
      %3129 = vmatpush1.bf16.msra.mxu0 0
      %3130 = vmatprep.subr.bf16.mxu0 0
      %3131 = vmatpush1.bf16.msra.mxu0 0
      %3132 = vmatprep.subr.bf16.mxu0 0
      %3133 = vmatpush1.bf16.msra.mxu0 0
      %3134 = vmatprep.subr.bf16.mxu0 0
      %3135 = vmatpush1.bf16.msra.mxu0 0
      %3136 = vmatprep.subr.bf16.mxu0 0
      %3137 = vmatpush1.bf16.msra.mxu0 0
      %3138 = vmatprep.subr.bf16.mxu0 0
      %3139 = vmatpush1.bf16.msra.mxu0 0
      %3140 = vmatprep.subr.bf16.mxu0 0
      %3141 = vmatpush1.bf16.msra.mxu0 0
      %3142 = vmatprep.subr.bf16.mxu0 0
      %3143 = vmatpush1.bf16.msra.mxu0 %v3126
      %3144 = vmatprep.subr.bf16.mxu0 0
      %3145 = vmatpush2.bf16.msra.mxu0 0
      %3146 = vmatprep.subr.bf16.mxu0 0
      %3147 = vmatpush2.bf16.msra.mxu0 0
      %3148 = vmatprep.subr.bf16.mxu0 0
      %3149 = vmatpush2.bf16.msra.mxu0 0
      %3150 = vmatprep.subr.bf16.mxu0 0
      %3151 = vmatpush2.bf16.msra.mxu0 0
      %3152 = vmatprep.subr.bf16.mxu0 0
      %3153 = vmatpush2.bf16.msra.mxu0 0
      %3154 = vmatprep.subr.bf16.mxu0 0
      %3155 = vmatpush2.bf16.msra.mxu0 0
      %3156 = vmatprep.subr.bf16.mxu0 0
      %3157 = vmatpush2.bf16.msra.mxu0 0
      %3158 = vmatprep.subr.bf16.mxu0 0
      %3159 = vmatpush2.bf16.msra.mxu0 0
      %3160 = vmatprep.mubr.bf16.mxu0 0
      %3161 = vmatmul.mubr.bf16.gmra.mxu0 %v3102
      %v3162 = vpop.f32.mrf.mxu0
      %v3163 = vadd.f32 0.0, %v3162
      %v3164 = vpop.f32.mrf.mxu0
      %v3165 = vpop.f32.mrf.mxu0
      %v3166 = vadd.f32 0.0, %v3165
      %v3167 = vpop.f32.mrf.mxu0
      %3168 = vmatprep.mubr.bf16.mxu0 0
      %3169 = vmatmul.mubr.bf16.gmra.mxu0 %v3105
      %v3170 = vpop.f32.mrf.mxu0
      %v3171 = vadd.f32 0.0, %v3170
      %v3172 = vpop.f32.mrf.mxu0
      %v3173 = vpop.f32.mrf.mxu0
      %v3174 = vadd.f32 0.0, %v3173
      %v3175 = vpop.f32.mrf.mxu0
      %3176 = vmatprep.mubr.bf16.mxu0 0
      %3177 = vmatmul.mubr.bf16.gmra.mxu0 %v3108
      %v3178 = vpop.f32.mrf.mxu0
      %v3179 = vadd.f32 0.0, %v3178
      %v3180 = vpop.f32.mrf.mxu0
      %v3181 = vpop.f32.mrf.mxu0
      %v3182 = vadd.f32 0.0, %v3181
      %v3183 = vpop.f32.mrf.mxu0
      %3184 = vmatprep.mubr.bf16.mxu0 0
      %3185 = vmatmul.mubr.bf16.gmra.mxu0 %v3111
      %v3186 = vpop.f32.mrf.mxu0
      %v3187 = vadd.f32 0.0, %v3186
      %v3188 = vpop.f32.mrf.mxu0
      %v3189 = vpop.f32.mrf.mxu0
      %v3190 = vadd.f32 0.0, %v3189
      %v3191 = vpop.f32.mrf.mxu0
      %3192 = vmatprep.mubr.bf16.mxu0 0
      %3193 = vmatmul.mubr.bf16.gmra.mxu0 %v3114
      %v3194 = vpop.f32.mrf.mxu0
      %v3195 = vadd.f32 0.0, %v3194
      %v3196 = vpop.f32.mrf.mxu0
      %v3197 = vpop.f32.mrf.mxu0
      %v3198 = vadd.f32 0.0, %v3197
      %v3199 = vpop.f32.mrf.mxu0
      %3200 = vmatprep.mubr.bf16.mxu0 0
      %3201 = vmatmul.mubr.bf16.gmra.mxu0 %v3117
      %v3202 = vpop.f32.mrf.mxu0
      %v3203 = vadd.f32 0.0, %v3202
      %v3204 = vpop.f32.mrf.mxu0
      %v3205 = vpop.f32.mrf.mxu0
      %v3206 = vadd.f32 0.0, %v3205
      %v3207 = vpop.f32.mrf.mxu0
      %3208 = vmatprep.mubr.bf16.mxu0 0
      %3209 = vmatmul.mubr.bf16.gmra.mxu0 %v3120
      %v3210 = vpop.f32.mrf.mxu0
      %v3211 = vadd.f32 0.0, %v3210
      %v3212 = vpop.f32.mrf.mxu0
      %v3213 = vpop.f32.mrf.mxu0
      %v3214 = vadd.f32 0.0, %v3213
      %v3215 = vpop.f32.mrf.mxu0
      %3216 = vmatprep.mubr.bf16.mxu0 0
      %3217 = vmatmul.mubr.bf16.gmra.mxu0 %v3123
      %v3218 = vpop.f32.mrf.mxu0
      %v3219 = vadd.f32 0.0, %v3218
      %v3220 = vpop.f32.mrf.mxu0
      %v3221 = vpop.f32.mrf.mxu0
      %v3222 = vadd.f32 0.0, %v3221
      %v3223 = vpop.f32.mrf.mxu0
      %3224 = vdwg.mxu0
      %v3225 = vadd.f32 %v2971, %v3163
      %v3226 = vadd.f32 %v2972, %v3166
      %v3227 = vadd.f32 %v2973, %v3171
      %v3228 = vadd.f32 %v2974, %v3174
      %v3229 = vadd.f32 %v2975, %v3179
      %v3230 = vadd.f32 %v2976, %v3182
      %v3231 = vadd.f32 %v2977, %v3187
      %v3232 = vadd.f32 %v2978, %v3190
      %v3233 = vadd.f32 %v2979, %v3195
      %v3234 = vadd.f32 %v2980, %v3198
      %v3235 = vadd.f32 %v2981, %v3203
      %v3236 = vadd.f32 %v2982, %v3206
      %v3237 = vadd.f32 %v2983, %v3211
      %v3238 = vadd.f32 %v2984, %v3214
      %v3239 = vadd.f32 %v2985, %v3219
      %v3240 = vadd.f32 %v2986, %v3222
      %v3241 = vld [vmem:[%s4] sm:$0x1]
      %v3243 = vlaneseq
      %v3244 = vshrl.u32 %v3243, 7
      %v3245 = vsub.s32 0, %v3244
      %v3246 = vrot.slane %v3241, %v3245
      %v3248 = vadd.f32 %v3225, %v3246
      %v3249 = vadd.f32 %v3226, %v3246
      %v3250 = vadd.f32 %v3227, %v3246
      %v3251 = vadd.f32 %v3228, %v3246
      %v3252 = vadd.f32 %v3229, %v3246
      %v3253 = vadd.f32 %v3230, %v3246
      %v3254 = vadd.f32 %v3231, %v3246
      %v3255 = vadd.f32 %v3232, %v3246
      %v3256 = vadd.f32 %v3233, %v3246
      %v3257 = vadd.f32 %v3234, %v3246
      %v3258 = vadd.f32 %v3235, %v3246
      %v3259 = vadd.f32 %v3236, %v3246
      %v3260 = vadd.f32 %v3237, %v3246
      %v3261 = vadd.f32 %v3238, %v3246
      %v3262 = vadd.f32 %v3239, %v3246
      %v3263 = vadd.f32 %v3240, %v3246
      %v3264 = vsub.f32 0.0, %v3248
      %v3265 = vsub.f32 0.0, %v3249
      %v3266 = vsub.f32 0.0, %v3250
      %v3267 = vsub.f32 0.0, %v3251
      %v3268 = vsub.f32 0.0, %v3252
      %v3269 = vsub.f32 0.0, %v3253
      %v3270 = vsub.f32 0.0, %v3254
      %v3271 = vsub.f32 0.0, %v3255
      %v3272 = vsub.f32 0.0, %v3256
      %v3273 = vsub.f32 0.0, %v3257
      %v3274 = vsub.f32 0.0, %v3258
      %v3275 = vsub.f32 0.0, %v3259
      %v3276 = vsub.f32 0.0, %v3260
      %v3277 = vsub.f32 0.0, %v3261
      %v3278 = vsub.f32 0.0, %v3262
      %v3279 = vsub.f32 0.0, %v3263
      %v3280 = vmul.f32 %v3264, 1.442695
      %v3281 = vpow.pop %v3280
      %v3282 = vmul.f32 %v3265, 1.442695
      %v3283 = vpow.pop %v3282
      %v3284 = vmul.f32 %v3266, 1.442695
      %v3285 = vpow.pop %v3284
      %v3286 = vmul.f32 %v3267, 1.442695
      %v3287 = vpow.pop %v3286
      %v3288 = vmul.f32 %v3268, 1.442695
      %v3289 = vpow.pop %v3288
      %v3290 = vmul.f32 %v3269, 1.442695
      %v3291 = vpow.pop %v3290
      %v3292 = vmul.f32 %v3270, 1.442695
      %v3293 = vpow.pop %v3292
      %v3294 = vmul.f32 %v3271, 1.442695
      %v3295 = vpow.pop %v3294
      %v3296 = vmul.f32 %v3272, 1.442695
      %v3297 = vpow.pop %v3296
      %v3298 = vmul.f32 %v3273, 1.442695
      %v3299 = vpow.pop %v3298
      %v3300 = vmul.f32 %v3274, 1.442695
      %v3301 = vpow.pop %v3300
      %v3302 = vmul.f32 %v3275, 1.442695
      %v3303 = vpow.pop %v3302
      %v3304 = vmul.f32 %v3276, 1.442695
      %v3305 = vpow.pop %v3304
      %v3306 = vmul.f32 %v3277, 1.442695
      %v3307 = vpow.pop %v3306
      %v3308 = vmul.f32 %v3278, 1.442695
      %v3309 = vpow.pop %v3308
      %v3310 = vmul.f32 %v3279, 1.442695
      %v3311 = vpow.pop %v3310
      %v3312 = vadd.f32 %v3281, 1.0
      %v3313 = vadd.f32 %v3283, 1.0
      %v3314 = vadd.f32 %v3285, 1.0
      %v3315 = vadd.f32 %v3287, 1.0
      %v3316 = vadd.f32 %v3289, 1.0
      %v3317 = vadd.f32 %v3291, 1.0
      %v3318 = vadd.f32 %v3293, 1.0
      %v3319 = vadd.f32 %v3295, 1.0
      %v3320 = vadd.f32 %v3297, 1.0
      %v3321 = vadd.f32 %v3299, 1.0
      %v3322 = vadd.f32 %v3301, 1.0
      %v3323 = vadd.f32 %v3303, 1.0
      %v3324 = vadd.f32 %v3305, 1.0
      %v3325 = vadd.f32 %v3307, 1.0
      %v3326 = vadd.f32 %v3309, 1.0
      %v3327 = vadd.f32 %v3311, 1.0
      %v3328 = vrcp.pop %v3312
      %v3329 = vrcp.pop %v3313
      %v3330 = vrcp.pop %v3314
      %v3331 = vrcp.pop %v3315
      %v3332 = vrcp.pop %v3316
      %v3333 = vrcp.pop %v3317
      %v3334 = vrcp.pop %v3318
      %v3335 = vrcp.pop %v3319
      %v3336 = vrcp.pop %v3320
      %v3337 = vrcp.pop %v3321
      %v3338 = vrcp.pop %v3322
      %v3339 = vrcp.pop %v3323
      %v3340 = vrcp.pop %v3324
      %v3341 = vrcp.pop %v3325
      %v3342 = vrcp.pop %v3326
      %v3343 = vrcp.pop %v3327
      %v3344 = vmul.f32 %v3248, %v3328
      %v3345 = vmul.f32 %v3249, %v3329
      %v3346 = vmul.f32 %v3250, %v3330
      %v3347 = vmul.f32 %v3251, %v3331
      %v3348 = vmul.f32 %v3252, %v3332
      %v3349 = vmul.f32 %v3253, %v3333
      %v3350 = vmul.f32 %v3254, %v3334
      %v3351 = vmul.f32 %v3255, %v3335
      %v3352 = vmul.f32 %v3256, %v3336
      %v3353 = vmul.f32 %v3257, %v3337
      %v3354 = vmul.f32 %v3258, %v3338
      %v3355 = vmul.f32 %v3259, %v3339
      %v3356 = vmul.f32 %v3260, %v3340
      %v3357 = vmul.f32 %v3261, %v3341
      %v3358 = vmul.f32 %v3262, %v3342
      %v3359 = vmul.f32 %v3263, %v3343
      %v3360 = vpack.c.bf16 %v3345, %v3344
      %v3361 = vpack.c.bf16 %v3347, %v3346
      %v3362 = vpack.c.bf16 %v3349, %v3348
      %v3363 = vpack.c.bf16 %v3351, %v3350
      %v3364 = vpack.c.bf16 %v3353, %v3352
      %v3365 = vpack.c.bf16 %v3355, %v3354
      %v3366 = vpack.c.bf16 %v3357, %v3356
      %v3367 = vpack.c.bf16 %v3359, %v3358
      %v3376 = vunpack.c.l.b16 %v3360
      %v3377 = vunpack.c.h.b16 %v3360
      %v3378 = vunpack.c.l.b16 %v3361
      %v3379 = vunpack.c.h.b16 %v3361
      %v3380 = vunpack.c.l.b16 %v3362
      %v3381 = vunpack.c.h.b16 %v3362
      %v3382 = vunpack.c.l.b16 %v3363
      %v3383 = vunpack.c.h.b16 %v3363
      %v3384 = vunpack.c.l.b16 %v3364
      %v3385 = vunpack.c.h.b16 %v3364
      %v3386 = vunpack.c.l.b16 %v3365
      %v3387 = vunpack.c.h.b16 %v3365
      %v3388 = vunpack.c.l.b16 %v3366
      %v3389 = vunpack.c.h.b16 %v3366
      %v3390 = vunpack.c.l.b16 %v3367
      %v3391 = vunpack.c.h.b16 %v3367
      %v3392 = vpack.c.b16 %v3376, %v3376
      %v3393 = vpack.c.b16 %v3377, %v3377
      %v3394 = vpack.c.b16 %v3378, %v3378
      %v3395 = vpack.c.b16 %v3379, %v3379
      %v3396 = vpack.c.b16 %v3380, %v3380
      %v3397 = vpack.c.b16 %v3381, %v3381
      %v3398 = vpack.c.b16 %v3382, %v3382
      %v3399 = vpack.c.b16 %v3383, %v3383
      %v3400 = vpack.c.b16 %v3384, %v3384
      %v3401 = vpack.c.b16 %v3385, %v3385
      %v3402 = vpack.c.b16 %v3386, %v3386
      %v3403 = vpack.c.b16 %v3387, %v3387
      %v3404 = vpack.c.b16 %v3388, %v3388
      %v3405 = vpack.c.b16 %v3389, %v3389
      %v3406 = vpack.c.b16 %v3390, %v3390
      %v3407 = vpack.c.b16 %v3391, %v3391
      %vm3424 = vcmask 11264
      %3425 = vst.msk [vmem:[%s391] sm:$0xf] %vm3424, %v3392
      %3426 = vst.msk [vmem:[%s391 + $0x4] sm:$0xf] %vm3424, %v3393
      %3427 = vst.msk [vmem:[%s391 + $0x8] sm:$0xf] %vm3424, %v3394
      %3428 = vst.msk [vmem:[%s391 + $0xc] sm:$0xf] %vm3424, %v3395
      %3429 = vst.msk [vmem:[%s391 + $0x10] sm:$0xf] %vm3424, %v3396
      %3430 = vst.msk [vmem:[%s391 + $0x14] sm:$0xf] %vm3424, %v3397
      %3431 = vst.msk [vmem:[%s391 + $0x18] sm:$0xf] %vm3424, %v3398
      %3432 = vst.msk [vmem:[%s391 + $0x1c] sm:$0xf] %vm3424, %v3399
      %3433 = vst.msk [vmem:[%s391 + $0x20] sm:$0xf] %vm3424, %v3400
      %3434 = vst.msk [vmem:[%s391 + $0x24] sm:$0xf] %vm3424, %v3401
      %3435 = vst.msk [vmem:[%s391 + $0x28] sm:$0xf] %vm3424, %v3402
      %3436 = vst.msk [vmem:[%s391 + $0x2c] sm:$0xf] %vm3424, %v3403
      %3437 = vst.msk [vmem:[%s391 + $0x30] sm:$0xf] %vm3424, %v3404
      %3438 = vst.msk [vmem:[%s391 + $0x34] sm:$0xf] %vm3424, %v3405
      %3439 = vst.msk [vmem:[%s391 + $0x38] sm:$0xf] %vm3424, %v3406
      %3440 = vst.msk [vmem:[%s391 + $0x3c] sm:$0xf] %vm3424, %v3407
      %s3441 = smul.u32 8, %s21
      %p3442 = scmp.lt.s32.totalorder %s20, 1
      %s3443 = scalar_select %p3442, %s20, 1
      %p3444 = scmp.lt.s32.totalorder %s3441, 15
      %s3445 = scalar_select %p3444, %s3441, 15
      %s3446 = smul.addr %s3445, 2
      %s3447 = smul.addr %s3443, 32
      %s3448 = sadd.s32 %s3446, %s3447
      %s3449 = smul.addr %s3448, 4
      %s3450 = scalar_lea.vmem %s5, %s3449
      // Predicated region
      $region57: #{elan_block_fpn.7} parent=39 // pred_check
        %p3451 = pneg %p190
      $region58: #{elan_block_fpn.7} parent=39 // pred_check_branch
        %3453 = sbr.rel (%p3451) target = $region60
      $region59: #{elan_block_fpn.7} parent=39 // pred_region
        %s3454 = smul.u32 8, %s21
      $region60: #{elan_block_fpn.7} parent=39 // pred_fallthru
        _
    $region40: #{elan_block_fpn.7} parent=5 // pred_fallthru
      _
    %p3455 = scmp.le.s32.totalorder 2, %s11
    // Predicated region
    $region61: #{elan_block_fpn.7} parent=5 // pred_check
      %p3456 = pneg %p3455
    $region62: #{elan_block_fpn.7} parent=5 // pred_check_branch
      %3458 = sbr.rel (%p3456) target = $region64
    $region63: #{elan_block_fpn.7} parent=5 // pred_region
      %s3459 = ssub.s32 %s11, 2
      // Predicated region
      $region65: #{elan_block_fpn.7} parent=63 // pred_check
        %p3460 = pneg %p196
      $region66: #{elan_block_fpn.7} parent=63 // pred_check_branch
        %3462 = sbr.rel (%p3460) target = $region68
      $region67: #{elan_block_fpn.7} parent=63 // pred_region
        %s3463 = smul.u32 8, %s23
        %p3464 = scmp.lt.s32.totalorder %s22, 1
        %s3465 = scalar_select %p3464, %s22, 1
        %p3466 = scmp.lt.s32.totalorder %s3463, 15
        %s3467 = scalar_select %p3466, %s3463, 15
        %s3468 = smul.addr %s3467, 2
        %s3469 = smul.addr %s3465, 32
        %s3470 = sadd.s32 %s3468, %s3469
        %s3471 = smul.addr %s3470, 4
        %s3472 = scalar_lea.vmem %s5, %s3471
      $region68: #{elan_block_fpn.7} parent=63 // pred_fallthru
        _
    $region64: #{elan_block_fpn.7} parent=5 // pred_fallthru
      _
  $region6: #{elan_block_fpn.7} parent=0 // loop_footer
    %s15 = sadd.s32 1, %s11
  $region7: #{elan_block_fpn.7} parent=0 // loop_footer_branch
    %10 = sbr.rel target = $region3
  $region8: #{elan_block_fpn.7} parent=0 // loop_exit
    _

// kernel: elan_block_fpn.8
$region0: #{elan_block_fpn.8}
  #allocation0 [shape = 'u32[]', space=smem, size = 0x4, offset = 0x4, fixed_abs, tag = 'smem constant byte address 0x4 - core index']
  #allocation1 [shape = 'u32[144,128]{1,0:T(1,128)}', space=vmem, size = 0x12000, scoped, tag = 'internal scratch']
  #allocation2 [shape = 'bf16[10,18,2]{2,1,0:T(8,128)(2,1)}', space=vmem, size = 0xf000, scoped, tag = 'scratch operand']
  %s0 = inlined_call_operand.vmem [shape: bf16[2,16,16,2], index: 0, kind: input, shape index: {}, may-alias: {0,1,2}]
  %s1 = inlined_call_operand.vmem [shape: bf16[2,16,16,2], index: 1, kind: input, shape index: {}, may-alias: {0,1,2}]
  %s2 = inlined_call_operand.vmem [shape: bf16[2,16,16,2], index: 2, kind: input, shape index: {}, may-alias: {0,1,2}]
  %s3 = inlined_call_operand.vmem [shape: bf16[9,2,2], index: 3, kind: input, shape index: {}]
  %s4 = inlined_call_operand.vmem [shape: f32[1,2], index: 4, kind: input, shape index: {}]
  %s5 = inlined_call_operand.vmem [shape: bf16[2,16,16,2], index: 5, kind: output, shape index: {}]
  %s6 = sld [smem:[#allocation0]]
  $region69: #{elan_block_fpn.8} parent=0
    _
  %s8 = ssub.s32 1, %s6
  %s9 = scalar_select 0, %s8, %s6
  loop: start=0, step=1, limit=6
  $region2: #{elan_block_fpn.8} parent=0 // loop_pre_header
    _
  $region3: #{elan_block_fpn.8} parent=0 // loop_header
    %s11 = sphi 0, %s15
    %p12 = scmp.ge.s32.totalorder %s11, 6
    %s18 = sphi 0, %s30
    %s19 = sphi 0, %s26
    %s20 = sphi 0, %s18
    %s21 = sphi 0, %s19
    %s22 = sphi 0, %s20
    %s23 = sphi 0, %s21
    %s35 = sphi 0, %s37
    %s38 = sphi 0, %s35
    %s39 = sphi 0, %s38
    %s55 = sphi 0, %s39
    %s71 = sphi 0, %s73
    %s74 = sphi 0, %s71
    %s75 = sphi 0, %s74
    %s91 = sphi 0, %s75
    %s107 = sphi 0, %s109
    %s110 = sphi 0, %s107
    %s111 = sphi 0, %s110
    %s127 = sphi 0, %s111
    %s131 = sphi 0, %s131
    %s133 = sphi 0, %s131
    %s134 = sphi 0, %s133
    %s148 = sphi 0, %s134
    %s152 = sphi 0, %s152
    %s154 = sphi 0, %s152
    %s155 = sphi 0, %s154
    %s169 = sphi 0, %s155
    %s177 = sphi 0, %s179
    %s180 = sphi 0, %s177
    %s181 = sphi 0, %s180
    %s197 = sphi 0, %s181
  $region4: #{elan_block_fpn.8} parent=0 // loop_header_branch
    %14 = sbr.rel (%p12) target = $region8
  $region5: #{elan_block_fpn.8} parent=0 // loop_body
    %s16 = ssub.s32 %s11, 1
    %s17 = ssub.s32 %s11, 2
    %s24 = sadd.s32 1, %s19
    %p25 = scmp.ge.s32.totalorder %s24, 2
    %s26 = scalar_select %p25, 0, %s24
    %s27 = sadd.s32 1, %s18
    %s28 = scalar_select %p25, %s27, %s18
    %p29 = scmp.ge.s32.totalorder %s28, 2
    %s30 = scalar_select %p29, 0, %s28
    %s31 = ssub.s32 %s18, %s30
    %s32 = ssub.s32 %s19, %s26
    %s33 = sor.u32 %s31, %s32
    %p34 = scmp.eq.s32.totalorder %s33, 0
    %s36 = sadd.s32 %s35, 1
    %s37 = scalar_select %p34, %s35, %s36
    %p40 = pneg %p34
    %p41 = scmp.eq.s32.totalorder %s11, 3
    %p42 = por %p40, %p41
    %p43 = scmp.ne.s32.totalorder %s35, %s38
    %p44 = scmp.eq.s32.totalorder %s11, 0
    %p45 = por %p43, %p44
    %p46 = scmp.ne.s32.totalorder %s35, %s38
    %p47 = scmp.eq.s32.totalorder %s16, 3
    %p48 = por %p46, %p47
    %p49 = scmp.ne.s32.totalorder %s38, %s39
    %p50 = scmp.eq.s32.totalorder %s16, 0
    %p51 = por %p49, %p50
    %p52 = scmp.ne.s32.totalorder %s38, %s39
    %p53 = scmp.eq.s32.totalorder %s17, 3
    %p54 = por %p52, %p53
    %p56 = scmp.ne.s32.totalorder %s39, %s55
    %p57 = scmp.eq.s32.totalorder %s17, 0
    %p58 = por %p56, %p57
    %s59 = smul.u32 %s19, 8
    %s60 = ssub.s32 %s59, 1
    %p61 = scmp.gt.s32.totalorder %s60, 0
    %s62 = scalar_select %p61, %s60, 0
    %s63 = smul.u32 %s26, 8
    %s64 = ssub.s32 %s63, 1
    %p65 = scmp.gt.s32.totalorder %s64, 0
    %s66 = scalar_select %p65, %s64, 0
    %s67 = ssub.s32 %s18, %s30
    %s68 = ssub.s32 %s62, %s66
    %s69 = sor.u32 %s67, %s68
    %p70 = scmp.eq.s32.totalorder %s69, 0
    %s72 = sadd.s32 %s71, 1
    %s73 = scalar_select %p70, %s71, %s72
    %p76 = pneg %p70
    %p77 = scmp.eq.s32.totalorder %s11, 3
    %p78 = por %p76, %p77
    %p79 = scmp.ne.s32.totalorder %s71, %s74
    %p80 = scmp.eq.s32.totalorder %s11, 0
    %p81 = por %p79, %p80
    %p82 = scmp.ne.s32.totalorder %s71, %s74
    %p83 = scmp.eq.s32.totalorder %s16, 3
    %p84 = por %p82, %p83
    %p85 = scmp.ne.s32.totalorder %s74, %s75
    %p86 = scmp.eq.s32.totalorder %s16, 0
    %p87 = por %p85, %p86
    %p88 = scmp.ne.s32.totalorder %s74, %s75
    %p89 = scmp.eq.s32.totalorder %s17, 3
    %p90 = por %p88, %p89
    %p92 = scmp.ne.s32.totalorder %s75, %s91
    %p93 = scmp.eq.s32.totalorder %s17, 0
    %p94 = por %p92, %p93
    %s95 = sadd.s32 %s19, 1
    %s96 = smul.u32 %s95, 8
    %p97 = scmp.lt.s32.totalorder %s96, 15
    %s98 = scalar_select %p97, %s96, 15
    %s99 = sadd.s32 %s26, 1
    %s100 = smul.u32 %s99, 8
    %p101 = scmp.lt.s32.totalorder %s100, 15
    %s102 = scalar_select %p101, %s100, 15
    %s103 = ssub.s32 %s18, %s30
    %s104 = ssub.s32 %s98, %s102
    %s105 = sor.u32 %s103, %s104
    %p106 = scmp.eq.s32.totalorder %s105, 0
    %s108 = sadd.s32 %s107, 1
    %s109 = scalar_select %p106, %s107, %s108
    %p112 = pneg %p106
    %p113 = scmp.eq.s32.totalorder %s11, 3
    %p114 = por %p112, %p113
    %p115 = scmp.ne.s32.totalorder %s107, %s110
    %p116 = scmp.eq.s32.totalorder %s11, 0
    %p117 = por %p115, %p116
    %p118 = scmp.ne.s32.totalorder %s107, %s110
    %p119 = scmp.eq.s32.totalorder %s16, 3
    %p120 = por %p118, %p119
    %p121 = scmp.ne.s32.totalorder %s110, %s111
    %p122 = scmp.eq.s32.totalorder %s16, 0
    %p123 = por %p121, %p122
    %p124 = scmp.ne.s32.totalorder %s110, %s111
    %p125 = scmp.eq.s32.totalorder %s17, 3
    %p126 = por %p124, %p125
    %p128 = scmp.ne.s32.totalorder %s111, %s127
    %p129 = scmp.eq.s32.totalorder %s17, 0
    %p130 = por %p128, %p129
    %s132 = sadd.s32 %s131, 1
    %p135 = scmp.eq.s32.totalorder %s11, 3
    %p136 = scmp.ne.s32.totalorder %s131, %s133
    %p137 = scmp.eq.s32.totalorder %s11, 0
    %p138 = por %p136, %p137
    %p139 = scmp.ne.s32.totalorder %s131, %s133
    %p140 = scmp.eq.s32.totalorder %s16, 3
    %p141 = por %p139, %p140
    %p142 = scmp.ne.s32.totalorder %s133, %s134
    %p143 = scmp.eq.s32.totalorder %s16, 0
    %p144 = por %p142, %p143
    %p145 = scmp.ne.s32.totalorder %s133, %s134
    %p146 = scmp.eq.s32.totalorder %s17, 3
    %p147 = por %p145, %p146
    %p149 = scmp.ne.s32.totalorder %s134, %s148
    %p150 = scmp.eq.s32.totalorder %s17, 0
    %p151 = por %p149, %p150
    %s153 = sadd.s32 %s152, 1
    %p156 = scmp.eq.s32.totalorder %s11, 3
    %p157 = scmp.ne.s32.totalorder %s152, %s154
    %p158 = scmp.eq.s32.totalorder %s11, 0
    %p159 = por %p157, %p158
    %p160 = scmp.ne.s32.totalorder %s152, %s154
    %p161 = scmp.eq.s32.totalorder %s16, 3
    %p162 = por %p160, %p161
    %p163 = scmp.ne.s32.totalorder %s154, %s155
    %p164 = scmp.eq.s32.totalorder %s16, 0
    %p165 = por %p163, %p164
    %p166 = scmp.ne.s32.totalorder %s154, %s155
    %p167 = scmp.eq.s32.totalorder %s17, 3
    %p168 = por %p166, %p167
    %p170 = scmp.ne.s32.totalorder %s155, %s169
    %p171 = scmp.eq.s32.totalorder %s17, 0
    %p172 = por %p170, %p171
    %s173 = ssub.s32 %s18, %s30
    %s174 = ssub.s32 %s19, %s26
    %s175 = sor.u32 %s173, %s174
    %p176 = scmp.eq.s32.totalorder %s175, 0
    %s178 = sadd.s32 %s177, 1
    %s179 = scalar_select %p176, %s177, %s178
    %p182 = pneg %p176
    %p183 = scmp.eq.s32.totalorder %s11, 3
    %p184 = por %p182, %p183
    %p185 = scmp.ne.s32.totalorder %s177, %s180
    %p186 = scmp.eq.s32.totalorder %s11, 0
    %p187 = por %p185, %p186
    %p188 = scmp.ne.s32.totalorder %s177, %s180
    %p189 = scmp.eq.s32.totalorder %s16, 3
    %p190 = por %p188, %p189
    %p191 = scmp.ne.s32.totalorder %s180, %s181
    %p192 = scmp.eq.s32.totalorder %s16, 0
    %p193 = por %p191, %p192
    %p194 = scmp.ne.s32.totalorder %s180, %s181
    %p195 = scmp.eq.s32.totalorder %s17, 3
    %p196 = por %p194, %p195
    %p198 = scmp.ne.s32.totalorder %s181, %s197
    %p199 = scmp.eq.s32.totalorder %s17, 0
    %p200 = por %p198, %p199
    %p201 = scmp.le.s32.totalorder 1, %s11
    %p202 = scmp.lt.s32.totalorder %s11, 5
    %p203 = pnand %p201, %p202
    %p204 = pneg %p203
    // Predicated region
    $region9: #{elan_block_fpn.8} parent=5 // pred_check
      _
    $region10: #{elan_block_fpn.8} parent=5 // pred_check_branch
      %206 = sbr.rel (%p203) target = $region12
    $region11: #{elan_block_fpn.8} parent=5 // pred_region
      %s207 = ssub.s32 %s11, 1
      // Predicated region
      $region13: #{elan_block_fpn.8} parent=11 // pred_check
        %p208 = pneg %p144
      $region14: #{elan_block_fpn.8} parent=11 // pred_check_branch
        %210 = sbr.rel (%p208) target = $region16
      $region15: #{elan_block_fpn.8} parent=11 // pred_region
        _
      $region16: #{elan_block_fpn.8} parent=11 // pred_fallthru
        _
      // Predicated region
      $region17: #{elan_block_fpn.8} parent=11 // pred_check
        %p211 = pneg %p165
      $region18: #{elan_block_fpn.8} parent=11 // pred_check_branch
        %213 = sbr.rel (%p211) target = $region20
      $region19: #{elan_block_fpn.8} parent=11 // pred_region
        _
      $region20: #{elan_block_fpn.8} parent=11 // pred_fallthru
        _
    $region12: #{elan_block_fpn.8} parent=5 // pred_fallthru
      _
    %p214 = scmp.lt.s32.totalorder %s11, 4
    // Predicated region
    $region21: #{elan_block_fpn.8} parent=5 // pred_check
      %p215 = pneg %p214
    $region22: #{elan_block_fpn.8} parent=5 // pred_check_branch
      %217 = sbr.rel (%p215) target = $region24
    $region23: #{elan_block_fpn.8} parent=5 // pred_region
      // Predicated region
      $region25: #{elan_block_fpn.8} parent=23 // pred_check
        %p218 = pneg %p45
      $region26: #{elan_block_fpn.8} parent=23 // pred_check_branch
        %220 = sbr.rel (%p218) target = $region28
      $region27: #{elan_block_fpn.8} parent=23 // pred_region
        %s221 = smul.u32 8, %s19
        %p222 = scmp.lt.s32.totalorder %s18, 1
        %s223 = scalar_select %p222, %s18, 1
        %p224 = scmp.lt.s32.totalorder %s221, 15
        %s225 = scalar_select %p224, %s221, 15
        %s226 = smul.addr %s225, 2
        %s227 = smul.addr %s223, 32
        %s228 = sadd.s32 %s226, %s227
        %s229 = smul.addr %s228, 4
        %s230 = scalar_lea.vmem %s0, %s229
        %s231 = smul.u32 8, %s19
      $region28: #{elan_block_fpn.8} parent=23 // pred_fallthru
        _
      // Predicated region
      $region29: #{elan_block_fpn.8} parent=23 // pred_check
        %p232 = pneg %p81
      $region30: #{elan_block_fpn.8} parent=23 // pred_check_branch
        %234 = sbr.rel (%p232) target = $region32
      $region31: #{elan_block_fpn.8} parent=23 // pred_region
        %s235 = smul.u32 %s19, 8
        %s236 = ssub.s32 %s235, 1
        %p237 = scmp.gt.s32.totalorder %s236, 0
        %s238 = scalar_select %p237, %s236, 0
        %p239 = scmp.lt.s32.totalorder %s18, 1
        %s240 = scalar_select %p239, %s18, 1
        %p241 = scmp.lt.s32.totalorder %s238, 15
        %s242 = scalar_select %p241, %s238, 15
        %s243 = smul.addr %s242, 2
        %s244 = smul.addr %s240, 32
        %s245 = sadd.s32 %s243, %s244
        %s246 = smul.addr %s245, 4
        %s247 = scalar_lea.vmem %s1, %s246
        %s248 = smul.u32 %s19, 8
        %s249 = ssub.s32 %s248, 1
        %p250 = scmp.gt.s32.totalorder %s249, 0
        %s251 = scalar_select %p250, %s249, 0
      $region32: #{elan_block_fpn.8} parent=23 // pred_fallthru
        _
      // Predicated region
      $region33: #{elan_block_fpn.8} parent=23 // pred_check
        %p252 = pneg %p117
      $region34: #{elan_block_fpn.8} parent=23 // pred_check_branch
        %254 = sbr.rel (%p252) target = $region36
      $region35: #{elan_block_fpn.8} parent=23 // pred_region
        %s255 = sadd.s32 %s19, 1
        %s256 = smul.u32 %s255, 8
        %p257 = scmp.lt.s32.totalorder %s256, 15
        %s258 = scalar_select %p257, %s256, 15
        %p259 = scmp.lt.s32.totalorder %s18, 1
        %s260 = scalar_select %p259, %s18, 1
        %p261 = scmp.lt.s32.totalorder %s258, 15
        %s262 = scalar_select %p261, %s258, 15
        %s263 = smul.addr %s262, 2
        %s264 = smul.addr %s260, 32
        %s265 = sadd.s32 %s263, %s264
        %s266 = smul.addr %s265, 4
        %s267 = scalar_lea.vmem %s2, %s266
        %s268 = sadd.s32 %s19, 1
        %s269 = smul.u32 %s268, 8
        %p270 = scmp.lt.s32.totalorder %s269, 15
        %s271 = scalar_select %p270, %s269, 15
      $region36: #{elan_block_fpn.8} parent=23 // pred_fallthru
        _
    $region24: #{elan_block_fpn.8} parent=5 // pred_fallthru
      _
    %p272 = scmp.le.s32.totalorder 1, %s11
    %p273 = scmp.lt.s32.totalorder %s11, 5
    %p274 = pnand %p272, %p273
    %p275 = pneg %p274
    // Predicated region
    $region37: #{elan_block_fpn.8} parent=5 // pred_check
      _
    $region38: #{elan_block_fpn.8} parent=5 // pred_check_branch
      %277 = sbr.rel (%p274) target = $region40
    $region39: #{elan_block_fpn.8} parent=5 // pred_region
      %s278 = ssub.s32 %s11, 1
      %s279 = smul.u32 8, %s21
      %p280 = scmp.lt.s32.totalorder %s20, 1
      %s281 = scalar_select %p280, %s20, 1
      %p282 = scmp.lt.s32.totalorder %s279, 15
      %s283 = scalar_select %p282, %s279, 15
      %s284 = smul.addr %s283, 2
      %s285 = smul.addr %s281, 32
      %s286 = sadd.s32 %s284, %s285
      %s287 = smul.addr %s286, 4
      %s288 = scalar_lea.vmem %s0, %s287
      %p289 = pneg %p51
      %p290 = pneg %p48
      %s291 = smul.u32 %s21, 8
      %s292 = ssub.s32 %s291, 1
      %p293 = scmp.gt.s32.totalorder %s292, 0
      %s294 = scalar_select %p293, %s292, 0
      %p295 = scmp.lt.s32.totalorder %s20, 1
      %s296 = scalar_select %p295, %s20, 1
      %p297 = scmp.lt.s32.totalorder %s294, 15
      %s298 = scalar_select %p297, %s294, 15
      %s299 = smul.addr %s298, 2
      %s300 = smul.addr %s296, 32
      %s301 = sadd.s32 %s299, %s300
      %s302 = smul.addr %s301, 4
      %s303 = scalar_lea.vmem %s1, %s302
      %p304 = pneg %p87
      %p305 = pneg %p84
      %s306 = sadd.s32 %s21, 1
      %s307 = smul.u32 %s306, 8
      %p308 = scmp.lt.s32.totalorder %s307, 15
      %s309 = scalar_select %p308, %s307, 15
      %p310 = scmp.lt.s32.totalorder %s20, 1
      %s311 = scalar_select %p310, %s20, 1
      %p312 = scmp.lt.s32.totalorder %s309, 15
      %s313 = scalar_select %p312, %s309, 15
      %s314 = smul.addr %s313, 2
      %s315 = smul.addr %s311, 32
      %s316 = sadd.s32 %s314, %s315
      %s317 = smul.addr %s316, 4
      %s318 = scalar_lea.vmem %s2, %s317
      %p319 = pneg %p123
      %p320 = pneg %p120
      %p321 = pneg %p144
      %p322 = pneg %p141
      %p323 = pneg %p165
      %p324 = pneg %p162
      %p325 = pneg %p193
      %p326 = pneg %p190
      %s327 = smul.u32 8, %s21
      %p328 = scmp.lt.s32.totalorder %s20, 1
      %s329 = scalar_select %p328, %s20, 1
      %p330 = scmp.lt.s32.totalorder %s327, 15
      %s331 = scalar_select %p330, %s327, 15
      %s332 = smul.addr %s331, 2
      %s333 = smul.addr %s329, 32
      %s334 = sadd.s32 %s332, %s333
      %s335 = smul.addr %s334, 4
      %s336 = scalar_lea.vmem %s5, %s335
      %s337 = smul.u32 8, %s21
      %p338 = scmp.lt.s32.totalorder %s20, 1
      %s339 = scalar_select %p338, %s20, 1
      %p340 = scmp.lt.s32.totalorder %s337, 15
      %s341 = scalar_select %p340, %s337, 15
      %s342 = smul.addr %s341, 2
      %s343 = smul.addr %s339, 32
      %s344 = sadd.s32 %s342, %s343
      %s345 = smul.addr %s344, 4
      %s346 = scalar_lea.vmem %s0, %s345
      %s347 = smul.u32 8, %s21
      %s348 = smul.u32 %s21, 8
      %s349 = ssub.s32 %s348, 1
      %p350 = scmp.gt.s32.totalorder %s349, 0
      %s351 = scalar_select %p350, %s349, 0
      %p352 = scmp.lt.s32.totalorder %s20, 1
      %s353 = scalar_select %p352, %s20, 1
      %p354 = scmp.lt.s32.totalorder %s351, 15
      %s355 = scalar_select %p354, %s351, 15
      %s356 = smul.addr %s355, 2
      %s357 = smul.addr %s353, 32
      %s358 = sadd.s32 %s356, %s357
      %s359 = smul.addr %s358, 4
      %s360 = scalar_lea.vmem %s1, %s359
      %s361 = smul.u32 %s21, 8
      %s362 = ssub.s32 %s361, 1
      %p363 = scmp.gt.s32.totalorder %s362, 0
      %s364 = scalar_select %p363, %s362, 0
      %s365 = sadd.s32 %s21, 1
      %s366 = smul.u32 %s365, 8
      %p367 = scmp.lt.s32.totalorder %s366, 15
      %s368 = scalar_select %p367, %s366, 15
      %p369 = scmp.lt.s32.totalorder %s20, 1
      %s370 = scalar_select %p369, %s20, 1
      %p371 = scmp.lt.s32.totalorder %s368, 15
      %s372 = scalar_select %p371, %s368, 15
      %s373 = smul.addr %s372, 2
      %s374 = smul.addr %s370, 32
      %s375 = sadd.s32 %s373, %s374
      %s376 = smul.addr %s375, 4
      %s377 = scalar_lea.vmem %s2, %s376
      %s378 = sadd.s32 %s21, 1
      %s379 = smul.u32 %s378, 8
      %p380 = scmp.lt.s32.totalorder %s379, 15
      %s381 = scalar_select %p380, %s379, 15
      %s382 = smul.u32 8, %s21
      %p383 = scmp.lt.s32.totalorder %s20, 1
      %s384 = scalar_select %p383, %s20, 1
      %p385 = scmp.lt.s32.totalorder %s382, 15
      %s386 = scalar_select %p385, %s382, 15
      %s387 = smul.addr %s386, 2
      %s388 = smul.addr %s384, 32
      %s389 = sadd.s32 %s387, %s388
      %s390 = smul.addr %s389, 4
      %s391 = scalar_lea.vmem %s5, %s390
      %s392 = smul.u32 8, %s21
      %vm394 = vcmask 8192
      %vm395 = vsmask.f32 256
      %vm396 = vmand %vm394, %vm395
      %v397 = vld [vmem:[#allocation2] sm:$0x1]
      %v398 = vsel %vm396, 0, %v397
      %399 = vst [vmem:[#allocation2] sm:$0x1] %v398
      %v400 = vld [vmem:[#allocation2 + $0xc] sm:$0x1]
      %v401 = vsel %vm396, 0, %v400
      %402 = vst [vmem:[#allocation2 + $0xc] sm:$0x1] %v401
      %v403 = vld [vmem:[#allocation2 + $0x18] sm:$0x1]
      %v404 = vsel %vm396, 0, %v403
      %405 = vst [vmem:[#allocation2 + $0x18] sm:$0x1] %v404
      %v406 = vld [vmem:[#allocation2 + $0x24] sm:$0x1]
      %v407 = vsel %vm396, 0, %v406
      %408 = vst [vmem:[#allocation2 + $0x24] sm:$0x1] %v407
      %v409 = vld [vmem:[#allocation2 + $0x30] sm:$0x1]
      %v410 = vsel %vm396, 0, %v409
      %411 = vst [vmem:[#allocation2 + $0x30] sm:$0x1] %v410
      %v412 = vld [vmem:[#allocation2 + $0x3c] sm:$0x1]
      %v413 = vsel %vm396, 0, %v412
      %414 = vst [vmem:[#allocation2 + $0x3c] sm:$0x1] %v413
      %v415 = vld [vmem:[#allocation2 + $0x48] sm:$0x1]
      %v416 = vsel %vm396, 0, %v415
      %417 = vst [vmem:[#allocation2 + $0x48] sm:$0x1] %v416
      %v418 = vld [vmem:[#allocation2 + $0x54] sm:$0x1]
      %v419 = vsel %vm396, 0, %v418
      %420 = vst [vmem:[#allocation2 + $0x54] sm:$0x1] %v419
      %v421 = vld [vmem:[#allocation2 + $0x60] sm:$0x1]
      %v422 = vsel %vm396, 0, %v421
      %423 = vst [vmem:[#allocation2 + $0x60] sm:$0x1] %v422
      %v424 = vld [vmem:[#allocation2 + $0x6c] sm:$0x1]
      %v425 = vsel %vm396, 0, %v424
      %426 = vst [vmem:[#allocation2 + $0x6c] sm:$0x1] %v425
      %vm427 = vsmask.f32 7938
      %vm428 = vmand %vm394, %vm427
      %v429 = vld [vmem:[#allocation2 + $0x8] sm:$0x1]
      %v430 = vsel %vm428, 0, %v429
      %431 = vst [vmem:[#allocation2 + $0x8] sm:$0x1] %v430
      %v432 = vld [vmem:[#allocation2 + $0x14] sm:$0x1]
      %v433 = vsel %vm428, 0, %v432
      %434 = vst [vmem:[#allocation2 + $0x14] sm:$0x1] %v433
      %v435 = vld [vmem:[#allocation2 + $0x20] sm:$0x1]
      %v436 = vsel %vm428, 0, %v435
      %437 = vst [vmem:[#allocation2 + $0x20] sm:$0x1] %v436
      %v438 = vld [vmem:[#allocation2 + $0x2c] sm:$0x1]
      %v439 = vsel %vm428, 0, %v438
      %440 = vst [vmem:[#allocation2 + $0x2c] sm:$0x1] %v439
      %v441 = vld [vmem:[#allocation2 + $0x38] sm:$0x1]
      %v442 = vsel %vm428, 0, %v441
      %443 = vst [vmem:[#allocation2 + $0x38] sm:$0x1] %v442
      %v444 = vld [vmem:[#allocation2 + $0x44] sm:$0x1]
      %v445 = vsel %vm428, 0, %v444
      %446 = vst [vmem:[#allocation2 + $0x44] sm:$0x1] %v445
      %v447 = vld [vmem:[#allocation2 + $0x50] sm:$0x1]
      %v448 = vsel %vm428, 0, %v447
      %449 = vst [vmem:[#allocation2 + $0x50] sm:$0x1] %v448
      %v450 = vld [vmem:[#allocation2 + $0x5c] sm:$0x1]
      %v451 = vsel %vm428, 0, %v450
      %452 = vst [vmem:[#allocation2 + $0x5c] sm:$0x1] %v451
      %v453 = vld [vmem:[#allocation2 + $0x68] sm:$0x1]
      %v454 = vsel %vm428, 0, %v453
      %455 = vst [vmem:[#allocation2 + $0x68] sm:$0x1] %v454
      %v456 = vld [vmem:[#allocation2 + $0x74] sm:$0x1]
      %v457 = vsel %vm428, 0, %v456
      %458 = vst [vmem:[#allocation2 + $0x74] sm:$0x1] %v457
      %v459 = vld [vmem:[%s346] sm:$0xf]
      %v460 = vld [vmem:[%s346 + $0x4] sm:$0xf]
      %v461 = vld [vmem:[%s346 + $0x8] sm:$0xf]
      %v462 = vld [vmem:[%s346 + $0xc] sm:$0xf]
      %v463 = vld [vmem:[%s346 + $0x10] sm:$0xf]
      %v464 = vld [vmem:[%s346 + $0x14] sm:$0xf]
      %v465 = vld [vmem:[%s346 + $0x18] sm:$0xf]
      %v466 = vld [vmem:[%s346 + $0x1c] sm:$0xf]
      %v467 = vld [vmem:[%s346 + $0x20] sm:$0xf]
      %v468 = vld [vmem:[%s346 + $0x24] sm:$0xf]
      %v469 = vld [vmem:[%s346 + $0x28] sm:$0xf]
      %v470 = vld [vmem:[%s346 + $0x2c] sm:$0xf]
      %v471 = vld [vmem:[%s346 + $0x30] sm:$0xf]
      %v472 = vld [vmem:[%s346 + $0x34] sm:$0xf]
      %v473 = vld [vmem:[%s346 + $0x38] sm:$0xf]
      %v474 = vld [vmem:[%s346 + $0x3c] sm:$0xf]
      %vm475 = vsmask.f32 4368
      %vm476 = vmor %vm395, %vm475
      %v478 = vshrl.u32 %v459, 16
      %v480 = vrot.slane %v478, 7
      %v481 = vshll.u32 %v459, 16
      %v483 = vor.u32 %v480, %v481
      %v484 = vrot.slane %v480, 4
      %v486 = vshrl.u32 %v460, 16
      %v488 = vrot.slane %v486, 7
      %v489 = vshll.u32 %v460, 16
      %v491 = vor.u32 %v488, %v489
      %v492 = vsel %vm476, %v484, %v491
      %v493 = vrot.slane %v488, 4
      %v495 = vshrl.u32 %v461, 16
      %v497 = vrot.slane %v495, 7
      %v498 = vshll.u32 %v461, 16
      %v500 = vor.u32 %v497, %v498
      %v501 = vrot.slane %v497, 4
      %v503 = vshrl.u32 %v462, 16
      %v505 = vrot.slane %v503, 7
      %v506 = vshll.u32 %v462, 16
      %v508 = vor.u32 %v505, %v506
      %v509 = vsel %vm476, %v501, %v508
      %v510 = vrot.slane %v505, 4
      %v512 = vshrl.u32 %v463, 16
      %v514 = vrot.slane %v512, 7
      %v515 = vshll.u32 %v463, 16
      %v517 = vor.u32 %v514, %v515
      %v518 = vrot.slane %v514, 4
      %v520 = vshrl.u32 %v464, 16
      %v522 = vrot.slane %v520, 7
      %v523 = vshll.u32 %v464, 16
      %v525 = vor.u32 %v522, %v523
      %v526 = vsel %vm476, %v518, %v525
      %v527 = vrot.slane %v522, 4
      %v529 = vshrl.u32 %v465, 16
      %v531 = vrot.slane %v529, 7
      %v532 = vshll.u32 %v465, 16
      %v534 = vor.u32 %v531, %v532
      %v535 = vrot.slane %v531, 4
      %v537 = vshrl.u32 %v466, 16
      %v539 = vrot.slane %v537, 7
      %v540 = vshll.u32 %v466, 16
      %v542 = vor.u32 %v539, %v540
      %v543 = vsel %vm476, %v535, %v542
      %v544 = vrot.slane %v539, 4
      %v546 = vshrl.u32 %v467, 16
      %v548 = vrot.slane %v546, 7
      %v549 = vshll.u32 %v467, 16
      %v551 = vor.u32 %v548, %v549
      %v552 = vrot.slane %v548, 4
      %v554 = vshrl.u32 %v468, 16
      %v556 = vrot.slane %v554, 7
      %v557 = vshll.u32 %v468, 16
      %v559 = vor.u32 %v556, %v557
      %v560 = vsel %vm476, %v552, %v559
      %v561 = vrot.slane %v556, 4
      %v563 = vshrl.u32 %v469, 16
      %v565 = vrot.slane %v563, 7
      %v566 = vshll.u32 %v469, 16
      %v568 = vor.u32 %v565, %v566
      %v569 = vrot.slane %v565, 4
      %v571 = vshrl.u32 %v470, 16
      %v573 = vrot.slane %v571, 7
      %v574 = vshll.u32 %v470, 16
      %v576 = vor.u32 %v573, %v574
      %v577 = vsel %vm476, %v569, %v576
      %v578 = vrot.slane %v573, 4
      %v580 = vshrl.u32 %v471, 16
      %v582 = vrot.slane %v580, 7
      %v583 = vshll.u32 %v471, 16
      %v585 = vor.u32 %v582, %v583
      %v586 = vrot.slane %v582, 4
      %v588 = vshrl.u32 %v472, 16
      %v590 = vrot.slane %v588, 7
      %v591 = vshll.u32 %v472, 16
      %v593 = vor.u32 %v590, %v591
      %v594 = vsel %vm476, %v586, %v593
      %v595 = vrot.slane %v590, 4
      %v597 = vshrl.u32 %v473, 16
      %v599 = vrot.slane %v597, 7
      %v600 = vshll.u32 %v473, 16
      %v602 = vor.u32 %v599, %v600
      %v603 = vrot.slane %v599, 4
      %v605 = vshrl.u32 %v474, 16
      %v607 = vrot.slane %v605, 7
      %v608 = vshll.u32 %v474, 16
      %v610 = vor.u32 %v607, %v608
      %v611 = vsel %vm476, %v603, %v610
      %v612 = vrot.slane %v607, 4
      %s637 = scalar_lea.vmem [#allocation2], 12
      %vm638 = vcmask 11264
      %vm639 = vmand %vm638, %vm427
      %v640 = vld [vmem:[%s637] sm:$0xf]
      %v641 = vsel %vm639, %v483, %v640
      %642 = vst [vmem:[%s637] sm:$0xf] %v641
      %vm643 = vcmask 11264
      %644 = vst.msk [vmem:[%s637 + $0x4] sm:$0xf] %vm643, %v492
      %v645 = vld [vmem:[%s637 + $0x8] sm:$0x1]
      %v646 = vsel %vm396, %v493, %v645
      %647 = vst [vmem:[%s637 + $0x8] sm:$0x1] %v646
      %v648 = vld [vmem:[%s637 + $0xc] sm:$0xf]
      %v649 = vsel %vm639, %v500, %v648
      %650 = vst [vmem:[%s637 + $0xc] sm:$0xf] %v649
      %651 = vst.msk [vmem:[%s637 + $0x10] sm:$0xf] %vm643, %v509
      %v652 = vld [vmem:[%s637 + $0x14] sm:$0x1]
      %v653 = vsel %vm396, %v510, %v652
      %654 = vst [vmem:[%s637 + $0x14] sm:$0x1] %v653
      %v655 = vld [vmem:[%s637 + $0x18] sm:$0xf]
      %v656 = vsel %vm639, %v517, %v655
      %657 = vst [vmem:[%s637 + $0x18] sm:$0xf] %v656
      %658 = vst.msk [vmem:[%s637 + $0x1c] sm:$0xf] %vm643, %v526
      %v659 = vld [vmem:[%s637 + $0x20] sm:$0x1]
      %v660 = vsel %vm396, %v527, %v659
      %661 = vst [vmem:[%s637 + $0x20] sm:$0x1] %v660
      %v662 = vld [vmem:[%s637 + $0x24] sm:$0xf]
      %v663 = vsel %vm639, %v534, %v662
      %664 = vst [vmem:[%s637 + $0x24] sm:$0xf] %v663
      %665 = vst.msk [vmem:[%s637 + $0x28] sm:$0xf] %vm643, %v543
      %v666 = vld [vmem:[%s637 + $0x2c] sm:$0x1]
      %v667 = vsel %vm396, %v544, %v666
      %668 = vst [vmem:[%s637 + $0x2c] sm:$0x1] %v667
      %v669 = vld [vmem:[%s637 + $0x30] sm:$0xf]
      %v670 = vsel %vm639, %v551, %v669
      %671 = vst [vmem:[%s637 + $0x30] sm:$0xf] %v670
      %672 = vst.msk [vmem:[%s637 + $0x34] sm:$0xf] %vm643, %v560
      %v673 = vld [vmem:[%s637 + $0x38] sm:$0x1]
      %v674 = vsel %vm396, %v561, %v673
      %675 = vst [vmem:[%s637 + $0x38] sm:$0x1] %v674
      %v676 = vld [vmem:[%s637 + $0x3c] sm:$0xf]
      %v677 = vsel %vm639, %v568, %v676
      %678 = vst [vmem:[%s637 + $0x3c] sm:$0xf] %v677
      %679 = vst.msk [vmem:[%s637 + $0x40] sm:$0xf] %vm643, %v577
      %v680 = vld [vmem:[%s637 + $0x44] sm:$0x1]
      %v681 = vsel %vm396, %v578, %v680
      %682 = vst [vmem:[%s637 + $0x44] sm:$0x1] %v681
      %v683 = vld [vmem:[%s637 + $0x48] sm:$0xf]
      %v684 = vsel %vm639, %v585, %v683
      %685 = vst [vmem:[%s637 + $0x48] sm:$0xf] %v684
      %686 = vst.msk [vmem:[%s637 + $0x4c] sm:$0xf] %vm643, %v594
      %v687 = vld [vmem:[%s637 + $0x50] sm:$0x1]
      %v688 = vsel %vm396, %v595, %v687
      %689 = vst [vmem:[%s637 + $0x50] sm:$0x1] %v688
      %v690 = vld [vmem:[%s637 + $0x54] sm:$0xf]
      %v691 = vsel %vm639, %v602, %v690
      %692 = vst [vmem:[%s637 + $0x54] sm:$0xf] %v691
      %693 = vst.msk [vmem:[%s637 + $0x58] sm:$0xf] %vm643, %v611
      %v694 = vld [vmem:[%s637 + $0x5c] sm:$0x1]
      %v695 = vsel %vm396, %v612, %v694
      %696 = vst [vmem:[%s637 + $0x5c] sm:$0x1] %v695
      %p697 = scmp.eq.s32.totalorder %s21, 0
      // Predicated region
      $region41: #{elan_block_fpn.8} parent=39 // pred_check
        %p698 = pneg %p697
      $region42: #{elan_block_fpn.8} parent=39 // pred_check_branch
        %700 = sbr.rel (%p698) target = $region44
      $region43: #{elan_block_fpn.8} parent=39 // pred_region
        %v701 = vld [vmem:[#allocation2] sm:$0xf]
        %v702 = vsel %vm639, 0, %v701
        %703 = vst [vmem:[#allocation2] sm:$0xf] %v702
        %704 = vst.msk [vmem:[#allocation2 + $0x4] sm:$0xf] %vm643, 0
        %v705 = vld [vmem:[#allocation2 + $0x8] sm:$0x1]
        %v706 = vsel %vm396, 0, %v705
        %707 = vst [vmem:[#allocation2 + $0x8] sm:$0x1] %v706
      $region44: #{elan_block_fpn.8} parent=39 // pred_fallthru
        _
      %p708 = scmp.gt.s32.totalorder %s21, 0
      // Predicated region
      $region45: #{elan_block_fpn.8} parent=39 // pred_check
        %p709 = pneg %p708
      $region46: #{elan_block_fpn.8} parent=39 // pred_check_branch
        %711 = sbr.rel (%p709) target = $region48
      $region47: #{elan_block_fpn.8} parent=39 // pred_region
        %v712 = vld [vmem:[%s360] sm:$0xf]
        %v713 = vld [vmem:[%s360 + $0x4] sm:$0xf]
        %v715 = vshrl.u32 %v712, 16
        %v717 = vrot.slane %v715, 7
        %v718 = vshll.u32 %v712, 16
        %v720 = vor.u32 %v717, %v718
        %v721 = vrot.slane %v717, 4
        %v723 = vshrl.u32 %v713, 16
        %v725 = vrot.slane %v723, 7
        %v726 = vshll.u32 %v713, 16
        %v728 = vor.u32 %v725, %v726
        %v729 = vsel %vm476, %v721, %v728
        %v730 = vrot.slane %v725, 4
        %v734 = vld [vmem:[#allocation2] sm:$0xf]
        %v735 = vsel %vm639, %v720, %v734
        %736 = vst [vmem:[#allocation2] sm:$0xf] %v735
        %737 = vst.msk [vmem:[#allocation2 + $0x4] sm:$0xf] %vm643, %v729
        %v738 = vld [vmem:[#allocation2 + $0x8] sm:$0x1]
        %v739 = vsel %vm396, %v730, %v738
        %740 = vst [vmem:[#allocation2 + $0x8] sm:$0x1] %v739
      $region48: #{elan_block_fpn.8} parent=39 // pred_fallthru
        _
      %p741 = scmp.eq.s32.totalorder %s21, 1
      // Predicated region
      $region49: #{elan_block_fpn.8} parent=39 // pred_check
        %p742 = pneg %p741
      $region50: #{elan_block_fpn.8} parent=39 // pred_check_branch
        %744 = sbr.rel (%p742) target = $region52
      $region51: #{elan_block_fpn.8} parent=39 // pred_region
        %s745 = scalar_lea.vmem [#allocation2], 108
        %v746 = vld [vmem:[%s745] sm:$0xf]
        %v747 = vsel %vm639, 0, %v746
        %748 = vst [vmem:[%s745] sm:$0xf] %v747
        %749 = vst.msk [vmem:[%s745 + $0x4] sm:$0xf] %vm643, 0
        %v750 = vld [vmem:[%s745 + $0x8] sm:$0x1]
        %v751 = vsel %vm396, 0, %v750
        %752 = vst [vmem:[%s745 + $0x8] sm:$0x1] %v751
      $region52: #{elan_block_fpn.8} parent=39 // pred_fallthru
        _
      %p753 = scmp.lt.s32.totalorder %s21, 1
      // Predicated region
      $region53: #{elan_block_fpn.8} parent=39 // pred_check
        %p754 = pneg %p753
      $region54: #{elan_block_fpn.8} parent=39 // pred_check_branch
        %756 = sbr.rel (%p754) target = $region56
      $region55: #{elan_block_fpn.8} parent=39 // pred_region
        %v757 = vld [vmem:[%s377] sm:$0xf]
        %v758 = vld [vmem:[%s377 + $0x4] sm:$0xf]
        %v760 = vshrl.u32 %v757, 16
        %v762 = vrot.slane %v760, 7
        %v763 = vshll.u32 %v757, 16
        %v765 = vor.u32 %v762, %v763
        %v766 = vrot.slane %v762, 4
        %v768 = vshrl.u32 %v758, 16
        %v770 = vrot.slane %v768, 7
        %v771 = vshll.u32 %v758, 16
        %v773 = vor.u32 %v770, %v771
        %v774 = vsel %vm476, %v766, %v773
        %v775 = vrot.slane %v770, 4
        %s779 = scalar_lea.vmem [#allocation2], 108
        %v780 = vld [vmem:[%s779] sm:$0xf]
        %v781 = vsel %vm639, %v765, %v780
        %782 = vst [vmem:[%s779] sm:$0xf] %v781
        %783 = vst.msk [vmem:[%s779 + $0x4] sm:$0xf] %vm643, %v774
        %v784 = vld [vmem:[%s779 + $0x8] sm:$0x1]
        %v785 = vsel %vm396, %v775, %v784
        %786 = vst [vmem:[%s779 + $0x8] sm:$0x1] %v785
      $region56: #{elan_block_fpn.8} parent=39 // pred_fallthru
        _
      %v787 = vld [vmem:[#allocation2] sm:$0xf]
      %v788 = vld [vmem:[#allocation2 + $0x4] sm:$0xf]
      %v789 = vld [vmem:[#allocation2 + $0xc] sm:$0xf]
      %v790 = vld [vmem:[#allocation2 + $0x10] sm:$0xf]
      %v791 = vld [vmem:[#allocation2 + $0x18] sm:$0xf]
      %v792 = vld [vmem:[#allocation2 + $0x1c] sm:$0xf]
      %v793 = vld [vmem:[#allocation2 + $0x24] sm:$0xf]
      %v794 = vld [vmem:[#allocation2 + $0x28] sm:$0xf]
      %v795 = vld [vmem:[#allocation2 + $0x30] sm:$0xf]
      %v796 = vld [vmem:[#allocation2 + $0x34] sm:$0xf]
      %v797 = vld [vmem:[#allocation2 + $0x3c] sm:$0xf]
      %v798 = vld [vmem:[#allocation2 + $0x40] sm:$0xf]
      %v799 = vld [vmem:[#allocation2 + $0x48] sm:$0xf]
      %v800 = vld [vmem:[#allocation2 + $0x4c] sm:$0xf]
      %v801 = vld [vmem:[#allocation2 + $0x54] sm:$0xf]
      %v802 = vld [vmem:[#allocation2 + $0x58] sm:$0xf]
      %v803 = vld [vmem:[%s3] sm:$0x1]
      %v804 = vld [vmem:[#allocation2 + $0x8] sm:$0x1]
      %v805 = vld [vmem:[#allocation2 + $0x14] sm:$0x1]
      %v806 = vld [vmem:[#allocation2 + $0x20] sm:$0x1]
      %v807 = vld [vmem:[#allocation2 + $0x2c] sm:$0x1]
      %v808 = vld [vmem:[#allocation2 + $0x38] sm:$0x1]
      %v809 = vld [vmem:[#allocation2 + $0x44] sm:$0x1]
      %v810 = vld [vmem:[#allocation2 + $0x50] sm:$0x1]
      %v811 = vld [vmem:[#allocation2 + $0x5c] sm:$0x1]
      %vm812 = vsmask.f32 3328
      %vm813 = vsmask.f32 7440
      %vm814 = vmor %vm812, %vm813
      %v816 = vshrl.u32 %v787, 16
      %v818 = vrot.slane %v816, 4
      %v819 = vshll.u32 %v787, 16
      %v821 = vrot.slane %v819, 5
      %v822 = vor.u32 %v818, %v821
      %v823 = vrot.slane %v822, 4
      %v825 = vshll.u32 %v788, 16
      %v827 = vrot.slane %v825, 5
      %v828 = vsel %vm814, %v823, %v827
      %v829 = vshrl.u32 %v788, 16
      %v831 = vrot.slane %v829, 4
      %v832 = vor.u32 %v831, %v827
      %v833 = vrot.slane %v832, 4
      %v835 = vshll.u32 %v804, 16
      %v837 = vrot.slane %v835, 5
      %v838 = vsel %vm814, %v833, %v837
      %v840 = vshrl.u32 %v789, 16
      %v842 = vrot.slane %v840, 4
      %v843 = vshll.u32 %v789, 16
      %v845 = vrot.slane %v843, 5
      %v846 = vor.u32 %v842, %v845
      %v847 = vrot.slane %v846, 4
      %v849 = vshll.u32 %v790, 16
      %v851 = vrot.slane %v849, 5
      %v852 = vsel %vm814, %v847, %v851
      %v853 = vshrl.u32 %v790, 16
      %v855 = vrot.slane %v853, 4
      %v856 = vor.u32 %v855, %v851
      %v857 = vrot.slane %v856, 4
      %v859 = vshll.u32 %v805, 16
      %v861 = vrot.slane %v859, 5
      %v862 = vsel %vm814, %v857, %v861
      %v864 = vshrl.u32 %v791, 16
      %v866 = vrot.slane %v864, 4
      %v867 = vshll.u32 %v791, 16
      %v869 = vrot.slane %v867, 5
      %v870 = vor.u32 %v866, %v869
      %v871 = vrot.slane %v870, 4
      %v873 = vshll.u32 %v792, 16
      %v875 = vrot.slane %v873, 5
      %v876 = vsel %vm814, %v871, %v875
      %v877 = vshrl.u32 %v792, 16
      %v879 = vrot.slane %v877, 4
      %v880 = vor.u32 %v879, %v875
      %v881 = vrot.slane %v880, 4
      %v883 = vshll.u32 %v806, 16
      %v885 = vrot.slane %v883, 5
      %v886 = vsel %vm814, %v881, %v885
      %v888 = vshrl.u32 %v793, 16
      %v890 = vrot.slane %v888, 4
      %v891 = vshll.u32 %v793, 16
      %v893 = vrot.slane %v891, 5
      %v894 = vor.u32 %v890, %v893
      %v895 = vrot.slane %v894, 4
      %v897 = vshll.u32 %v794, 16
      %v899 = vrot.slane %v897, 5
      %v900 = vsel %vm814, %v895, %v899
      %v901 = vshrl.u32 %v794, 16
      %v903 = vrot.slane %v901, 4
      %v904 = vor.u32 %v903, %v899
      %v905 = vrot.slane %v904, 4
      %v907 = vshll.u32 %v807, 16
      %v909 = vrot.slane %v907, 5
      %v910 = vsel %vm814, %v905, %v909
      %v912 = vshrl.u32 %v795, 16
      %v914 = vrot.slane %v912, 4
      %v915 = vshll.u32 %v795, 16
      %v917 = vrot.slane %v915, 5
      %v918 = vor.u32 %v914, %v917
      %v919 = vrot.slane %v918, 4
      %v921 = vshll.u32 %v796, 16
      %v923 = vrot.slane %v921, 5
      %v924 = vsel %vm814, %v919, %v923
      %v925 = vshrl.u32 %v796, 16
      %v927 = vrot.slane %v925, 4
      %v928 = vor.u32 %v927, %v923
      %v929 = vrot.slane %v928, 4
      %v931 = vshll.u32 %v808, 16
      %v933 = vrot.slane %v931, 5
      %v934 = vsel %vm814, %v929, %v933
      %v936 = vshrl.u32 %v797, 16
      %v938 = vrot.slane %v936, 4
      %v939 = vshll.u32 %v797, 16
      %v941 = vrot.slane %v939, 5
      %v942 = vor.u32 %v938, %v941
      %v943 = vrot.slane %v942, 4
      %v945 = vshll.u32 %v798, 16
      %v947 = vrot.slane %v945, 5
      %v948 = vsel %vm814, %v943, %v947
      %v949 = vshrl.u32 %v798, 16
      %v951 = vrot.slane %v949, 4
      %v952 = vor.u32 %v951, %v947
      %v953 = vrot.slane %v952, 4
      %v955 = vshll.u32 %v809, 16
      %v957 = vrot.slane %v955, 5
      %v958 = vsel %vm814, %v953, %v957
      %v960 = vshrl.u32 %v799, 16
      %v962 = vrot.slane %v960, 4
      %v963 = vshll.u32 %v799, 16
      %v965 = vrot.slane %v963, 5
      %v966 = vor.u32 %v962, %v965
      %v967 = vrot.slane %v966, 4
      %v969 = vshll.u32 %v800, 16
      %v971 = vrot.slane %v969, 5
      %v972 = vsel %vm814, %v967, %v971
      %v973 = vshrl.u32 %v800, 16
      %v975 = vrot.slane %v973, 4
      %v976 = vor.u32 %v975, %v971
      %v977 = vrot.slane %v976, 4
      %v979 = vshll.u32 %v810, 16
      %v981 = vrot.slane %v979, 5
      %v982 = vsel %vm814, %v977, %v981
      %v984 = vshrl.u32 %v801, 16
      %v986 = vrot.slane %v984, 4
      %v987 = vshll.u32 %v801, 16
      %v989 = vrot.slane %v987, 5
      %v990 = vor.u32 %v986, %v989
      %v991 = vrot.slane %v990, 4
      %v993 = vshll.u32 %v802, 16
      %v995 = vrot.slane %v993, 5
      %v996 = vsel %vm814, %v991, %v995
      %v997 = vshrl.u32 %v802, 16
      %v999 = vrot.slane %v997, 4
      %v1000 = vor.u32 %v999, %v995
      %v1001 = vrot.slane %v1000, 4
      %v1003 = vshll.u32 %v811, 16
      %v1005 = vrot.slane %v1003, 5
      %v1006 = vsel %vm814, %v1001, %v1005
      %s1007 = scalar_lea.vmem %s3, 1
      %v1008 = vld [vmem:[%s1007] sm:$0x1]
      %v1009 = vunpack.c.l.b16 %v828
      %v1010 = vunpack.c.l.b16 %v838
      %v1011 = vunpack.c.l.b16 %v852
      %v1012 = vunpack.c.l.b16 %v862
      %v1013 = vunpack.c.l.b16 %v876
      %v1014 = vunpack.c.l.b16 %v886
      %v1015 = vunpack.c.l.b16 %v900
      %v1016 = vunpack.c.l.b16 %v910
      %v1017 = vunpack.c.l.b16 %v924
      %v1018 = vunpack.c.l.b16 %v934
      %v1019 = vunpack.c.l.b16 %v948
      %v1020 = vunpack.c.l.b16 %v958
      %v1021 = vunpack.c.l.b16 %v972
      %v1022 = vunpack.c.l.b16 %v982
      %v1023 = vunpack.c.l.b16 %v996
      %v1024 = vunpack.c.l.b16 %v1006
      %v1025 = vpack.c.b16 %v1010, %v1009
      %v1026 = vpack.c.b16 %v1012, %v1011
      %v1027 = vpack.c.b16 %v1014, %v1013
      %v1028 = vpack.c.b16 %v1016, %v1015
      %v1029 = vpack.c.b16 %v1018, %v1017
      %v1030 = vpack.c.b16 %v1020, %v1019
      %v1031 = vpack.c.b16 %v1022, %v1021
      %v1032 = vpack.c.b16 %v1024, %v1023
      %vm1033 = vcmask 15360
      %v1035 = vsel %vm1033, %v1025, 0
      %v1038 = vsel %vm1033, %v1026, 0
      %v1041 = vsel %vm1033, %v1027, 0
      %v1044 = vsel %vm1033, %v1028, 0
      %v1047 = vsel %vm1033, %v1029, 0
      %v1050 = vsel %vm1033, %v1030, 0
      %v1053 = vsel %vm1033, %v1031, 0
      %v1056 = vsel %vm1033, %v1032, 0
      %vm1058 = vcmask 1040384
      %v1060 = vsel %vm1058, %v1008, 0
      %1062 = vmatprep.subr.bf16.mxu0 0
      %1063 = vmatpush1.bf16.msra.mxu0 0
      %1064 = vmatprep.subr.bf16.mxu0 0
      %1065 = vmatpush1.bf16.msra.mxu0 0
      %1066 = vmatprep.subr.bf16.mxu0 0
      %1067 = vmatpush1.bf16.msra.mxu0 0
      %1068 = vmatprep.subr.bf16.mxu0 0
      %1069 = vmatpush1.bf16.msra.mxu0 0
      %1070 = vmatprep.subr.bf16.mxu0 0
      %1071 = vmatpush1.bf16.msra.mxu0 0
      %1072 = vmatprep.subr.bf16.mxu0 0
      %1073 = vmatpush1.bf16.msra.mxu0 0
      %1074 = vmatprep.subr.bf16.mxu0 0
      %1075 = vmatpush1.bf16.msra.mxu0 0
      %1076 = vmatprep.subr.bf16.mxu0 0
      %1077 = vmatpush1.bf16.msra.mxu0 %v1060
      %1078 = vmatprep.subr.bf16.mxu0 0
      %1079 = vmatpush2.bf16.msra.mxu0 0
      %1080 = vmatprep.subr.bf16.mxu0 0
      %1081 = vmatpush2.bf16.msra.mxu0 0
      %1082 = vmatprep.subr.bf16.mxu0 0
      %1083 = vmatpush2.bf16.msra.mxu0 0
      %1084 = vmatprep.subr.bf16.mxu0 0
      %1085 = vmatpush2.bf16.msra.mxu0 0
      %1086 = vmatprep.subr.bf16.mxu0 0
      %1087 = vmatpush2.bf16.msra.mxu0 0
      %1088 = vmatprep.subr.bf16.mxu0 0
      %1089 = vmatpush2.bf16.msra.mxu0 0
      %1090 = vmatprep.subr.bf16.mxu0 0
      %1091 = vmatpush2.bf16.msra.mxu0 0
      %1092 = vmatprep.subr.bf16.mxu0 0
      %1093 = vmatpush2.bf16.msra.mxu0 0
      %1094 = vmatprep.mubr.bf16.mxu0 0
      %1095 = vmatmul.mubr.bf16.gmra.mxu0 %v1035
      %v1096 = vpop.f32.mrf.mxu0
      %v1097 = vadd.f32 0.0, %v1096
      %v1098 = vpop.f32.mrf.mxu0
      %v1099 = vpop.f32.mrf.mxu0
      %v1100 = vadd.f32 0.0, %v1099
      %v1101 = vpop.f32.mrf.mxu0
      %1102 = vmatprep.mubr.bf16.mxu0 0
      %1103 = vmatmul.mubr.bf16.gmra.mxu0 %v1038
      %v1104 = vpop.f32.mrf.mxu0
      %v1105 = vadd.f32 0.0, %v1104
      %v1106 = vpop.f32.mrf.mxu0
      %v1107 = vpop.f32.mrf.mxu0
      %v1108 = vadd.f32 0.0, %v1107
      %v1109 = vpop.f32.mrf.mxu0
      %1110 = vmatprep.mubr.bf16.mxu0 0
      %1111 = vmatmul.mubr.bf16.gmra.mxu0 %v1041
      %v1112 = vpop.f32.mrf.mxu0
      %v1113 = vadd.f32 0.0, %v1112
      %v1114 = vpop.f32.mrf.mxu0
      %v1115 = vpop.f32.mrf.mxu0
      %v1116 = vadd.f32 0.0, %v1115
      %v1117 = vpop.f32.mrf.mxu0
      %1118 = vmatprep.mubr.bf16.mxu0 0
      %1119 = vmatmul.mubr.bf16.gmra.mxu0 %v1044
      %v1120 = vpop.f32.mrf.mxu0
      %v1121 = vadd.f32 0.0, %v1120
      %v1122 = vpop.f32.mrf.mxu0
      %v1123 = vpop.f32.mrf.mxu0
      %v1124 = vadd.f32 0.0, %v1123
      %v1125 = vpop.f32.mrf.mxu0
      %1126 = vmatprep.mubr.bf16.mxu0 0
      %1127 = vmatmul.mubr.bf16.gmra.mxu0 %v1047
      %v1128 = vpop.f32.mrf.mxu0
      %v1129 = vadd.f32 0.0, %v1128
      %v1130 = vpop.f32.mrf.mxu0
      %v1131 = vpop.f32.mrf.mxu0
      %v1132 = vadd.f32 0.0, %v1131
      %v1133 = vpop.f32.mrf.mxu0
      %1134 = vmatprep.mubr.bf16.mxu0 0
      %1135 = vmatmul.mubr.bf16.gmra.mxu0 %v1050
      %v1136 = vpop.f32.mrf.mxu0
      %v1137 = vadd.f32 0.0, %v1136
      %v1138 = vpop.f32.mrf.mxu0
      %v1139 = vpop.f32.mrf.mxu0
      %v1140 = vadd.f32 0.0, %v1139
      %v1141 = vpop.f32.mrf.mxu0
      %1142 = vmatprep.mubr.bf16.mxu0 0
      %1143 = vmatmul.mubr.bf16.gmra.mxu0 %v1053
      %v1144 = vpop.f32.mrf.mxu0
      %v1145 = vadd.f32 0.0, %v1144
      %v1146 = vpop.f32.mrf.mxu0
      %v1147 = vpop.f32.mrf.mxu0
      %v1148 = vadd.f32 0.0, %v1147
      %v1149 = vpop.f32.mrf.mxu0
      %1150 = vmatprep.mubr.bf16.mxu0 0
      %1151 = vmatmul.mubr.bf16.gmra.mxu0 %v1056
      %v1152 = vpop.f32.mrf.mxu0
      %v1153 = vadd.f32 0.0, %v1152
      %v1154 = vpop.f32.mrf.mxu0
      %v1155 = vpop.f32.mrf.mxu0
      %v1156 = vadd.f32 0.0, %v1155
      %v1157 = vpop.f32.mrf.mxu0
      %1158 = vdwg.mxu0
      %v1175 = vunpack.c.l.b16 %v787
      %v1176 = vunpack.c.l.b16 %v788
      %v1177 = vunpack.c.l.b16 %v789
      %v1178 = vunpack.c.l.b16 %v790
      %v1179 = vunpack.c.l.b16 %v791
      %v1180 = vunpack.c.l.b16 %v792
      %v1181 = vunpack.c.l.b16 %v793
      %v1182 = vunpack.c.l.b16 %v794
      %v1183 = vunpack.c.l.b16 %v795
      %v1184 = vunpack.c.l.b16 %v796
      %v1185 = vunpack.c.l.b16 %v797
      %v1186 = vunpack.c.l.b16 %v798
      %v1187 = vunpack.c.l.b16 %v799
      %v1188 = vunpack.c.l.b16 %v800
      %v1189 = vunpack.c.l.b16 %v801
      %v1190 = vunpack.c.l.b16 %v802
      %v1191 = vpack.c.b16 %v1176, %v1175
      %v1192 = vpack.c.b16 %v1178, %v1177
      %v1193 = vpack.c.b16 %v1180, %v1179
      %v1194 = vpack.c.b16 %v1182, %v1181
      %v1195 = vpack.c.b16 %v1184, %v1183
      %v1196 = vpack.c.b16 %v1186, %v1185
      %v1197 = vpack.c.b16 %v1188, %v1187
      %v1198 = vpack.c.b16 %v1190, %v1189
      %v1200 = vsel %vm1033, %v1191, 0
      %v1203 = vsel %vm1033, %v1192, 0
      %v1206 = vsel %vm1033, %v1193, 0
      %v1209 = vsel %vm1033, %v1194, 0
      %v1212 = vsel %vm1033, %v1195, 0
      %v1215 = vsel %vm1033, %v1196, 0
      %v1218 = vsel %vm1033, %v1197, 0
      %v1221 = vsel %vm1033, %v1198, 0
      %v1224 = vsel %vm1058, %v803, 0
      %1226 = vmatprep.subr.bf16.mxu0 0
      %1227 = vmatpush1.bf16.msra.mxu0 0
      %1228 = vmatprep.subr.bf16.mxu0 0
      %1229 = vmatpush1.bf16.msra.mxu0 0
      %1230 = vmatprep.subr.bf16.mxu0 0
      %1231 = vmatpush1.bf16.msra.mxu0 0
      %1232 = vmatprep.subr.bf16.mxu0 0
      %1233 = vmatpush1.bf16.msra.mxu0 0
      %1234 = vmatprep.subr.bf16.mxu0 0
      %1235 = vmatpush1.bf16.msra.mxu0 0
      %1236 = vmatprep.subr.bf16.mxu0 0
      %1237 = vmatpush1.bf16.msra.mxu0 0
      %1238 = vmatprep.subr.bf16.mxu0 0
      %1239 = vmatpush1.bf16.msra.mxu0 0
      %1240 = vmatprep.subr.bf16.mxu0 0
      %1241 = vmatpush1.bf16.msra.mxu0 %v1224
      %1242 = vmatprep.subr.bf16.mxu0 0
      %1243 = vmatpush2.bf16.msra.mxu0 0
      %1244 = vmatprep.subr.bf16.mxu0 0
      %1245 = vmatpush2.bf16.msra.mxu0 0
      %1246 = vmatprep.subr.bf16.mxu0 0
      %1247 = vmatpush2.bf16.msra.mxu0 0
      %1248 = vmatprep.subr.bf16.mxu0 0
      %1249 = vmatpush2.bf16.msra.mxu0 0
      %1250 = vmatprep.subr.bf16.mxu0 0
      %1251 = vmatpush2.bf16.msra.mxu0 0
      %1252 = vmatprep.subr.bf16.mxu0 0
      %1253 = vmatpush2.bf16.msra.mxu0 0
      %1254 = vmatprep.subr.bf16.mxu0 0
      %1255 = vmatpush2.bf16.msra.mxu0 0
      %1256 = vmatprep.subr.bf16.mxu0 0
      %1257 = vmatpush2.bf16.msra.mxu0 0
      %1258 = vmatprep.mubr.bf16.mxu0 0
      %1259 = vmatmul.mubr.bf16.gmra.mxu0 %v1200
      %v1260 = vpop.f32.mrf.mxu0
      %v1261 = vadd.f32 %v1097, %v1260
      %v1262 = vpop.f32.mrf.mxu0
      %v1263 = vpop.f32.mrf.mxu0
      %v1264 = vadd.f32 %v1100, %v1263
      %v1265 = vpop.f32.mrf.mxu0
      %1266 = vmatprep.mubr.bf16.mxu0 0
      %1267 = vmatmul.mubr.bf16.gmra.mxu0 %v1203
      %v1268 = vpop.f32.mrf.mxu0
      %v1269 = vadd.f32 %v1105, %v1268
      %v1270 = vpop.f32.mrf.mxu0
      %v1271 = vpop.f32.mrf.mxu0
      %v1272 = vadd.f32 %v1108, %v1271
      %v1273 = vpop.f32.mrf.mxu0
      %1274 = vmatprep.mubr.bf16.mxu0 0
      %1275 = vmatmul.mubr.bf16.gmra.mxu0 %v1206
      %v1276 = vpop.f32.mrf.mxu0
      %v1277 = vadd.f32 %v1113, %v1276
      %v1278 = vpop.f32.mrf.mxu0
      %v1279 = vpop.f32.mrf.mxu0
      %v1280 = vadd.f32 %v1116, %v1279
      %v1281 = vpop.f32.mrf.mxu0
      %1282 = vmatprep.mubr.bf16.mxu0 0
      %1283 = vmatmul.mubr.bf16.gmra.mxu0 %v1209
      %v1284 = vpop.f32.mrf.mxu0
      %v1285 = vadd.f32 %v1121, %v1284
      %v1286 = vpop.f32.mrf.mxu0
      %v1287 = vpop.f32.mrf.mxu0
      %v1288 = vadd.f32 %v1124, %v1287
      %v1289 = vpop.f32.mrf.mxu0
      %1290 = vmatprep.mubr.bf16.mxu0 0
      %1291 = vmatmul.mubr.bf16.gmra.mxu0 %v1212
      %v1292 = vpop.f32.mrf.mxu0
      %v1293 = vadd.f32 %v1129, %v1292
      %v1294 = vpop.f32.mrf.mxu0
      %v1295 = vpop.f32.mrf.mxu0
      %v1296 = vadd.f32 %v1132, %v1295
      %v1297 = vpop.f32.mrf.mxu0
      %1298 = vmatprep.mubr.bf16.mxu0 0
      %1299 = vmatmul.mubr.bf16.gmra.mxu0 %v1215
      %v1300 = vpop.f32.mrf.mxu0
      %v1301 = vadd.f32 %v1137, %v1300
      %v1302 = vpop.f32.mrf.mxu0
      %v1303 = vpop.f32.mrf.mxu0
      %v1304 = vadd.f32 %v1140, %v1303
      %v1305 = vpop.f32.mrf.mxu0
      %1306 = vmatprep.mubr.bf16.mxu0 0
      %1307 = vmatmul.mubr.bf16.gmra.mxu0 %v1218
      %v1308 = vpop.f32.mrf.mxu0
      %v1309 = vadd.f32 %v1145, %v1308
      %v1310 = vpop.f32.mrf.mxu0
      %v1311 = vpop.f32.mrf.mxu0
      %v1312 = vadd.f32 %v1148, %v1311
      %v1313 = vpop.f32.mrf.mxu0
      %1314 = vmatprep.mubr.bf16.mxu0 0
      %1315 = vmatmul.mubr.bf16.gmra.mxu0 %v1221
      %v1316 = vpop.f32.mrf.mxu0
      %v1317 = vadd.f32 %v1153, %v1316
      %v1318 = vpop.f32.mrf.mxu0
      %v1319 = vpop.f32.mrf.mxu0
      %v1320 = vadd.f32 %v1156, %v1319
      %v1321 = vpop.f32.mrf.mxu0
      %1322 = vdwg.mxu0
      %v1323 = vld [vmem:[#allocation2] sm:$0xe]
      %v1324 = vld [vmem:[#allocation2 + $0xc] sm:$0xe]
      %v1325 = vld [vmem:[#allocation2 + $0x18] sm:$0xe]
      %v1326 = vld [vmem:[#allocation2 + $0x24] sm:$0xe]
      %v1327 = vld [vmem:[#allocation2 + $0x30] sm:$0xe]
      %v1328 = vld [vmem:[#allocation2 + $0x3c] sm:$0xe]
      %v1329 = vld [vmem:[#allocation2 + $0x48] sm:$0xe]
      %v1330 = vld [vmem:[#allocation2 + $0x54] sm:$0xe]
      %vm1347 = vcmask 1042432
      %vm1348 = vcmask 1046532
      %vm1349 = vmor %vm1347, %vm1348
      %v1350 = vrot.slane %v1323, 5
      %v1351 = vrot.slane %v1350, 4
      %v1352 = vrot.slane %v788, 5
      %v1353 = vsel %vm1349, %v1351, %v1352
      %v1354 = vrot.slane %v1352, 4
      %v1355 = vrot.slane %v804, 5
      %v1356 = vsel %vm1349, %v1354, %v1355
      %v1357 = vrot.slane %v1324, 5
      %v1358 = vrot.slane %v1357, 4
      %v1359 = vrot.slane %v790, 5
      %v1360 = vsel %vm1349, %v1358, %v1359
      %v1361 = vrot.slane %v1359, 4
      %v1362 = vrot.slane %v805, 5
      %v1363 = vsel %vm1349, %v1361, %v1362
      %v1364 = vrot.slane %v1325, 5
      %v1365 = vrot.slane %v1364, 4
      %v1366 = vrot.slane %v792, 5
      %v1367 = vsel %vm1349, %v1365, %v1366
      %v1368 = vrot.slane %v1366, 4
      %v1369 = vrot.slane %v806, 5
      %v1370 = vsel %vm1349, %v1368, %v1369
      %v1371 = vrot.slane %v1326, 5
      %v1372 = vrot.slane %v1371, 4
      %v1373 = vrot.slane %v794, 5
      %v1374 = vsel %vm1349, %v1372, %v1373
      %v1375 = vrot.slane %v1373, 4
      %v1376 = vrot.slane %v807, 5
      %v1377 = vsel %vm1349, %v1375, %v1376
      %v1378 = vrot.slane %v1327, 5
      %v1379 = vrot.slane %v1378, 4
      %v1380 = vrot.slane %v796, 5
      %v1381 = vsel %vm1349, %v1379, %v1380
      %v1382 = vrot.slane %v1380, 4
      %v1383 = vrot.slane %v808, 5
      %v1384 = vsel %vm1349, %v1382, %v1383
      %v1385 = vrot.slane %v1328, 5
      %v1386 = vrot.slane %v1385, 4
      %v1387 = vrot.slane %v798, 5
      %v1388 = vsel %vm1349, %v1386, %v1387
      %v1389 = vrot.slane %v1387, 4
      %v1390 = vrot.slane %v809, 5
      %v1391 = vsel %vm1349, %v1389, %v1390
      %v1392 = vrot.slane %v1329, 5
      %v1393 = vrot.slane %v1392, 4
      %v1394 = vrot.slane %v800, 5
      %v1395 = vsel %vm1349, %v1393, %v1394
      %v1396 = vrot.slane %v1394, 4
      %v1397 = vrot.slane %v810, 5
      %v1398 = vsel %vm1349, %v1396, %v1397
      %v1399 = vrot.slane %v1330, 5
      %v1400 = vrot.slane %v1399, 4
      %v1401 = vrot.slane %v802, 5
      %v1402 = vsel %vm1349, %v1400, %v1401
      %v1403 = vrot.slane %v1401, 4
      %v1404 = vrot.slane %v811, 5
      %v1405 = vsel %vm1349, %v1403, %v1404
      %s1406 = scalar_lea.vmem %s3, 2
      %v1407 = vld [vmem:[%s1406] sm:$0x1]
      %v1408 = vunpack.c.l.b16 %v1353
      %v1409 = vunpack.c.l.b16 %v1356
      %v1410 = vunpack.c.l.b16 %v1360
      %v1411 = vunpack.c.l.b16 %v1363
      %v1412 = vunpack.c.l.b16 %v1367
      %v1413 = vunpack.c.l.b16 %v1370
      %v1414 = vunpack.c.l.b16 %v1374
      %v1415 = vunpack.c.l.b16 %v1377
      %v1416 = vunpack.c.l.b16 %v1381
      %v1417 = vunpack.c.l.b16 %v1384
      %v1418 = vunpack.c.l.b16 %v1388
      %v1419 = vunpack.c.l.b16 %v1391
      %v1420 = vunpack.c.l.b16 %v1395
      %v1421 = vunpack.c.l.b16 %v1398
      %v1422 = vunpack.c.l.b16 %v1402
      %v1423 = vunpack.c.l.b16 %v1405
      %v1424 = vpack.c.b16 %v1409, %v1408
      %v1425 = vpack.c.b16 %v1411, %v1410
      %v1426 = vpack.c.b16 %v1413, %v1412
      %v1427 = vpack.c.b16 %v1415, %v1414
      %v1428 = vpack.c.b16 %v1417, %v1416
      %v1429 = vpack.c.b16 %v1419, %v1418
      %v1430 = vpack.c.b16 %v1421, %v1420
      %v1431 = vpack.c.b16 %v1423, %v1422
      %v1433 = vsel %vm1033, %v1424, 0
      %v1436 = vsel %vm1033, %v1425, 0
      %v1439 = vsel %vm1033, %v1426, 0
      %v1442 = vsel %vm1033, %v1427, 0
      %v1445 = vsel %vm1033, %v1428, 0
      %v1448 = vsel %vm1033, %v1429, 0
      %v1451 = vsel %vm1033, %v1430, 0
      %v1454 = vsel %vm1033, %v1431, 0
      %v1457 = vsel %vm1058, %v1407, 0
      %1459 = vmatprep.subr.bf16.mxu0 0
      %1460 = vmatpush1.bf16.msra.mxu0 0
      %1461 = vmatprep.subr.bf16.mxu0 0
      %1462 = vmatpush1.bf16.msra.mxu0 0
      %1463 = vmatprep.subr.bf16.mxu0 0
      %1464 = vmatpush1.bf16.msra.mxu0 0
      %1465 = vmatprep.subr.bf16.mxu0 0
      %1466 = vmatpush1.bf16.msra.mxu0 0
      %1467 = vmatprep.subr.bf16.mxu0 0
      %1468 = vmatpush1.bf16.msra.mxu0 0
      %1469 = vmatprep.subr.bf16.mxu0 0
      %1470 = vmatpush1.bf16.msra.mxu0 0
      %1471 = vmatprep.subr.bf16.mxu0 0
      %1472 = vmatpush1.bf16.msra.mxu0 0
      %1473 = vmatprep.subr.bf16.mxu0 0
      %1474 = vmatpush1.bf16.msra.mxu0 %v1457
      %1475 = vmatprep.subr.bf16.mxu0 0
      %1476 = vmatpush2.bf16.msra.mxu0 0
      %1477 = vmatprep.subr.bf16.mxu0 0
      %1478 = vmatpush2.bf16.msra.mxu0 0
      %1479 = vmatprep.subr.bf16.mxu0 0
      %1480 = vmatpush2.bf16.msra.mxu0 0
      %1481 = vmatprep.subr.bf16.mxu0 0
      %1482 = vmatpush2.bf16.msra.mxu0 0
      %1483 = vmatprep.subr.bf16.mxu0 0
      %1484 = vmatpush2.bf16.msra.mxu0 0
      %1485 = vmatprep.subr.bf16.mxu0 0
      %1486 = vmatpush2.bf16.msra.mxu0 0
      %1487 = vmatprep.subr.bf16.mxu0 0
      %1488 = vmatpush2.bf16.msra.mxu0 0
      %1489 = vmatprep.subr.bf16.mxu0 0
      %1490 = vmatpush2.bf16.msra.mxu0 0
      %1491 = vmatprep.mubr.bf16.mxu0 0
      %1492 = vmatmul.mubr.bf16.gmra.mxu0 %v1433
      %v1493 = vpop.f32.mrf.mxu0
      %v1494 = vadd.f32 0.0, %v1493
      %v1495 = vpop.f32.mrf.mxu0
      %v1496 = vpop.f32.mrf.mxu0
      %v1497 = vadd.f32 0.0, %v1496
      %v1498 = vpop.f32.mrf.mxu0
      %1499 = vmatprep.mubr.bf16.mxu0 0
      %1500 = vmatmul.mubr.bf16.gmra.mxu0 %v1436
      %v1501 = vpop.f32.mrf.mxu0
      %v1502 = vadd.f32 0.0, %v1501
      %v1503 = vpop.f32.mrf.mxu0
      %v1504 = vpop.f32.mrf.mxu0
      %v1505 = vadd.f32 0.0, %v1504
      %v1506 = vpop.f32.mrf.mxu0
      %1507 = vmatprep.mubr.bf16.mxu0 0
      %1508 = vmatmul.mubr.bf16.gmra.mxu0 %v1439
      %v1509 = vpop.f32.mrf.mxu0
      %v1510 = vadd.f32 0.0, %v1509
      %v1511 = vpop.f32.mrf.mxu0
      %v1512 = vpop.f32.mrf.mxu0
      %v1513 = vadd.f32 0.0, %v1512
      %v1514 = vpop.f32.mrf.mxu0
      %1515 = vmatprep.mubr.bf16.mxu0 0
      %1516 = vmatmul.mubr.bf16.gmra.mxu0 %v1442
      %v1517 = vpop.f32.mrf.mxu0
      %v1518 = vadd.f32 0.0, %v1517
      %v1519 = vpop.f32.mrf.mxu0
      %v1520 = vpop.f32.mrf.mxu0
      %v1521 = vadd.f32 0.0, %v1520
      %v1522 = vpop.f32.mrf.mxu0
      %1523 = vmatprep.mubr.bf16.mxu0 0
      %1524 = vmatmul.mubr.bf16.gmra.mxu0 %v1445
      %v1525 = vpop.f32.mrf.mxu0
      %v1526 = vadd.f32 0.0, %v1525
      %v1527 = vpop.f32.mrf.mxu0
      %v1528 = vpop.f32.mrf.mxu0
      %v1529 = vadd.f32 0.0, %v1528
      %v1530 = vpop.f32.mrf.mxu0
      %1531 = vmatprep.mubr.bf16.mxu0 0
      %1532 = vmatmul.mubr.bf16.gmra.mxu0 %v1448
      %v1533 = vpop.f32.mrf.mxu0
      %v1534 = vadd.f32 0.0, %v1533
      %v1535 = vpop.f32.mrf.mxu0
      %v1536 = vpop.f32.mrf.mxu0
      %v1537 = vadd.f32 0.0, %v1536
      %v1538 = vpop.f32.mrf.mxu0
      %1539 = vmatprep.mubr.bf16.mxu0 0
      %1540 = vmatmul.mubr.bf16.gmra.mxu0 %v1451
      %v1541 = vpop.f32.mrf.mxu0
      %v1542 = vadd.f32 0.0, %v1541
      %v1543 = vpop.f32.mrf.mxu0
      %v1544 = vpop.f32.mrf.mxu0
      %v1545 = vadd.f32 0.0, %v1544
      %v1546 = vpop.f32.mrf.mxu0
      %1547 = vmatprep.mubr.bf16.mxu0 0
      %1548 = vmatmul.mubr.bf16.gmra.mxu0 %v1454
      %v1549 = vpop.f32.mrf.mxu0
      %v1550 = vadd.f32 0.0, %v1549
      %v1551 = vpop.f32.mrf.mxu0
      %v1552 = vpop.f32.mrf.mxu0
      %v1553 = vadd.f32 0.0, %v1552
      %v1554 = vpop.f32.mrf.mxu0
      %1555 = vdwg.mxu0
      %v1556 = vadd.f32 %v1261, %v1494
      %v1557 = vadd.f32 %v1264, %v1497
      %v1558 = vadd.f32 %v1269, %v1502
      %v1559 = vadd.f32 %v1272, %v1505
      %v1560 = vadd.f32 %v1277, %v1510
      %v1561 = vadd.f32 %v1280, %v1513
      %v1562 = vadd.f32 %v1285, %v1518
      %v1563 = vadd.f32 %v1288, %v1521
      %v1564 = vadd.f32 %v1293, %v1526
      %v1565 = vadd.f32 %v1296, %v1529
      %v1566 = vadd.f32 %v1301, %v1534
      %v1567 = vadd.f32 %v1304, %v1537
      %v1568 = vadd.f32 %v1309, %v1542
      %v1569 = vadd.f32 %v1312, %v1545
      %v1570 = vadd.f32 %v1317, %v1550
      %v1571 = vadd.f32 %v1320, %v1553
      %v1572 = vld [vmem:[%s637] sm:$0xf]
      %v1573 = vld [vmem:[%s637 + $0x4] sm:$0xf]
      %v1574 = vld [vmem:[%s637 + $0xc] sm:$0xf]
      %v1575 = vld [vmem:[%s637 + $0x10] sm:$0xf]
      %v1576 = vld [vmem:[%s637 + $0x18] sm:$0xf]
      %v1577 = vld [vmem:[%s637 + $0x1c] sm:$0xf]
      %v1578 = vld [vmem:[%s637 + $0x24] sm:$0xf]
      %v1579 = vld [vmem:[%s637 + $0x28] sm:$0xf]
      %v1580 = vld [vmem:[%s637 + $0x30] sm:$0xf]
      %v1581 = vld [vmem:[%s637 + $0x34] sm:$0xf]
      %v1582 = vld [vmem:[%s637 + $0x3c] sm:$0xf]
      %v1583 = vld [vmem:[%s637 + $0x40] sm:$0xf]
      %v1584 = vld [vmem:[%s637 + $0x48] sm:$0xf]
      %v1585 = vld [vmem:[%s637 + $0x4c] sm:$0xf]
      %v1586 = vld [vmem:[%s637 + $0x54] sm:$0xf]
      %v1587 = vld [vmem:[%s637 + $0x58] sm:$0xf]
      %s1588 = scalar_lea.vmem %s3, 3
      %v1589 = vld [vmem:[%s1588] sm:$0x1]
      %v1606 = vunpack.c.l.b16 %v1572
      %v1607 = vunpack.c.l.b16 %v1573
      %v1608 = vunpack.c.l.b16 %v1574
      %v1609 = vunpack.c.l.b16 %v1575
      %v1610 = vunpack.c.l.b16 %v1576
      %v1611 = vunpack.c.l.b16 %v1577
      %v1612 = vunpack.c.l.b16 %v1578
      %v1613 = vunpack.c.l.b16 %v1579
      %v1614 = vunpack.c.l.b16 %v1580
      %v1615 = vunpack.c.l.b16 %v1581
      %v1616 = vunpack.c.l.b16 %v1582
      %v1617 = vunpack.c.l.b16 %v1583
      %v1618 = vunpack.c.l.b16 %v1584
      %v1619 = vunpack.c.l.b16 %v1585
      %v1620 = vunpack.c.l.b16 %v1586
      %v1621 = vunpack.c.l.b16 %v1587
      %v1622 = vpack.c.b16 %v1607, %v1606
      %v1623 = vpack.c.b16 %v1609, %v1608
      %v1624 = vpack.c.b16 %v1611, %v1610
      %v1625 = vpack.c.b16 %v1613, %v1612
      %v1626 = vpack.c.b16 %v1615, %v1614
      %v1627 = vpack.c.b16 %v1617, %v1616
      %v1628 = vpack.c.b16 %v1619, %v1618
      %v1629 = vpack.c.b16 %v1621, %v1620
      %v1631 = vsel %vm1033, %v1622, 0
      %v1634 = vsel %vm1033, %v1623, 0
      %v1637 = vsel %vm1033, %v1624, 0
      %v1640 = vsel %vm1033, %v1625, 0
      %v1643 = vsel %vm1033, %v1626, 0
      %v1646 = vsel %vm1033, %v1627, 0
      %v1649 = vsel %vm1033, %v1628, 0
      %v1652 = vsel %vm1033, %v1629, 0
      %v1655 = vsel %vm1058, %v1589, 0
      %1657 = vmatprep.subr.bf16.mxu0 0
      %1658 = vmatpush1.bf16.msra.mxu0 0
      %1659 = vmatprep.subr.bf16.mxu0 0
      %1660 = vmatpush1.bf16.msra.mxu0 0
      %1661 = vmatprep.subr.bf16.mxu0 0
      %1662 = vmatpush1.bf16.msra.mxu0 0
      %1663 = vmatprep.subr.bf16.mxu0 0
      %1664 = vmatpush1.bf16.msra.mxu0 0
      %1665 = vmatprep.subr.bf16.mxu0 0
      %1666 = vmatpush1.bf16.msra.mxu0 0
      %1667 = vmatprep.subr.bf16.mxu0 0
      %1668 = vmatpush1.bf16.msra.mxu0 0
      %1669 = vmatprep.subr.bf16.mxu0 0
      %1670 = vmatpush1.bf16.msra.mxu0 0
      %1671 = vmatprep.subr.bf16.mxu0 0
      %1672 = vmatpush1.bf16.msra.mxu0 %v1655
      %1673 = vmatprep.subr.bf16.mxu0 0
      %1674 = vmatpush2.bf16.msra.mxu0 0
      %1675 = vmatprep.subr.bf16.mxu0 0
      %1676 = vmatpush2.bf16.msra.mxu0 0
      %1677 = vmatprep.subr.bf16.mxu0 0
      %1678 = vmatpush2.bf16.msra.mxu0 0
      %1679 = vmatprep.subr.bf16.mxu0 0
      %1680 = vmatpush2.bf16.msra.mxu0 0
      %1681 = vmatprep.subr.bf16.mxu0 0
      %1682 = vmatpush2.bf16.msra.mxu0 0
      %1683 = vmatprep.subr.bf16.mxu0 0
      %1684 = vmatpush2.bf16.msra.mxu0 0
      %1685 = vmatprep.subr.bf16.mxu0 0
      %1686 = vmatpush2.bf16.msra.mxu0 0
      %1687 = vmatprep.subr.bf16.mxu0 0
      %1688 = vmatpush2.bf16.msra.mxu0 0
      %1689 = vmatprep.mubr.bf16.mxu0 0
      %1690 = vmatmul.mubr.bf16.gmra.mxu0 %v1631
      %v1691 = vpop.f32.mrf.mxu0
      %v1692 = vadd.f32 0.0, %v1691
      %v1693 = vpop.f32.mrf.mxu0
      %v1694 = vpop.f32.mrf.mxu0
      %v1695 = vadd.f32 0.0, %v1694
      %v1696 = vpop.f32.mrf.mxu0
      %1697 = vmatprep.mubr.bf16.mxu0 0
      %1698 = vmatmul.mubr.bf16.gmra.mxu0 %v1634
      %v1699 = vpop.f32.mrf.mxu0
      %v1700 = vadd.f32 0.0, %v1699
      %v1701 = vpop.f32.mrf.mxu0
      %v1702 = vpop.f32.mrf.mxu0
      %v1703 = vadd.f32 0.0, %v1702
      %v1704 = vpop.f32.mrf.mxu0
      %1705 = vmatprep.mubr.bf16.mxu0 0
      %1706 = vmatmul.mubr.bf16.gmra.mxu0 %v1637
      %v1707 = vpop.f32.mrf.mxu0
      %v1708 = vadd.f32 0.0, %v1707
      %v1709 = vpop.f32.mrf.mxu0
      %v1710 = vpop.f32.mrf.mxu0
      %v1711 = vadd.f32 0.0, %v1710
      %v1712 = vpop.f32.mrf.mxu0
      %1713 = vmatprep.mubr.bf16.mxu0 0
      %1714 = vmatmul.mubr.bf16.gmra.mxu0 %v1640
      %v1715 = vpop.f32.mrf.mxu0
      %v1716 = vadd.f32 0.0, %v1715
      %v1717 = vpop.f32.mrf.mxu0
      %v1718 = vpop.f32.mrf.mxu0
      %v1719 = vadd.f32 0.0, %v1718
      %v1720 = vpop.f32.mrf.mxu0
      %1721 = vmatprep.mubr.bf16.mxu0 0
      %1722 = vmatmul.mubr.bf16.gmra.mxu0 %v1643
      %v1723 = vpop.f32.mrf.mxu0
      %v1724 = vadd.f32 0.0, %v1723
      %v1725 = vpop.f32.mrf.mxu0
      %v1726 = vpop.f32.mrf.mxu0
      %v1727 = vadd.f32 0.0, %v1726
      %v1728 = vpop.f32.mrf.mxu0
      %1729 = vmatprep.mubr.bf16.mxu0 0
      %1730 = vmatmul.mubr.bf16.gmra.mxu0 %v1646
      %v1731 = vpop.f32.mrf.mxu0
      %v1732 = vadd.f32 0.0, %v1731
      %v1733 = vpop.f32.mrf.mxu0
      %v1734 = vpop.f32.mrf.mxu0
      %v1735 = vadd.f32 0.0, %v1734
      %v1736 = vpop.f32.mrf.mxu0
      %1737 = vmatprep.mubr.bf16.mxu0 0
      %1738 = vmatmul.mubr.bf16.gmra.mxu0 %v1649
      %v1739 = vpop.f32.mrf.mxu0
      %v1740 = vadd.f32 0.0, %v1739
      %v1741 = vpop.f32.mrf.mxu0
      %v1742 = vpop.f32.mrf.mxu0
      %v1743 = vadd.f32 0.0, %v1742
      %v1744 = vpop.f32.mrf.mxu0
      %1745 = vmatprep.mubr.bf16.mxu0 0
      %1746 = vmatmul.mubr.bf16.gmra.mxu0 %v1652
      %v1747 = vpop.f32.mrf.mxu0
      %v1748 = vadd.f32 0.0, %v1747
      %v1749 = vpop.f32.mrf.mxu0
      %v1750 = vpop.f32.mrf.mxu0
      %v1751 = vadd.f32 0.0, %v1750
      %v1752 = vpop.f32.mrf.mxu0
      %1753 = vdwg.mxu0
      %v1754 = vadd.f32 %v1556, %v1692
      %v1755 = vadd.f32 %v1557, %v1695
      %v1756 = vadd.f32 %v1558, %v1700
      %v1757 = vadd.f32 %v1559, %v1703
      %v1758 = vadd.f32 %v1560, %v1708
      %v1759 = vadd.f32 %v1561, %v1711
      %v1760 = vadd.f32 %v1562, %v1716
      %v1761 = vadd.f32 %v1563, %v1719
      %v1762 = vadd.f32 %v1564, %v1724
      %v1763 = vadd.f32 %v1565, %v1727
      %v1764 = vadd.f32 %v1566, %v1732
      %v1765 = vadd.f32 %v1567, %v1735
      %v1766 = vadd.f32 %v1568, %v1740
      %v1767 = vadd.f32 %v1569, %v1743
      %v1768 = vadd.f32 %v1570, %v1748
      %v1769 = vadd.f32 %v1571, %v1751
      %v1770 = vld [vmem:[%s637] sm:$0xf]
      %v1771 = vld [vmem:[%s637 + $0x4] sm:$0xf]
      %v1772 = vld [vmem:[%s637 + $0x8] sm:$0x1]
      %v1773 = vld [vmem:[%s637 + $0xc] sm:$0xf]
      %v1774 = vld [vmem:[%s637 + $0x10] sm:$0xf]
      %v1775 = vld [vmem:[%s637 + $0x14] sm:$0x1]
      %v1776 = vld [vmem:[%s637 + $0x18] sm:$0xf]
      %v1777 = vld [vmem:[%s637 + $0x1c] sm:$0xf]
      %v1778 = vld [vmem:[%s637 + $0x20] sm:$0x1]
      %v1779 = vld [vmem:[%s637 + $0x24] sm:$0xf]
      %v1780 = vld [vmem:[%s637 + $0x28] sm:$0xf]
      %v1781 = vld [vmem:[%s637 + $0x2c] sm:$0x1]
      %v1782 = vld [vmem:[%s637 + $0x30] sm:$0xf]
      %v1783 = vld [vmem:[%s637 + $0x34] sm:$0xf]
      %v1784 = vld [vmem:[%s637 + $0x38] sm:$0x1]
      %v1785 = vld [vmem:[%s637 + $0x3c] sm:$0xf]
      %v1786 = vld [vmem:[%s637 + $0x40] sm:$0xf]
      %v1787 = vld [vmem:[%s637 + $0x44] sm:$0x1]
      %v1788 = vld [vmem:[%s637 + $0x48] sm:$0xf]
      %v1789 = vld [vmem:[%s637 + $0x4c] sm:$0xf]
      %v1790 = vld [vmem:[%s637 + $0x50] sm:$0x1]
      %v1791 = vld [vmem:[%s637 + $0x54] sm:$0xf]
      %v1792 = vld [vmem:[%s637 + $0x58] sm:$0xf]
      %v1793 = vld [vmem:[%s637 + $0x5c] sm:$0x1]
      %v1795 = vshrl.u32 %v1770, 16
      %v1797 = vrot.slane %v1795, 4
      %v1798 = vshll.u32 %v1770, 16
      %v1800 = vrot.slane %v1798, 5
      %v1801 = vor.u32 %v1797, %v1800
      %v1802 = vrot.slane %v1801, 4
      %v1804 = vshll.u32 %v1771, 16
      %v1806 = vrot.slane %v1804, 5
      %v1807 = vsel %vm814, %v1802, %v1806
      %v1808 = vshrl.u32 %v1771, 16
      %v1810 = vrot.slane %v1808, 4
      %v1811 = vor.u32 %v1810, %v1806
      %v1812 = vrot.slane %v1811, 4
      %v1814 = vshll.u32 %v1772, 16
      %v1816 = vrot.slane %v1814, 5
      %v1817 = vsel %vm814, %v1812, %v1816
      %v1819 = vshrl.u32 %v1773, 16
      %v1821 = vrot.slane %v1819, 4
      %v1822 = vshll.u32 %v1773, 16
      %v1824 = vrot.slane %v1822, 5
      %v1825 = vor.u32 %v1821, %v1824
      %v1826 = vrot.slane %v1825, 4
      %v1828 = vshll.u32 %v1774, 16
      %v1830 = vrot.slane %v1828, 5
      %v1831 = vsel %vm814, %v1826, %v1830
      %v1832 = vshrl.u32 %v1774, 16
      %v1834 = vrot.slane %v1832, 4
      %v1835 = vor.u32 %v1834, %v1830
      %v1836 = vrot.slane %v1835, 4
      %v1838 = vshll.u32 %v1775, 16
      %v1840 = vrot.slane %v1838, 5
      %v1841 = vsel %vm814, %v1836, %v1840
      %v1843 = vshrl.u32 %v1776, 16
      %v1845 = vrot.slane %v1843, 4
      %v1846 = vshll.u32 %v1776, 16
      %v1848 = vrot.slane %v1846, 5
      %v1849 = vor.u32 %v1845, %v1848
      %v1850 = vrot.slane %v1849, 4
      %v1852 = vshll.u32 %v1777, 16
      %v1854 = vrot.slane %v1852, 5
      %v1855 = vsel %vm814, %v1850, %v1854
      %v1856 = vshrl.u32 %v1777, 16
      %v1858 = vrot.slane %v1856, 4
      %v1859 = vor.u32 %v1858, %v1854
      %v1860 = vrot.slane %v1859, 4
      %v1862 = vshll.u32 %v1778, 16
      %v1864 = vrot.slane %v1862, 5
      %v1865 = vsel %vm814, %v1860, %v1864
      %v1867 = vshrl.u32 %v1779, 16
      %v1869 = vrot.slane %v1867, 4
      %v1870 = vshll.u32 %v1779, 16
      %v1872 = vrot.slane %v1870, 5
      %v1873 = vor.u32 %v1869, %v1872
      %v1874 = vrot.slane %v1873, 4
      %v1876 = vshll.u32 %v1780, 16
      %v1878 = vrot.slane %v1876, 5
      %v1879 = vsel %vm814, %v1874, %v1878
      %v1880 = vshrl.u32 %v1780, 16
      %v1882 = vrot.slane %v1880, 4
      %v1883 = vor.u32 %v1882, %v1878
      %v1884 = vrot.slane %v1883, 4
      %v1886 = vshll.u32 %v1781, 16
      %v1888 = vrot.slane %v1886, 5
      %v1889 = vsel %vm814, %v1884, %v1888
      %v1891 = vshrl.u32 %v1782, 16
      %v1893 = vrot.slane %v1891, 4
      %v1894 = vshll.u32 %v1782, 16
      %v1896 = vrot.slane %v1894, 5
      %v1897 = vor.u32 %v1893, %v1896
      %v1898 = vrot.slane %v1897, 4
      %v1900 = vshll.u32 %v1783, 16
      %v1902 = vrot.slane %v1900, 5
      %v1903 = vsel %vm814, %v1898, %v1902
      %v1904 = vshrl.u32 %v1783, 16
      %v1906 = vrot.slane %v1904, 4
      %v1907 = vor.u32 %v1906, %v1902
      %v1908 = vrot.slane %v1907, 4
      %v1910 = vshll.u32 %v1784, 16
      %v1912 = vrot.slane %v1910, 5
      %v1913 = vsel %vm814, %v1908, %v1912
      %v1915 = vshrl.u32 %v1785, 16
      %v1917 = vrot.slane %v1915, 4
      %v1918 = vshll.u32 %v1785, 16
      %v1920 = vrot.slane %v1918, 5
      %v1921 = vor.u32 %v1917, %v1920
      %v1922 = vrot.slane %v1921, 4
      %v1924 = vshll.u32 %v1786, 16
      %v1926 = vrot.slane %v1924, 5
      %v1927 = vsel %vm814, %v1922, %v1926
      %v1928 = vshrl.u32 %v1786, 16
      %v1930 = vrot.slane %v1928, 4
      %v1931 = vor.u32 %v1930, %v1926
      %v1932 = vrot.slane %v1931, 4
      %v1934 = vshll.u32 %v1787, 16
      %v1936 = vrot.slane %v1934, 5
      %v1937 = vsel %vm814, %v1932, %v1936
      %v1939 = vshrl.u32 %v1788, 16
      %v1941 = vrot.slane %v1939, 4
      %v1942 = vshll.u32 %v1788, 16
      %v1944 = vrot.slane %v1942, 5
      %v1945 = vor.u32 %v1941, %v1944
      %v1946 = vrot.slane %v1945, 4
      %v1948 = vshll.u32 %v1789, 16
      %v1950 = vrot.slane %v1948, 5
      %v1951 = vsel %vm814, %v1946, %v1950
      %v1952 = vshrl.u32 %v1789, 16
      %v1954 = vrot.slane %v1952, 4
      %v1955 = vor.u32 %v1954, %v1950
      %v1956 = vrot.slane %v1955, 4
      %v1958 = vshll.u32 %v1790, 16
      %v1960 = vrot.slane %v1958, 5
      %v1961 = vsel %vm814, %v1956, %v1960
      %v1963 = vshrl.u32 %v1791, 16
      %v1965 = vrot.slane %v1963, 4
      %v1966 = vshll.u32 %v1791, 16
      %v1968 = vrot.slane %v1966, 5
      %v1969 = vor.u32 %v1965, %v1968
      %v1970 = vrot.slane %v1969, 4
      %v1972 = vshll.u32 %v1792, 16
      %v1974 = vrot.slane %v1972, 5
      %v1975 = vsel %vm814, %v1970, %v1974
      %v1976 = vshrl.u32 %v1792, 16
      %v1978 = vrot.slane %v1976, 4
      %v1979 = vor.u32 %v1978, %v1974
      %v1980 = vrot.slane %v1979, 4
      %v1982 = vshll.u32 %v1793, 16
      %v1984 = vrot.slane %v1982, 5
      %v1985 = vsel %vm814, %v1980, %v1984
      %s1986 = scalar_lea.vmem %s3, 4
      %v1987 = vld [vmem:[%s1986] sm:$0x1]
      %v1988 = vunpack.c.l.b16 %v1807
      %v1989 = vunpack.c.l.b16 %v1817
      %v1990 = vunpack.c.l.b16 %v1831
      %v1991 = vunpack.c.l.b16 %v1841
      %v1992 = vunpack.c.l.b16 %v1855
      %v1993 = vunpack.c.l.b16 %v1865
      %v1994 = vunpack.c.l.b16 %v1879
      %v1995 = vunpack.c.l.b16 %v1889
      %v1996 = vunpack.c.l.b16 %v1903
      %v1997 = vunpack.c.l.b16 %v1913
      %v1998 = vunpack.c.l.b16 %v1927
      %v1999 = vunpack.c.l.b16 %v1937
      %v2000 = vunpack.c.l.b16 %v1951
      %v2001 = vunpack.c.l.b16 %v1961
      %v2002 = vunpack.c.l.b16 %v1975
      %v2003 = vunpack.c.l.b16 %v1985
      %v2004 = vpack.c.b16 %v1989, %v1988
      %v2005 = vpack.c.b16 %v1991, %v1990
      %v2006 = vpack.c.b16 %v1993, %v1992
      %v2007 = vpack.c.b16 %v1995, %v1994
      %v2008 = vpack.c.b16 %v1997, %v1996
      %v2009 = vpack.c.b16 %v1999, %v1998
      %v2010 = vpack.c.b16 %v2001, %v2000
      %v2011 = vpack.c.b16 %v2003, %v2002
      %v2013 = vsel %vm1033, %v2004, 0
      %v2016 = vsel %vm1033, %v2005, 0
      %v2019 = vsel %vm1033, %v2006, 0
      %v2022 = vsel %vm1033, %v2007, 0
      %v2025 = vsel %vm1033, %v2008, 0
      %v2028 = vsel %vm1033, %v2009, 0
      %v2031 = vsel %vm1033, %v2010, 0
      %v2034 = vsel %vm1033, %v2011, 0
      %v2037 = vsel %vm1058, %v1987, 0
      %2039 = vmatprep.subr.bf16.mxu0 0
      %2040 = vmatpush1.bf16.msra.mxu0 0
      %2041 = vmatprep.subr.bf16.mxu0 0
      %2042 = vmatpush1.bf16.msra.mxu0 0
      %2043 = vmatprep.subr.bf16.mxu0 0
      %2044 = vmatpush1.bf16.msra.mxu0 0
      %2045 = vmatprep.subr.bf16.mxu0 0
      %2046 = vmatpush1.bf16.msra.mxu0 0
      %2047 = vmatprep.subr.bf16.mxu0 0
      %2048 = vmatpush1.bf16.msra.mxu0 0
      %2049 = vmatprep.subr.bf16.mxu0 0
      %2050 = vmatpush1.bf16.msra.mxu0 0
      %2051 = vmatprep.subr.bf16.mxu0 0
      %2052 = vmatpush1.bf16.msra.mxu0 0
      %2053 = vmatprep.subr.bf16.mxu0 0
      %2054 = vmatpush1.bf16.msra.mxu0 %v2037
      %2055 = vmatprep.subr.bf16.mxu0 0
      %2056 = vmatpush2.bf16.msra.mxu0 0
      %2057 = vmatprep.subr.bf16.mxu0 0
      %2058 = vmatpush2.bf16.msra.mxu0 0
      %2059 = vmatprep.subr.bf16.mxu0 0
      %2060 = vmatpush2.bf16.msra.mxu0 0
      %2061 = vmatprep.subr.bf16.mxu0 0
      %2062 = vmatpush2.bf16.msra.mxu0 0
      %2063 = vmatprep.subr.bf16.mxu0 0
      %2064 = vmatpush2.bf16.msra.mxu0 0
      %2065 = vmatprep.subr.bf16.mxu0 0
      %2066 = vmatpush2.bf16.msra.mxu0 0
      %2067 = vmatprep.subr.bf16.mxu0 0
      %2068 = vmatpush2.bf16.msra.mxu0 0
      %2069 = vmatprep.subr.bf16.mxu0 0
      %2070 = vmatpush2.bf16.msra.mxu0 0
      %2071 = vmatprep.mubr.bf16.mxu0 0
      %2072 = vmatmul.mubr.bf16.gmra.mxu0 %v2013
      %v2073 = vpop.f32.mrf.mxu0
      %v2074 = vadd.f32 0.0, %v2073
      %v2075 = vpop.f32.mrf.mxu0
      %v2076 = vpop.f32.mrf.mxu0
      %v2077 = vadd.f32 0.0, %v2076
      %v2078 = vpop.f32.mrf.mxu0
      %2079 = vmatprep.mubr.bf16.mxu0 0
      %2080 = vmatmul.mubr.bf16.gmra.mxu0 %v2016
      %v2081 = vpop.f32.mrf.mxu0
      %v2082 = vadd.f32 0.0, %v2081
      %v2083 = vpop.f32.mrf.mxu0
      %v2084 = vpop.f32.mrf.mxu0
      %v2085 = vadd.f32 0.0, %v2084
      %v2086 = vpop.f32.mrf.mxu0
      %2087 = vmatprep.mubr.bf16.mxu0 0
      %2088 = vmatmul.mubr.bf16.gmra.mxu0 %v2019
      %v2089 = vpop.f32.mrf.mxu0
      %v2090 = vadd.f32 0.0, %v2089
      %v2091 = vpop.f32.mrf.mxu0
      %v2092 = vpop.f32.mrf.mxu0
      %v2093 = vadd.f32 0.0, %v2092
      %v2094 = vpop.f32.mrf.mxu0
      %2095 = vmatprep.mubr.bf16.mxu0 0
      %2096 = vmatmul.mubr.bf16.gmra.mxu0 %v2022
      %v2097 = vpop.f32.mrf.mxu0
      %v2098 = vadd.f32 0.0, %v2097
      %v2099 = vpop.f32.mrf.mxu0
      %v2100 = vpop.f32.mrf.mxu0
      %v2101 = vadd.f32 0.0, %v2100
      %v2102 = vpop.f32.mrf.mxu0
      %2103 = vmatprep.mubr.bf16.mxu0 0
      %2104 = vmatmul.mubr.bf16.gmra.mxu0 %v2025
      %v2105 = vpop.f32.mrf.mxu0
      %v2106 = vadd.f32 0.0, %v2105
      %v2107 = vpop.f32.mrf.mxu0
      %v2108 = vpop.f32.mrf.mxu0
      %v2109 = vadd.f32 0.0, %v2108
      %v2110 = vpop.f32.mrf.mxu0
      %2111 = vmatprep.mubr.bf16.mxu0 0
      %2112 = vmatmul.mubr.bf16.gmra.mxu0 %v2028
      %v2113 = vpop.f32.mrf.mxu0
      %v2114 = vadd.f32 0.0, %v2113
      %v2115 = vpop.f32.mrf.mxu0
      %v2116 = vpop.f32.mrf.mxu0
      %v2117 = vadd.f32 0.0, %v2116
      %v2118 = vpop.f32.mrf.mxu0
      %2119 = vmatprep.mubr.bf16.mxu0 0
      %2120 = vmatmul.mubr.bf16.gmra.mxu0 %v2031
      %v2121 = vpop.f32.mrf.mxu0
      %v2122 = vadd.f32 0.0, %v2121
      %v2123 = vpop.f32.mrf.mxu0
      %v2124 = vpop.f32.mrf.mxu0
      %v2125 = vadd.f32 0.0, %v2124
      %v2126 = vpop.f32.mrf.mxu0
      %2127 = vmatprep.mubr.bf16.mxu0 0
      %2128 = vmatmul.mubr.bf16.gmra.mxu0 %v2034
      %v2129 = vpop.f32.mrf.mxu0
      %v2130 = vadd.f32 0.0, %v2129
      %v2131 = vpop.f32.mrf.mxu0
      %v2132 = vpop.f32.mrf.mxu0
      %v2133 = vadd.f32 0.0, %v2132
      %v2134 = vpop.f32.mrf.mxu0
      %2135 = vdwg.mxu0
      %v2136 = vadd.f32 %v1754, %v2074
      %v2137 = vadd.f32 %v1755, %v2077
      %v2138 = vadd.f32 %v1756, %v2082
      %v2139 = vadd.f32 %v1757, %v2085
      %v2140 = vadd.f32 %v1758, %v2090
      %v2141 = vadd.f32 %v1759, %v2093
      %v2142 = vadd.f32 %v1760, %v2098
      %v2143 = vadd.f32 %v1761, %v2101
      %v2144 = vadd.f32 %v1762, %v2106
      %v2145 = vadd.f32 %v1763, %v2109
      %v2146 = vadd.f32 %v1764, %v2114
      %v2147 = vadd.f32 %v1765, %v2117
      %v2148 = vadd.f32 %v1766, %v2122
      %v2149 = vadd.f32 %v1767, %v2125
      %v2150 = vadd.f32 %v1768, %v2130
      %v2151 = vadd.f32 %v1769, %v2133
      %v2152 = vld [vmem:[%s637] sm:$0xe]
      %v2153 = vld [vmem:[%s637 + $0xc] sm:$0xe]
      %v2154 = vld [vmem:[%s637 + $0x18] sm:$0xe]
      %v2155 = vld [vmem:[%s637 + $0x24] sm:$0xe]
      %v2156 = vld [vmem:[%s637 + $0x30] sm:$0xe]
      %v2157 = vld [vmem:[%s637 + $0x3c] sm:$0xe]
      %v2158 = vld [vmem:[%s637 + $0x48] sm:$0xe]
      %v2159 = vld [vmem:[%s637 + $0x54] sm:$0xe]
      %v2184 = vrot.slane %v2152, 5
      %v2185 = vrot.slane %v2184, 4
      %v2186 = vrot.slane %v1771, 5
      %v2187 = vsel %vm1349, %v2185, %v2186
      %v2188 = vrot.slane %v2186, 4
      %v2189 = vrot.slane %v1772, 5
      %v2190 = vsel %vm1349, %v2188, %v2189
      %v2191 = vrot.slane %v2153, 5
      %v2192 = vrot.slane %v2191, 4
      %v2193 = vrot.slane %v1774, 5
      %v2194 = vsel %vm1349, %v2192, %v2193
      %v2195 = vrot.slane %v2193, 4
      %v2196 = vrot.slane %v1775, 5
      %v2197 = vsel %vm1349, %v2195, %v2196
      %v2198 = vrot.slane %v2154, 5
      %v2199 = vrot.slane %v2198, 4
      %v2200 = vrot.slane %v1777, 5
      %v2201 = vsel %vm1349, %v2199, %v2200
      %v2202 = vrot.slane %v2200, 4
      %v2203 = vrot.slane %v1778, 5
      %v2204 = vsel %vm1349, %v2202, %v2203
      %v2205 = vrot.slane %v2155, 5
      %v2206 = vrot.slane %v2205, 4
      %v2207 = vrot.slane %v1780, 5
      %v2208 = vsel %vm1349, %v2206, %v2207
      %v2209 = vrot.slane %v2207, 4
      %v2210 = vrot.slane %v1781, 5
      %v2211 = vsel %vm1349, %v2209, %v2210
      %v2212 = vrot.slane %v2156, 5
      %v2213 = vrot.slane %v2212, 4
      %v2214 = vrot.slane %v1783, 5
      %v2215 = vsel %vm1349, %v2213, %v2214
      %v2216 = vrot.slane %v2214, 4
      %v2217 = vrot.slane %v1784, 5
      %v2218 = vsel %vm1349, %v2216, %v2217
      %v2219 = vrot.slane %v2157, 5
      %v2220 = vrot.slane %v2219, 4
      %v2221 = vrot.slane %v1786, 5
      %v2222 = vsel %vm1349, %v2220, %v2221
      %v2223 = vrot.slane %v2221, 4
      %v2224 = vrot.slane %v1787, 5
      %v2225 = vsel %vm1349, %v2223, %v2224
      %v2226 = vrot.slane %v2158, 5
      %v2227 = vrot.slane %v2226, 4
      %v2228 = vrot.slane %v1789, 5
      %v2229 = vsel %vm1349, %v2227, %v2228
      %v2230 = vrot.slane %v2228, 4
      %v2231 = vrot.slane %v1790, 5
      %v2232 = vsel %vm1349, %v2230, %v2231
      %v2233 = vrot.slane %v2159, 5
      %v2234 = vrot.slane %v2233, 4
      %v2235 = vrot.slane %v1792, 5
      %v2236 = vsel %vm1349, %v2234, %v2235
      %v2237 = vrot.slane %v2235, 4
      %v2238 = vrot.slane %v1793, 5
      %v2239 = vsel %vm1349, %v2237, %v2238
      %s2240 = scalar_lea.vmem %s3, 5
      %v2241 = vld [vmem:[%s2240] sm:$0x1]
      %v2242 = vunpack.c.l.b16 %v2187
      %v2243 = vunpack.c.l.b16 %v2190
      %v2244 = vunpack.c.l.b16 %v2194
      %v2245 = vunpack.c.l.b16 %v2197
      %v2246 = vunpack.c.l.b16 %v2201
      %v2247 = vunpack.c.l.b16 %v2204
      %v2248 = vunpack.c.l.b16 %v2208
      %v2249 = vunpack.c.l.b16 %v2211
      %v2250 = vunpack.c.l.b16 %v2215
      %v2251 = vunpack.c.l.b16 %v2218
      %v2252 = vunpack.c.l.b16 %v2222
      %v2253 = vunpack.c.l.b16 %v2225
      %v2254 = vunpack.c.l.b16 %v2229
      %v2255 = vunpack.c.l.b16 %v2232
      %v2256 = vunpack.c.l.b16 %v2236
      %v2257 = vunpack.c.l.b16 %v2239
      %v2258 = vpack.c.b16 %v2243, %v2242
      %v2259 = vpack.c.b16 %v2245, %v2244
      %v2260 = vpack.c.b16 %v2247, %v2246
      %v2261 = vpack.c.b16 %v2249, %v2248
      %v2262 = vpack.c.b16 %v2251, %v2250
      %v2263 = vpack.c.b16 %v2253, %v2252
      %v2264 = vpack.c.b16 %v2255, %v2254
      %v2265 = vpack.c.b16 %v2257, %v2256
      %v2267 = vsel %vm1033, %v2258, 0
      %v2270 = vsel %vm1033, %v2259, 0
      %v2273 = vsel %vm1033, %v2260, 0
      %v2276 = vsel %vm1033, %v2261, 0
      %v2279 = vsel %vm1033, %v2262, 0
      %v2282 = vsel %vm1033, %v2263, 0
      %v2285 = vsel %vm1033, %v2264, 0
      %v2288 = vsel %vm1033, %v2265, 0
      %v2291 = vsel %vm1058, %v2241, 0
      %2293 = vmatprep.subr.bf16.mxu0 0
      %2294 = vmatpush1.bf16.msra.mxu0 0
      %2295 = vmatprep.subr.bf16.mxu0 0
      %2296 = vmatpush1.bf16.msra.mxu0 0
      %2297 = vmatprep.subr.bf16.mxu0 0
      %2298 = vmatpush1.bf16.msra.mxu0 0
      %2299 = vmatprep.subr.bf16.mxu0 0
      %2300 = vmatpush1.bf16.msra.mxu0 0
      %2301 = vmatprep.subr.bf16.mxu0 0
      %2302 = vmatpush1.bf16.msra.mxu0 0
      %2303 = vmatprep.subr.bf16.mxu0 0
      %2304 = vmatpush1.bf16.msra.mxu0 0
      %2305 = vmatprep.subr.bf16.mxu0 0
      %2306 = vmatpush1.bf16.msra.mxu0 0
      %2307 = vmatprep.subr.bf16.mxu0 0
      %2308 = vmatpush1.bf16.msra.mxu0 %v2291
      %2309 = vmatprep.subr.bf16.mxu0 0
      %2310 = vmatpush2.bf16.msra.mxu0 0
      %2311 = vmatprep.subr.bf16.mxu0 0
      %2312 = vmatpush2.bf16.msra.mxu0 0
      %2313 = vmatprep.subr.bf16.mxu0 0
      %2314 = vmatpush2.bf16.msra.mxu0 0
      %2315 = vmatprep.subr.bf16.mxu0 0
      %2316 = vmatpush2.bf16.msra.mxu0 0
      %2317 = vmatprep.subr.bf16.mxu0 0
      %2318 = vmatpush2.bf16.msra.mxu0 0
      %2319 = vmatprep.subr.bf16.mxu0 0
      %2320 = vmatpush2.bf16.msra.mxu0 0
      %2321 = vmatprep.subr.bf16.mxu0 0
      %2322 = vmatpush2.bf16.msra.mxu0 0
      %2323 = vmatprep.subr.bf16.mxu0 0
      %2324 = vmatpush2.bf16.msra.mxu0 0
      %2325 = vmatprep.mubr.bf16.mxu0 0
      %2326 = vmatmul.mubr.bf16.gmra.mxu0 %v2267
      %v2327 = vpop.f32.mrf.mxu0
      %v2328 = vadd.f32 0.0, %v2327
      %v2329 = vpop.f32.mrf.mxu0
      %v2330 = vpop.f32.mrf.mxu0
      %v2331 = vadd.f32 0.0, %v2330
      %v2332 = vpop.f32.mrf.mxu0
      %2333 = vmatprep.mubr.bf16.mxu0 0
      %2334 = vmatmul.mubr.bf16.gmra.mxu0 %v2270
      %v2335 = vpop.f32.mrf.mxu0
      %v2336 = vadd.f32 0.0, %v2335
      %v2337 = vpop.f32.mrf.mxu0
      %v2338 = vpop.f32.mrf.mxu0
      %v2339 = vadd.f32 0.0, %v2338
      %v2340 = vpop.f32.mrf.mxu0
      %2341 = vmatprep.mubr.bf16.mxu0 0
      %2342 = vmatmul.mubr.bf16.gmra.mxu0 %v2273
      %v2343 = vpop.f32.mrf.mxu0
      %v2344 = vadd.f32 0.0, %v2343
      %v2345 = vpop.f32.mrf.mxu0
      %v2346 = vpop.f32.mrf.mxu0
      %v2347 = vadd.f32 0.0, %v2346
      %v2348 = vpop.f32.mrf.mxu0
      %2349 = vmatprep.mubr.bf16.mxu0 0
      %2350 = vmatmul.mubr.bf16.gmra.mxu0 %v2276
      %v2351 = vpop.f32.mrf.mxu0
      %v2352 = vadd.f32 0.0, %v2351
      %v2353 = vpop.f32.mrf.mxu0
      %v2354 = vpop.f32.mrf.mxu0
      %v2355 = vadd.f32 0.0, %v2354
      %v2356 = vpop.f32.mrf.mxu0
      %2357 = vmatprep.mubr.bf16.mxu0 0
      %2358 = vmatmul.mubr.bf16.gmra.mxu0 %v2279
      %v2359 = vpop.f32.mrf.mxu0
      %v2360 = vadd.f32 0.0, %v2359
      %v2361 = vpop.f32.mrf.mxu0
      %v2362 = vpop.f32.mrf.mxu0
      %v2363 = vadd.f32 0.0, %v2362
      %v2364 = vpop.f32.mrf.mxu0
      %2365 = vmatprep.mubr.bf16.mxu0 0
      %2366 = vmatmul.mubr.bf16.gmra.mxu0 %v2282
      %v2367 = vpop.f32.mrf.mxu0
      %v2368 = vadd.f32 0.0, %v2367
      %v2369 = vpop.f32.mrf.mxu0
      %v2370 = vpop.f32.mrf.mxu0
      %v2371 = vadd.f32 0.0, %v2370
      %v2372 = vpop.f32.mrf.mxu0
      %2373 = vmatprep.mubr.bf16.mxu0 0
      %2374 = vmatmul.mubr.bf16.gmra.mxu0 %v2285
      %v2375 = vpop.f32.mrf.mxu0
      %v2376 = vadd.f32 0.0, %v2375
      %v2377 = vpop.f32.mrf.mxu0
      %v2378 = vpop.f32.mrf.mxu0
      %v2379 = vadd.f32 0.0, %v2378
      %v2380 = vpop.f32.mrf.mxu0
      %2381 = vmatprep.mubr.bf16.mxu0 0
      %2382 = vmatmul.mubr.bf16.gmra.mxu0 %v2288
      %v2383 = vpop.f32.mrf.mxu0
      %v2384 = vadd.f32 0.0, %v2383
      %v2385 = vpop.f32.mrf.mxu0
      %v2386 = vpop.f32.mrf.mxu0
      %v2387 = vadd.f32 0.0, %v2386
      %v2388 = vpop.f32.mrf.mxu0
      %2389 = vdwg.mxu0
      %v2390 = vadd.f32 %v2136, %v2328
      %v2391 = vadd.f32 %v2137, %v2331
      %v2392 = vadd.f32 %v2138, %v2336
      %v2393 = vadd.f32 %v2139, %v2339
      %v2394 = vadd.f32 %v2140, %v2344
      %v2395 = vadd.f32 %v2141, %v2347
      %v2396 = vadd.f32 %v2142, %v2352
      %v2397 = vadd.f32 %v2143, %v2355
      %v2398 = vadd.f32 %v2144, %v2360
      %v2399 = vadd.f32 %v2145, %v2363
      %v2400 = vadd.f32 %v2146, %v2368
      %v2401 = vadd.f32 %v2147, %v2371
      %v2402 = vadd.f32 %v2148, %v2376
      %v2403 = vadd.f32 %v2149, %v2379
      %v2404 = vadd.f32 %v2150, %v2384
      %v2405 = vadd.f32 %v2151, %v2387
      %s2406 = scalar_lea.vmem [#allocation2], 24
      %v2407 = vld [vmem:[%s2406] sm:$0xf]
      %v2408 = vld [vmem:[%s2406 + $0x4] sm:$0xf]
      %v2409 = vld [vmem:[%s2406 + $0xc] sm:$0xf]
      %v2410 = vld [vmem:[%s2406 + $0x10] sm:$0xf]
      %v2411 = vld [vmem:[%s2406 + $0x18] sm:$0xf]
      %v2412 = vld [vmem:[%s2406 + $0x1c] sm:$0xf]
      %v2413 = vld [vmem:[%s2406 + $0x24] sm:$0xf]
      %v2414 = vld [vmem:[%s2406 + $0x28] sm:$0xf]
      %v2415 = vld [vmem:[%s2406 + $0x30] sm:$0xf]
      %v2416 = vld [vmem:[%s2406 + $0x34] sm:$0xf]
      %v2417 = vld [vmem:[%s2406 + $0x3c] sm:$0xf]
      %v2418 = vld [vmem:[%s2406 + $0x40] sm:$0xf]
      %v2419 = vld [vmem:[%s2406 + $0x48] sm:$0xf]
      %v2420 = vld [vmem:[%s2406 + $0x4c] sm:$0xf]
      %v2421 = vld [vmem:[%s2406 + $0x54] sm:$0xf]
      %v2422 = vld [vmem:[%s2406 + $0x58] sm:$0xf]
      %s2423 = scalar_lea.vmem %s3, 6
      %v2424 = vld [vmem:[%s2423] sm:$0x1]
      %v2441 = vunpack.c.l.b16 %v2407
      %v2442 = vunpack.c.l.b16 %v2408
      %v2443 = vunpack.c.l.b16 %v2409
      %v2444 = vunpack.c.l.b16 %v2410
      %v2445 = vunpack.c.l.b16 %v2411
      %v2446 = vunpack.c.l.b16 %v2412
      %v2447 = vunpack.c.l.b16 %v2413
      %v2448 = vunpack.c.l.b16 %v2414
      %v2449 = vunpack.c.l.b16 %v2415
      %v2450 = vunpack.c.l.b16 %v2416
      %v2451 = vunpack.c.l.b16 %v2417
      %v2452 = vunpack.c.l.b16 %v2418
      %v2453 = vunpack.c.l.b16 %v2419
      %v2454 = vunpack.c.l.b16 %v2420
      %v2455 = vunpack.c.l.b16 %v2421
      %v2456 = vunpack.c.l.b16 %v2422
      %v2457 = vpack.c.b16 %v2442, %v2441
      %v2458 = vpack.c.b16 %v2444, %v2443
      %v2459 = vpack.c.b16 %v2446, %v2445
      %v2460 = vpack.c.b16 %v2448, %v2447
      %v2461 = vpack.c.b16 %v2450, %v2449
      %v2462 = vpack.c.b16 %v2452, %v2451
      %v2463 = vpack.c.b16 %v2454, %v2453
      %v2464 = vpack.c.b16 %v2456, %v2455
      %v2466 = vsel %vm1033, %v2457, 0
      %v2469 = vsel %vm1033, %v2458, 0
      %v2472 = vsel %vm1033, %v2459, 0
      %v2475 = vsel %vm1033, %v2460, 0
      %v2478 = vsel %vm1033, %v2461, 0
      %v2481 = vsel %vm1033, %v2462, 0
      %v2484 = vsel %vm1033, %v2463, 0
      %v2487 = vsel %vm1033, %v2464, 0
      %v2490 = vsel %vm1058, %v2424, 0
      %2492 = vmatprep.subr.bf16.mxu0 0
      %2493 = vmatpush1.bf16.msra.mxu0 0
      %2494 = vmatprep.subr.bf16.mxu0 0
      %2495 = vmatpush1.bf16.msra.mxu0 0
      %2496 = vmatprep.subr.bf16.mxu0 0
      %2497 = vmatpush1.bf16.msra.mxu0 0
      %2498 = vmatprep.subr.bf16.mxu0 0
      %2499 = vmatpush1.bf16.msra.mxu0 0
      %2500 = vmatprep.subr.bf16.mxu0 0
      %2501 = vmatpush1.bf16.msra.mxu0 0
      %2502 = vmatprep.subr.bf16.mxu0 0
      %2503 = vmatpush1.bf16.msra.mxu0 0
      %2504 = vmatprep.subr.bf16.mxu0 0
      %2505 = vmatpush1.bf16.msra.mxu0 0
      %2506 = vmatprep.subr.bf16.mxu0 0
      %2507 = vmatpush1.bf16.msra.mxu0 %v2490
      %2508 = vmatprep.subr.bf16.mxu0 0
      %2509 = vmatpush2.bf16.msra.mxu0 0
      %2510 = vmatprep.subr.bf16.mxu0 0
      %2511 = vmatpush2.bf16.msra.mxu0 0
      %2512 = vmatprep.subr.bf16.mxu0 0
      %2513 = vmatpush2.bf16.msra.mxu0 0
      %2514 = vmatprep.subr.bf16.mxu0 0
      %2515 = vmatpush2.bf16.msra.mxu0 0
      %2516 = vmatprep.subr.bf16.mxu0 0
      %2517 = vmatpush2.bf16.msra.mxu0 0
      %2518 = vmatprep.subr.bf16.mxu0 0
      %2519 = vmatpush2.bf16.msra.mxu0 0
      %2520 = vmatprep.subr.bf16.mxu0 0
      %2521 = vmatpush2.bf16.msra.mxu0 0
      %2522 = vmatprep.subr.bf16.mxu0 0
      %2523 = vmatpush2.bf16.msra.mxu0 0
      %2524 = vmatprep.mubr.bf16.mxu0 0
      %2525 = vmatmul.mubr.bf16.gmra.mxu0 %v2466
      %v2526 = vpop.f32.mrf.mxu0
      %v2527 = vadd.f32 0.0, %v2526
      %v2528 = vpop.f32.mrf.mxu0
      %v2529 = vpop.f32.mrf.mxu0
      %v2530 = vadd.f32 0.0, %v2529
      %v2531 = vpop.f32.mrf.mxu0
      %2532 = vmatprep.mubr.bf16.mxu0 0
      %2533 = vmatmul.mubr.bf16.gmra.mxu0 %v2469
      %v2534 = vpop.f32.mrf.mxu0
      %v2535 = vadd.f32 0.0, %v2534
      %v2536 = vpop.f32.mrf.mxu0
      %v2537 = vpop.f32.mrf.mxu0
      %v2538 = vadd.f32 0.0, %v2537
      %v2539 = vpop.f32.mrf.mxu0
      %2540 = vmatprep.mubr.bf16.mxu0 0
      %2541 = vmatmul.mubr.bf16.gmra.mxu0 %v2472
      %v2542 = vpop.f32.mrf.mxu0
      %v2543 = vadd.f32 0.0, %v2542
      %v2544 = vpop.f32.mrf.mxu0
      %v2545 = vpop.f32.mrf.mxu0
      %v2546 = vadd.f32 0.0, %v2545
      %v2547 = vpop.f32.mrf.mxu0
      %2548 = vmatprep.mubr.bf16.mxu0 0
      %2549 = vmatmul.mubr.bf16.gmra.mxu0 %v2475
      %v2550 = vpop.f32.mrf.mxu0
      %v2551 = vadd.f32 0.0, %v2550
      %v2552 = vpop.f32.mrf.mxu0
      %v2553 = vpop.f32.mrf.mxu0
      %v2554 = vadd.f32 0.0, %v2553
      %v2555 = vpop.f32.mrf.mxu0
      %2556 = vmatprep.mubr.bf16.mxu0 0
      %2557 = vmatmul.mubr.bf16.gmra.mxu0 %v2478
      %v2558 = vpop.f32.mrf.mxu0
      %v2559 = vadd.f32 0.0, %v2558
      %v2560 = vpop.f32.mrf.mxu0
      %v2561 = vpop.f32.mrf.mxu0
      %v2562 = vadd.f32 0.0, %v2561
      %v2563 = vpop.f32.mrf.mxu0
      %2564 = vmatprep.mubr.bf16.mxu0 0
      %2565 = vmatmul.mubr.bf16.gmra.mxu0 %v2481
      %v2566 = vpop.f32.mrf.mxu0
      %v2567 = vadd.f32 0.0, %v2566
      %v2568 = vpop.f32.mrf.mxu0
      %v2569 = vpop.f32.mrf.mxu0
      %v2570 = vadd.f32 0.0, %v2569
      %v2571 = vpop.f32.mrf.mxu0
      %2572 = vmatprep.mubr.bf16.mxu0 0
      %2573 = vmatmul.mubr.bf16.gmra.mxu0 %v2484
      %v2574 = vpop.f32.mrf.mxu0
      %v2575 = vadd.f32 0.0, %v2574
      %v2576 = vpop.f32.mrf.mxu0
      %v2577 = vpop.f32.mrf.mxu0
      %v2578 = vadd.f32 0.0, %v2577
      %v2579 = vpop.f32.mrf.mxu0
      %2580 = vmatprep.mubr.bf16.mxu0 0
      %2581 = vmatmul.mubr.bf16.gmra.mxu0 %v2487
      %v2582 = vpop.f32.mrf.mxu0
      %v2583 = vadd.f32 0.0, %v2582
      %v2584 = vpop.f32.mrf.mxu0
      %v2585 = vpop.f32.mrf.mxu0
      %v2586 = vadd.f32 0.0, %v2585
      %v2587 = vpop.f32.mrf.mxu0
      %2588 = vdwg.mxu0
      %v2589 = vadd.f32 %v2390, %v2527
      %v2590 = vadd.f32 %v2391, %v2530
      %v2591 = vadd.f32 %v2392, %v2535
      %v2592 = vadd.f32 %v2393, %v2538
      %v2593 = vadd.f32 %v2394, %v2543
      %v2594 = vadd.f32 %v2395, %v2546
      %v2595 = vadd.f32 %v2396, %v2551
      %v2596 = vadd.f32 %v2397, %v2554
      %v2597 = vadd.f32 %v2398, %v2559
      %v2598 = vadd.f32 %v2399, %v2562
      %v2599 = vadd.f32 %v2400, %v2567
      %v2600 = vadd.f32 %v2401, %v2570
      %v2601 = vadd.f32 %v2402, %v2575
      %v2602 = vadd.f32 %v2403, %v2578
      %v2603 = vadd.f32 %v2404, %v2583
      %v2604 = vadd.f32 %v2405, %v2586
      %v2605 = vld [vmem:[%s2406] sm:$0xf]
      %v2606 = vld [vmem:[%s2406 + $0x4] sm:$0xf]
      %v2607 = vld [vmem:[%s2406 + $0x8] sm:$0x1]
      %v2608 = vld [vmem:[%s2406 + $0xc] sm:$0xf]
      %v2609 = vld [vmem:[%s2406 + $0x10] sm:$0xf]
      %v2610 = vld [vmem:[%s2406 + $0x14] sm:$0x1]
      %v2611 = vld [vmem:[%s2406 + $0x18] sm:$0xf]
      %v2612 = vld [vmem:[%s2406 + $0x1c] sm:$0xf]
      %v2613 = vld [vmem:[%s2406 + $0x20] sm:$0x1]
      %v2614 = vld [vmem:[%s2406 + $0x24] sm:$0xf]
      %v2615 = vld [vmem:[%s2406 + $0x28] sm:$0xf]
      %v2616 = vld [vmem:[%s2406 + $0x2c] sm:$0x1]
      %v2617 = vld [vmem:[%s2406 + $0x30] sm:$0xf]
      %v2618 = vld [vmem:[%s2406 + $0x34] sm:$0xf]
      %v2619 = vld [vmem:[%s2406 + $0x38] sm:$0x1]
      %v2620 = vld [vmem:[%s2406 + $0x3c] sm:$0xf]
      %v2621 = vld [vmem:[%s2406 + $0x40] sm:$0xf]
      %v2622 = vld [vmem:[%s2406 + $0x44] sm:$0x1]
      %v2623 = vld [vmem:[%s2406 + $0x48] sm:$0xf]
      %v2624 = vld [vmem:[%s2406 + $0x4c] sm:$0xf]
      %v2625 = vld [vmem:[%s2406 + $0x50] sm:$0x1]
      %v2626 = vld [vmem:[%s2406 + $0x54] sm:$0xf]
      %v2627 = vld [vmem:[%s2406 + $0x58] sm:$0xf]
      %v2628 = vld [vmem:[%s2406 + $0x5c] sm:$0x1]
      %v2630 = vshrl.u32 %v2605, 16
      %v2632 = vrot.slane %v2630, 4
      %v2633 = vshll.u32 %v2605, 16
      %v2635 = vrot.slane %v2633, 5
      %v2636 = vor.u32 %v2632, %v2635
      %v2637 = vrot.slane %v2636, 4
      %v2639 = vshll.u32 %v2606, 16
      %v2641 = vrot.slane %v2639, 5
      %v2642 = vsel %vm814, %v2637, %v2641
      %v2643 = vshrl.u32 %v2606, 16
      %v2645 = vrot.slane %v2643, 4
      %v2646 = vor.u32 %v2645, %v2641
      %v2647 = vrot.slane %v2646, 4
      %v2649 = vshll.u32 %v2607, 16
      %v2651 = vrot.slane %v2649, 5
      %v2652 = vsel %vm814, %v2647, %v2651
      %v2654 = vshrl.u32 %v2608, 16
      %v2656 = vrot.slane %v2654, 4
      %v2657 = vshll.u32 %v2608, 16
      %v2659 = vrot.slane %v2657, 5
      %v2660 = vor.u32 %v2656, %v2659
      %v2661 = vrot.slane %v2660, 4
      %v2663 = vshll.u32 %v2609, 16
      %v2665 = vrot.slane %v2663, 5
      %v2666 = vsel %vm814, %v2661, %v2665
      %v2667 = vshrl.u32 %v2609, 16
      %v2669 = vrot.slane %v2667, 4
      %v2670 = vor.u32 %v2669, %v2665
      %v2671 = vrot.slane %v2670, 4
      %v2673 = vshll.u32 %v2610, 16
      %v2675 = vrot.slane %v2673, 5
      %v2676 = vsel %vm814, %v2671, %v2675
      %v2678 = vshrl.u32 %v2611, 16
      %v2680 = vrot.slane %v2678, 4
      %v2681 = vshll.u32 %v2611, 16
      %v2683 = vrot.slane %v2681, 5
      %v2684 = vor.u32 %v2680, %v2683
      %v2685 = vrot.slane %v2684, 4
      %v2687 = vshll.u32 %v2612, 16
      %v2689 = vrot.slane %v2687, 5
      %v2690 = vsel %vm814, %v2685, %v2689
      %v2691 = vshrl.u32 %v2612, 16
      %v2693 = vrot.slane %v2691, 4
      %v2694 = vor.u32 %v2693, %v2689
      %v2695 = vrot.slane %v2694, 4
      %v2697 = vshll.u32 %v2613, 16
      %v2699 = vrot.slane %v2697, 5
      %v2700 = vsel %vm814, %v2695, %v2699
      %v2702 = vshrl.u32 %v2614, 16
      %v2704 = vrot.slane %v2702, 4
      %v2705 = vshll.u32 %v2614, 16
      %v2707 = vrot.slane %v2705, 5
      %v2708 = vor.u32 %v2704, %v2707
      %v2709 = vrot.slane %v2708, 4
      %v2711 = vshll.u32 %v2615, 16
      %v2713 = vrot.slane %v2711, 5
      %v2714 = vsel %vm814, %v2709, %v2713
      %v2715 = vshrl.u32 %v2615, 16
      %v2717 = vrot.slane %v2715, 4
      %v2718 = vor.u32 %v2717, %v2713
      %v2719 = vrot.slane %v2718, 4
      %v2721 = vshll.u32 %v2616, 16
      %v2723 = vrot.slane %v2721, 5
      %v2724 = vsel %vm814, %v2719, %v2723
      %v2726 = vshrl.u32 %v2617, 16
      %v2728 = vrot.slane %v2726, 4
      %v2729 = vshll.u32 %v2617, 16
      %v2731 = vrot.slane %v2729, 5
      %v2732 = vor.u32 %v2728, %v2731
      %v2733 = vrot.slane %v2732, 4
      %v2735 = vshll.u32 %v2618, 16
      %v2737 = vrot.slane %v2735, 5
      %v2738 = vsel %vm814, %v2733, %v2737
      %v2739 = vshrl.u32 %v2618, 16
      %v2741 = vrot.slane %v2739, 4
      %v2742 = vor.u32 %v2741, %v2737
      %v2743 = vrot.slane %v2742, 4
      %v2745 = vshll.u32 %v2619, 16
      %v2747 = vrot.slane %v2745, 5
      %v2748 = vsel %vm814, %v2743, %v2747
      %v2750 = vshrl.u32 %v2620, 16
      %v2752 = vrot.slane %v2750, 4
      %v2753 = vshll.u32 %v2620, 16
      %v2755 = vrot.slane %v2753, 5
      %v2756 = vor.u32 %v2752, %v2755
      %v2757 = vrot.slane %v2756, 4
      %v2759 = vshll.u32 %v2621, 16
      %v2761 = vrot.slane %v2759, 5
      %v2762 = vsel %vm814, %v2757, %v2761
      %v2763 = vshrl.u32 %v2621, 16
      %v2765 = vrot.slane %v2763, 4
      %v2766 = vor.u32 %v2765, %v2761
      %v2767 = vrot.slane %v2766, 4
      %v2769 = vshll.u32 %v2622, 16
      %v2771 = vrot.slane %v2769, 5
      %v2772 = vsel %vm814, %v2767, %v2771
      %v2774 = vshrl.u32 %v2623, 16
      %v2776 = vrot.slane %v2774, 4
      %v2777 = vshll.u32 %v2623, 16
      %v2779 = vrot.slane %v2777, 5
      %v2780 = vor.u32 %v2776, %v2779
      %v2781 = vrot.slane %v2780, 4
      %v2783 = vshll.u32 %v2624, 16
      %v2785 = vrot.slane %v2783, 5
      %v2786 = vsel %vm814, %v2781, %v2785
      %v2787 = vshrl.u32 %v2624, 16
      %v2789 = vrot.slane %v2787, 4
      %v2790 = vor.u32 %v2789, %v2785
      %v2791 = vrot.slane %v2790, 4
      %v2793 = vshll.u32 %v2625, 16
      %v2795 = vrot.slane %v2793, 5
      %v2796 = vsel %vm814, %v2791, %v2795
      %v2798 = vshrl.u32 %v2626, 16
      %v2800 = vrot.slane %v2798, 4
      %v2801 = vshll.u32 %v2626, 16
      %v2803 = vrot.slane %v2801, 5
      %v2804 = vor.u32 %v2800, %v2803
      %v2805 = vrot.slane %v2804, 4
      %v2807 = vshll.u32 %v2627, 16
      %v2809 = vrot.slane %v2807, 5
      %v2810 = vsel %vm814, %v2805, %v2809
      %v2811 = vshrl.u32 %v2627, 16
      %v2813 = vrot.slane %v2811, 4
      %v2814 = vor.u32 %v2813, %v2809
      %v2815 = vrot.slane %v2814, 4
      %v2817 = vshll.u32 %v2628, 16
      %v2819 = vrot.slane %v2817, 5
      %v2820 = vsel %vm814, %v2815, %v2819
      %s2821 = scalar_lea.vmem %s3, 7
      %v2822 = vld [vmem:[%s2821] sm:$0x1]
      %v2823 = vunpack.c.l.b16 %v2642
      %v2824 = vunpack.c.l.b16 %v2652
      %v2825 = vunpack.c.l.b16 %v2666
      %v2826 = vunpack.c.l.b16 %v2676
      %v2827 = vunpack.c.l.b16 %v2690
      %v2828 = vunpack.c.l.b16 %v2700
      %v2829 = vunpack.c.l.b16 %v2714
      %v2830 = vunpack.c.l.b16 %v2724
      %v2831 = vunpack.c.l.b16 %v2738
      %v2832 = vunpack.c.l.b16 %v2748
      %v2833 = vunpack.c.l.b16 %v2762
      %v2834 = vunpack.c.l.b16 %v2772
      %v2835 = vunpack.c.l.b16 %v2786
      %v2836 = vunpack.c.l.b16 %v2796
      %v2837 = vunpack.c.l.b16 %v2810
      %v2838 = vunpack.c.l.b16 %v2820
      %v2839 = vpack.c.b16 %v2824, %v2823
      %v2840 = vpack.c.b16 %v2826, %v2825
      %v2841 = vpack.c.b16 %v2828, %v2827
      %v2842 = vpack.c.b16 %v2830, %v2829
      %v2843 = vpack.c.b16 %v2832, %v2831
      %v2844 = vpack.c.b16 %v2834, %v2833
      %v2845 = vpack.c.b16 %v2836, %v2835
      %v2846 = vpack.c.b16 %v2838, %v2837
      %v2848 = vsel %vm1033, %v2839, 0
      %v2851 = vsel %vm1033, %v2840, 0
      %v2854 = vsel %vm1033, %v2841, 0
      %v2857 = vsel %vm1033, %v2842, 0
      %v2860 = vsel %vm1033, %v2843, 0
      %v2863 = vsel %vm1033, %v2844, 0
      %v2866 = vsel %vm1033, %v2845, 0
      %v2869 = vsel %vm1033, %v2846, 0
      %v2872 = vsel %vm1058, %v2822, 0
      %2874 = vmatprep.subr.bf16.mxu0 0
      %2875 = vmatpush1.bf16.msra.mxu0 0
      %2876 = vmatprep.subr.bf16.mxu0 0
      %2877 = vmatpush1.bf16.msra.mxu0 0
      %2878 = vmatprep.subr.bf16.mxu0 0
      %2879 = vmatpush1.bf16.msra.mxu0 0
      %2880 = vmatprep.subr.bf16.mxu0 0
      %2881 = vmatpush1.bf16.msra.mxu0 0
      %2882 = vmatprep.subr.bf16.mxu0 0
      %2883 = vmatpush1.bf16.msra.mxu0 0
      %2884 = vmatprep.subr.bf16.mxu0 0
      %2885 = vmatpush1.bf16.msra.mxu0 0
      %2886 = vmatprep.subr.bf16.mxu0 0
      %2887 = vmatpush1.bf16.msra.mxu0 0
      %2888 = vmatprep.subr.bf16.mxu0 0
      %2889 = vmatpush1.bf16.msra.mxu0 %v2872
      %2890 = vmatprep.subr.bf16.mxu0 0
      %2891 = vmatpush2.bf16.msra.mxu0 0
      %2892 = vmatprep.subr.bf16.mxu0 0
      %2893 = vmatpush2.bf16.msra.mxu0 0
      %2894 = vmatprep.subr.bf16.mxu0 0
      %2895 = vmatpush2.bf16.msra.mxu0 0
      %2896 = vmatprep.subr.bf16.mxu0 0
      %2897 = vmatpush2.bf16.msra.mxu0 0
      %2898 = vmatprep.subr.bf16.mxu0 0
      %2899 = vmatpush2.bf16.msra.mxu0 0
      %2900 = vmatprep.subr.bf16.mxu0 0
      %2901 = vmatpush2.bf16.msra.mxu0 0
      %2902 = vmatprep.subr.bf16.mxu0 0
      %2903 = vmatpush2.bf16.msra.mxu0 0
      %2904 = vmatprep.subr.bf16.mxu0 0
      %2905 = vmatpush2.bf16.msra.mxu0 0
      %2906 = vmatprep.mubr.bf16.mxu0 0
      %2907 = vmatmul.mubr.bf16.gmra.mxu0 %v2848
      %v2908 = vpop.f32.mrf.mxu0
      %v2909 = vadd.f32 0.0, %v2908
      %v2910 = vpop.f32.mrf.mxu0
      %v2911 = vpop.f32.mrf.mxu0
      %v2912 = vadd.f32 0.0, %v2911
      %v2913 = vpop.f32.mrf.mxu0
      %2914 = vmatprep.mubr.bf16.mxu0 0
      %2915 = vmatmul.mubr.bf16.gmra.mxu0 %v2851
      %v2916 = vpop.f32.mrf.mxu0
      %v2917 = vadd.f32 0.0, %v2916
      %v2918 = vpop.f32.mrf.mxu0
      %v2919 = vpop.f32.mrf.mxu0
      %v2920 = vadd.f32 0.0, %v2919
      %v2921 = vpop.f32.mrf.mxu0
      %2922 = vmatprep.mubr.bf16.mxu0 0
      %2923 = vmatmul.mubr.bf16.gmra.mxu0 %v2854
      %v2924 = vpop.f32.mrf.mxu0
      %v2925 = vadd.f32 0.0, %v2924
      %v2926 = vpop.f32.mrf.mxu0
      %v2927 = vpop.f32.mrf.mxu0
      %v2928 = vadd.f32 0.0, %v2927
      %v2929 = vpop.f32.mrf.mxu0
      %2930 = vmatprep.mubr.bf16.mxu0 0
      %2931 = vmatmul.mubr.bf16.gmra.mxu0 %v2857
      %v2932 = vpop.f32.mrf.mxu0
      %v2933 = vadd.f32 0.0, %v2932
      %v2934 = vpop.f32.mrf.mxu0
      %v2935 = vpop.f32.mrf.mxu0
      %v2936 = vadd.f32 0.0, %v2935
      %v2937 = vpop.f32.mrf.mxu0
      %2938 = vmatprep.mubr.bf16.mxu0 0
      %2939 = vmatmul.mubr.bf16.gmra.mxu0 %v2860
      %v2940 = vpop.f32.mrf.mxu0
      %v2941 = vadd.f32 0.0, %v2940
      %v2942 = vpop.f32.mrf.mxu0
      %v2943 = vpop.f32.mrf.mxu0
      %v2944 = vadd.f32 0.0, %v2943
      %v2945 = vpop.f32.mrf.mxu0
      %2946 = vmatprep.mubr.bf16.mxu0 0
      %2947 = vmatmul.mubr.bf16.gmra.mxu0 %v2863
      %v2948 = vpop.f32.mrf.mxu0
      %v2949 = vadd.f32 0.0, %v2948
      %v2950 = vpop.f32.mrf.mxu0
      %v2951 = vpop.f32.mrf.mxu0
      %v2952 = vadd.f32 0.0, %v2951
      %v2953 = vpop.f32.mrf.mxu0
      %2954 = vmatprep.mubr.bf16.mxu0 0
      %2955 = vmatmul.mubr.bf16.gmra.mxu0 %v2866
      %v2956 = vpop.f32.mrf.mxu0
      %v2957 = vadd.f32 0.0, %v2956
      %v2958 = vpop.f32.mrf.mxu0
      %v2959 = vpop.f32.mrf.mxu0
      %v2960 = vadd.f32 0.0, %v2959
      %v2961 = vpop.f32.mrf.mxu0
      %2962 = vmatprep.mubr.bf16.mxu0 0
      %2963 = vmatmul.mubr.bf16.gmra.mxu0 %v2869
      %v2964 = vpop.f32.mrf.mxu0
      %v2965 = vadd.f32 0.0, %v2964
      %v2966 = vpop.f32.mrf.mxu0
      %v2967 = vpop.f32.mrf.mxu0
      %v2968 = vadd.f32 0.0, %v2967
      %v2969 = vpop.f32.mrf.mxu0
      %2970 = vdwg.mxu0
      %v2971 = vadd.f32 %v2589, %v2909
      %v2972 = vadd.f32 %v2590, %v2912
      %v2973 = vadd.f32 %v2591, %v2917
      %v2974 = vadd.f32 %v2592, %v2920
      %v2975 = vadd.f32 %v2593, %v2925
      %v2976 = vadd.f32 %v2594, %v2928
      %v2977 = vadd.f32 %v2595, %v2933
      %v2978 = vadd.f32 %v2596, %v2936
      %v2979 = vadd.f32 %v2597, %v2941
      %v2980 = vadd.f32 %v2598, %v2944
      %v2981 = vadd.f32 %v2599, %v2949
      %v2982 = vadd.f32 %v2600, %v2952
      %v2983 = vadd.f32 %v2601, %v2957
      %v2984 = vadd.f32 %v2602, %v2960
      %v2985 = vadd.f32 %v2603, %v2965
      %v2986 = vadd.f32 %v2604, %v2968
      %v2987 = vld [vmem:[%s2406] sm:$0xe]
      %v2988 = vld [vmem:[%s2406 + $0xc] sm:$0xe]
      %v2989 = vld [vmem:[%s2406 + $0x18] sm:$0xe]
      %v2990 = vld [vmem:[%s2406 + $0x24] sm:$0xe]
      %v2991 = vld [vmem:[%s2406 + $0x30] sm:$0xe]
      %v2992 = vld [vmem:[%s2406 + $0x3c] sm:$0xe]
      %v2993 = vld [vmem:[%s2406 + $0x48] sm:$0xe]
      %v2994 = vld [vmem:[%s2406 + $0x54] sm:$0xe]
      %v3019 = vrot.slane %v2987, 5
      %v3020 = vrot.slane %v3019, 4
      %v3021 = vrot.slane %v2606, 5
      %v3022 = vsel %vm1349, %v3020, %v3021
      %v3023 = vrot.slane %v3021, 4
      %v3024 = vrot.slane %v2607, 5
      %v3025 = vsel %vm1349, %v3023, %v3024
      %v3026 = vrot.slane %v2988, 5
      %v3027 = vrot.slane %v3026, 4
      %v3028 = vrot.slane %v2609, 5
      %v3029 = vsel %vm1349, %v3027, %v3028
      %v3030 = vrot.slane %v3028, 4
      %v3031 = vrot.slane %v2610, 5
      %v3032 = vsel %vm1349, %v3030, %v3031
      %v3033 = vrot.slane %v2989, 5
      %v3034 = vrot.slane %v3033, 4
      %v3035 = vrot.slane %v2612, 5
      %v3036 = vsel %vm1349, %v3034, %v3035
      %v3037 = vrot.slane %v3035, 4
      %v3038 = vrot.slane %v2613, 5
      %v3039 = vsel %vm1349, %v3037, %v3038
      %v3040 = vrot.slane %v2990, 5
      %v3041 = vrot.slane %v3040, 4
      %v3042 = vrot.slane %v2615, 5
      %v3043 = vsel %vm1349, %v3041, %v3042
      %v3044 = vrot.slane %v3042, 4
      %v3045 = vrot.slane %v2616, 5
      %v3046 = vsel %vm1349, %v3044, %v3045
      %v3047 = vrot.slane %v2991, 5
      %v3048 = vrot.slane %v3047, 4
      %v3049 = vrot.slane %v2618, 5
      %v3050 = vsel %vm1349, %v3048, %v3049
      %v3051 = vrot.slane %v3049, 4
      %v3052 = vrot.slane %v2619, 5
      %v3053 = vsel %vm1349, %v3051, %v3052
      %v3054 = vrot.slane %v2992, 5
      %v3055 = vrot.slane %v3054, 4
      %v3056 = vrot.slane %v2621, 5
      %v3057 = vsel %vm1349, %v3055, %v3056
      %v3058 = vrot.slane %v3056, 4
      %v3059 = vrot.slane %v2622, 5
      %v3060 = vsel %vm1349, %v3058, %v3059
      %v3061 = vrot.slane %v2993, 5
      %v3062 = vrot.slane %v3061, 4
      %v3063 = vrot.slane %v2624, 5
      %v3064 = vsel %vm1349, %v3062, %v3063
      %v3065 = vrot.slane %v3063, 4
      %v3066 = vrot.slane %v2625, 5
      %v3067 = vsel %vm1349, %v3065, %v3066
      %v3068 = vrot.slane %v2994, 5
      %v3069 = vrot.slane %v3068, 4
      %v3070 = vrot.slane %v2627, 5
      %v3071 = vsel %vm1349, %v3069, %v3070
      %v3072 = vrot.slane %v3070, 4
      %v3073 = vrot.slane %v2628, 5
      %v3074 = vsel %vm1349, %v3072, %v3073
      %s3075 = scalar_lea.vmem %s3, 8
      %v3076 = vld [vmem:[%s3075] sm:$0x1]
      %v3077 = vunpack.c.l.b16 %v3022
      %v3078 = vunpack.c.l.b16 %v3025
      %v3079 = vunpack.c.l.b16 %v3029
      %v3080 = vunpack.c.l.b16 %v3032
      %v3081 = vunpack.c.l.b16 %v3036
      %v3082 = vunpack.c.l.b16 %v3039
      %v3083 = vunpack.c.l.b16 %v3043
      %v3084 = vunpack.c.l.b16 %v3046
      %v3085 = vunpack.c.l.b16 %v3050
      %v3086 = vunpack.c.l.b16 %v3053
      %v3087 = vunpack.c.l.b16 %v3057
      %v3088 = vunpack.c.l.b16 %v3060
      %v3089 = vunpack.c.l.b16 %v3064
      %v3090 = vunpack.c.l.b16 %v3067
      %v3091 = vunpack.c.l.b16 %v3071
      %v3092 = vunpack.c.l.b16 %v3074
      %v3093 = vpack.c.b16 %v3078, %v3077
      %v3094 = vpack.c.b16 %v3080, %v3079
      %v3095 = vpack.c.b16 %v3082, %v3081
      %v3096 = vpack.c.b16 %v3084, %v3083
      %v3097 = vpack.c.b16 %v3086, %v3085
      %v3098 = vpack.c.b16 %v3088, %v3087
      %v3099 = vpack.c.b16 %v3090, %v3089
      %v3100 = vpack.c.b16 %v3092, %v3091
      %v3102 = vsel %vm1033, %v3093, 0
      %v3105 = vsel %vm1033, %v3094, 0
      %v3108 = vsel %vm1033, %v3095, 0
      %v3111 = vsel %vm1033, %v3096, 0
      %v3114 = vsel %vm1033, %v3097, 0
      %v3117 = vsel %vm1033, %v3098, 0
      %v3120 = vsel %vm1033, %v3099, 0
      %v3123 = vsel %vm1033, %v3100, 0
      %v3126 = vsel %vm1058, %v3076, 0
      %3128 = vmatprep.subr.bf16.mxu0 0
      %3129 = vmatpush1.bf16.msra.mxu0 0
      %3130 = vmatprep.subr.bf16.mxu0 0
      %3131 = vmatpush1.bf16.msra.mxu0 0
      %3132 = vmatprep.subr.bf16.mxu0 0
      %3133 = vmatpush1.bf16.msra.mxu0 0
      %3134 = vmatprep.subr.bf16.mxu0 0
      %3135 = vmatpush1.bf16.msra.mxu0 0
      %3136 = vmatprep.subr.bf16.mxu0 0
      %3137 = vmatpush1.bf16.msra.mxu0 0
      %3138 = vmatprep.subr.bf16.mxu0 0
      %3139 = vmatpush1.bf16.msra.mxu0 0
      %3140 = vmatprep.subr.bf16.mxu0 0
      %3141 = vmatpush1.bf16.msra.mxu0 0
      %3142 = vmatprep.subr.bf16.mxu0 0
      %3143 = vmatpush1.bf16.msra.mxu0 %v3126
      %3144 = vmatprep.subr.bf16.mxu0 0
      %3145 = vmatpush2.bf16.msra.mxu0 0
      %3146 = vmatprep.subr.bf16.mxu0 0
      %3147 = vmatpush2.bf16.msra.mxu0 0
      %3148 = vmatprep.subr.bf16.mxu0 0
      %3149 = vmatpush2.bf16.msra.mxu0 0
      %3150 = vmatprep.subr.bf16.mxu0 0
      %3151 = vmatpush2.bf16.msra.mxu0 0
      %3152 = vmatprep.subr.bf16.mxu0 0
      %3153 = vmatpush2.bf16.msra.mxu0 0
      %3154 = vmatprep.subr.bf16.mxu0 0
      %3155 = vmatpush2.bf16.msra.mxu0 0
      %3156 = vmatprep.subr.bf16.mxu0 0
      %3157 = vmatpush2.bf16.msra.mxu0 0
      %3158 = vmatprep.subr.bf16.mxu0 0
      %3159 = vmatpush2.bf16.msra.mxu0 0
      %3160 = vmatprep.mubr.bf16.mxu0 0
      %3161 = vmatmul.mubr.bf16.gmra.mxu0 %v3102
      %v3162 = vpop.f32.mrf.mxu0
      %v3163 = vadd.f32 0.0, %v3162
      %v3164 = vpop.f32.mrf.mxu0
      %v3165 = vpop.f32.mrf.mxu0
      %v3166 = vadd.f32 0.0, %v3165
      %v3167 = vpop.f32.mrf.mxu0
      %3168 = vmatprep.mubr.bf16.mxu0 0
      %3169 = vmatmul.mubr.bf16.gmra.mxu0 %v3105
      %v3170 = vpop.f32.mrf.mxu0
      %v3171 = vadd.f32 0.0, %v3170
      %v3172 = vpop.f32.mrf.mxu0
      %v3173 = vpop.f32.mrf.mxu0
      %v3174 = vadd.f32 0.0, %v3173
      %v3175 = vpop.f32.mrf.mxu0
      %3176 = vmatprep.mubr.bf16.mxu0 0
      %3177 = vmatmul.mubr.bf16.gmra.mxu0 %v3108
      %v3178 = vpop.f32.mrf.mxu0
      %v3179 = vadd.f32 0.0, %v3178
      %v3180 = vpop.f32.mrf.mxu0
      %v3181 = vpop.f32.mrf.mxu0
      %v3182 = vadd.f32 0.0, %v3181
      %v3183 = vpop.f32.mrf.mxu0
      %3184 = vmatprep.mubr.bf16.mxu0 0
      %3185 = vmatmul.mubr.bf16.gmra.mxu0 %v3111
      %v3186 = vpop.f32.mrf.mxu0
      %v3187 = vadd.f32 0.0, %v3186
      %v3188 = vpop.f32.mrf.mxu0
      %v3189 = vpop.f32.mrf.mxu0
      %v3190 = vadd.f32 0.0, %v3189
      %v3191 = vpop.f32.mrf.mxu0
      %3192 = vmatprep.mubr.bf16.mxu0 0
      %3193 = vmatmul.mubr.bf16.gmra.mxu0 %v3114
      %v3194 = vpop.f32.mrf.mxu0
      %v3195 = vadd.f32 0.0, %v3194
      %v3196 = vpop.f32.mrf.mxu0
      %v3197 = vpop.f32.mrf.mxu0
      %v3198 = vadd.f32 0.0, %v3197
      %v3199 = vpop.f32.mrf.mxu0
      %3200 = vmatprep.mubr.bf16.mxu0 0
      %3201 = vmatmul.mubr.bf16.gmra.mxu0 %v3117
      %v3202 = vpop.f32.mrf.mxu0
      %v3203 = vadd.f32 0.0, %v3202
      %v3204 = vpop.f32.mrf.mxu0
      %v3205 = vpop.f32.mrf.mxu0
      %v3206 = vadd.f32 0.0, %v3205
      %v3207 = vpop.f32.mrf.mxu0
      %3208 = vmatprep.mubr.bf16.mxu0 0
      %3209 = vmatmul.mubr.bf16.gmra.mxu0 %v3120
      %v3210 = vpop.f32.mrf.mxu0
      %v3211 = vadd.f32 0.0, %v3210
      %v3212 = vpop.f32.mrf.mxu0
      %v3213 = vpop.f32.mrf.mxu0
      %v3214 = vadd.f32 0.0, %v3213
      %v3215 = vpop.f32.mrf.mxu0
      %3216 = vmatprep.mubr.bf16.mxu0 0
      %3217 = vmatmul.mubr.bf16.gmra.mxu0 %v3123
      %v3218 = vpop.f32.mrf.mxu0
      %v3219 = vadd.f32 0.0, %v3218
      %v3220 = vpop.f32.mrf.mxu0
      %v3221 = vpop.f32.mrf.mxu0
      %v3222 = vadd.f32 0.0, %v3221
      %v3223 = vpop.f32.mrf.mxu0
      %3224 = vdwg.mxu0
      %v3225 = vadd.f32 %v2971, %v3163
      %v3226 = vadd.f32 %v2972, %v3166
      %v3227 = vadd.f32 %v2973, %v3171
      %v3228 = vadd.f32 %v2974, %v3174
      %v3229 = vadd.f32 %v2975, %v3179
      %v3230 = vadd.f32 %v2976, %v3182
      %v3231 = vadd.f32 %v2977, %v3187
      %v3232 = vadd.f32 %v2978, %v3190
      %v3233 = vadd.f32 %v2979, %v3195
      %v3234 = vadd.f32 %v2980, %v3198
      %v3235 = vadd.f32 %v2981, %v3203
      %v3236 = vadd.f32 %v2982, %v3206
      %v3237 = vadd.f32 %v2983, %v3211
      %v3238 = vadd.f32 %v2984, %v3214
      %v3239 = vadd.f32 %v2985, %v3219
      %v3240 = vadd.f32 %v2986, %v3222
      %v3241 = vld [vmem:[%s4] sm:$0x1]
      %v3243 = vlaneseq
      %v3244 = vshrl.u32 %v3243, 7
      %v3245 = vsub.s32 0, %v3244
      %v3246 = vrot.slane %v3241, %v3245
      %v3248 = vadd.f32 %v3225, %v3246
      %v3249 = vadd.f32 %v3226, %v3246
      %v3250 = vadd.f32 %v3227, %v3246
      %v3251 = vadd.f32 %v3228, %v3246
      %v3252 = vadd.f32 %v3229, %v3246
      %v3253 = vadd.f32 %v3230, %v3246
      %v3254 = vadd.f32 %v3231, %v3246
      %v3255 = vadd.f32 %v3232, %v3246
      %v3256 = vadd.f32 %v3233, %v3246
      %v3257 = vadd.f32 %v3234, %v3246
      %v3258 = vadd.f32 %v3235, %v3246
      %v3259 = vadd.f32 %v3236, %v3246
      %v3260 = vadd.f32 %v3237, %v3246
      %v3261 = vadd.f32 %v3238, %v3246
      %v3262 = vadd.f32 %v3239, %v3246
      %v3263 = vadd.f32 %v3240, %v3246
      %v3264 = vsub.f32 0.0, %v3248
      %v3265 = vsub.f32 0.0, %v3249
      %v3266 = vsub.f32 0.0, %v3250
      %v3267 = vsub.f32 0.0, %v3251
      %v3268 = vsub.f32 0.0, %v3252
      %v3269 = vsub.f32 0.0, %v3253
      %v3270 = vsub.f32 0.0, %v3254
      %v3271 = vsub.f32 0.0, %v3255
      %v3272 = vsub.f32 0.0, %v3256
      %v3273 = vsub.f32 0.0, %v3257
      %v3274 = vsub.f32 0.0, %v3258
      %v3275 = vsub.f32 0.0, %v3259
      %v3276 = vsub.f32 0.0, %v3260
      %v3277 = vsub.f32 0.0, %v3261
      %v3278 = vsub.f32 0.0, %v3262
      %v3279 = vsub.f32 0.0, %v3263
      %v3280 = vmul.f32 %v3264, 1.442695
      %v3281 = vpow.pop %v3280
      %v3282 = vmul.f32 %v3265, 1.442695
      %v3283 = vpow.pop %v3282
      %v3284 = vmul.f32 %v3266, 1.442695
      %v3285 = vpow.pop %v3284
      %v3286 = vmul.f32 %v3267, 1.442695
      %v3287 = vpow.pop %v3286
      %v3288 = vmul.f32 %v3268, 1.442695
      %v3289 = vpow.pop %v3288
      %v3290 = vmul.f32 %v3269, 1.442695
      %v3291 = vpow.pop %v3290
      %v3292 = vmul.f32 %v3270, 1.442695
      %v3293 = vpow.pop %v3292
      %v3294 = vmul.f32 %v3271, 1.442695
      %v3295 = vpow.pop %v3294
      %v3296 = vmul.f32 %v3272, 1.442695
      %v3297 = vpow.pop %v3296
      %v3298 = vmul.f32 %v3273, 1.442695
      %v3299 = vpow.pop %v3298
      %v3300 = vmul.f32 %v3274, 1.442695
      %v3301 = vpow.pop %v3300
      %v3302 = vmul.f32 %v3275, 1.442695
      %v3303 = vpow.pop %v3302
      %v3304 = vmul.f32 %v3276, 1.442695
      %v3305 = vpow.pop %v3304
      %v3306 = vmul.f32 %v3277, 1.442695
      %v3307 = vpow.pop %v3306
      %v3308 = vmul.f32 %v3278, 1.442695
      %v3309 = vpow.pop %v3308
      %v3310 = vmul.f32 %v3279, 1.442695
      %v3311 = vpow.pop %v3310
      %v3312 = vadd.f32 %v3281, 1.0
      %v3313 = vadd.f32 %v3283, 1.0
      %v3314 = vadd.f32 %v3285, 1.0
      %v3315 = vadd.f32 %v3287, 1.0
      %v3316 = vadd.f32 %v3289, 1.0
      %v3317 = vadd.f32 %v3291, 1.0
      %v3318 = vadd.f32 %v3293, 1.0
      %v3319 = vadd.f32 %v3295, 1.0
      %v3320 = vadd.f32 %v3297, 1.0
      %v3321 = vadd.f32 %v3299, 1.0
      %v3322 = vadd.f32 %v3301, 1.0
      %v3323 = vadd.f32 %v3303, 1.0
      %v3324 = vadd.f32 %v3305, 1.0
      %v3325 = vadd.f32 %v3307, 1.0
      %v3326 = vadd.f32 %v3309, 1.0
      %v3327 = vadd.f32 %v3311, 1.0
      %v3328 = vrcp.pop %v3312
      %v3329 = vrcp.pop %v3313
      %v3330 = vrcp.pop %v3314
      %v3331 = vrcp.pop %v3315
      %v3332 = vrcp.pop %v3316
      %v3333 = vrcp.pop %v3317
      %v3334 = vrcp.pop %v3318
      %v3335 = vrcp.pop %v3319
      %v3336 = vrcp.pop %v3320
      %v3337 = vrcp.pop %v3321
      %v3338 = vrcp.pop %v3322
      %v3339 = vrcp.pop %v3323
      %v3340 = vrcp.pop %v3324
      %v3341 = vrcp.pop %v3325
      %v3342 = vrcp.pop %v3326
      %v3343 = vrcp.pop %v3327
      %v3344 = vmul.f32 %v3248, %v3328
      %v3345 = vmul.f32 %v3249, %v3329
      %v3346 = vmul.f32 %v3250, %v3330
      %v3347 = vmul.f32 %v3251, %v3331
      %v3348 = vmul.f32 %v3252, %v3332
      %v3349 = vmul.f32 %v3253, %v3333
      %v3350 = vmul.f32 %v3254, %v3334
      %v3351 = vmul.f32 %v3255, %v3335
      %v3352 = vmul.f32 %v3256, %v3336
      %v3353 = vmul.f32 %v3257, %v3337
      %v3354 = vmul.f32 %v3258, %v3338
      %v3355 = vmul.f32 %v3259, %v3339
      %v3356 = vmul.f32 %v3260, %v3340
      %v3357 = vmul.f32 %v3261, %v3341
      %v3358 = vmul.f32 %v3262, %v3342
      %v3359 = vmul.f32 %v3263, %v3343
      %v3360 = vpack.c.bf16 %v3345, %v3344
      %v3361 = vpack.c.bf16 %v3347, %v3346
      %v3362 = vpack.c.bf16 %v3349, %v3348
      %v3363 = vpack.c.bf16 %v3351, %v3350
      %v3364 = vpack.c.bf16 %v3353, %v3352
      %v3365 = vpack.c.bf16 %v3355, %v3354
      %v3366 = vpack.c.bf16 %v3357, %v3356
      %v3367 = vpack.c.bf16 %v3359, %v3358
      %v3376 = vunpack.c.l.b16 %v3360
      %v3377 = vunpack.c.h.b16 %v3360
      %v3378 = vunpack.c.l.b16 %v3361
      %v3379 = vunpack.c.h.b16 %v3361
      %v3380 = vunpack.c.l.b16 %v3362
      %v3381 = vunpack.c.h.b16 %v3362
      %v3382 = vunpack.c.l.b16 %v3363
      %v3383 = vunpack.c.h.b16 %v3363
      %v3384 = vunpack.c.l.b16 %v3364
      %v3385 = vunpack.c.h.b16 %v3364
      %v3386 = vunpack.c.l.b16 %v3365
      %v3387 = vunpack.c.h.b16 %v3365
      %v3388 = vunpack.c.l.b16 %v3366
      %v3389 = vunpack.c.h.b16 %v3366
      %v3390 = vunpack.c.l.b16 %v3367
      %v3391 = vunpack.c.h.b16 %v3367
      %v3392 = vpack.c.b16 %v3376, %v3376
      %v3393 = vpack.c.b16 %v3377, %v3377
      %v3394 = vpack.c.b16 %v3378, %v3378
      %v3395 = vpack.c.b16 %v3379, %v3379
      %v3396 = vpack.c.b16 %v3380, %v3380
      %v3397 = vpack.c.b16 %v3381, %v3381
      %v3398 = vpack.c.b16 %v3382, %v3382
      %v3399 = vpack.c.b16 %v3383, %v3383
      %v3400 = vpack.c.b16 %v3384, %v3384
      %v3401 = vpack.c.b16 %v3385, %v3385
      %v3402 = vpack.c.b16 %v3386, %v3386
      %v3403 = vpack.c.b16 %v3387, %v3387
      %v3404 = vpack.c.b16 %v3388, %v3388
      %v3405 = vpack.c.b16 %v3389, %v3389
      %v3406 = vpack.c.b16 %v3390, %v3390
      %v3407 = vpack.c.b16 %v3391, %v3391
      %3424 = vst.msk [vmem:[%s391] sm:$0xf] %vm643, %v3392
      %3425 = vst.msk [vmem:[%s391 + $0x4] sm:$0xf] %vm643, %v3393
      %3426 = vst.msk [vmem:[%s391 + $0x8] sm:$0xf] %vm643, %v3394
      %3427 = vst.msk [vmem:[%s391 + $0xc] sm:$0xf] %vm643, %v3395
      %3428 = vst.msk [vmem:[%s391 + $0x10] sm:$0xf] %vm643, %v3396
      %3429 = vst.msk [vmem:[%s391 + $0x14] sm:$0xf] %vm643, %v3397
      %3430 = vst.msk [vmem:[%s391 + $0x18] sm:$0xf] %vm643, %v3398
      %3431 = vst.msk [vmem:[%s391 + $0x1c] sm:$0xf] %vm643, %v3399
      %3432 = vst.msk [vmem:[%s391 + $0x20] sm:$0xf] %vm643, %v3400
      %3433 = vst.msk [vmem:[%s391 + $0x24] sm:$0xf] %vm643, %v3401
      %3434 = vst.msk [vmem:[%s391 + $0x28] sm:$0xf] %vm643, %v3402
      %3435 = vst.msk [vmem:[%s391 + $0x2c] sm:$0xf] %vm643, %v3403
      %3436 = vst.msk [vmem:[%s391 + $0x30] sm:$0xf] %vm643, %v3404
      %3437 = vst.msk [vmem:[%s391 + $0x34] sm:$0xf] %vm643, %v3405
      %3438 = vst.msk [vmem:[%s391 + $0x38] sm:$0xf] %vm643, %v3406
      %3439 = vst.msk [vmem:[%s391 + $0x3c] sm:$0xf] %vm643, %v3407
      %s3440 = smul.u32 8, %s21
      %p3441 = scmp.lt.s32.totalorder %s20, 1
      %s3442 = scalar_select %p3441, %s20, 1
      %p3443 = scmp.lt.s32.totalorder %s3440, 15
      %s3444 = scalar_select %p3443, %s3440, 15
      %s3445 = smul.addr %s3444, 2
      %s3446 = smul.addr %s3442, 32
      %s3447 = sadd.s32 %s3445, %s3446
      %s3448 = smul.addr %s3447, 4
      %s3449 = scalar_lea.vmem %s5, %s3448
      // Predicated region
      $region57: #{elan_block_fpn.8} parent=39 // pred_check
        %p3450 = pneg %p190
      $region58: #{elan_block_fpn.8} parent=39 // pred_check_branch
        %3452 = sbr.rel (%p3450) target = $region60
      $region59: #{elan_block_fpn.8} parent=39 // pred_region
        %s3453 = smul.u32 8, %s21
      $region60: #{elan_block_fpn.8} parent=39 // pred_fallthru
        _
    $region40: #{elan_block_fpn.8} parent=5 // pred_fallthru
      _
    %p3454 = scmp.le.s32.totalorder 2, %s11
    // Predicated region
    $region61: #{elan_block_fpn.8} parent=5 // pred_check
      %p3455 = pneg %p3454
    $region62: #{elan_block_fpn.8} parent=5 // pred_check_branch
      %3457 = sbr.rel (%p3455) target = $region64
    $region63: #{elan_block_fpn.8} parent=5 // pred_region
      %s3458 = ssub.s32 %s11, 2
      // Predicated region
      $region65: #{elan_block_fpn.8} parent=63 // pred_check
        %p3459 = pneg %p196
      $region66: #{elan_block_fpn.8} parent=63 // pred_check_branch
        %3461 = sbr.rel (%p3459) target = $region68
      $region67: #{elan_block_fpn.8} parent=63 // pred_region
        %s3462 = smul.u32 8, %s23
        %p3463 = scmp.lt.s32.totalorder %s22, 1
        %s3464 = scalar_select %p3463, %s22, 1
        %p3465 = scmp.lt.s32.totalorder %s3462, 15
        %s3466 = scalar_select %p3465, %s3462, 15
        %s3467 = smul.addr %s3466, 2
        %s3468 = smul.addr %s3464, 32
        %s3469 = sadd.s32 %s3467, %s3468
        %s3470 = smul.addr %s3469, 4
        %s3471 = scalar_lea.vmem %s5, %s3470
      $region68: #{elan_block_fpn.8} parent=63 // pred_fallthru
        _
    $region64: #{elan_block_fpn.8} parent=5 // pred_fallthru
      _
  $region6: #{elan_block_fpn.8} parent=0 // loop_footer
    %s15 = sadd.s32 1, %s11
  $region7: #{elan_block_fpn.8} parent=0 // loop_footer_branch
    %10 = sbr.rel target = $region3
  $region8: #{elan_block_fpn.8} parent=0 // loop_exit
    _

</llo_original>
